<compile_context>
chip_gen: v6e
topology: v6e:2x2x1
jax: 0.10.0
libtpu: 0.0.40
codegen_flags: <defaults>
</compile_context>

<pallas_src>
import jax
import jax.numpy as jnp
from jax import lax
from jax.experimental import pallas as pl
from jax.experimental.pallas import tpu as pltpu

# ----------------------------- static geometry ------------------------------ #
L_IN = 1600                # input length -> fc expects 64 * 58 features
L_C1 = L_IN - 2            # 1598  conv1 output length (valid, k=3)
L_P1 = L_C1 // 3           # 532   pool1 output length (floor mode)
L_C2 = L_P1 - 2            # 530   conv2 output length
L_P2 = L_C2 // 3           # 176   pool2 output length
L_C3 = L_P2                # 176   conv3 output length (padding=1)
L_P3 = L_C3 // 3           # 58    pool3 output length
C1, C2, C3 = 32, 64, 64
N_OUT = 14
F_FC = C3 * L_P3           # 3712


# --------------------------- fused conv/pool stack -------------------------- #
def _cnn_stack_kernel(x_ref, w1_ref, b1_ref, w2_ref, b2_ref, w3_ref, b3_ref,
                      o_ref, c1_ref, a1_ref, c2_ref, a2_ref, c3_ref):
    # x_ref : (1, L_IN, 1) raw 1-channel signal, length on sublanes
    # w1_ref: (3, C1)  b1_ref: (1, C1)
    # w2_ref: (3, C1, C2)  b2_ref: (1, C2)
    # w3_ref: (3, C2, C3)  b3_ref: (1, C3)
    # o_ref : (1, L_P3, C3)   pool3 output, (length, channel) layout
    # scratch: c1 (L_C1,C1), a1 (L_P1,C1), c2 (L_C2,C2), a2 (L_P2+2,C2), c3 (L_C3,C3)

    # ---- conv1 (Cin=1): three shifted broadcast-FMA taps on the VPU ----
    c1_ref[...] = (
        x_ref[0, 0:L_C1, :] * w1_ref[0:1, :]
        + x_ref[0, 1:1 + L_C1, :] * w1_ref[1:2, :]
        + x_ref[0, 2:2 + L_C1, :] * w1_ref[2:3, :]
        + b1_ref[...]
    )

    # ---- pool1: max of three stride-3 sublane views of the conv1 scratch ----
    a1_ref[...] = jnp.maximum(
        jnp.maximum(c1_ref[pl.ds(0, L_P1, stride=3), :],
                    c1_ref[pl.ds(1, L_P1, stride=3), :]),
        c1_ref[pl.ds(2, L_P1, stride=3), :])

    # ---- conv2: 3-tap accumulate of (530,32)x(32,64) MXU matmuls ----
    c2 = jnp.dot(a1_ref[pl.ds(0, L_C2), :], w2_ref[0],
                 preferred_element_type=jnp.float32)
    c2 = c2 + jnp.dot(a1_ref[pl.ds(1, L_C2), :], w2_ref[1],
                      preferred_element_type=jnp.float32)
    c2 = c2 + jnp.dot(a1_ref[pl.ds(2, L_C2), :], w2_ref[2],
                      preferred_element_type=jnp.float32)
    c2_ref[...] = c2 + b2_ref[...]

    # ---- pool2 + fused conv3 padding=1: rows 1..176 of a zero-bordered scratch ----
    zero_row = jnp.zeros((1, C2), jnp.float32)
    a2_ref[0:1, :] = zero_row
    a2_ref[L_P2 + 1:L_P2 + 2, :] = zero_row
    a2_ref[pl.ds(1, L_P2), :] = jnp.maximum(
        jnp.maximum(c2_ref[pl.ds(0, L_P2, stride=3), :],
                    c2_ref[pl.ds(1, L_P2, stride=3), :]),
        c2_ref[pl.ds(2, L_P2, stride=3), :])

    # ---- conv3 (padding already materialized in a2_ref) ----
    c3 = jnp.dot(a2_ref[pl.ds(0, L_C3), :], w3_ref[0],
                 preferred_element_type=jnp.float32)
    c3 = c3 + jnp.dot(a2_ref[pl.ds(1, L_C3), :], w3_ref[1],
                      preferred_element_type=jnp.float32)
    c3 = c3 + jnp.dot(a2_ref[pl.ds(2, L_C3), :], w3_ref[2],
                      preferred_element_type=jnp.float32)
    c3_ref[...] = c3 + b3_ref[...]

    # ---- pool3 -> output (lane-dense 64-wide store) ----
    o_ref[0] = jnp.maximum(
        jnp.maximum(c3_ref[pl.ds(0, L_P3, stride=3), :],
                    c3_ref[pl.ds(1, L_P3, stride=3), :]),
        c3_ref[pl.ds(2, L_P3, stride=3), :])


def cnn_stack(x3, w1, b1, w2, b2, w3, b3):
    """x3: (B, L_IN, 1) f32 -> (B, L_P3, C3) pool3 activations."""
    B = x3.shape[0]
    return pl.pallas_call(
        _cnn_stack_kernel,
        out_shape=jax.ShapeDtypeStruct((B, L_P3, C3), jnp.float32),
        grid=(B,),
        in_specs=[
            pl.BlockSpec((1, L_IN, 1), lambda b: (b, 0, 0)),
            pl.BlockSpec((3, C1), lambda b: (0, 0)),
            pl.BlockSpec((1, C1), lambda b: (0, 0)),
            pl.BlockSpec((3, C1, C2), lambda b: (0, 0, 0)),
            pl.BlockSpec((1, C2), lambda b: (0, 0)),
            pl.BlockSpec((3, C2, C3), lambda b: (0, 0, 0)),
            pl.BlockSpec((1, C3), lambda b: (0, 0)),
        ],
        out_specs=pl.BlockSpec((1, L_P3, C3), lambda b: (b, 0, 0)),
        scratch_shapes=[
            pltpu.VMEM((L_C1, C1), jnp.float32),       # conv1 out
            pltpu.VMEM((L_P1, C1), jnp.float32),       # pool1 out
            pltpu.VMEM((L_C2, C2), jnp.float32),       # conv2 out
            pltpu.VMEM((L_P2 + 2, C2), jnp.float32),   # pool2 out + pad rows
            pltpu.VMEM((L_C3, C3), jnp.float32),       # conv3 out
        ],
        compiler_params=pltpu.CompilerParams(dimension_semantics=("parallel",)),
    )(x3, w1, b1, w2, b2, w3, b3)


# --------------------------------- Linear ----------------------------------- #
def _fc_kernel(x_ref, w_ref, b_ref, o_ref):
    o_ref[...] = (
        jnp.dot(x_ref[...], w_ref[...], preferred_element_type=jnp.float32)
        + b_ref[...]
    )


def linear(x, w, b):
    """x: (B, F), w: (F, O), b: (1, O) -> (B, O)."""
    B, F = x.shape
    O = w.shape[1]
    return pl.pallas_call(
        _fc_kernel,
        out_shape=jax.ShapeDtypeStruct((B, O), jnp.float32),
        grid=(1,),
        in_specs=[
            pl.BlockSpec((B, F), lambda i: (0, 0)),
            pl.BlockSpec((F, O), lambda i: (0, 0)),
            pl.BlockSpec((1, O), lambda i: (0, 0)),
        ],
        out_specs=pl.BlockSpec((B, O), lambda i: (0, 0)),
    )(x, w, b)


# ------------------------ parameter init & preparation ----------------------- #
def init_params(key):
    """Parameters in PyTorch layouts: conv (Co, Ci, K), fc (O, F)."""
    ks = jax.random.split(key, 8)

    def u(k, shape, fan_in):
        s = 1.0 / jnp.sqrt(jnp.float32(fan_in))
        return jax.random.uniform(k, shape, jnp.float32, -s, s)

    return {
        "w1": u(ks[0], (32, 1, 3), 1 * 3),   "b1": u(ks[1], (32,), 1 * 3),
        "w2": u(ks[2], (64, 32, 3), 32 * 3), "b2": u(ks[3], (64,), 32 * 3),
        "w3": u(ks[4], (64, 64, 3), 64 * 3), "b3": u(ks[5], (64,), 64 * 3),
        "wf": u(ks[6], (N_OUT, F_FC), F_FC), "bf": u(ks[7], (N_OUT,), F_FC),
    }


def prepare_params(p):
    """One-time layout transforms so the forward pass has zero weight reshuffles."""
    return {
        "w1": jnp.transpose(p["w1"], (2, 1, 0)).reshape(3, C1),   # (K, Co)
        "b1": p["b1"].reshape(1, C1),
        "w2": jnp.transpose(p["w2"], (2, 1, 0)),                  # (K, Ci, Co)
        "b2": p["b2"].reshape(1, C2),
        "w3": jnp.transpose(p["w3"], (2, 1, 0)),                  # (K, Ci, Co)
        "b3": p["b3"].reshape(1, C3),
        # Absorb PyTorch's channel-major flatten (f = c*58 + l) into the weight:
        # rows reordered to the kernel's (l, c) row-major flatten (g = l*64 + c).
        "wf": jnp.transpose(p["wf"].reshape(N_OUT, C3, L_P3),
                            (2, 1, 0)).reshape(F_FC, N_OUT),
        "bf": p["bf"].reshape(1, N_OUT),
    }


# ------------------------------- full forward -------------------------------- #
@jax.jit
def cnn_forward(x, kp):
    # x: (B, L_IN) f32 — PyTorch's x.unsqueeze(1) single channel becomes a free
    # (B, L_IN, 1) reshape; conv1's im2col happens inside the kernel.
    B = x.shape[0]
    acts = cnn_stack(x[:, :, None], kp["w1"], kp["b1"], kp["w2"], kp["b2"],
                     kp["w3"], kp["b3"])                      # (B, 58, 64)
    flat = acts.reshape(B, F_FC)   # free row-major reshape; wf rows pre-permuted
    return linear(flat, kp["wf"], kp["bf"])                   # (B, 14)


# ----------------------------- pure-JAX reference ----------------------------- #
def ref_forward(x, p):
    xn = x[:, None, :]
    dn = ("NCH", "OIH", "NCH")

    def conv(h, w, b, pad):
        y = lax.conv_general_dilated(h, w, (1,), [(pad, pad)],
                                     dimension_numbers=dn)
        return y + b[None, :, None]

    def pool(h):
        return lax.reduce_window(h, -jnp.inf, lax.max,
                                 (1, 1, 3), (1, 1, 3), "VALID")

    h = pool(conv(xn, p["w1"], p["b1"], 0))
    h = pool(conv(h, p["w2"], p["b2"], 0))
    h = pool(conv(h, p["w3"], p["b3"], 1))
    flat = h.reshape(h.shape[0], -1)
    return flat @ p["wf"].T + p["bf"]


if __name__ == "__main__":
    key = jax.random.PRNGKey(0)
    kx, kp = jax.random.split(key)
    B = 2
    x = jax.random.normal(kx, (B, L_IN), jnp.float32)
    params = init_params(kp)
    kparams = prepare_params(params)   # weight layout transforms done once

    out = cnn_forward(x, kparams)
    out = jax.block_until_ready(out)
    assert out.shape == (B, N_OUT), out.shape

    ref = ref_forward(x, params)
    max_err = float(jnp.max(jnp.abs(out - ref)))
    assert jnp.allclose(out, ref, atol=1e-2, rtol=1e-2), max_err
    print("KERNEL_OK")
</pallas_src>

<mosaic_0001>
module attributes {stable_mosaic.version = 11 : i64} {
  func.func @_cnn_stack_kernel(%arg0: i32, %arg1: memref<1x1600x1xf32, #tpu.memory_space<vmem>>, %arg2: memref<3x32xf32, #tpu.memory_space<vmem>>, %arg3: memref<1x32xf32, #tpu.memory_space<vmem>>, %arg4: memref<3x32x64xf32, #tpu.memory_space<vmem>>, %arg5: memref<1x64xf32, #tpu.memory_space<vmem>>, %arg6: memref<3x64x64xf32, #tpu.memory_space<vmem>>, %arg7: memref<1x64xf32, #tpu.memory_space<vmem>>, %arg8: memref<1x58x64xf32, #tpu.memory_space<vmem>>, %arg9: memref<1598x32xf32, #tpu.memory_space<vmem>>, %arg10: memref<532x32xf32, #tpu.memory_space<vmem>>, %arg11: memref<530x64xf32, #tpu.memory_space<vmem>>, %arg12: memref<178x64xf32, #tpu.memory_space<vmem>>, %arg13: memref<176x64xf32, #tpu.memory_space<vmem>>) attributes {dimension_semantics = [#tpu.dimension_semantics<parallel>], iteration_bounds = array<i64: 2>, scalar_prefetch = 0 : i64, scratch_operands = 5 : i64, tpu.core_type = #tpu.core_type<tc>, window_params = [{transform_indices = @transform_0, window_bounds = array<i64: 1, 1600, 1>}, {pipeline_mode = #tpu.pipeline_mode<synchronous>, transform_indices = @transform_1, window_bounds = array<i64: 3, 32>}, {pipeline_mode = #tpu.pipeline_mode<synchronous>, transform_indices = @transform_2, window_bounds = array<i64: 1, 32>}, {pipeline_mode = #tpu.pipeline_mode<synchronous>, transform_indices = @transform_3, window_bounds = array<i64: 3, 32, 64>}, {pipeline_mode = #tpu.pipeline_mode<synchronous>, transform_indices = @transform_4, window_bounds = array<i64: 1, 64>}, {pipeline_mode = #tpu.pipeline_mode<synchronous>, transform_indices = @transform_5, window_bounds = array<i64: 3, 64, 64>}, {pipeline_mode = #tpu.pipeline_mode<synchronous>, transform_indices = @transform_6, window_bounds = array<i64: 1, 64>}, {transform_indices = @transform_7, window_bounds = array<i64: 1, 58, 64>}]} {
    %c0 = arith.constant 0 : index
    %c0_0 = arith.constant 0 : index
    %c0_1 = arith.constant 0 : index
    %0 = vector.load %arg1[%c0, %c0_0, %c0_1] : memref<1x1600x1xf32, #tpu.memory_space<vmem>>, vector<1x1598x1xf32>
    %1 = vector.shape_cast %0 : vector<1x1598x1xf32> to vector<1598x1xf32>
    %c0_2 = arith.constant 0 : index
    %c0_3 = arith.constant 0 : index
    %2 = vector.load %arg2[%c0_2, %c0_3] : memref<3x32xf32, #tpu.memory_space<vmem>>, vector<1x32xf32>
    %3 = vector.broadcast %1 : vector<1598x1xf32> to vector<1598x32xf32>
    %4 = vector.broadcast %2 : vector<1x32xf32> to vector<1598x32xf32>
    %5 = arith.mulf %3, %4 : vector<1598x32xf32>
    %c0_4 = arith.constant 0 : index
    %c1 = arith.constant 1 : index
    %c0_5 = arith.constant 0 : index
    %6 = vector.load %arg1[%c0_4, %c1, %c0_5] : memref<1x1600x1xf32, #tpu.memory_space<vmem>>, vector<1x1598x1xf32>
    %7 = vector.shape_cast %6 : vector<1x1598x1xf32> to vector<1598x1xf32>
    %c1_6 = arith.constant 1 : index
    %c0_7 = arith.constant 0 : index
    %8 = vector.load %arg2[%c1_6, %c0_7] : memref<3x32xf32, #tpu.memory_space<vmem>>, vector<1x32xf32>
    %9 = vector.broadcast %7 : vector<1598x1xf32> to vector<1598x32xf32>
    %10 = vector.broadcast %8 : vector<1x32xf32> to vector<1598x32xf32>
    %11 = arith.mulf %9, %10 : vector<1598x32xf32>
    %12 = arith.addf %5, %11 : vector<1598x32xf32>
    %c0_8 = arith.constant 0 : index
    %c2 = arith.constant 2 : index
    %c0_9 = arith.constant 0 : index
    %13 = vector.load %arg1[%c0_8, %c2, %c0_9] : memref<1x1600x1xf32, #tpu.memory_space<vmem>>, vector<1x1598x1xf32>
    %14 = vector.shape_cast %13 : vector<1x1598x1xf32> to vector<1598x1xf32>
    %c2_10 = arith.constant 2 : index
    %c0_11 = arith.constant 0 : index
    %15 = vector.load %arg2[%c2_10, %c0_11] : memref<3x32xf32, #tpu.memory_space<vmem>>, vector<1x32xf32>
    %16 = vector.broadcast %14 : vector<1598x1xf32> to vector<1598x32xf32>
    %17 = vector.broadcast %15 : vector<1x32xf32> to vector<1598x32xf32>
    %18 = arith.mulf %16, %17 : vector<1598x32xf32>
    %19 = arith.addf %12, %18 : vector<1598x32xf32>
    %c0_12 = arith.constant 0 : index
    %c0_13 = arith.constant 0 : index
    %20 = vector.load %arg3[%c0_12, %c0_13] : memref<1x32xf32, #tpu.memory_space<vmem>>, vector<1x32xf32>
    %21 = vector.broadcast %20 : vector<1x32xf32> to vector<1598x32xf32>
    %22 = arith.addf %19, %21 : vector<1598x32xf32>
    %c0_14 = arith.constant 0 : index
    %c0_15 = arith.constant 0 : index
    %23 = vector.load %arg9[%c0_14, %c0_15] : memref<1598x32xf32, #tpu.memory_space<vmem>>, vector<1598x32xf32>
    tpu.vector_store %arg9[%c0_14, %c0_15], %22 {strides = array<i32>} : memref<1598x32xf32, #tpu.memory_space<vmem>>, vector<1598x32xf32>,
    %c0_16 = arith.constant 0 : index
    %c0_17 = arith.constant 0 : index
    %24 = tpu.strided_load %arg9[%c0_16, %c0_17] {strides = array<i32: 3, 1>} : memref<1598x32xf32, #tpu.memory_space<vmem>>, vector<532x32xf32>
    %c1_18 = arith.constant 1 : index
    %c0_19 = arith.constant 0 : index
    %25 = tpu.strided_load %arg9[%c1_18, %c0_19] {strides = array<i32: 3, 1>} : memref<1598x32xf32, #tpu.memory_space<vmem>>, vector<532x32xf32>
    %26 = arith.maximumf %24, %25 : vector<532x32xf32>
    %c2_20 = arith.constant 2 : index
    %c0_21 = arith.constant 0 : index
    %27 = tpu.strided_load %arg9[%c2_20, %c0_21] {strides = array<i32: 3, 1>} : memref<1598x32xf32, #tpu.memory_space<vmem>>, vector<532x32xf32>
    %28 = arith.maximumf %26, %27 : vector<532x32xf32>
    %c0_22 = arith.constant 0 : index
    %c0_23 = arith.constant 0 : index
    %29 = vector.load %arg10[%c0_22, %c0_23] : memref<532x32xf32, #tpu.memory_space<vmem>>, vector<532x32xf32>
    tpu.vector_store %arg10[%c0_22, %c0_23], %28 {strides = array<i32>} : memref<532x32xf32, #tpu.memory_space<vmem>>, vector<532x32xf32>,
    %c0_24 = arith.constant 0 : index
    %c0_25 = arith.constant 0 : index
    %30 = vector.load %arg10[%c0_24, %c0_25] : memref<532x32xf32, #tpu.memory_space<vmem>>, vector<530x32xf32>
    %c0_26 = arith.constant 0 : index
    %c0_27 = arith.constant 0 : index
    %c0_28 = arith.constant 0 : index
    %31 = vector.load %arg4[%c0_26, %c0_27, %c0_28] : memref<3x32x64xf32, #tpu.memory_space<vmem>>, vector<1x32x64xf32>
    %32 = vector.shape_cast %31 : vector<1x32x64xf32> to vector<32x64xf32>
    %cst = arith.constant dense<0.000000e+00> : vector<530x64xf32>
    %33 = tpu.matmul %30, %32, %cst {dimension_numbers = #tpu.dot_dimension_numbers<[1], [0], [0], [1], [0, 0, 1, 1], [], []>} : vector<530x32xf32>, vector<32x64xf32>, vector<530x64xf32> -> vector<530x64xf32>
    %c1_29 = arith.constant 1 : index
    %c0_30 = arith.constant 0 : index
    %34 = vector.load %arg10[%c1_29, %c0_30] : memref<532x32xf32, #tpu.memory_space<vmem>>, vector<530x32xf32>
    %c1_31 = arith.constant 1 : index
    %c0_32 = arith.constant 0 : index
    %c0_33 = arith.constant 0 : index
    %35 = vector.load %arg4[%c1_31, %c0_32, %c0_33] : memref<3x32x64xf32, #tpu.memory_space<vmem>>, vector<1x32x64xf32>
    %36 = vector.shape_cast %35 : vector<1x32x64xf32> to vector<32x64xf32>
    %cst_34 = arith.constant dense<0.000000e+00> : vector<530x64xf32>
    %37 = tpu.matmul %34, %36, %cst_34 {dimension_numbers = #tpu.dot_dimension_numbers<[1], [0], [0], [1], [0, 0, 1, 1], [], []>} : vector<530x32xf32>, vector<32x64xf32>, vector<530x64xf32> -> vector<530x64xf32>
    %38 = arith.addf %33, %37 : vector<530x64xf32>
    %c2_35 = arith.constant 2 : index
    %c0_36 = arith.constant 0 : index
    %39 = vector.load %arg10[%c2_35, %c0_36] : memref<532x32xf32, #tpu.memory_space<vmem>>, vector<530x32xf32>
    %c2_37 = arith.constant 2 : index
    %c0_38 = arith.constant 0 : index
    %c0_39 = arith.constant 0 : index
    %40 = vector.load %arg4[%c2_37, %c0_38, %c0_39] : memref<3x32x64xf32, #tpu.memory_space<vmem>>, vector<1x32x64xf32>
    %41 = vector.shape_cast %40 : vector<1x32x64xf32> to vector<32x64xf32>
    %cst_40 = arith.constant dense<0.000000e+00> : vector<530x64xf32>
    %42 = tpu.matmul %39, %41, %cst_40 {dimension_numbers = #tpu.dot_dimension_numbers<[1], [0], [0], [1], [0, 0, 1, 1], [], []>} : vector<530x32xf32>, vector<32x64xf32>, vector<530x64xf32> -> vector<530x64xf32>
    %43 = arith.addf %38, %42 : vector<530x64xf32>
    %c0_41 = arith.constant 0 : index
    %c0_42 = arith.constant 0 : index
    %44 = vector.load %arg5[%c0_41, %c0_42] : memref<1x64xf32, #tpu.memory_space<vmem>>, vector<1x64xf32>
    %45 = vector.broadcast %44 : vector<1x64xf32> to vector<530x64xf32>
    %46 = arith.addf %43, %45 : vector<530x64xf32>
    %c0_43 = arith.constant 0 : index
    %c0_44 = arith.constant 0 : index
    %47 = vector.load %arg11[%c0_43, %c0_44] : memref<530x64xf32, #tpu.memory_space<vmem>>, vector<530x64xf32>
    tpu.vector_store %arg11[%c0_43, %c0_44], %46 {strides = array<i32>} : memref<530x64xf32, #tpu.memory_space<vmem>>, vector<530x64xf32>,
    %cst_45 = arith.constant 0.000000e+00 : f32
    %48 = vector.broadcast %cst_45 : f32 to vector<1x64xf32>
    %c0_46 = arith.constant 0 : index
    %c0_47 = arith.constant 0 : index
    %49 = vector.load %arg12[%c0_46, %c0_47] : memref<178x64xf32, #tpu.memory_space<vmem>>, vector<1x64xf32>
    tpu.vector_store %arg12[%c0_46, %c0_47], %48 {strides = array<i32>} : memref<178x64xf32, #tpu.memory_space<vmem>>, vector<1x64xf32>,
    %c177 = arith.constant 177 : index
    %c0_48 = arith.constant 0 : index
    %50 = vector.load %arg12[%c177, %c0_48] : memref<178x64xf32, #tpu.memory_space<vmem>>, vector<1x64xf32>
    tpu.vector_store %arg12[%c177, %c0_48], %48 {strides = array<i32>} : memref<178x64xf32, #tpu.memory_space<vmem>>, vector<1x64xf32>,
    %c0_49 = arith.constant 0 : index
    %c0_50 = arith.constant 0 : index
    %51 = tpu.strided_load %arg11[%c0_49, %c0_50] {strides = array<i32: 3, 1>} : memref<530x64xf32, #tpu.memory_space<vmem>>, vector<176x64xf32>
    %c1_51 = arith.constant 1 : index
    %c0_52 = arith.constant 0 : index
    %52 = tpu.strided_load %arg11[%c1_51, %c0_52] {strides = array<i32: 3, 1>} : memref<530x64xf32, #tpu.memory_space<vmem>>, vector<176x64xf32>
    %53 = arith.maximumf %51, %52 : vector<176x64xf32>
    %c2_53 = arith.constant 2 : index
    %c0_54 = arith.constant 0 : index
    %54 = tpu.strided_load %arg11[%c2_53, %c0_54] {strides = array<i32: 3, 1>} : memref<530x64xf32, #tpu.memory_space<vmem>>, vector<176x64xf32>
    %55 = arith.maximumf %53, %54 : vector<176x64xf32>
    %c1_55 = arith.constant 1 : index
    %c0_56 = arith.constant 0 : index
    %56 = vector.load %arg12[%c1_55, %c0_56] : memref<178x64xf32, #tpu.memory_space<vmem>>, vector<176x64xf32>
    tpu.vector_store %arg12[%c1_55, %c0_56], %55 {strides = array<i32>} : memref<178x64xf32, #tpu.memory_space<vmem>>, vector<176x64xf32>,
    %c0_57 = arith.constant 0 : index
    %c0_58 = arith.constant 0 : index
    %57 = vector.load %arg12[%c0_57, %c0_58] : memref<178x64xf32, #tpu.memory_space<vmem>>, vector<176x64xf32>
    %c0_59 = arith.constant 0 : index
    %c0_60 = arith.constant 0 : index
    %c0_61 = arith.constant 0 : index
    %58 = vector.load %arg6[%c0_59, %c0_60, %c0_61] : memref<3x64x64xf32, #tpu.memory_space<vmem>>, vector<1x64x64xf32>
    %59 = vector.shape_cast %58 : vector<1x64x64xf32> to vector<64x64xf32>
    %cst_62 = arith.constant dense<0.000000e+00> : vector<176x64xf32>
    %60 = tpu.matmul %57, %59, %cst_62 {dimension_numbers = #tpu.dot_dimension_numbers<[1], [0], [0], [1], [0, 0, 1, 1], [], []>} : vector<176x64xf32>, vector<64x64xf32>, vector<176x64xf32> -> vector<176x64xf32>
    %c1_63 = arith.constant 1 : index
    %c0_64 = arith.constant 0 : index
    %61 = vector.load %arg12[%c1_63, %c0_64] : memref<178x64xf32, #tpu.memory_space<vmem>>, vector<176x64xf32>
    %c1_65 = arith.constant 1 : index
    %c0_66 = arith.constant 0 : index
    %c0_67 = arith.constant 0 : index
    %62 = vector.load %arg6[%c1_65, %c0_66, %c0_67] : memref<3x64x64xf32, #tpu.memory_space<vmem>>, vector<1x64x64xf32>
    %63 = vector.shape_cast %62 : vector<1x64x64xf32> to vector<64x64xf32>
    %cst_68 = arith.constant dense<0.000000e+00> : vector<176x64xf32>
    %64 = tpu.matmul %61, %63, %cst_68 {dimension_numbers = #tpu.dot_dimension_numbers<[1], [0], [0], [1], [0, 0, 1, 1], [], []>} : vector<176x64xf32>, vector<64x64xf32>, vector<176x64xf32> -> vector<176x64xf32>
    %65 = arith.addf %60, %64 : vector<176x64xf32>
    %c2_69 = arith.constant 2 : index
    %c0_70 = arith.constant 0 : index
    %66 = vector.load %arg12[%c2_69, %c0_70] : memref<178x64xf32, #tpu.memory_space<vmem>>, vector<176x64xf32>
    %c2_71 = arith.constant 2 : index
    %c0_72 = arith.constant 0 : index
    %c0_73 = arith.constant 0 : index
    %67 = vector.load %arg6[%c2_71, %c0_72, %c0_73] : memref<3x64x64xf32, #tpu.memory_space<vmem>>, vector<1x64x64xf32>
    %68 = vector.shape_cast %67 : vector<1x64x64xf32> to vector<64x64xf32>
    %cst_74 = arith.constant dense<0.000000e+00> : vector<176x64xf32>
    %69 = tpu.matmul %66, %68, %cst_74 {dimension_numbers = #tpu.dot_dimension_numbers<[1], [0], [0], [1], [0, 0, 1, 1], [], []>} : vector<176x64xf32>, vector<64x64xf32>, vector<176x64xf32> -> vector<176x64xf32>
    %70 = arith.addf %65, %69 : vector<176x64xf32>
    %c0_75 = arith.constant 0 : index
    %c0_76 = arith.constant 0 : index
    %71 = vector.load %arg7[%c0_75, %c0_76] : memref<1x64xf32, #tpu.memory_space<vmem>>, vector<1x64xf32>
    %72 = vector.broadcast %71 : vector<1x64xf32> to vector<176x64xf32>
    %73 = arith.addf %70, %72 : vector<176x64xf32>
    %c0_77 = arith.constant 0 : index
    %c0_78 = arith.constant 0 : index
    %74 = vector.load %arg13[%c0_77, %c0_78] : memref<176x64xf32, #tpu.memory_space<vmem>>, vector<176x64xf32>
    tpu.vector_store %arg13[%c0_77, %c0_78], %73 {strides = array<i32>} : memref<176x64xf32, #tpu.memory_space<vmem>>, vector<176x64xf32>,
    %c0_79 = arith.constant 0 : index
    %c0_80 = arith.constant 0 : index
    %75 = tpu.strided_load %arg13[%c0_79, %c0_80] {strides = array<i32: 3, 1>} : memref<176x64xf32, #tpu.memory_space<vmem>>, vector<58x64xf32>
    %c1_81 = arith.constant 1 : index
    %c0_82 = arith.constant 0 : index
    %76 = tpu.strided_load %arg13[%c1_81, %c0_82] {strides = array<i32: 3, 1>} : memref<176x64xf32, #tpu.memory_space<vmem>>, vector<58x64xf32>
    %77 = arith.maximumf %75, %76 : vector<58x64xf32>
    %c2_83 = arith.constant 2 : index
    %c0_84 = arith.constant 0 : index
    %78 = tpu.strided_load %arg13[%c2_83, %c0_84] {strides = array<i32: 3, 1>} : memref<176x64xf32, #tpu.memory_space<vmem>>, vector<58x64xf32>
    %79 = arith.maximumf %77, %78 : vector<58x64xf32>
    %c0_85 = arith.constant 0 : index
    %c0_86 = arith.constant 0 : index
    %c0_87 = arith.constant 0 : index
    %80 = vector.load %arg8[%c0_85, %c0_86, %c0_87] : memref<1x58x64xf32, #tpu.memory_space<vmem>>, vector<1x58x64xf32>
    %81 = vector.shape_cast %80 : vector<1x58x64xf32> to vector<58x64xf32>
    %82 = vector.shape_cast %79 : vector<58x64xf32> to vector<1x58x64xf32>
    tpu.vector_store %arg8[%c0_85, %c0_86, %c0_87], %82 {strides = array<i32>} : memref<1x58x64xf32, #tpu.memory_space<vmem>>, vector<1x58x64xf32>,
    return
  }
  func.func @transform_0(%arg0: i32) -> (i32, i32, i32) {
    %c0_i32 = arith.constant 0 : i32
    %c0_i32_0 = arith.constant 0 : i32
    %c0_i32_1 = arith.constant 0 : i32
    return %arg0, %c0_i32, %c0_i32_0 : i32, i32, i32
  }
  func.func @transform_1(%arg0: i32) -> (i32, i32) {
    %c0_i32 = arith.constant 0 : i32
    %c0_i32_0 = arith.constant 0 : i32
    %c0_i32_1 = arith.constant 0 : i32
    return %c0_i32, %c0_i32_0 : i32, i32
  }
  func.func @transform_2(%arg0: i32) -> (i32, i32) {
    %c0_i32 = arith.constant 0 : i32
    %c0_i32_0 = arith.constant 0 : i32
    %c0_i32_1 = arith.constant 0 : i32
    return %c0_i32, %c0_i32_0 : i32, i32
  }
  func.func @transform_3(%arg0: i32) -> (i32, i32, i32) {
    %c0_i32 = arith.constant 0 : i32
    %c0_i32_0 = arith.constant 0 : i32
    %c0_i32_1 = arith.constant 0 : i32
    %c0_i32_2 = arith.constant 0 : i32
    return %c0_i32, %c0_i32_0, %c0_i32_1 : i32, i32, i32
  }
  func.func @transform_4(%arg0: i32) -> (i32, i32) {
    %c0_i32 = arith.constant 0 : i32
    %c0_i32_0 = arith.constant 0 : i32
    %c0_i32_1 = arith.constant 0 : i32
    return %c0_i32, %c0_i32_0 : i32, i32
  }
  func.func @transform_5(%arg0: i32) -> (i32, i32, i32) {
    %c0_i32 = arith.constant 0 : i32
    %c0_i32_0 = arith.constant 0 : i32
    %c0_i32_1 = arith.constant 0 : i32
    %c0_i32_2 = arith.constant 0 : i32
    return %c0_i32, %c0_i32_0, %c0_i32_1 : i32, i32, i32
  }
  func.func @transform_6(%arg0: i32) -> (i32, i32) {
    %c0_i32 = arith.constant 0 : i32
    %c0_i32_0 = arith.constant 0 : i32
    %c0_i32_1 = arith.constant 0 : i32
    return %c0_i32, %c0_i32_0 : i32, i32
  }
  func.func @transform_7(%arg0: i32) -> (i32, i32, i32) {
    %c0_i32 = arith.constant 0 : i32
    %c0_i32_0 = arith.constant 0 : i32
    %c0_i32_1 = arith.constant 0 : i32
    return %arg0, %c0_i32, %c0_i32_0 : i32, i32, i32
  }
}

module attributes {stable_mosaic.version = 11 : i64} {
  func.func @_fc_kernel(%arg0: i32, %arg1: memref<2x3712xf32, #tpu.memory_space<vmem>>, %arg2: memref<3712x14xf32, #tpu.memory_space<vmem>>, %arg3: memref<1x14xf32, #tpu.memory_space<vmem>>, %arg4: memref<2x14xf32, #tpu.memory_space<vmem>>) attributes {dimension_semantics = [#tpu.dimension_semantics<arbitrary>], iteration_bounds = array<i64: 1>, scalar_prefetch = 0 : i64, scratch_operands = 0 : i64, tpu.core_type = #tpu.core_type<tc>, window_params = [{pipeline_mode = #tpu.pipeline_mode<synchronous>, transform_indices = @transform_0, window_bounds = array<i64: 2, 3712>}, {pipeline_mode = #tpu.pipeline_mode<synchronous>, transform_indices = @transform_1, window_bounds = array<i64: 3712, 14>}, {pipeline_mode = #tpu.pipeline_mode<synchronous>, transform_indices = @transform_2, window_bounds = array<i64: 1, 14>}, {pipeline_mode = #tpu.pipeline_mode<synchronous>, transform_indices = @transform_3, window_bounds = array<i64: 2, 14>}]} {
    %c0 = arith.constant 0 : index
    %c0_0 = arith.constant 0 : index
    %0 = vector.load %arg1[%c0, %c0_0] : memref<2x3712xf32, #tpu.memory_space<vmem>>, vector<2x3712xf32>
    %c0_1 = arith.constant 0 : index
    %c0_2 = arith.constant 0 : index
    %1 = vector.load %arg2[%c0_1, %c0_2] : memref<3712x14xf32, #tpu.memory_space<vmem>>, vector<3712x14xf32>
    %cst = arith.constant dense<0.000000e+00> : vector<2x14xf32>
    %2 = tpu.matmul %0, %1, %cst {dimension_numbers = #tpu.dot_dimension_numbers<[1], [0], [0], [1], [0, 0, 1, 1], [], []>} : vector<2x3712xf32>, vector<3712x14xf32>, vector<2x14xf32> -> vector<2x14xf32>
    %c0_3 = arith.constant 0 : index
    %c0_4 = arith.constant 0 : index
    %3 = vector.load %arg3[%c0_3, %c0_4] : memref<1x14xf32, #tpu.memory_space<vmem>>, vector<1x14xf32>
    %4 = vector.broadcast %3 : vector<1x14xf32> to vector<2x14xf32>
    %5 = arith.addf %2, %4 : vector<2x14xf32>
    %c0_5 = arith.constant 0 : index
    %c0_6 = arith.constant 0 : index
    %6 = vector.load %arg4[%c0_5, %c0_6] : memref<2x14xf32, #tpu.memory_space<vmem>>, vector<2x14xf32>
    tpu.vector_store %arg4[%c0_5, %c0_6], %5 {strides = array<i32>} : memref<2x14xf32, #tpu.memory_space<vmem>>, vector<2x14xf32>,
    return
  }
  func.func @transform_0(%arg0: i32) -> (i32, i32) {
    %c0_i32 = arith.constant 0 : i32
    %c0_i32_0 = arith.constant 0 : i32
    %c0_i32_1 = arith.constant 0 : i32
    return %c0_i32, %c0_i32_0 : i32, i32
  }
  func.func @transform_1(%arg0: i32) -> (i32, i32) {
    %c0_i32 = arith.constant 0 : i32
    %c0_i32_0 = arith.constant 0 : i32
    %c0_i32_1 = arith.constant 0 : i32
    return %c0_i32, %c0_i32_0 : i32, i32
  }
  func.func @transform_2(%arg0: i32) -> (i32, i32) {
    %c0_i32 = arith.constant 0 : i32
    %c0_i32_0 = arith.constant 0 : i32
    %c0_i32_1 = arith.constant 0 : i32
    return %c0_i32, %c0_i32_0 : i32, i32
  }
  func.func @transform_3(%arg0: i32) -> (i32, i32) {
    %c0_i32 = arith.constant 0 : i32
    %c0_i32_0 = arith.constant 0 : i32
    %c0_i32_1 = arith.constant 0 : i32
    return %c0_i32, %c0_i32_0 : i32, i32
  }
}

</mosaic_0001>

<llo_original>
// kernel: cnn_forward.3
$region0: #{cnn_forward.3}
  #allocation0 [shape = 'u32[]', space=smem, size = 0x4, offset = 0x4, fixed_abs, tag = 'smem constant byte address 0x4 - core index']
  #allocation1 [shape = 'u32[144,128]{1,0:T(1,128)}', space=vmem, size = 0x12000, scoped, tag = 'internal scratch']
  %s0 = inlined_call_operand.vmem [shape: f32[2,3712], index: 0, kind: input, shape index: {}]
  %s1 = inlined_call_operand.vmem [shape: f32[3712,14], index: 1, kind: input, shape index: {}]
  %s2 = inlined_call_operand.vmem [shape: f32[1,14], index: 2, kind: input, shape index: {}]
  %s3 = inlined_call_operand.hbm [shape: f32[2,14], index: 3, kind: output, shape index: {}]
  %s4 = sld [smem:[#allocation0]]
  $region22: #{cnn_forward.3} parent=0
    _
  %s6 = ssub.s32 1, %s4
  %s7 = scalar_select 0, %s6, %s4
  $region1: #{cnn_forward.3} parent=0
    #allocation2 [shape = 'u8[1024]{0}', space=vmem, size = 0x400, scoped, tag = 'output window, operand 0, single buffered']
    #allocation3 [shape = 's32[1]{0}', space=sflag, size = 0x4, scoped, tag = 'scoped memory for cnn_forward.3']
    %8 = vsyncpa [#allocation3], 0
    // Predicated region
    $region2: #{cnn_forward.3} parent=1 // pred_check
      _
    $region3: #{cnn_forward.3} parent=1 // pred_check_branch
      %10 = sbr.rel (0) target = $region5
    $region4: #{cnn_forward.3} parent=1 // pred_region
      _
    $region5: #{cnn_forward.3} parent=1 // pred_fallthru
      _
    // Predicated region
    $region6: #{cnn_forward.3} parent=1 // pred_check
      _
    $region7: #{cnn_forward.3} parent=1 // pred_check_branch
      %12 = sbr.rel (0) target = $region9
    $region8: #{cnn_forward.3} parent=1 // pred_region
      _
    $region9: #{cnn_forward.3} parent=1 // pred_fallthru
      _
    // Predicated region
    $region10: #{cnn_forward.3} parent=1 // pred_check
      _
    $region11: #{cnn_forward.3} parent=1 // pred_check_branch
      %14 = sbr.rel (0) target = $region13
    $region12: #{cnn_forward.3} parent=1 // pred_region
      _
    $region13: #{cnn_forward.3} parent=1 // pred_fallthru
      _
    %v15 = vld [vmem:[%s0] sm:$0xff]
    %v16 = vld [vmem:[%s0 + $0x8] sm:$0xff]
    %v17 = vld [vmem:[%s0 + $0x10] sm:$0xff]
    %v18 = vld [vmem:[%s0 + $0x18] sm:$0xff]
    %v19 = vld [vmem:[%s0 + $0x20] sm:$0xff]
    %v20 = vld [vmem:[%s0 + $0x28] sm:$0xff]
    %v21 = vld [vmem:[%s0 + $0x30] sm:$0xff]
    %v22 = vld [vmem:[%s0 + $0x38] sm:$0x3]
    %v23 = vld [vmem:[%s1] sm:$0xff]
    %v24 = vld [vmem:[%s1 + $0x8] sm:$0xff]
    %v25 = vld [vmem:[%s1 + $0x10] sm:$0xff]
    %v26 = vld [vmem:[%s1 + $0x18] sm:$0xff]
    %v27 = vld [vmem:[%s1 + $0x20] sm:$0xff]
    %v28 = vld [vmem:[%s1 + $0x28] sm:$0xff]
    %v29 = vld [vmem:[%s1 + $0x30] sm:$0xff]
    %v30 = vld [vmem:[%s1 + $0x38] sm:$0xff]
    %v31 = vld [vmem:[%s1 + $0x40] sm:$0xff]
    %v32 = vld [vmem:[%s1 + $0x48] sm:$0xff]
    %v33 = vld [vmem:[%s1 + $0x50] sm:$0xff]
    %v34 = vld [vmem:[%s1 + $0x58] sm:$0xff]
    %v35 = vld [vmem:[%s1 + $0x60] sm:$0xff]
    %v36 = vld [vmem:[%s1 + $0x68] sm:$0xff]
    %v37 = vld [vmem:[%s1 + $0x70] sm:$0xff]
    %v38 = vld [vmem:[%s1 + $0x78] sm:$0xff]
    %v39 = vld [vmem:[%s1 + $0x80] sm:$0xff]
    %v40 = vld [vmem:[%s1 + $0x88] sm:$0xff]
    %v41 = vld [vmem:[%s1 + $0x90] sm:$0xff]
    %v42 = vld [vmem:[%s1 + $0x98] sm:$0xff]
    %v43 = vld [vmem:[%s1 + $0xa0] sm:$0xff]
    %v44 = vld [vmem:[%s1 + $0xa8] sm:$0xff]
    %v45 = vld [vmem:[%s1 + $0xb0] sm:$0xff]
    %v46 = vld [vmem:[%s1 + $0xb8] sm:$0xff]
    %v47 = vld [vmem:[%s1 + $0xc0] sm:$0xff]
    %v48 = vld [vmem:[%s1 + $0xc8] sm:$0xff]
    %v49 = vld [vmem:[%s1 + $0xd0] sm:$0xff]
    %v50 = vld [vmem:[%s1 + $0xd8] sm:$0xff]
    %v51 = vld [vmem:[%s1 + $0xe0] sm:$0xff]
    %v52 = vld [vmem:[%s1 + $0xe8] sm:$0xff]
    %v53 = vld [vmem:[%s1 + $0xf0] sm:$0xff]
    %v54 = vld [vmem:[%s1 + $0xf8] sm:$0xff]
    %v55 = vld [vmem:[%s1 + $0x100] sm:$0xff]
    %v56 = vld [vmem:[%s1 + $0x108] sm:$0xff]
    %v57 = vld [vmem:[%s1 + $0x110] sm:$0xff]
    %v58 = vld [vmem:[%s1 + $0x118] sm:$0xff]
    %v59 = vld [vmem:[%s1 + $0x120] sm:$0xff]
    %v60 = vld [vmem:[%s1 + $0x128] sm:$0xff]
    %v61 = vld [vmem:[%s1 + $0x130] sm:$0xff]
    %v62 = vld [vmem:[%s1 + $0x138] sm:$0xff]
    %v63 = vld [vmem:[%s1 + $0x140] sm:$0xff]
    %v64 = vld [vmem:[%s1 + $0x148] sm:$0xff]
    %v65 = vld [vmem:[%s1 + $0x150] sm:$0xff]
    %v66 = vld [vmem:[%s1 + $0x158] sm:$0xff]
    %v67 = vld [vmem:[%s1 + $0x160] sm:$0xff]
    %v68 = vld [vmem:[%s1 + $0x168] sm:$0xff]
    %v69 = vld [vmem:[%s1 + $0x170] sm:$0xff]
    %v70 = vld [vmem:[%s1 + $0x178] sm:$0xff]
    %v71 = vld [vmem:[%s1 + $0x180] sm:$0xff]
    %v72 = vld [vmem:[%s1 + $0x188] sm:$0xff]
    %v73 = vld [vmem:[%s1 + $0x190] sm:$0xff]
    %v74 = vld [vmem:[%s1 + $0x198] sm:$0xff]
    %v75 = vld [vmem:[%s1 + $0x1a0] sm:$0xff]
    %v76 = vld [vmem:[%s1 + $0x1a8] sm:$0xff]
    %v77 = vld [vmem:[%s1 + $0x1b0] sm:$0xff]
    %v78 = vld [vmem:[%s1 + $0x1b8] sm:$0xff]
    %v79 = vld [vmem:[%s1 + $0x1c0] sm:$0xff]
    %v80 = vld [vmem:[%s1 + $0x1c8] sm:$0xff]
    %v81 = vld [vmem:[%s1 + $0x1d0] sm:$0xff]
    %v82 = vld [vmem:[%s1 + $0x1d8] sm:$0xff]
    %v83 = vld [vmem:[%s1 + $0x1e0] sm:$0xff]
    %v84 = vld [vmem:[%s1 + $0x1e8] sm:$0xff]
    %v85 = vld [vmem:[%s1 + $0x1f0] sm:$0xff]
    %v86 = vld [vmem:[%s1 + $0x1f8] sm:$0xff]
    %v87 = vld [vmem:[%s1 + $0x200] sm:$0xff]
    %v88 = vld [vmem:[%s1 + $0x208] sm:$0xff]
    %v89 = vld [vmem:[%s1 + $0x210] sm:$0xff]
    %v90 = vld [vmem:[%s1 + $0x218] sm:$0xff]
    %v91 = vld [vmem:[%s1 + $0x220] sm:$0xff]
    %v92 = vld [vmem:[%s1 + $0x228] sm:$0xff]
    %v93 = vld [vmem:[%s1 + $0x230] sm:$0xff]
    %v94 = vld [vmem:[%s1 + $0x238] sm:$0xff]
    %v95 = vld [vmem:[%s1 + $0x240] sm:$0xff]
    %v96 = vld [vmem:[%s1 + $0x248] sm:$0xff]
    %v97 = vld [vmem:[%s1 + $0x250] sm:$0xff]
    %v98 = vld [vmem:[%s1 + $0x258] sm:$0xff]
    %v99 = vld [vmem:[%s1 + $0x260] sm:$0xff]
    %v100 = vld [vmem:[%s1 + $0x268] sm:$0xff]
    %v101 = vld [vmem:[%s1 + $0x270] sm:$0xff]
    %v102 = vld [vmem:[%s1 + $0x278] sm:$0xff]
    %v103 = vld [vmem:[%s1 + $0x280] sm:$0xff]
    %v104 = vld [vmem:[%s1 + $0x288] sm:$0xff]
    %v105 = vld [vmem:[%s1 + $0x290] sm:$0xff]
    %v106 = vld [vmem:[%s1 + $0x298] sm:$0xff]
    %v107 = vld [vmem:[%s1 + $0x2a0] sm:$0xff]
    %v108 = vld [vmem:[%s1 + $0x2a8] sm:$0xff]
    %v109 = vld [vmem:[%s1 + $0x2b0] sm:$0xff]
    %v110 = vld [vmem:[%s1 + $0x2b8] sm:$0xff]
    %v111 = vld [vmem:[%s1 + $0x2c0] sm:$0xff]
    %v112 = vld [vmem:[%s1 + $0x2c8] sm:$0xff]
    %v113 = vld [vmem:[%s1 + $0x2d0] sm:$0xff]
    %v114 = vld [vmem:[%s1 + $0x2d8] sm:$0xff]
    %v115 = vld [vmem:[%s1 + $0x2e0] sm:$0xff]
    %v116 = vld [vmem:[%s1 + $0x2e8] sm:$0xff]
    %v117 = vld [vmem:[%s1 + $0x2f0] sm:$0xff]
    %v118 = vld [vmem:[%s1 + $0x2f8] sm:$0xff]
    %v119 = vld [vmem:[%s1 + $0x300] sm:$0xff]
    %v120 = vld [vmem:[%s1 + $0x308] sm:$0xff]
    %v121 = vld [vmem:[%s1 + $0x310] sm:$0xff]
    %v122 = vld [vmem:[%s1 + $0x318] sm:$0xff]
    %v123 = vld [vmem:[%s1 + $0x320] sm:$0xff]
    %v124 = vld [vmem:[%s1 + $0x328] sm:$0xff]
    %v125 = vld [vmem:[%s1 + $0x330] sm:$0xff]
    %v126 = vld [vmem:[%s1 + $0x338] sm:$0xff]
    %v127 = vld [vmem:[%s1 + $0x340] sm:$0xff]
    %v128 = vld [vmem:[%s1 + $0x348] sm:$0xff]
    %v129 = vld [vmem:[%s1 + $0x350] sm:$0xff]
    %v130 = vld [vmem:[%s1 + $0x358] sm:$0xff]
    %v131 = vld [vmem:[%s1 + $0x360] sm:$0xff]
    %v132 = vld [vmem:[%s1 + $0x368] sm:$0xff]
    %v133 = vld [vmem:[%s1 + $0x370] sm:$0xff]
    %v134 = vld [vmem:[%s1 + $0x378] sm:$0xff]
    %v135 = vld [vmem:[%s1 + $0x380] sm:$0xff]
    %v136 = vld [vmem:[%s1 + $0x388] sm:$0xff]
    %v137 = vld [vmem:[%s1 + $0x390] sm:$0xff]
    %v138 = vld [vmem:[%s1 + $0x398] sm:$0xff]
    %v139 = vld [vmem:[%s1 + $0x3a0] sm:$0xff]
    %v140 = vld [vmem:[%s1 + $0x3a8] sm:$0xff]
    %v141 = vld [vmem:[%s1 + $0x3b0] sm:$0xff]
    %v142 = vld [vmem:[%s1 + $0x3b8] sm:$0xff]
    %v143 = vld [vmem:[%s1 + $0x3c0] sm:$0xff]
    %v144 = vld [vmem:[%s1 + $0x3c8] sm:$0xff]
    %v145 = vld [vmem:[%s1 + $0x3d0] sm:$0xff]
    %v146 = vld [vmem:[%s1 + $0x3d8] sm:$0xff]
    %v147 = vld [vmem:[%s1 + $0x3e0] sm:$0xff]
    %v148 = vld [vmem:[%s1 + $0x3e8] sm:$0xff]
    %v149 = vld [vmem:[%s1 + $0x3f0] sm:$0xff]
    %v150 = vld [vmem:[%s1 + $0x3f8] sm:$0xff]
    %v151 = vld [vmem:[%s1 + $0x400] sm:$0xff]
    %v152 = vld [vmem:[%s1 + $0x408] sm:$0xff]
    %v153 = vld [vmem:[%s1 + $0x410] sm:$0xff]
    %v154 = vld [vmem:[%s1 + $0x418] sm:$0xff]
    %v155 = vld [vmem:[%s1 + $0x420] sm:$0xff]
    %v156 = vld [vmem:[%s1 + $0x428] sm:$0xff]
    %v157 = vld [vmem:[%s1 + $0x430] sm:$0xff]
    %v158 = vld [vmem:[%s1 + $0x438] sm:$0xff]
    %v159 = vld [vmem:[%s1 + $0x440] sm:$0xff]
    %v160 = vld [vmem:[%s1 + $0x448] sm:$0xff]
    %v161 = vld [vmem:[%s1 + $0x450] sm:$0xff]
    %v162 = vld [vmem:[%s1 + $0x458] sm:$0xff]
    %v163 = vld [vmem:[%s1 + $0x460] sm:$0xff]
    %v164 = vld [vmem:[%s1 + $0x468] sm:$0xff]
    %v165 = vld [vmem:[%s1 + $0x470] sm:$0xff]
    %v166 = vld [vmem:[%s1 + $0x478] sm:$0xff]
    %v167 = vld [vmem:[%s1 + $0x480] sm:$0xff]
    %v168 = vld [vmem:[%s1 + $0x488] sm:$0xff]
    %v169 = vld [vmem:[%s1 + $0x490] sm:$0xff]
    %v170 = vld [vmem:[%s1 + $0x498] sm:$0xff]
    %v171 = vld [vmem:[%s1 + $0x4a0] sm:$0xff]
    %v172 = vld [vmem:[%s1 + $0x4a8] sm:$0xff]
    %v173 = vld [vmem:[%s1 + $0x4b0] sm:$0xff]
    %v174 = vld [vmem:[%s1 + $0x4b8] sm:$0xff]
    %v175 = vld [vmem:[%s1 + $0x4c0] sm:$0xff]
    %v176 = vld [vmem:[%s1 + $0x4c8] sm:$0xff]
    %v177 = vld [vmem:[%s1 + $0x4d0] sm:$0xff]
    %v178 = vld [vmem:[%s1 + $0x4d8] sm:$0xff]
    %v179 = vld [vmem:[%s1 + $0x4e0] sm:$0xff]
    %v180 = vld [vmem:[%s1 + $0x4e8] sm:$0xff]
    %v181 = vld [vmem:[%s1 + $0x4f0] sm:$0xff]
    %v182 = vld [vmem:[%s1 + $0x4f8] sm:$0xff]
    %v183 = vld [vmem:[%s1 + $0x500] sm:$0xff]
    %v184 = vld [vmem:[%s1 + $0x508] sm:$0xff]
    %v185 = vld [vmem:[%s1 + $0x510] sm:$0xff]
    %v186 = vld [vmem:[%s1 + $0x518] sm:$0xff]
    %v187 = vld [vmem:[%s1 + $0x520] sm:$0xff]
    %v188 = vld [vmem:[%s1 + $0x528] sm:$0xff]
    %v189 = vld [vmem:[%s1 + $0x530] sm:$0xff]
    %v190 = vld [vmem:[%s1 + $0x538] sm:$0xff]
    %v191 = vld [vmem:[%s1 + $0x540] sm:$0xff]
    %v192 = vld [vmem:[%s1 + $0x548] sm:$0xff]
    %v193 = vld [vmem:[%s1 + $0x550] sm:$0xff]
    %v194 = vld [vmem:[%s1 + $0x558] sm:$0xff]
    %v195 = vld [vmem:[%s1 + $0x560] sm:$0xff]
    %v196 = vld [vmem:[%s1 + $0x568] sm:$0xff]
    %v197 = vld [vmem:[%s1 + $0x570] sm:$0xff]
    %v198 = vld [vmem:[%s1 + $0x578] sm:$0xff]
    %v199 = vld [vmem:[%s1 + $0x580] sm:$0xff]
    %v200 = vld [vmem:[%s1 + $0x588] sm:$0xff]
    %v201 = vld [vmem:[%s1 + $0x590] sm:$0xff]
    %v202 = vld [vmem:[%s1 + $0x598] sm:$0xff]
    %v203 = vld [vmem:[%s1 + $0x5a0] sm:$0xff]
    %v204 = vld [vmem:[%s1 + $0x5a8] sm:$0xff]
    %v205 = vld [vmem:[%s1 + $0x5b0] sm:$0xff]
    %v206 = vld [vmem:[%s1 + $0x5b8] sm:$0xff]
    %v207 = vld [vmem:[%s1 + $0x5c0] sm:$0xff]
    %v208 = vld [vmem:[%s1 + $0x5c8] sm:$0xff]
    %v209 = vld [vmem:[%s1 + $0x5d0] sm:$0xff]
    %v210 = vld [vmem:[%s1 + $0x5d8] sm:$0xff]
    %v211 = vld [vmem:[%s1 + $0x5e0] sm:$0xff]
    %v212 = vld [vmem:[%s1 + $0x5e8] sm:$0xff]
    %v213 = vld [vmem:[%s1 + $0x5f0] sm:$0xff]
    %v214 = vld [vmem:[%s1 + $0x5f8] sm:$0xff]
    %v215 = vld [vmem:[%s1 + $0x600] sm:$0xff]
    %v216 = vld [vmem:[%s1 + $0x608] sm:$0xff]
    %v217 = vld [vmem:[%s1 + $0x610] sm:$0xff]
    %v218 = vld [vmem:[%s1 + $0x618] sm:$0xff]
    %v219 = vld [vmem:[%s1 + $0x620] sm:$0xff]
    %v220 = vld [vmem:[%s1 + $0x628] sm:$0xff]
    %v221 = vld [vmem:[%s1 + $0x630] sm:$0xff]
    %v222 = vld [vmem:[%s1 + $0x638] sm:$0xff]
    %v223 = vld [vmem:[%s1 + $0x640] sm:$0xff]
    %v224 = vld [vmem:[%s1 + $0x648] sm:$0xff]
    %v225 = vld [vmem:[%s1 + $0x650] sm:$0xff]
    %v226 = vld [vmem:[%s1 + $0x658] sm:$0xff]
    %v227 = vld [vmem:[%s1 + $0x660] sm:$0xff]
    %v228 = vld [vmem:[%s1 + $0x668] sm:$0xff]
    %v229 = vld [vmem:[%s1 + $0x670] sm:$0xff]
    %v230 = vld [vmem:[%s1 + $0x678] sm:$0xff]
    %v231 = vld [vmem:[%s1 + $0x680] sm:$0xff]
    %v232 = vld [vmem:[%s1 + $0x688] sm:$0xff]
    %v233 = vld [vmem:[%s1 + $0x690] sm:$0xff]
    %v234 = vld [vmem:[%s1 + $0x698] sm:$0xff]
    %v235 = vld [vmem:[%s1 + $0x6a0] sm:$0xff]
    %v236 = vld [vmem:[%s1 + $0x6a8] sm:$0xff]
    %v237 = vld [vmem:[%s1 + $0x6b0] sm:$0xff]
    %v238 = vld [vmem:[%s1 + $0x6b8] sm:$0xff]
    %v239 = vld [vmem:[%s1 + $0x6c0] sm:$0xff]
    %v240 = vld [vmem:[%s1 + $0x6c8] sm:$0xff]
    %v241 = vld [vmem:[%s1 + $0x6d0] sm:$0xff]
    %v242 = vld [vmem:[%s1 + $0x6d8] sm:$0xff]
    %v243 = vld [vmem:[%s1 + $0x6e0] sm:$0xff]
    %v244 = vld [vmem:[%s1 + $0x6e8] sm:$0xff]
    %v245 = vld [vmem:[%s1 + $0x6f0] sm:$0xff]
    %v246 = vld [vmem:[%s1 + $0x6f8] sm:$0xff]
    %v247 = vld [vmem:[%s1 + $0x700] sm:$0xff]
    %v248 = vld [vmem:[%s1 + $0x708] sm:$0xff]
    %v249 = vld [vmem:[%s1 + $0x710] sm:$0xff]
    %v250 = vld [vmem:[%s1 + $0x718] sm:$0xff]
    %v251 = vld [vmem:[%s1 + $0x720] sm:$0xff]
    %v252 = vld [vmem:[%s1 + $0x728] sm:$0xff]
    %v253 = vld [vmem:[%s1 + $0x730] sm:$0xff]
    %v254 = vld [vmem:[%s1 + $0x738] sm:$0xff]
    %v255 = vld [vmem:[%s1 + $0x740] sm:$0xff]
    %v256 = vld [vmem:[%s1 + $0x748] sm:$0xff]
    %v257 = vld [vmem:[%s1 + $0x750] sm:$0xff]
    %v258 = vld [vmem:[%s1 + $0x758] sm:$0xff]
    %v259 = vld [vmem:[%s1 + $0x760] sm:$0xff]
    %v260 = vld [vmem:[%s1 + $0x768] sm:$0xff]
    %v261 = vld [vmem:[%s1 + $0x770] sm:$0xff]
    %v262 = vld [vmem:[%s1 + $0x778] sm:$0xff]
    %v263 = vld [vmem:[%s1 + $0x780] sm:$0xff]
    %v264 = vld [vmem:[%s1 + $0x788] sm:$0xff]
    %v265 = vld [vmem:[%s1 + $0x790] sm:$0xff]
    %v266 = vld [vmem:[%s1 + $0x798] sm:$0xff]
    %v267 = vld [vmem:[%s1 + $0x7a0] sm:$0xff]
    %v268 = vld [vmem:[%s1 + $0x7a8] sm:$0xff]
    %v269 = vld [vmem:[%s1 + $0x7b0] sm:$0xff]
    %v270 = vld [vmem:[%s1 + $0x7b8] sm:$0xff]
    %v271 = vld [vmem:[%s1 + $0x7c0] sm:$0xff]
    %v272 = vld [vmem:[%s1 + $0x7c8] sm:$0xff]
    %v273 = vld [vmem:[%s1 + $0x7d0] sm:$0xff]
    %v274 = vld [vmem:[%s1 + $0x7d8] sm:$0xff]
    %v275 = vld [vmem:[%s1 + $0x7e0] sm:$0xff]
    %v276 = vld [vmem:[%s1 + $0x7e8] sm:$0xff]
    %v277 = vld [vmem:[%s1 + $0x7f0] sm:$0xff]
    %v278 = vld [vmem:[%s1 + $0x7f8] sm:$0xff]
    %v279 = vld [vmem:[%s1 + $0x800] sm:$0xff]
    %v280 = vld [vmem:[%s1 + $0x808] sm:$0xff]
    %v281 = vld [vmem:[%s1 + $0x810] sm:$0xff]
    %v282 = vld [vmem:[%s1 + $0x818] sm:$0xff]
    %v283 = vld [vmem:[%s1 + $0x820] sm:$0xff]
    %v284 = vld [vmem:[%s1 + $0x828] sm:$0xff]
    %v285 = vld [vmem:[%s1 + $0x830] sm:$0xff]
    %v286 = vld [vmem:[%s1 + $0x838] sm:$0xff]
    %v287 = vld [vmem:[%s1 + $0x840] sm:$0xff]
    %v288 = vld [vmem:[%s1 + $0x848] sm:$0xff]
    %v289 = vld [vmem:[%s1 + $0x850] sm:$0xff]
    %v290 = vld [vmem:[%s1 + $0x858] sm:$0xff]
    %v291 = vld [vmem:[%s1 + $0x860] sm:$0xff]
    %v292 = vld [vmem:[%s1 + $0x868] sm:$0xff]
    %v293 = vld [vmem:[%s1 + $0x870] sm:$0xff]
    %v294 = vld [vmem:[%s1 + $0x878] sm:$0xff]
    %v295 = vld [vmem:[%s1 + $0x880] sm:$0xff]
    %v296 = vld [vmem:[%s1 + $0x888] sm:$0xff]
    %v297 = vld [vmem:[%s1 + $0x890] sm:$0xff]
    %v298 = vld [vmem:[%s1 + $0x898] sm:$0xff]
    %v299 = vld [vmem:[%s1 + $0x8a0] sm:$0xff]
    %v300 = vld [vmem:[%s1 + $0x8a8] sm:$0xff]
    %v301 = vld [vmem:[%s1 + $0x8b0] sm:$0xff]
    %v302 = vld [vmem:[%s1 + $0x8b8] sm:$0xff]
    %v303 = vld [vmem:[%s1 + $0x8c0] sm:$0xff]
    %v304 = vld [vmem:[%s1 + $0x8c8] sm:$0xff]
    %v305 = vld [vmem:[%s1 + $0x8d0] sm:$0xff]
    %v306 = vld [vmem:[%s1 + $0x8d8] sm:$0xff]
    %v307 = vld [vmem:[%s1 + $0x8e0] sm:$0xff]
    %v308 = vld [vmem:[%s1 + $0x8e8] sm:$0xff]
    %v309 = vld [vmem:[%s1 + $0x8f0] sm:$0xff]
    %v310 = vld [vmem:[%s1 + $0x8f8] sm:$0xff]
    %v311 = vld [vmem:[%s1 + $0x900] sm:$0xff]
    %v312 = vld [vmem:[%s1 + $0x908] sm:$0xff]
    %v313 = vld [vmem:[%s1 + $0x910] sm:$0xff]
    %v314 = vld [vmem:[%s1 + $0x918] sm:$0xff]
    %v315 = vld [vmem:[%s1 + $0x920] sm:$0xff]
    %v316 = vld [vmem:[%s1 + $0x928] sm:$0xff]
    %v317 = vld [vmem:[%s1 + $0x930] sm:$0xff]
    %v318 = vld [vmem:[%s1 + $0x938] sm:$0xff]
    %v319 = vld [vmem:[%s1 + $0x940] sm:$0xff]
    %v320 = vld [vmem:[%s1 + $0x948] sm:$0xff]
    %v321 = vld [vmem:[%s1 + $0x950] sm:$0xff]
    %v322 = vld [vmem:[%s1 + $0x958] sm:$0xff]
    %v323 = vld [vmem:[%s1 + $0x960] sm:$0xff]
    %v324 = vld [vmem:[%s1 + $0x968] sm:$0xff]
    %v325 = vld [vmem:[%s1 + $0x970] sm:$0xff]
    %v326 = vld [vmem:[%s1 + $0x978] sm:$0xff]
    %v327 = vld [vmem:[%s1 + $0x980] sm:$0xff]
    %v328 = vld [vmem:[%s1 + $0x988] sm:$0xff]
    %v329 = vld [vmem:[%s1 + $0x990] sm:$0xff]
    %v330 = vld [vmem:[%s1 + $0x998] sm:$0xff]
    %v331 = vld [vmem:[%s1 + $0x9a0] sm:$0xff]
    %v332 = vld [vmem:[%s1 + $0x9a8] sm:$0xff]
    %v333 = vld [vmem:[%s1 + $0x9b0] sm:$0xff]
    %v334 = vld [vmem:[%s1 + $0x9b8] sm:$0xff]
    %v335 = vld [vmem:[%s1 + $0x9c0] sm:$0xff]
    %v336 = vld [vmem:[%s1 + $0x9c8] sm:$0xff]
    %v337 = vld [vmem:[%s1 + $0x9d0] sm:$0xff]
    %v338 = vld [vmem:[%s1 + $0x9d8] sm:$0xff]
    %v339 = vld [vmem:[%s1 + $0x9e0] sm:$0xff]
    %v340 = vld [vmem:[%s1 + $0x9e8] sm:$0xff]
    %v341 = vld [vmem:[%s1 + $0x9f0] sm:$0xff]
    %v342 = vld [vmem:[%s1 + $0x9f8] sm:$0xff]
    %v343 = vld [vmem:[%s1 + $0xa00] sm:$0xff]
    %v344 = vld [vmem:[%s1 + $0xa08] sm:$0xff]
    %v345 = vld [vmem:[%s1 + $0xa10] sm:$0xff]
    %v346 = vld [vmem:[%s1 + $0xa18] sm:$0xff]
    %v347 = vld [vmem:[%s1 + $0xa20] sm:$0xff]
    %v348 = vld [vmem:[%s1 + $0xa28] sm:$0xff]
    %v349 = vld [vmem:[%s1 + $0xa30] sm:$0xff]
    %v350 = vld [vmem:[%s1 + $0xa38] sm:$0xff]
    %v351 = vld [vmem:[%s1 + $0xa40] sm:$0xff]
    %v352 = vld [vmem:[%s1 + $0xa48] sm:$0xff]
    %v353 = vld [vmem:[%s1 + $0xa50] sm:$0xff]
    %v354 = vld [vmem:[%s1 + $0xa58] sm:$0xff]
    %v355 = vld [vmem:[%s1 + $0xa60] sm:$0xff]
    %v356 = vld [vmem:[%s1 + $0xa68] sm:$0xff]
    %v357 = vld [vmem:[%s1 + $0xa70] sm:$0xff]
    %v358 = vld [vmem:[%s1 + $0xa78] sm:$0xff]
    %v359 = vld [vmem:[%s1 + $0xa80] sm:$0xff]
    %v360 = vld [vmem:[%s1 + $0xa88] sm:$0xff]
    %v361 = vld [vmem:[%s1 + $0xa90] sm:$0xff]
    %v362 = vld [vmem:[%s1 + $0xa98] sm:$0xff]
    %v363 = vld [vmem:[%s1 + $0xaa0] sm:$0xff]
    %v364 = vld [vmem:[%s1 + $0xaa8] sm:$0xff]
    %v365 = vld [vmem:[%s1 + $0xab0] sm:$0xff]
    %v366 = vld [vmem:[%s1 + $0xab8] sm:$0xff]
    %v367 = vld [vmem:[%s1 + $0xac0] sm:$0xff]
    %v368 = vld [vmem:[%s1 + $0xac8] sm:$0xff]
    %v369 = vld [vmem:[%s1 + $0xad0] sm:$0xff]
    %v370 = vld [vmem:[%s1 + $0xad8] sm:$0xff]
    %v371 = vld [vmem:[%s1 + $0xae0] sm:$0xff]
    %v372 = vld [vmem:[%s1 + $0xae8] sm:$0xff]
    %v373 = vld [vmem:[%s1 + $0xaf0] sm:$0xff]
    %v374 = vld [vmem:[%s1 + $0xaf8] sm:$0xff]
    %v375 = vld [vmem:[%s1 + $0xb00] sm:$0xff]
    %v376 = vld [vmem:[%s1 + $0xb08] sm:$0xff]
    %v377 = vld [vmem:[%s1 + $0xb10] sm:$0xff]
    %v378 = vld [vmem:[%s1 + $0xb18] sm:$0xff]
    %v379 = vld [vmem:[%s1 + $0xb20] sm:$0xff]
    %v380 = vld [vmem:[%s1 + $0xb28] sm:$0xff]
    %v381 = vld [vmem:[%s1 + $0xb30] sm:$0xff]
    %v382 = vld [vmem:[%s1 + $0xb38] sm:$0xff]
    %v383 = vld [vmem:[%s1 + $0xb40] sm:$0xff]
    %v384 = vld [vmem:[%s1 + $0xb48] sm:$0xff]
    %v385 = vld [vmem:[%s1 + $0xb50] sm:$0xff]
    %v386 = vld [vmem:[%s1 + $0xb58] sm:$0xff]
    %v387 = vld [vmem:[%s1 + $0xb60] sm:$0xff]
    %v388 = vld [vmem:[%s1 + $0xb68] sm:$0xff]
    %v389 = vld [vmem:[%s1 + $0xb70] sm:$0xff]
    %v390 = vld [vmem:[%s1 + $0xb78] sm:$0xff]
    %v391 = vld [vmem:[%s1 + $0xb80] sm:$0xff]
    %v392 = vld [vmem:[%s1 + $0xb88] sm:$0xff]
    %v393 = vld [vmem:[%s1 + $0xb90] sm:$0xff]
    %v394 = vld [vmem:[%s1 + $0xb98] sm:$0xff]
    %v395 = vld [vmem:[%s1 + $0xba0] sm:$0xff]
    %v396 = vld [vmem:[%s1 + $0xba8] sm:$0xff]
    %v397 = vld [vmem:[%s1 + $0xbb0] sm:$0xff]
    %v398 = vld [vmem:[%s1 + $0xbb8] sm:$0xff]
    %v399 = vld [vmem:[%s1 + $0xbc0] sm:$0xff]
    %v400 = vld [vmem:[%s1 + $0xbc8] sm:$0xff]
    %v401 = vld [vmem:[%s1 + $0xbd0] sm:$0xff]
    %v402 = vld [vmem:[%s1 + $0xbd8] sm:$0xff]
    %v403 = vld [vmem:[%s1 + $0xbe0] sm:$0xff]
    %v404 = vld [vmem:[%s1 + $0xbe8] sm:$0xff]
    %v405 = vld [vmem:[%s1 + $0xbf0] sm:$0xff]
    %v406 = vld [vmem:[%s1 + $0xbf8] sm:$0xff]
    %v407 = vld [vmem:[%s1 + $0xc00] sm:$0xff]
    %v408 = vld [vmem:[%s1 + $0xc08] sm:$0xff]
    %v409 = vld [vmem:[%s1 + $0xc10] sm:$0xff]
    %v410 = vld [vmem:[%s1 + $0xc18] sm:$0xff]
    %v411 = vld [vmem:[%s1 + $0xc20] sm:$0xff]
    %v412 = vld [vmem:[%s1 + $0xc28] sm:$0xff]
    %v413 = vld [vmem:[%s1 + $0xc30] sm:$0xff]
    %v414 = vld [vmem:[%s1 + $0xc38] sm:$0xff]
    %v415 = vld [vmem:[%s1 + $0xc40] sm:$0xff]
    %v416 = vld [vmem:[%s1 + $0xc48] sm:$0xff]
    %v417 = vld [vmem:[%s1 + $0xc50] sm:$0xff]
    %v418 = vld [vmem:[%s1 + $0xc58] sm:$0xff]
    %v419 = vld [vmem:[%s1 + $0xc60] sm:$0xff]
    %v420 = vld [vmem:[%s1 + $0xc68] sm:$0xff]
    %v421 = vld [vmem:[%s1 + $0xc70] sm:$0xff]
    %v422 = vld [vmem:[%s1 + $0xc78] sm:$0xff]
    %v423 = vld [vmem:[%s1 + $0xc80] sm:$0xff]
    %v424 = vld [vmem:[%s1 + $0xc88] sm:$0xff]
    %v425 = vld [vmem:[%s1 + $0xc90] sm:$0xff]
    %v426 = vld [vmem:[%s1 + $0xc98] sm:$0xff]
    %v427 = vld [vmem:[%s1 + $0xca0] sm:$0xff]
    %v428 = vld [vmem:[%s1 + $0xca8] sm:$0xff]
    %v429 = vld [vmem:[%s1 + $0xcb0] sm:$0xff]
    %v430 = vld [vmem:[%s1 + $0xcb8] sm:$0xff]
    %v431 = vld [vmem:[%s1 + $0xcc0] sm:$0xff]
    %v432 = vld [vmem:[%s1 + $0xcc8] sm:$0xff]
    %v433 = vld [vmem:[%s1 + $0xcd0] sm:$0xff]
    %v434 = vld [vmem:[%s1 + $0xcd8] sm:$0xff]
    %v435 = vld [vmem:[%s1 + $0xce0] sm:$0xff]
    %v436 = vld [vmem:[%s1 + $0xce8] sm:$0xff]
    %v437 = vld [vmem:[%s1 + $0xcf0] sm:$0xff]
    %v438 = vld [vmem:[%s1 + $0xcf8] sm:$0xff]
    %v439 = vld [vmem:[%s1 + $0xd00] sm:$0xff]
    %v440 = vld [vmem:[%s1 + $0xd08] sm:$0xff]
    %v441 = vld [vmem:[%s1 + $0xd10] sm:$0xff]
    %v442 = vld [vmem:[%s1 + $0xd18] sm:$0xff]
    %v443 = vld [vmem:[%s1 + $0xd20] sm:$0xff]
    %v444 = vld [vmem:[%s1 + $0xd28] sm:$0xff]
    %v445 = vld [vmem:[%s1 + $0xd30] sm:$0xff]
    %v446 = vld [vmem:[%s1 + $0xd38] sm:$0xff]
    %v447 = vld [vmem:[%s1 + $0xd40] sm:$0xff]
    %v448 = vld [vmem:[%s1 + $0xd48] sm:$0xff]
    %v449 = vld [vmem:[%s1 + $0xd50] sm:$0xff]
    %v450 = vld [vmem:[%s1 + $0xd58] sm:$0xff]
    %v451 = vld [vmem:[%s1 + $0xd60] sm:$0xff]
    %v452 = vld [vmem:[%s1 + $0xd68] sm:$0xff]
    %v453 = vld [vmem:[%s1 + $0xd70] sm:$0xff]
    %v454 = vld [vmem:[%s1 + $0xd78] sm:$0xff]
    %v455 = vld [vmem:[%s1 + $0xd80] sm:$0xff]
    %v456 = vld [vmem:[%s1 + $0xd88] sm:$0xff]
    %v457 = vld [vmem:[%s1 + $0xd90] sm:$0xff]
    %v458 = vld [vmem:[%s1 + $0xd98] sm:$0xff]
    %v459 = vld [vmem:[%s1 + $0xda0] sm:$0xff]
    %v460 = vld [vmem:[%s1 + $0xda8] sm:$0xff]
    %v461 = vld [vmem:[%s1 + $0xdb0] sm:$0xff]
    %v462 = vld [vmem:[%s1 + $0xdb8] sm:$0xff]
    %v463 = vld [vmem:[%s1 + $0xdc0] sm:$0xff]
    %v464 = vld [vmem:[%s1 + $0xdc8] sm:$0xff]
    %v465 = vld [vmem:[%s1 + $0xdd0] sm:$0xff]
    %v466 = vld [vmem:[%s1 + $0xdd8] sm:$0xff]
    %v467 = vld [vmem:[%s1 + $0xde0] sm:$0xff]
    %v468 = vld [vmem:[%s1 + $0xde8] sm:$0xff]
    %v469 = vld [vmem:[%s1 + $0xdf0] sm:$0xff]
    %v470 = vld [vmem:[%s1 + $0xdf8] sm:$0xff]
    %v471 = vld [vmem:[%s1 + $0xe00] sm:$0xff]
    %v472 = vld [vmem:[%s1 + $0xe08] sm:$0xff]
    %v473 = vld [vmem:[%s1 + $0xe10] sm:$0xff]
    %v474 = vld [vmem:[%s1 + $0xe18] sm:$0xff]
    %v475 = vld [vmem:[%s1 + $0xe20] sm:$0xff]
    %v476 = vld [vmem:[%s1 + $0xe28] sm:$0xff]
    %v477 = vld [vmem:[%s1 + $0xe30] sm:$0xff]
    %v478 = vld [vmem:[%s1 + $0xe38] sm:$0xff]
    %v479 = vld [vmem:[%s1 + $0xe40] sm:$0xff]
    %v480 = vld [vmem:[%s1 + $0xe48] sm:$0xff]
    %v481 = vld [vmem:[%s1 + $0xe50] sm:$0xff]
    %v482 = vld [vmem:[%s1 + $0xe58] sm:$0xff]
    %v483 = vld [vmem:[%s1 + $0xe60] sm:$0xff]
    %v484 = vld [vmem:[%s1 + $0xe68] sm:$0xff]
    %v485 = vld [vmem:[%s1 + $0xe70] sm:$0xff]
    %v486 = vld [vmem:[%s1 + $0xe78] sm:$0xff]
    %v487 = vld [vmem:[%s2] sm:$0x1]
    %v489 = vlaneseq
    %v490 = vshrl.u32 %v489, 7
    %v491 = vsub.s32 0, %v490
    %v492 = vrot.slane %v487, %v491
    %v502 = vcombine.high %v15, %v15
    %v504 = vunpack.c.l.s4 1983009808
    %v505 = vunpack.c.0.s8 %v504
    %v506 = vlaneseq
    %v507 = vshrl.u32 %v506, 7
    %v508 = vsub.s32 %v505, %v507
    %v509 = vrot.slane %v15, %v508
    %v511 = vunpack.c.l.s4 1983009808
    %v512 = vunpack.c.0.s8 %v511
    %v513 = vlaneseq
    %v514 = vshrl.u32 %v513, 7
    %v515 = vsub.s32 %v512, %v514
    %v516 = vrot.slane %v502, %v515
    %v517 = vcombine.high %v509, %v509
    %v518 = vcombine.high %v516, %v516
    %v519 = vcombine.high %v16, %v16
    %v521 = vunpack.c.l.s4 1983009808
    %v522 = vunpack.c.0.s8 %v521
    %v523 = vlaneseq
    %v524 = vshrl.u32 %v523, 7
    %v525 = vsub.s32 %v522, %v524
    %v526 = vrot.slane %v16, %v525
    %v528 = vunpack.c.l.s4 1983009808
    %v529 = vunpack.c.0.s8 %v528
    %v530 = vlaneseq
    %v531 = vshrl.u32 %v530, 7
    %v532 = vsub.s32 %v529, %v531
    %v533 = vrot.slane %v519, %v532
    %v534 = vcombine.high %v526, %v526
    %v535 = vcombine.high %v533, %v533
    %v536 = vcombine.high %v17, %v17
    %v538 = vunpack.c.l.s4 1983009808
    %v539 = vunpack.c.0.s8 %v538
    %v540 = vlaneseq
    %v541 = vshrl.u32 %v540, 7
    %v542 = vsub.s32 %v539, %v541
    %v543 = vrot.slane %v17, %v542
    %v545 = vunpack.c.l.s4 1983009808
    %v546 = vunpack.c.0.s8 %v545
    %v547 = vlaneseq
    %v548 = vshrl.u32 %v547, 7
    %v549 = vsub.s32 %v546, %v548
    %v550 = vrot.slane %v536, %v549
    %v551 = vcombine.high %v543, %v543
    %v552 = vcombine.high %v550, %v550
    %v553 = vcombine.high %v18, %v18
    %v555 = vunpack.c.l.s4 1983009808
    %v556 = vunpack.c.0.s8 %v555
    %v557 = vlaneseq
    %v558 = vshrl.u32 %v557, 7
    %v559 = vsub.s32 %v556, %v558
    %v560 = vrot.slane %v18, %v559
    %v562 = vunpack.c.l.s4 1983009808
    %v563 = vunpack.c.0.s8 %v562
    %v564 = vlaneseq
    %v565 = vshrl.u32 %v564, 7
    %v566 = vsub.s32 %v563, %v565
    %v567 = vrot.slane %v553, %v566
    %v568 = vcombine.high %v560, %v560
    %v569 = vcombine.high %v567, %v567
    %v570 = vcombine.high %v19, %v19
    %v572 = vunpack.c.l.s4 1983009808
    %v573 = vunpack.c.0.s8 %v572
    %v574 = vlaneseq
    %v575 = vshrl.u32 %v574, 7
    %v576 = vsub.s32 %v573, %v575
    %v577 = vrot.slane %v19, %v576
    %v579 = vunpack.c.l.s4 1983009808
    %v580 = vunpack.c.0.s8 %v579
    %v581 = vlaneseq
    %v582 = vshrl.u32 %v581, 7
    %v583 = vsub.s32 %v580, %v582
    %v584 = vrot.slane %v570, %v583
    %v585 = vcombine.high %v577, %v577
    %v586 = vcombine.high %v584, %v584
    %v587 = vcombine.high %v20, %v20
    %v589 = vunpack.c.l.s4 1983009808
    %v590 = vunpack.c.0.s8 %v589
    %v591 = vlaneseq
    %v592 = vshrl.u32 %v591, 7
    %v593 = vsub.s32 %v590, %v592
    %v594 = vrot.slane %v20, %v593
    %v596 = vunpack.c.l.s4 1983009808
    %v597 = vunpack.c.0.s8 %v596
    %v598 = vlaneseq
    %v599 = vshrl.u32 %v598, 7
    %v600 = vsub.s32 %v597, %v599
    %v601 = vrot.slane %v587, %v600
    %v602 = vcombine.high %v594, %v594
    %v603 = vcombine.high %v601, %v601
    %v604 = vcombine.high %v21, %v21
    %v606 = vunpack.c.l.s4 1983009808
    %v607 = vunpack.c.0.s8 %v606
    %v608 = vlaneseq
    %v609 = vshrl.u32 %v608, 7
    %v610 = vsub.s32 %v607, %v609
    %v611 = vrot.slane %v21, %v610
    %v613 = vunpack.c.l.s4 1983009808
    %v614 = vunpack.c.0.s8 %v613
    %v615 = vlaneseq
    %v616 = vshrl.u32 %v615, 7
    %v617 = vsub.s32 %v614, %v616
    %v618 = vrot.slane %v604, %v617
    %v619 = vcombine.high %v611, %v611
    %v620 = vcombine.high %v618, %v618
    %v622 = vunpack.c.l.s4 1983009808
    %v623 = vunpack.c.0.s8 %v622
    %v624 = vlaneseq
    %v625 = vshrl.u32 %v624, 7
    %v626 = vsub.s32 %v623, %v625
    %v627 = vrot.slane %v22, %v626
    %657 = vmatprep.subr.mxu0 0.0
    %658 = vmatpush1.msra.mxu0 %v38
    %659 = vmatprep.subr.mxu0 0.0
    %660 = vmatpush1.msra.mxu0 %v37
    %661 = vmatprep.subr.mxu0 0.0
    %662 = vmatpush1.msra.mxu0 %v36
    %663 = vmatprep.subr.mxu0 0.0
    %664 = vmatpush1.msra.mxu0 %v35
    %665 = vmatprep.subr.mxu0 0.0
    %666 = vmatpush1.msra.mxu0 %v34
    %667 = vmatprep.subr.mxu0 0.0
    %668 = vmatpush1.msra.mxu0 %v33
    %669 = vmatprep.subr.mxu0 0.0
    %670 = vmatpush1.msra.mxu0 %v32
    %671 = vmatprep.subr.mxu0 0.0
    %672 = vmatpush1.msra.mxu0 %v31
    %673 = vmatprep.subr.mxu0 0.0
    %674 = vmatpush1.msra.mxu0 %v30
    %675 = vmatprep.subr.mxu0 0.0
    %676 = vmatpush1.msra.mxu0 %v29
    %677 = vmatprep.subr.mxu0 0.0
    %678 = vmatpush1.msra.mxu0 %v28
    %679 = vmatprep.subr.mxu0 0.0
    %680 = vmatpush1.msra.mxu0 %v27
    %681 = vmatprep.subr.mxu0 0.0
    %682 = vmatpush1.msra.mxu0 %v26
    %683 = vmatprep.subr.mxu0 0.0
    %684 = vmatpush1.msra.mxu0 %v25
    %685 = vmatprep.subr.mxu0 0.0
    %686 = vmatpush1.msra.mxu0 %v24
    %687 = vmatprep.subr.mxu0 0.0
    %688 = vmatpush1.msra.mxu0 %v23
    %689 = vmatprep.subr.mxu0 0.0
    %690 = vmatpush2.msra.mxu0 %v54
    %691 = vmatprep.subr.mxu0 0.0
    %692 = vmatpush2.msra.mxu0 %v53
    %693 = vmatprep.subr.mxu0 0.0
    %694 = vmatpush2.msra.mxu0 %v52
    %695 = vmatprep.subr.mxu0 0.0
    %696 = vmatpush2.msra.mxu0 %v51
    %697 = vmatprep.subr.mxu0 0.0
    %698 = vmatpush2.msra.mxu0 %v50
    %699 = vmatprep.subr.mxu0 0.0
    %700 = vmatpush2.msra.mxu0 %v49
    %701 = vmatprep.subr.mxu0 0.0
    %702 = vmatpush2.msra.mxu0 %v48
    %703 = vmatprep.subr.mxu0 0.0
    %704 = vmatpush2.msra.mxu0 %v47
    %705 = vmatprep.subr.mxu0 0.0
    %706 = vmatpush2.msra.mxu0 %v46
    %707 = vmatprep.subr.mxu0 0.0
    %708 = vmatpush2.msra.mxu0 %v45
    %709 = vmatprep.subr.mxu0 0.0
    %710 = vmatpush2.msra.mxu0 %v44
    %711 = vmatprep.subr.mxu0 0.0
    %712 = vmatpush2.msra.mxu0 %v43
    %713 = vmatprep.subr.mxu0 0.0
    %714 = vmatpush2.msra.mxu0 %v42
    %715 = vmatprep.subr.mxu0 0.0
    %716 = vmatpush2.msra.mxu0 %v41
    %717 = vmatprep.subr.mxu0 0.0
    %718 = vmatpush2.msra.mxu0 %v40
    %719 = vmatprep.subr.mxu0 0.0
    %720 = vmatpush2.msra.mxu0 %v39
    %721 = vmatprep.mubr.f32.mxu0 %v517
    %722 = vmatmul.mubr.f32.gmra.mxu0 %v509
    %v723 = vpop.f32.mrf.mxu0
    %v724 = vadd.f32 %v492, %v723
    %v725 = vpop.f32.mrf.mxu0
    %726 = vdwg.mxu0
    %727 = vmatprep.subr.mxu0 0.0
    %728 = vmatpush1.msra.mxu0 %v70
    %729 = vmatprep.subr.mxu0 0.0
    %730 = vmatpush1.msra.mxu0 %v69
    %731 = vmatprep.subr.mxu0 0.0
    %732 = vmatpush1.msra.mxu0 %v68
    %733 = vmatprep.subr.mxu0 0.0
    %734 = vmatpush1.msra.mxu0 %v67
    %735 = vmatprep.subr.mxu0 0.0
    %736 = vmatpush1.msra.mxu0 %v66
    %737 = vmatprep.subr.mxu0 0.0
    %738 = vmatpush1.msra.mxu0 %v65
    %739 = vmatprep.subr.mxu0 0.0
    %740 = vmatpush1.msra.mxu0 %v64
    %741 = vmatprep.subr.mxu0 0.0
    %742 = vmatpush1.msra.mxu0 %v63
    %743 = vmatprep.subr.mxu0 0.0
    %744 = vmatpush1.msra.mxu0 %v62
    %745 = vmatprep.subr.mxu0 0.0
    %746 = vmatpush1.msra.mxu0 %v61
    %747 = vmatprep.subr.mxu0 0.0
    %748 = vmatpush1.msra.mxu0 %v60
    %749 = vmatprep.subr.mxu0 0.0
    %750 = vmatpush1.msra.mxu0 %v59
    %751 = vmatprep.subr.mxu0 0.0
    %752 = vmatpush1.msra.mxu0 %v58
    %753 = vmatprep.subr.mxu0 0.0
    %754 = vmatpush1.msra.mxu0 %v57
    %755 = vmatprep.subr.mxu0 0.0
    %756 = vmatpush1.msra.mxu0 %v56
    %757 = vmatprep.subr.mxu0 0.0
    %758 = vmatpush1.msra.mxu0 %v55
    %759 = vmatprep.subr.mxu0 0.0
    %760 = vmatpush2.msra.mxu0 %v86
    %761 = vmatprep.subr.mxu0 0.0
    %762 = vmatpush2.msra.mxu0 %v85
    %763 = vmatprep.subr.mxu0 0.0
    %764 = vmatpush2.msra.mxu0 %v84
    %765 = vmatprep.subr.mxu0 0.0
    %766 = vmatpush2.msra.mxu0 %v83
    %767 = vmatprep.subr.mxu0 0.0
    %768 = vmatpush2.msra.mxu0 %v82
    %769 = vmatprep.subr.mxu0 0.0
    %770 = vmatpush2.msra.mxu0 %v81
    %771 = vmatprep.subr.mxu0 0.0
    %772 = vmatpush2.msra.mxu0 %v80
    %773 = vmatprep.subr.mxu0 0.0
    %774 = vmatpush2.msra.mxu0 %v79
    %775 = vmatprep.subr.mxu0 0.0
    %776 = vmatpush2.msra.mxu0 %v78
    %777 = vmatprep.subr.mxu0 0.0
    %778 = vmatpush2.msra.mxu0 %v77
    %779 = vmatprep.subr.mxu0 0.0
    %780 = vmatpush2.msra.mxu0 %v76
    %781 = vmatprep.subr.mxu0 0.0
    %782 = vmatpush2.msra.mxu0 %v75
    %783 = vmatprep.subr.mxu0 0.0
    %784 = vmatpush2.msra.mxu0 %v74
    %785 = vmatprep.subr.mxu0 0.0
    %786 = vmatpush2.msra.mxu0 %v73
    %787 = vmatprep.subr.mxu0 0.0
    %788 = vmatpush2.msra.mxu0 %v72
    %789 = vmatprep.subr.mxu0 0.0
    %790 = vmatpush2.msra.mxu0 %v71
    %791 = vmatprep.mubr.f32.mxu0 %v518
    %792 = vmatmul.mubr.f32.gmra.mxu0 %v516
    %v793 = vpop.f32.mrf.mxu0
    %v794 = vadd.f32 %v724, %v793
    %v795 = vpop.f32.mrf.mxu0
    %796 = vdwg.mxu0
    %797 = vmatprep.subr.mxu0 0.0
    %798 = vmatpush1.msra.mxu0 %v102
    %799 = vmatprep.subr.mxu0 0.0
    %800 = vmatpush1.msra.mxu0 %v101
    %801 = vmatprep.subr.mxu0 0.0
    %802 = vmatpush1.msra.mxu0 %v100
    %803 = vmatprep.subr.mxu0 0.0
    %804 = vmatpush1.msra.mxu0 %v99
    %805 = vmatprep.subr.mxu0 0.0
    %806 = vmatpush1.msra.mxu0 %v98
    %807 = vmatprep.subr.mxu0 0.0
    %808 = vmatpush1.msra.mxu0 %v97
    %809 = vmatprep.subr.mxu0 0.0
    %810 = vmatpush1.msra.mxu0 %v96
    %811 = vmatprep.subr.mxu0 0.0
    %812 = vmatpush1.msra.mxu0 %v95
    %813 = vmatprep.subr.mxu0 0.0
    %814 = vmatpush1.msra.mxu0 %v94
    %815 = vmatprep.subr.mxu0 0.0
    %816 = vmatpush1.msra.mxu0 %v93
    %817 = vmatprep.subr.mxu0 0.0
    %818 = vmatpush1.msra.mxu0 %v92
    %819 = vmatprep.subr.mxu0 0.0
    %820 = vmatpush1.msra.mxu0 %v91
    %821 = vmatprep.subr.mxu0 0.0
    %822 = vmatpush1.msra.mxu0 %v90
    %823 = vmatprep.subr.mxu0 0.0
    %824 = vmatpush1.msra.mxu0 %v89
    %825 = vmatprep.subr.mxu0 0.0
    %826 = vmatpush1.msra.mxu0 %v88
    %827 = vmatprep.subr.mxu0 0.0
    %828 = vmatpush1.msra.mxu0 %v87
    %829 = vmatprep.subr.mxu0 0.0
    %830 = vmatpush2.msra.mxu0 %v118
    %831 = vmatprep.subr.mxu0 0.0
    %832 = vmatpush2.msra.mxu0 %v117
    %833 = vmatprep.subr.mxu0 0.0
    %834 = vmatpush2.msra.mxu0 %v116
    %835 = vmatprep.subr.mxu0 0.0
    %836 = vmatpush2.msra.mxu0 %v115
    %837 = vmatprep.subr.mxu0 0.0
    %838 = vmatpush2.msra.mxu0 %v114
    %839 = vmatprep.subr.mxu0 0.0
    %840 = vmatpush2.msra.mxu0 %v113
    %841 = vmatprep.subr.mxu0 0.0
    %842 = vmatpush2.msra.mxu0 %v112
    %843 = vmatprep.subr.mxu0 0.0
    %844 = vmatpush2.msra.mxu0 %v111
    %845 = vmatprep.subr.mxu0 0.0
    %846 = vmatpush2.msra.mxu0 %v110
    %847 = vmatprep.subr.mxu0 0.0
    %848 = vmatpush2.msra.mxu0 %v109
    %849 = vmatprep.subr.mxu0 0.0
    %850 = vmatpush2.msra.mxu0 %v108
    %851 = vmatprep.subr.mxu0 0.0
    %852 = vmatpush2.msra.mxu0 %v107
    %853 = vmatprep.subr.mxu0 0.0
    %854 = vmatpush2.msra.mxu0 %v106
    %855 = vmatprep.subr.mxu0 0.0
    %856 = vmatpush2.msra.mxu0 %v105
    %857 = vmatprep.subr.mxu0 0.0
    %858 = vmatpush2.msra.mxu0 %v104
    %859 = vmatprep.subr.mxu0 0.0
    %860 = vmatpush2.msra.mxu0 %v103
    %861 = vmatprep.mubr.f32.mxu0 %v534
    %862 = vmatmul.mubr.f32.gmra.mxu0 %v526
    %v863 = vpop.f32.mrf.mxu0
    %v864 = vadd.f32 %v794, %v863
    %v865 = vpop.f32.mrf.mxu0
    %866 = vdwg.mxu0
    %867 = vmatprep.subr.mxu0 0.0
    %868 = vmatpush1.msra.mxu0 %v134
    %869 = vmatprep.subr.mxu0 0.0
    %870 = vmatpush1.msra.mxu0 %v133
    %871 = vmatprep.subr.mxu0 0.0
    %872 = vmatpush1.msra.mxu0 %v132
    %873 = vmatprep.subr.mxu0 0.0
    %874 = vmatpush1.msra.mxu0 %v131
    %875 = vmatprep.subr.mxu0 0.0
    %876 = vmatpush1.msra.mxu0 %v130
    %877 = vmatprep.subr.mxu0 0.0
    %878 = vmatpush1.msra.mxu0 %v129
    %879 = vmatprep.subr.mxu0 0.0
    %880 = vmatpush1.msra.mxu0 %v128
    %881 = vmatprep.subr.mxu0 0.0
    %882 = vmatpush1.msra.mxu0 %v127
    %883 = vmatprep.subr.mxu0 0.0
    %884 = vmatpush1.msra.mxu0 %v126
    %885 = vmatprep.subr.mxu0 0.0
    %886 = vmatpush1.msra.mxu0 %v125
    %887 = vmatprep.subr.mxu0 0.0
    %888 = vmatpush1.msra.mxu0 %v124
    %889 = vmatprep.subr.mxu0 0.0
    %890 = vmatpush1.msra.mxu0 %v123
    %891 = vmatprep.subr.mxu0 0.0
    %892 = vmatpush1.msra.mxu0 %v122
    %893 = vmatprep.subr.mxu0 0.0
    %894 = vmatpush1.msra.mxu0 %v121
    %895 = vmatprep.subr.mxu0 0.0
    %896 = vmatpush1.msra.mxu0 %v120
    %897 = vmatprep.subr.mxu0 0.0
    %898 = vmatpush1.msra.mxu0 %v119
    %899 = vmatprep.subr.mxu0 0.0
    %900 = vmatpush2.msra.mxu0 %v150
    %901 = vmatprep.subr.mxu0 0.0
    %902 = vmatpush2.msra.mxu0 %v149
    %903 = vmatprep.subr.mxu0 0.0
    %904 = vmatpush2.msra.mxu0 %v148
    %905 = vmatprep.subr.mxu0 0.0
    %906 = vmatpush2.msra.mxu0 %v147
    %907 = vmatprep.subr.mxu0 0.0
    %908 = vmatpush2.msra.mxu0 %v146
    %909 = vmatprep.subr.mxu0 0.0
    %910 = vmatpush2.msra.mxu0 %v145
    %911 = vmatprep.subr.mxu0 0.0
    %912 = vmatpush2.msra.mxu0 %v144
    %913 = vmatprep.subr.mxu0 0.0
    %914 = vmatpush2.msra.mxu0 %v143
    %915 = vmatprep.subr.mxu0 0.0
    %916 = vmatpush2.msra.mxu0 %v142
    %917 = vmatprep.subr.mxu0 0.0
    %918 = vmatpush2.msra.mxu0 %v141
    %919 = vmatprep.subr.mxu0 0.0
    %920 = vmatpush2.msra.mxu0 %v140
    %921 = vmatprep.subr.mxu0 0.0
    %922 = vmatpush2.msra.mxu0 %v139
    %923 = vmatprep.subr.mxu0 0.0
    %924 = vmatpush2.msra.mxu0 %v138
    %925 = vmatprep.subr.mxu0 0.0
    %926 = vmatpush2.msra.mxu0 %v137
    %927 = vmatprep.subr.mxu0 0.0
    %928 = vmatpush2.msra.mxu0 %v136
    %929 = vmatprep.subr.mxu0 0.0
    %930 = vmatpush2.msra.mxu0 %v135
    %931 = vmatprep.mubr.f32.mxu0 %v535
    %932 = vmatmul.mubr.f32.gmra.mxu0 %v533
    %v933 = vpop.f32.mrf.mxu0
    %v934 = vadd.f32 %v864, %v933
    %v935 = vpop.f32.mrf.mxu0
    %936 = vdwg.mxu0
    %937 = vmatprep.subr.mxu0 0.0
    %938 = vmatpush1.msra.mxu0 %v166
    %939 = vmatprep.subr.mxu0 0.0
    %940 = vmatpush1.msra.mxu0 %v165
    %941 = vmatprep.subr.mxu0 0.0
    %942 = vmatpush1.msra.mxu0 %v164
    %943 = vmatprep.subr.mxu0 0.0
    %944 = vmatpush1.msra.mxu0 %v163
    %945 = vmatprep.subr.mxu0 0.0
    %946 = vmatpush1.msra.mxu0 %v162
    %947 = vmatprep.subr.mxu0 0.0
    %948 = vmatpush1.msra.mxu0 %v161
    %949 = vmatprep.subr.mxu0 0.0
    %950 = vmatpush1.msra.mxu0 %v160
    %951 = vmatprep.subr.mxu0 0.0
    %952 = vmatpush1.msra.mxu0 %v159
    %953 = vmatprep.subr.mxu0 0.0
    %954 = vmatpush1.msra.mxu0 %v158
    %955 = vmatprep.subr.mxu0 0.0
    %956 = vmatpush1.msra.mxu0 %v157
    %957 = vmatprep.subr.mxu0 0.0
    %958 = vmatpush1.msra.mxu0 %v156
    %959 = vmatprep.subr.mxu0 0.0
    %960 = vmatpush1.msra.mxu0 %v155
    %961 = vmatprep.subr.mxu0 0.0
    %962 = vmatpush1.msra.mxu0 %v154
    %963 = vmatprep.subr.mxu0 0.0
    %964 = vmatpush1.msra.mxu0 %v153
    %965 = vmatprep.subr.mxu0 0.0
    %966 = vmatpush1.msra.mxu0 %v152
    %967 = vmatprep.subr.mxu0 0.0
    %968 = vmatpush1.msra.mxu0 %v151
    %969 = vmatprep.subr.mxu0 0.0
    %970 = vmatpush2.msra.mxu0 %v182
    %971 = vmatprep.subr.mxu0 0.0
    %972 = vmatpush2.msra.mxu0 %v181
    %973 = vmatprep.subr.mxu0 0.0
    %974 = vmatpush2.msra.mxu0 %v180
    %975 = vmatprep.subr.mxu0 0.0
    %976 = vmatpush2.msra.mxu0 %v179
    %977 = vmatprep.subr.mxu0 0.0
    %978 = vmatpush2.msra.mxu0 %v178
    %979 = vmatprep.subr.mxu0 0.0
    %980 = vmatpush2.msra.mxu0 %v177
    %981 = vmatprep.subr.mxu0 0.0
    %982 = vmatpush2.msra.mxu0 %v176
    %983 = vmatprep.subr.mxu0 0.0
    %984 = vmatpush2.msra.mxu0 %v175
    %985 = vmatprep.subr.mxu0 0.0
    %986 = vmatpush2.msra.mxu0 %v174
    %987 = vmatprep.subr.mxu0 0.0
    %988 = vmatpush2.msra.mxu0 %v173
    %989 = vmatprep.subr.mxu0 0.0
    %990 = vmatpush2.msra.mxu0 %v172
    %991 = vmatprep.subr.mxu0 0.0
    %992 = vmatpush2.msra.mxu0 %v171
    %993 = vmatprep.subr.mxu0 0.0
    %994 = vmatpush2.msra.mxu0 %v170
    %995 = vmatprep.subr.mxu0 0.0
    %996 = vmatpush2.msra.mxu0 %v169
    %997 = vmatprep.subr.mxu0 0.0
    %998 = vmatpush2.msra.mxu0 %v168
    %999 = vmatprep.subr.mxu0 0.0
    %1000 = vmatpush2.msra.mxu0 %v167
    %1001 = vmatprep.mubr.f32.mxu0 %v551
    %1002 = vmatmul.mubr.f32.gmra.mxu0 %v543
    %v1003 = vpop.f32.mrf.mxu0
    %v1004 = vadd.f32 %v934, %v1003
    %v1005 = vpop.f32.mrf.mxu0
    %1006 = vdwg.mxu0
    %1007 = vmatprep.subr.mxu0 0.0
    %1008 = vmatpush1.msra.mxu0 %v198
    %1009 = vmatprep.subr.mxu0 0.0
    %1010 = vmatpush1.msra.mxu0 %v197
    %1011 = vmatprep.subr.mxu0 0.0
    %1012 = vmatpush1.msra.mxu0 %v196
    %1013 = vmatprep.subr.mxu0 0.0
    %1014 = vmatpush1.msra.mxu0 %v195
    %1015 = vmatprep.subr.mxu0 0.0
    %1016 = vmatpush1.msra.mxu0 %v194
    %1017 = vmatprep.subr.mxu0 0.0
    %1018 = vmatpush1.msra.mxu0 %v193
    %1019 = vmatprep.subr.mxu0 0.0
    %1020 = vmatpush1.msra.mxu0 %v192
    %1021 = vmatprep.subr.mxu0 0.0
    %1022 = vmatpush1.msra.mxu0 %v191
    %1023 = vmatprep.subr.mxu0 0.0
    %1024 = vmatpush1.msra.mxu0 %v190
    %1025 = vmatprep.subr.mxu0 0.0
    %1026 = vmatpush1.msra.mxu0 %v189
    %1027 = vmatprep.subr.mxu0 0.0
    %1028 = vmatpush1.msra.mxu0 %v188
    %1029 = vmatprep.subr.mxu0 0.0
    %1030 = vmatpush1.msra.mxu0 %v187
    %1031 = vmatprep.subr.mxu0 0.0
    %1032 = vmatpush1.msra.mxu0 %v186
    %1033 = vmatprep.subr.mxu0 0.0
    %1034 = vmatpush1.msra.mxu0 %v185
    %1035 = vmatprep.subr.mxu0 0.0
    %1036 = vmatpush1.msra.mxu0 %v184
    %1037 = vmatprep.subr.mxu0 0.0
    %1038 = vmatpush1.msra.mxu0 %v183
    %1039 = vmatprep.subr.mxu0 0.0
    %1040 = vmatpush2.msra.mxu0 %v214
    %1041 = vmatprep.subr.mxu0 0.0
    %1042 = vmatpush2.msra.mxu0 %v213
    %1043 = vmatprep.subr.mxu0 0.0
    %1044 = vmatpush2.msra.mxu0 %v212
    %1045 = vmatprep.subr.mxu0 0.0
    %1046 = vmatpush2.msra.mxu0 %v211
    %1047 = vmatprep.subr.mxu0 0.0
    %1048 = vmatpush2.msra.mxu0 %v210
    %1049 = vmatprep.subr.mxu0 0.0
    %1050 = vmatpush2.msra.mxu0 %v209
    %1051 = vmatprep.subr.mxu0 0.0
    %1052 = vmatpush2.msra.mxu0 %v208
    %1053 = vmatprep.subr.mxu0 0.0
    %1054 = vmatpush2.msra.mxu0 %v207
    %1055 = vmatprep.subr.mxu0 0.0
    %1056 = vmatpush2.msra.mxu0 %v206
    %1057 = vmatprep.subr.mxu0 0.0
    %1058 = vmatpush2.msra.mxu0 %v205
    %1059 = vmatprep.subr.mxu0 0.0
    %1060 = vmatpush2.msra.mxu0 %v204
    %1061 = vmatprep.subr.mxu0 0.0
    %1062 = vmatpush2.msra.mxu0 %v203
    %1063 = vmatprep.subr.mxu0 0.0
    %1064 = vmatpush2.msra.mxu0 %v202
    %1065 = vmatprep.subr.mxu0 0.0
    %1066 = vmatpush2.msra.mxu0 %v201
    %1067 = vmatprep.subr.mxu0 0.0
    %1068 = vmatpush2.msra.mxu0 %v200
    %1069 = vmatprep.subr.mxu0 0.0
    %1070 = vmatpush2.msra.mxu0 %v199
    %1071 = vmatprep.mubr.f32.mxu0 %v552
    %1072 = vmatmul.mubr.f32.gmra.mxu0 %v550
    %v1073 = vpop.f32.mrf.mxu0
    %v1074 = vadd.f32 %v1004, %v1073
    %v1075 = vpop.f32.mrf.mxu0
    %1076 = vdwg.mxu0
    %1077 = vmatprep.subr.mxu0 0.0
    %1078 = vmatpush1.msra.mxu0 %v230
    %1079 = vmatprep.subr.mxu0 0.0
    %1080 = vmatpush1.msra.mxu0 %v229
    %1081 = vmatprep.subr.mxu0 0.0
    %1082 = vmatpush1.msra.mxu0 %v228
    %1083 = vmatprep.subr.mxu0 0.0
    %1084 = vmatpush1.msra.mxu0 %v227
    %1085 = vmatprep.subr.mxu0 0.0
    %1086 = vmatpush1.msra.mxu0 %v226
    %1087 = vmatprep.subr.mxu0 0.0
    %1088 = vmatpush1.msra.mxu0 %v225
    %1089 = vmatprep.subr.mxu0 0.0
    %1090 = vmatpush1.msra.mxu0 %v224
    %1091 = vmatprep.subr.mxu0 0.0
    %1092 = vmatpush1.msra.mxu0 %v223
    %1093 = vmatprep.subr.mxu0 0.0
    %1094 = vmatpush1.msra.mxu0 %v222
    %1095 = vmatprep.subr.mxu0 0.0
    %1096 = vmatpush1.msra.mxu0 %v221
    %1097 = vmatprep.subr.mxu0 0.0
    %1098 = vmatpush1.msra.mxu0 %v220
    %1099 = vmatprep.subr.mxu0 0.0
    %1100 = vmatpush1.msra.mxu0 %v219
    %1101 = vmatprep.subr.mxu0 0.0
    %1102 = vmatpush1.msra.mxu0 %v218
    %1103 = vmatprep.subr.mxu0 0.0
    %1104 = vmatpush1.msra.mxu0 %v217
    %1105 = vmatprep.subr.mxu0 0.0
    %1106 = vmatpush1.msra.mxu0 %v216
    %1107 = vmatprep.subr.mxu0 0.0
    %1108 = vmatpush1.msra.mxu0 %v215
    %1109 = vmatprep.subr.mxu0 0.0
    %1110 = vmatpush2.msra.mxu0 %v246
    %1111 = vmatprep.subr.mxu0 0.0
    %1112 = vmatpush2.msra.mxu0 %v245
    %1113 = vmatprep.subr.mxu0 0.0
    %1114 = vmatpush2.msra.mxu0 %v244
    %1115 = vmatprep.subr.mxu0 0.0
    %1116 = vmatpush2.msra.mxu0 %v243
    %1117 = vmatprep.subr.mxu0 0.0
    %1118 = vmatpush2.msra.mxu0 %v242
    %1119 = vmatprep.subr.mxu0 0.0
    %1120 = vmatpush2.msra.mxu0 %v241
    %1121 = vmatprep.subr.mxu0 0.0
    %1122 = vmatpush2.msra.mxu0 %v240
    %1123 = vmatprep.subr.mxu0 0.0
    %1124 = vmatpush2.msra.mxu0 %v239
    %1125 = vmatprep.subr.mxu0 0.0
    %1126 = vmatpush2.msra.mxu0 %v238
    %1127 = vmatprep.subr.mxu0 0.0
    %1128 = vmatpush2.msra.mxu0 %v237
    %1129 = vmatprep.subr.mxu0 0.0
    %1130 = vmatpush2.msra.mxu0 %v236
    %1131 = vmatprep.subr.mxu0 0.0
    %1132 = vmatpush2.msra.mxu0 %v235
    %1133 = vmatprep.subr.mxu0 0.0
    %1134 = vmatpush2.msra.mxu0 %v234
    %1135 = vmatprep.subr.mxu0 0.0
    %1136 = vmatpush2.msra.mxu0 %v233
    %1137 = vmatprep.subr.mxu0 0.0
    %1138 = vmatpush2.msra.mxu0 %v232
    %1139 = vmatprep.subr.mxu0 0.0
    %1140 = vmatpush2.msra.mxu0 %v231
    %1141 = vmatprep.mubr.f32.mxu0 %v568
    %1142 = vmatmul.mubr.f32.gmra.mxu0 %v560
    %v1143 = vpop.f32.mrf.mxu0
    %v1144 = vadd.f32 %v1074, %v1143
    %v1145 = vpop.f32.mrf.mxu0
    %1146 = vdwg.mxu0
    %1147 = vmatprep.subr.mxu0 0.0
    %1148 = vmatpush1.msra.mxu0 %v262
    %1149 = vmatprep.subr.mxu0 0.0
    %1150 = vmatpush1.msra.mxu0 %v261
    %1151 = vmatprep.subr.mxu0 0.0
    %1152 = vmatpush1.msra.mxu0 %v260
    %1153 = vmatprep.subr.mxu0 0.0
    %1154 = vmatpush1.msra.mxu0 %v259
    %1155 = vmatprep.subr.mxu0 0.0
    %1156 = vmatpush1.msra.mxu0 %v258
    %1157 = vmatprep.subr.mxu0 0.0
    %1158 = vmatpush1.msra.mxu0 %v257
    %1159 = vmatprep.subr.mxu0 0.0
    %1160 = vmatpush1.msra.mxu0 %v256
    %1161 = vmatprep.subr.mxu0 0.0
    %1162 = vmatpush1.msra.mxu0 %v255
    %1163 = vmatprep.subr.mxu0 0.0
    %1164 = vmatpush1.msra.mxu0 %v254
    %1165 = vmatprep.subr.mxu0 0.0
    %1166 = vmatpush1.msra.mxu0 %v253
    %1167 = vmatprep.subr.mxu0 0.0
    %1168 = vmatpush1.msra.mxu0 %v252
    %1169 = vmatprep.subr.mxu0 0.0
    %1170 = vmatpush1.msra.mxu0 %v251
    %1171 = vmatprep.subr.mxu0 0.0
    %1172 = vmatpush1.msra.mxu0 %v250
    %1173 = vmatprep.subr.mxu0 0.0
    %1174 = vmatpush1.msra.mxu0 %v249
    %1175 = vmatprep.subr.mxu0 0.0
    %1176 = vmatpush1.msra.mxu0 %v248
    %1177 = vmatprep.subr.mxu0 0.0
    %1178 = vmatpush1.msra.mxu0 %v247
    %1179 = vmatprep.subr.mxu0 0.0
    %1180 = vmatpush2.msra.mxu0 %v278
    %1181 = vmatprep.subr.mxu0 0.0
    %1182 = vmatpush2.msra.mxu0 %v277
    %1183 = vmatprep.subr.mxu0 0.0
    %1184 = vmatpush2.msra.mxu0 %v276
    %1185 = vmatprep.subr.mxu0 0.0
    %1186 = vmatpush2.msra.mxu0 %v275
    %1187 = vmatprep.subr.mxu0 0.0
    %1188 = vmatpush2.msra.mxu0 %v274
    %1189 = vmatprep.subr.mxu0 0.0
    %1190 = vmatpush2.msra.mxu0 %v273
    %1191 = vmatprep.subr.mxu0 0.0
    %1192 = vmatpush2.msra.mxu0 %v272
    %1193 = vmatprep.subr.mxu0 0.0
    %1194 = vmatpush2.msra.mxu0 %v271
    %1195 = vmatprep.subr.mxu0 0.0
    %1196 = vmatpush2.msra.mxu0 %v270
    %1197 = vmatprep.subr.mxu0 0.0
    %1198 = vmatpush2.msra.mxu0 %v269
    %1199 = vmatprep.subr.mxu0 0.0
    %1200 = vmatpush2.msra.mxu0 %v268
    %1201 = vmatprep.subr.mxu0 0.0
    %1202 = vmatpush2.msra.mxu0 %v267
    %1203 = vmatprep.subr.mxu0 0.0
    %1204 = vmatpush2.msra.mxu0 %v266
    %1205 = vmatprep.subr.mxu0 0.0
    %1206 = vmatpush2.msra.mxu0 %v265
    %1207 = vmatprep.subr.mxu0 0.0
    %1208 = vmatpush2.msra.mxu0 %v264
    %1209 = vmatprep.subr.mxu0 0.0
    %1210 = vmatpush2.msra.mxu0 %v263
    %1211 = vmatprep.mubr.f32.mxu0 %v569
    %1212 = vmatmul.mubr.f32.gmra.mxu0 %v567
    %v1213 = vpop.f32.mrf.mxu0
    %v1214 = vadd.f32 %v1144, %v1213
    %v1215 = vpop.f32.mrf.mxu0
    %1216 = vdwg.mxu0
    %1217 = vmatprep.subr.mxu0 0.0
    %1218 = vmatpush1.msra.mxu0 %v294
    %1219 = vmatprep.subr.mxu0 0.0
    %1220 = vmatpush1.msra.mxu0 %v293
    %1221 = vmatprep.subr.mxu0 0.0
    %1222 = vmatpush1.msra.mxu0 %v292
    %1223 = vmatprep.subr.mxu0 0.0
    %1224 = vmatpush1.msra.mxu0 %v291
    %1225 = vmatprep.subr.mxu0 0.0
    %1226 = vmatpush1.msra.mxu0 %v290
    %1227 = vmatprep.subr.mxu0 0.0
    %1228 = vmatpush1.msra.mxu0 %v289
    %1229 = vmatprep.subr.mxu0 0.0
    %1230 = vmatpush1.msra.mxu0 %v288
    %1231 = vmatprep.subr.mxu0 0.0
    %1232 = vmatpush1.msra.mxu0 %v287
    %1233 = vmatprep.subr.mxu0 0.0
    %1234 = vmatpush1.msra.mxu0 %v286
    %1235 = vmatprep.subr.mxu0 0.0
    %1236 = vmatpush1.msra.mxu0 %v285
    %1237 = vmatprep.subr.mxu0 0.0
    %1238 = vmatpush1.msra.mxu0 %v284
    %1239 = vmatprep.subr.mxu0 0.0
    %1240 = vmatpush1.msra.mxu0 %v283
    %1241 = vmatprep.subr.mxu0 0.0
    %1242 = vmatpush1.msra.mxu0 %v282
    %1243 = vmatprep.subr.mxu0 0.0
    %1244 = vmatpush1.msra.mxu0 %v281
    %1245 = vmatprep.subr.mxu0 0.0
    %1246 = vmatpush1.msra.mxu0 %v280
    %1247 = vmatprep.subr.mxu0 0.0
    %1248 = vmatpush1.msra.mxu0 %v279
    %1249 = vmatprep.subr.mxu0 0.0
    %1250 = vmatpush2.msra.mxu0 %v310
    %1251 = vmatprep.subr.mxu0 0.0
    %1252 = vmatpush2.msra.mxu0 %v309
    %1253 = vmatprep.subr.mxu0 0.0
    %1254 = vmatpush2.msra.mxu0 %v308
    %1255 = vmatprep.subr.mxu0 0.0
    %1256 = vmatpush2.msra.mxu0 %v307
    %1257 = vmatprep.subr.mxu0 0.0
    %1258 = vmatpush2.msra.mxu0 %v306
    %1259 = vmatprep.subr.mxu0 0.0
    %1260 = vmatpush2.msra.mxu0 %v305
    %1261 = vmatprep.subr.mxu0 0.0
    %1262 = vmatpush2.msra.mxu0 %v304
    %1263 = vmatprep.subr.mxu0 0.0
    %1264 = vmatpush2.msra.mxu0 %v303
    %1265 = vmatprep.subr.mxu0 0.0
    %1266 = vmatpush2.msra.mxu0 %v302
    %1267 = vmatprep.subr.mxu0 0.0
    %1268 = vmatpush2.msra.mxu0 %v301
    %1269 = vmatprep.subr.mxu0 0.0
    %1270 = vmatpush2.msra.mxu0 %v300
    %1271 = vmatprep.subr.mxu0 0.0
    %1272 = vmatpush2.msra.mxu0 %v299
    %1273 = vmatprep.subr.mxu0 0.0
    %1274 = vmatpush2.msra.mxu0 %v298
    %1275 = vmatprep.subr.mxu0 0.0
    %1276 = vmatpush2.msra.mxu0 %v297
    %1277 = vmatprep.subr.mxu0 0.0
    %1278 = vmatpush2.msra.mxu0 %v296
    %1279 = vmatprep.subr.mxu0 0.0
    %1280 = vmatpush2.msra.mxu0 %v295
    %1281 = vmatprep.mubr.f32.mxu0 %v585
    %1282 = vmatmul.mubr.f32.gmra.mxu0 %v577
    %v1283 = vpop.f32.mrf.mxu0
    %v1284 = vadd.f32 %v1214, %v1283
    %v1285 = vpop.f32.mrf.mxu0
    %1286 = vdwg.mxu0
    %1287 = vmatprep.subr.mxu0 0.0
    %1288 = vmatpush1.msra.mxu0 %v326
    %1289 = vmatprep.subr.mxu0 0.0
    %1290 = vmatpush1.msra.mxu0 %v325
    %1291 = vmatprep.subr.mxu0 0.0
    %1292 = vmatpush1.msra.mxu0 %v324
    %1293 = vmatprep.subr.mxu0 0.0
    %1294 = vmatpush1.msra.mxu0 %v323
    %1295 = vmatprep.subr.mxu0 0.0
    %1296 = vmatpush1.msra.mxu0 %v322
    %1297 = vmatprep.subr.mxu0 0.0
    %1298 = vmatpush1.msra.mxu0 %v321
    %1299 = vmatprep.subr.mxu0 0.0
    %1300 = vmatpush1.msra.mxu0 %v320
    %1301 = vmatprep.subr.mxu0 0.0
    %1302 = vmatpush1.msra.mxu0 %v319
    %1303 = vmatprep.subr.mxu0 0.0
    %1304 = vmatpush1.msra.mxu0 %v318
    %1305 = vmatprep.subr.mxu0 0.0
    %1306 = vmatpush1.msra.mxu0 %v317
    %1307 = vmatprep.subr.mxu0 0.0
    %1308 = vmatpush1.msra.mxu0 %v316
    %1309 = vmatprep.subr.mxu0 0.0
    %1310 = vmatpush1.msra.mxu0 %v315
    %1311 = vmatprep.subr.mxu0 0.0
    %1312 = vmatpush1.msra.mxu0 %v314
    %1313 = vmatprep.subr.mxu0 0.0
    %1314 = vmatpush1.msra.mxu0 %v313
    %1315 = vmatprep.subr.mxu0 0.0
    %1316 = vmatpush1.msra.mxu0 %v312
    %1317 = vmatprep.subr.mxu0 0.0
    %1318 = vmatpush1.msra.mxu0 %v311
    %1319 = vmatprep.subr.mxu0 0.0
    %1320 = vmatpush2.msra.mxu0 %v342
    %1321 = vmatprep.subr.mxu0 0.0
    %1322 = vmatpush2.msra.mxu0 %v341
    %1323 = vmatprep.subr.mxu0 0.0
    %1324 = vmatpush2.msra.mxu0 %v340
    %1325 = vmatprep.subr.mxu0 0.0
    %1326 = vmatpush2.msra.mxu0 %v339
    %1327 = vmatprep.subr.mxu0 0.0
    %1328 = vmatpush2.msra.mxu0 %v338
    %1329 = vmatprep.subr.mxu0 0.0
    %1330 = vmatpush2.msra.mxu0 %v337
    %1331 = vmatprep.subr.mxu0 0.0
    %1332 = vmatpush2.msra.mxu0 %v336
    %1333 = vmatprep.subr.mxu0 0.0
    %1334 = vmatpush2.msra.mxu0 %v335
    %1335 = vmatprep.subr.mxu0 0.0
    %1336 = vmatpush2.msra.mxu0 %v334
    %1337 = vmatprep.subr.mxu0 0.0
    %1338 = vmatpush2.msra.mxu0 %v333
    %1339 = vmatprep.subr.mxu0 0.0
    %1340 = vmatpush2.msra.mxu0 %v332
    %1341 = vmatprep.subr.mxu0 0.0
    %1342 = vmatpush2.msra.mxu0 %v331
    %1343 = vmatprep.subr.mxu0 0.0
    %1344 = vmatpush2.msra.mxu0 %v330
    %1345 = vmatprep.subr.mxu0 0.0
    %1346 = vmatpush2.msra.mxu0 %v329
    %1347 = vmatprep.subr.mxu0 0.0
    %1348 = vmatpush2.msra.mxu0 %v328
    %1349 = vmatprep.subr.mxu0 0.0
    %1350 = vmatpush2.msra.mxu0 %v327
    %1351 = vmatprep.mubr.f32.mxu0 %v586
    %1352 = vmatmul.mubr.f32.gmra.mxu0 %v584
    %v1353 = vpop.f32.mrf.mxu0
    %v1354 = vadd.f32 %v1284, %v1353
    %v1355 = vpop.f32.mrf.mxu0
    %1356 = vdwg.mxu0
    %1357 = vmatprep.subr.mxu0 0.0
    %1358 = vmatpush1.msra.mxu0 %v358
    %1359 = vmatprep.subr.mxu0 0.0
    %1360 = vmatpush1.msra.mxu0 %v357
    %1361 = vmatprep.subr.mxu0 0.0
    %1362 = vmatpush1.msra.mxu0 %v356
    %1363 = vmatprep.subr.mxu0 0.0
    %1364 = vmatpush1.msra.mxu0 %v355
    %1365 = vmatprep.subr.mxu0 0.0
    %1366 = vmatpush1.msra.mxu0 %v354
    %1367 = vmatprep.subr.mxu0 0.0
    %1368 = vmatpush1.msra.mxu0 %v353
    %1369 = vmatprep.subr.mxu0 0.0
    %1370 = vmatpush1.msra.mxu0 %v352
    %1371 = vmatprep.subr.mxu0 0.0
    %1372 = vmatpush1.msra.mxu0 %v351
    %1373 = vmatprep.subr.mxu0 0.0
    %1374 = vmatpush1.msra.mxu0 %v350
    %1375 = vmatprep.subr.mxu0 0.0
    %1376 = vmatpush1.msra.mxu0 %v349
    %1377 = vmatprep.subr.mxu0 0.0
    %1378 = vmatpush1.msra.mxu0 %v348
    %1379 = vmatprep.subr.mxu0 0.0
    %1380 = vmatpush1.msra.mxu0 %v347
    %1381 = vmatprep.subr.mxu0 0.0
    %1382 = vmatpush1.msra.mxu0 %v346
    %1383 = vmatprep.subr.mxu0 0.0
    %1384 = vmatpush1.msra.mxu0 %v345
    %1385 = vmatprep.subr.mxu0 0.0
    %1386 = vmatpush1.msra.mxu0 %v344
    %1387 = vmatprep.subr.mxu0 0.0
    %1388 = vmatpush1.msra.mxu0 %v343
    %1389 = vmatprep.subr.mxu0 0.0
    %1390 = vmatpush2.msra.mxu0 %v374
    %1391 = vmatprep.subr.mxu0 0.0
    %1392 = vmatpush2.msra.mxu0 %v373
    %1393 = vmatprep.subr.mxu0 0.0
    %1394 = vmatpush2.msra.mxu0 %v372
    %1395 = vmatprep.subr.mxu0 0.0
    %1396 = vmatpush2.msra.mxu0 %v371
    %1397 = vmatprep.subr.mxu0 0.0
    %1398 = vmatpush2.msra.mxu0 %v370
    %1399 = vmatprep.subr.mxu0 0.0
    %1400 = vmatpush2.msra.mxu0 %v369
    %1401 = vmatprep.subr.mxu0 0.0
    %1402 = vmatpush2.msra.mxu0 %v368
    %1403 = vmatprep.subr.mxu0 0.0
    %1404 = vmatpush2.msra.mxu0 %v367
    %1405 = vmatprep.subr.mxu0 0.0
    %1406 = vmatpush2.msra.mxu0 %v366
    %1407 = vmatprep.subr.mxu0 0.0
    %1408 = vmatpush2.msra.mxu0 %v365
    %1409 = vmatprep.subr.mxu0 0.0
    %1410 = vmatpush2.msra.mxu0 %v364
    %1411 = vmatprep.subr.mxu0 0.0
    %1412 = vmatpush2.msra.mxu0 %v363
    %1413 = vmatprep.subr.mxu0 0.0
    %1414 = vmatpush2.msra.mxu0 %v362
    %1415 = vmatprep.subr.mxu0 0.0
    %1416 = vmatpush2.msra.mxu0 %v361
    %1417 = vmatprep.subr.mxu0 0.0
    %1418 = vmatpush2.msra.mxu0 %v360
    %1419 = vmatprep.subr.mxu0 0.0
    %1420 = vmatpush2.msra.mxu0 %v359
    %1421 = vmatprep.mubr.f32.mxu0 %v602
    %1422 = vmatmul.mubr.f32.gmra.mxu0 %v594
    %v1423 = vpop.f32.mrf.mxu0
    %v1424 = vadd.f32 %v1354, %v1423
    %v1425 = vpop.f32.mrf.mxu0
    %1426 = vdwg.mxu0
    %1427 = vmatprep.subr.mxu0 0.0
    %1428 = vmatpush1.msra.mxu0 %v390
    %1429 = vmatprep.subr.mxu0 0.0
    %1430 = vmatpush1.msra.mxu0 %v389
    %1431 = vmatprep.subr.mxu0 0.0
    %1432 = vmatpush1.msra.mxu0 %v388
    %1433 = vmatprep.subr.mxu0 0.0
    %1434 = vmatpush1.msra.mxu0 %v387
    %1435 = vmatprep.subr.mxu0 0.0
    %1436 = vmatpush1.msra.mxu0 %v386
    %1437 = vmatprep.subr.mxu0 0.0
    %1438 = vmatpush1.msra.mxu0 %v385
    %1439 = vmatprep.subr.mxu0 0.0
    %1440 = vmatpush1.msra.mxu0 %v384
    %1441 = vmatprep.subr.mxu0 0.0
    %1442 = vmatpush1.msra.mxu0 %v383
    %1443 = vmatprep.subr.mxu0 0.0
    %1444 = vmatpush1.msra.mxu0 %v382
    %1445 = vmatprep.subr.mxu0 0.0
    %1446 = vmatpush1.msra.mxu0 %v381
    %1447 = vmatprep.subr.mxu0 0.0
    %1448 = vmatpush1.msra.mxu0 %v380
    %1449 = vmatprep.subr.mxu0 0.0
    %1450 = vmatpush1.msra.mxu0 %v379
    %1451 = vmatprep.subr.mxu0 0.0
    %1452 = vmatpush1.msra.mxu0 %v378
    %1453 = vmatprep.subr.mxu0 0.0
    %1454 = vmatpush1.msra.mxu0 %v377
    %1455 = vmatprep.subr.mxu0 0.0
    %1456 = vmatpush1.msra.mxu0 %v376
    %1457 = vmatprep.subr.mxu0 0.0
    %1458 = vmatpush1.msra.mxu0 %v375
    %1459 = vmatprep.subr.mxu0 0.0
    %1460 = vmatpush2.msra.mxu0 %v406
    %1461 = vmatprep.subr.mxu0 0.0
    %1462 = vmatpush2.msra.mxu0 %v405
    %1463 = vmatprep.subr.mxu0 0.0
    %1464 = vmatpush2.msra.mxu0 %v404
    %1465 = vmatprep.subr.mxu0 0.0
    %1466 = vmatpush2.msra.mxu0 %v403
    %1467 = vmatprep.subr.mxu0 0.0
    %1468 = vmatpush2.msra.mxu0 %v402
    %1469 = vmatprep.subr.mxu0 0.0
    %1470 = vmatpush2.msra.mxu0 %v401
    %1471 = vmatprep.subr.mxu0 0.0
    %1472 = vmatpush2.msra.mxu0 %v400
    %1473 = vmatprep.subr.mxu0 0.0
    %1474 = vmatpush2.msra.mxu0 %v399
    %1475 = vmatprep.subr.mxu0 0.0
    %1476 = vmatpush2.msra.mxu0 %v398
    %1477 = vmatprep.subr.mxu0 0.0
    %1478 = vmatpush2.msra.mxu0 %v397
    %1479 = vmatprep.subr.mxu0 0.0
    %1480 = vmatpush2.msra.mxu0 %v396
    %1481 = vmatprep.subr.mxu0 0.0
    %1482 = vmatpush2.msra.mxu0 %v395
    %1483 = vmatprep.subr.mxu0 0.0
    %1484 = vmatpush2.msra.mxu0 %v394
    %1485 = vmatprep.subr.mxu0 0.0
    %1486 = vmatpush2.msra.mxu0 %v393
    %1487 = vmatprep.subr.mxu0 0.0
    %1488 = vmatpush2.msra.mxu0 %v392
    %1489 = vmatprep.subr.mxu0 0.0
    %1490 = vmatpush2.msra.mxu0 %v391
    %1491 = vmatprep.mubr.f32.mxu0 %v603
    %1492 = vmatmul.mubr.f32.gmra.mxu0 %v601
    %v1493 = vpop.f32.mrf.mxu0
    %v1494 = vadd.f32 %v1424, %v1493
    %v1495 = vpop.f32.mrf.mxu0
    %1496 = vdwg.mxu0
    %1497 = vmatprep.subr.mxu0 0.0
    %1498 = vmatpush1.msra.mxu0 %v422
    %1499 = vmatprep.subr.mxu0 0.0
    %1500 = vmatpush1.msra.mxu0 %v421
    %1501 = vmatprep.subr.mxu0 0.0
    %1502 = vmatpush1.msra.mxu0 %v420
    %1503 = vmatprep.subr.mxu0 0.0
    %1504 = vmatpush1.msra.mxu0 %v419
    %1505 = vmatprep.subr.mxu0 0.0
    %1506 = vmatpush1.msra.mxu0 %v418
    %1507 = vmatprep.subr.mxu0 0.0
    %1508 = vmatpush1.msra.mxu0 %v417
    %1509 = vmatprep.subr.mxu0 0.0
    %1510 = vmatpush1.msra.mxu0 %v416
    %1511 = vmatprep.subr.mxu0 0.0
    %1512 = vmatpush1.msra.mxu0 %v415
    %1513 = vmatprep.subr.mxu0 0.0
    %1514 = vmatpush1.msra.mxu0 %v414
    %1515 = vmatprep.subr.mxu0 0.0
    %1516 = vmatpush1.msra.mxu0 %v413
    %1517 = vmatprep.subr.mxu0 0.0
    %1518 = vmatpush1.msra.mxu0 %v412
    %1519 = vmatprep.subr.mxu0 0.0
    %1520 = vmatpush1.msra.mxu0 %v411
    %1521 = vmatprep.subr.mxu0 0.0
    %1522 = vmatpush1.msra.mxu0 %v410
    %1523 = vmatprep.subr.mxu0 0.0
    %1524 = vmatpush1.msra.mxu0 %v409
    %1525 = vmatprep.subr.mxu0 0.0
    %1526 = vmatpush1.msra.mxu0 %v408
    %1527 = vmatprep.subr.mxu0 0.0
    %1528 = vmatpush1.msra.mxu0 %v407
    %1529 = vmatprep.subr.mxu0 0.0
    %1530 = vmatpush2.msra.mxu0 %v438
    %1531 = vmatprep.subr.mxu0 0.0
    %1532 = vmatpush2.msra.mxu0 %v437
    %1533 = vmatprep.subr.mxu0 0.0
    %1534 = vmatpush2.msra.mxu0 %v436
    %1535 = vmatprep.subr.mxu0 0.0
    %1536 = vmatpush2.msra.mxu0 %v435
    %1537 = vmatprep.subr.mxu0 0.0
    %1538 = vmatpush2.msra.mxu0 %v434
    %1539 = vmatprep.subr.mxu0 0.0
    %1540 = vmatpush2.msra.mxu0 %v433
    %1541 = vmatprep.subr.mxu0 0.0
    %1542 = vmatpush2.msra.mxu0 %v432
    %1543 = vmatprep.subr.mxu0 0.0
    %1544 = vmatpush2.msra.mxu0 %v431
    %1545 = vmatprep.subr.mxu0 0.0
    %1546 = vmatpush2.msra.mxu0 %v430
    %1547 = vmatprep.subr.mxu0 0.0
    %1548 = vmatpush2.msra.mxu0 %v429
    %1549 = vmatprep.subr.mxu0 0.0
    %1550 = vmatpush2.msra.mxu0 %v428
    %1551 = vmatprep.subr.mxu0 0.0
    %1552 = vmatpush2.msra.mxu0 %v427
    %1553 = vmatprep.subr.mxu0 0.0
    %1554 = vmatpush2.msra.mxu0 %v426
    %1555 = vmatprep.subr.mxu0 0.0
    %1556 = vmatpush2.msra.mxu0 %v425
    %1557 = vmatprep.subr.mxu0 0.0
    %1558 = vmatpush2.msra.mxu0 %v424
    %1559 = vmatprep.subr.mxu0 0.0
    %1560 = vmatpush2.msra.mxu0 %v423
    %1561 = vmatprep.mubr.f32.mxu0 %v619
    %1562 = vmatmul.mubr.f32.gmra.mxu0 %v611
    %v1563 = vpop.f32.mrf.mxu0
    %v1564 = vadd.f32 %v1494, %v1563
    %v1565 = vpop.f32.mrf.mxu0
    %1566 = vdwg.mxu0
    %1567 = vmatprep.subr.mxu0 0.0
    %1568 = vmatpush1.msra.mxu0 %v454
    %1569 = vmatprep.subr.mxu0 0.0
    %1570 = vmatpush1.msra.mxu0 %v453
    %1571 = vmatprep.subr.mxu0 0.0
    %1572 = vmatpush1.msra.mxu0 %v452
    %1573 = vmatprep.subr.mxu0 0.0
    %1574 = vmatpush1.msra.mxu0 %v451
    %1575 = vmatprep.subr.mxu0 0.0
    %1576 = vmatpush1.msra.mxu0 %v450
    %1577 = vmatprep.subr.mxu0 0.0
    %1578 = vmatpush1.msra.mxu0 %v449
    %1579 = vmatprep.subr.mxu0 0.0
    %1580 = vmatpush1.msra.mxu0 %v448
    %1581 = vmatprep.subr.mxu0 0.0
    %1582 = vmatpush1.msra.mxu0 %v447
    %1583 = vmatprep.subr.mxu0 0.0
    %1584 = vmatpush1.msra.mxu0 %v446
    %1585 = vmatprep.subr.mxu0 0.0
    %1586 = vmatpush1.msra.mxu0 %v445
    %1587 = vmatprep.subr.mxu0 0.0
    %1588 = vmatpush1.msra.mxu0 %v444
    %1589 = vmatprep.subr.mxu0 0.0
    %1590 = vmatpush1.msra.mxu0 %v443
    %1591 = vmatprep.subr.mxu0 0.0
    %1592 = vmatpush1.msra.mxu0 %v442
    %1593 = vmatprep.subr.mxu0 0.0
    %1594 = vmatpush1.msra.mxu0 %v441
    %1595 = vmatprep.subr.mxu0 0.0
    %1596 = vmatpush1.msra.mxu0 %v440
    %1597 = vmatprep.subr.mxu0 0.0
    %1598 = vmatpush1.msra.mxu0 %v439
    %1599 = vmatprep.subr.mxu0 0.0
    %1600 = vmatpush2.msra.mxu0 %v470
    %1601 = vmatprep.subr.mxu0 0.0
    %1602 = vmatpush2.msra.mxu0 %v469
    %1603 = vmatprep.subr.mxu0 0.0
    %1604 = vmatpush2.msra.mxu0 %v468
    %1605 = vmatprep.subr.mxu0 0.0
    %1606 = vmatpush2.msra.mxu0 %v467
    %1607 = vmatprep.subr.mxu0 0.0
    %1608 = vmatpush2.msra.mxu0 %v466
    %1609 = vmatprep.subr.mxu0 0.0
    %1610 = vmatpush2.msra.mxu0 %v465
    %1611 = vmatprep.subr.mxu0 0.0
    %1612 = vmatpush2.msra.mxu0 %v464
    %1613 = vmatprep.subr.mxu0 0.0
    %1614 = vmatpush2.msra.mxu0 %v463
    %1615 = vmatprep.subr.mxu0 0.0
    %1616 = vmatpush2.msra.mxu0 %v462
    %1617 = vmatprep.subr.mxu0 0.0
    %1618 = vmatpush2.msra.mxu0 %v461
    %1619 = vmatprep.subr.mxu0 0.0
    %1620 = vmatpush2.msra.mxu0 %v460
    %1621 = vmatprep.subr.mxu0 0.0
    %1622 = vmatpush2.msra.mxu0 %v459
    %1623 = vmatprep.subr.mxu0 0.0
    %1624 = vmatpush2.msra.mxu0 %v458
    %1625 = vmatprep.subr.mxu0 0.0
    %1626 = vmatpush2.msra.mxu0 %v457
    %1627 = vmatprep.subr.mxu0 0.0
    %1628 = vmatpush2.msra.mxu0 %v456
    %1629 = vmatprep.subr.mxu0 0.0
    %1630 = vmatpush2.msra.mxu0 %v455
    %1631 = vmatprep.mubr.f32.mxu0 %v620
    %1632 = vmatmul.mubr.f32.gmra.mxu0 %v618
    %v1633 = vpop.f32.mrf.mxu0
    %v1634 = vadd.f32 %v1564, %v1633
    %v1635 = vpop.f32.mrf.mxu0
    %1636 = vdwg.mxu0
    %1637 = vmatprep.subr.mxu0 0.0
    %1638 = vmatpush1.msra.mxu0 %v486
    %1639 = vmatprep.subr.mxu0 0.0
    %1640 = vmatpush1.msra.mxu0 %v485
    %1641 = vmatprep.subr.mxu0 0.0
    %1642 = vmatpush1.msra.mxu0 %v484
    %1643 = vmatprep.subr.mxu0 0.0
    %1644 = vmatpush1.msra.mxu0 %v483
    %1645 = vmatprep.subr.mxu0 0.0
    %1646 = vmatpush1.msra.mxu0 %v482
    %1647 = vmatprep.subr.mxu0 0.0
    %1648 = vmatpush1.msra.mxu0 %v481
    %1649 = vmatprep.subr.mxu0 0.0
    %1650 = vmatpush1.msra.mxu0 %v480
    %1651 = vmatprep.subr.mxu0 0.0
    %1652 = vmatpush1.msra.mxu0 %v479
    %1653 = vmatprep.subr.mxu0 0.0
    %1654 = vmatpush1.msra.mxu0 %v478
    %1655 = vmatprep.subr.mxu0 0.0
    %1656 = vmatpush1.msra.mxu0 %v477
    %1657 = vmatprep.subr.mxu0 0.0
    %1658 = vmatpush1.msra.mxu0 %v476
    %1659 = vmatprep.subr.mxu0 0.0
    %1660 = vmatpush1.msra.mxu0 %v475
    %1661 = vmatprep.subr.mxu0 0.0
    %1662 = vmatpush1.msra.mxu0 %v474
    %1663 = vmatprep.subr.mxu0 0.0
    %1664 = vmatpush1.msra.mxu0 %v473
    %1665 = vmatprep.subr.mxu0 0.0
    %1666 = vmatpush1.msra.mxu0 %v472
    %1667 = vmatprep.subr.mxu0 0.0
    %1668 = vmatpush1.msra.mxu0 %v471
    %1669 = vmatprep.subr.mxu0 0.0
    %1670 = vmatpush2.msra.mxu0 0.0
    %1671 = vmatprep.subr.mxu0 0.0
    %1672 = vmatpush2.msra.mxu0 0.0
    %1673 = vmatprep.subr.mxu0 0.0
    %1674 = vmatpush2.msra.mxu0 0.0
    %1675 = vmatprep.subr.mxu0 0.0
    %1676 = vmatpush2.msra.mxu0 0.0
    %1677 = vmatprep.subr.mxu0 0.0
    %1678 = vmatpush2.msra.mxu0 0.0
    %1679 = vmatprep.subr.mxu0 0.0
    %1680 = vmatpush2.msra.mxu0 0.0
    %1681 = vmatprep.subr.mxu0 0.0
    %1682 = vmatpush2.msra.mxu0 0.0
    %1683 = vmatprep.subr.mxu0 0.0
    %1684 = vmatpush2.msra.mxu0 0.0
    %1685 = vmatprep.subr.mxu0 0.0
    %1686 = vmatpush2.msra.mxu0 0.0
    %1687 = vmatprep.subr.mxu0 0.0
    %1688 = vmatpush2.msra.mxu0 0.0
    %1689 = vmatprep.subr.mxu0 0.0
    %1690 = vmatpush2.msra.mxu0 0.0
    %1691 = vmatprep.subr.mxu0 0.0
    %1692 = vmatpush2.msra.mxu0 0.0
    %1693 = vmatprep.subr.mxu0 0.0
    %1694 = vmatpush2.msra.mxu0 0.0
    %1695 = vmatprep.subr.mxu0 0.0
    %1696 = vmatpush2.msra.mxu0 0.0
    %1697 = vmatprep.subr.mxu0 0.0
    %1698 = vmatpush2.msra.mxu0 0.0
    %1699 = vmatprep.subr.mxu0 0.0
    %1700 = vmatpush2.msra.mxu0 0.0
    %1701 = vmatprep.mubr.f32.mxu0 0.0
    %1702 = vmatmul.mubr.f32.gmra.mxu0 %v627
    %v1703 = vpop.f32.mrf.mxu0
    %v1704 = vadd.f32 %v1634, %v1703
    %v1705 = vpop.f32.mrf.mxu0
    %1706 = vdwg.mxu0
    %vm1707 = vcmask 107520
    %1708 = vst.msk [vmem:[#allocation2] sm:$0x3] %vm1707, %v1704
    // Predicated region
    $region14: #{cnn_forward.3} parent=1 // pred_check
      _
    $region15: #{cnn_forward.3} parent=1 // pred_check_branch
      %1710 = sbr.rel (0) target = $region17
    $region16: #{cnn_forward.3} parent=1 // pred_region
      %s1712 = ssub.s32 32, 32
      %1713 = vsyncadd [#allocation3], %s1712
      %s1715 = sshll.u32 [#allocation2], 4
      %s1716 = int_to_ptr.vmem [resolvable:$true] %s1715
      %1718 = dma.vmem_to_hbm [thread:$0]  %s1716, 32, %s3, [#allocation3]
    $region17: #{cnn_forward.3} parent=1 // pred_fallthru
      _
    // Predicated region
    $region18: #{cnn_forward.3} parent=1 // pred_check
      _
    $region19: #{cnn_forward.3} parent=1 // pred_check_branch
      %1720 = sbr.rel (0) target = $region21
    $region20: #{cnn_forward.3} parent=1 // pred_region
      %1721 = dma.done [#allocation3], 32
    $region21: #{cnn_forward.3} parent=1 // pred_fallthru
      _
    %1722 = vsyncpa [#allocation3], 1

// kernel: cnn_forward.2
$region0: #{cnn_forward.2}
  #allocation0 [shape = 'u32[]', space=smem, size = 0x4, offset = 0x4, fixed_abs, tag = 'smem constant byte address 0x4 - core index']
  #allocation1 [shape = 'u32[144,128]{1,0:T(1,128)}', space=vmem, size = 0x12000, scoped, tag = 'internal scratch']
  #allocation2 [shape = 'f32[1598,32]{1,0:T(8,128)}', space=vmem, size = 0xc8000, scoped, tag = 'scratch operand']
  #allocation3 [shape = 'f32[532,32]{1,0:T(8,128)}', space=vmem, size = 0x43000, scoped, tag = 'scratch operand']
  #allocation4 [shape = 'f32[530,64]{1,0:T(8,128)}', space=vmem, size = 0x43000, scoped, tag = 'scratch operand']
  #allocation5 [shape = 'f32[178,64]{1,0:T(8,128)}', space=vmem, size = 0x17000, scoped, tag = 'scratch operand']
  #allocation6 [shape = 'f32[176,64]{1,0:T(8,128)}', space=vmem, size = 0x16000, scoped, tag = 'scratch operand']
  %s0 = inlined_call_operand.vmem [shape: f32[2,1600,1], index: 0, kind: input, shape index: {}]
  %s1 = inlined_call_operand.hbm [shape: f32[3,32], index: 1, kind: input, shape index: {}]
  %s2 = inlined_call_operand.hbm [shape: f32[1,32], index: 2, kind: input, shape index: {}]
  %s3 = inlined_call_operand.hbm [shape: f32[3,32,64], index: 3, kind: input, shape index: {}]
  %s4 = inlined_call_operand.hbm [shape: f32[1,64], index: 4, kind: input, shape index: {}]
  %s5 = inlined_call_operand.hbm [shape: f32[3,64,64], index: 5, kind: input, shape index: {}]
  %s6 = inlined_call_operand.hbm [shape: f32[1,64], index: 6, kind: input, shape index: {}]
  %s7 = inlined_call_operand.vmem [shape: f32[2,58,64], index: 7, kind: output, shape index: {}]
  %s8 = sld [smem:[#allocation0]]
  $region85: #{cnn_forward.2} parent=0
    _
  %s10 = ssub.s32 1, %s8
  %s11 = scalar_select 0, %s10, %s8
  $region1: #{cnn_forward.2} parent=0
    #allocation7 [shape = 'u8[2048]{0}', space=vmem, size = 0x800, scoped, tag = 'input window, operand 1, single buffered']
    #allocation8 [shape = 's32[2]{0}', space=sflag, size = 0x8, scoped, tag = 'scoped memory for cnn_forward.2']
    #allocation9 [shape = 'u8[512]{0}', space=vmem, size = 0x400, scoped, tag = 'input window, operand 2, single buffered']
    #allocation10 [shape = 's32[1]{0}', space=sflag, size = 0x4, scoped, tag = 'scoped memory for cnn_forward.2']
    #allocation11 [shape = 'u8[49152]{0}', space=vmem, size = 0xc000, scoped, tag = 'input window, operand 3, single buffered']
    #allocation12 [shape = 'u8[512]{0}', space=vmem, size = 0x400, scoped, tag = 'input window, operand 4, single buffered']
    #allocation13 [shape = 's32[1]{0}', space=sflag, size = 0x4, scoped, tag = 'scoped memory for cnn_forward.2']
    #allocation14 [shape = 'u8[98304]{0}', space=vmem, size = 0x18000, scoped, tag = 'input window, operand 5, single buffered']
    #allocation15 [shape = 'u8[512]{0}', space=vmem, size = 0x400, scoped, tag = 'input window, operand 6, single buffered']
    #allocation16 [shape = 's32[1]{0}', space=sflag, size = 0x4, scoped, tag = 'scoped memory for cnn_forward.2']
    %12 = vsyncpa [#allocation8], 0
    %13 = vsyncpa [#allocation10], 0
    %14 = vsyncpa [#allocation13], 0
    %15 = vsyncpa [#allocation16], 0
    loop: start=0, step=1, limit=4
    $region2: #{cnn_forward.2} parent=1 // loop_pre_header
      _
    $region3: #{cnn_forward.2} parent=1 // loop_header
      %s17 = sphi 0, %s21
      %p18 = scmp.ge.s32.totalorder %s17, 4
      %s27 = sphi 0, %s29
      %s30 = sphi 0, %s27
      %s31 = sphi 0, %s30
      %s47 = sphi 0, %s31
      %s51 = sphi 0, %s51
      %s53 = sphi 0, %s51
      %s54 = sphi 0, %s53
      %s68 = sphi 0, %s54
      %s72 = sphi 0, %s72
      %s74 = sphi 0, %s72
      %s75 = sphi 0, %s74
      %s89 = sphi 0, %s75
      %s93 = sphi 0, %s93
      %s95 = sphi 0, %s93
      %s96 = sphi 0, %s95
      %s110 = sphi 0, %s96
      %s114 = sphi 0, %s114
      %s116 = sphi 0, %s114
      %s117 = sphi 0, %s116
      %s131 = sphi 0, %s117
      %s135 = sphi 0, %s135
      %s137 = sphi 0, %s135
      %s138 = sphi 0, %s137
      %s152 = sphi 0, %s138
      %s156 = sphi 0, %s156
      %s158 = sphi 0, %s156
      %s159 = sphi 0, %s158
      %s173 = sphi 0, %s159
      %s179 = sphi 0, %s181
      %s182 = sphi 0, %s179
      %s183 = sphi 0, %s182
      %s199 = sphi 0, %s183
    $region4: #{cnn_forward.2} parent=1 // loop_header_branch
      %20 = sbr.rel (%p18) target = $region8
    $region5: #{cnn_forward.2} parent=1 // loop_body
      %s22 = ssub.s32 %s17, 1
      %s23 = ssub.s32 %s17, 2
      %s24 = sadd.s32 %s17, 1
      %s25 = ssub.s32 %s17, %s24
      %p26 = scmp.eq.s32.totalorder %s25, 0
      %s28 = sadd.s32 %s27, 1
      %s29 = scalar_select %p26, %s27, %s28
      %p32 = pneg %p26
      %p33 = scmp.eq.s32.totalorder %s17, 1
      %p34 = por %p32, %p33
      %p35 = scmp.ne.s32.totalorder %s27, %s30
      %p36 = scmp.eq.s32.totalorder %s17, 0
      %p37 = por %p35, %p36
      %p38 = scmp.ne.s32.totalorder %s27, %s30
      %p39 = scmp.eq.s32.totalorder %s22, 1
      %p40 = por %p38, %p39
      %p41 = scmp.ne.s32.totalorder %s30, %s31
      %p42 = scmp.eq.s32.totalorder %s22, 0
      %p43 = por %p41, %p42
      %p44 = scmp.ne.s32.totalorder %s30, %s31
      %p45 = scmp.eq.s32.totalorder %s23, 1
      %p46 = por %p44, %p45
      %p48 = scmp.ne.s32.totalorder %s31, %s47
      %p49 = scmp.eq.s32.totalorder %s23, 0
      %p50 = por %p48, %p49
      %s52 = sadd.s32 %s51, 1
      %p55 = scmp.eq.s32.totalorder %s17, 1
      %p56 = scmp.ne.s32.totalorder %s51, %s53
      %p57 = scmp.eq.s32.totalorder %s17, 0
      %p58 = por %p56, %p57
      %p59 = scmp.ne.s32.totalorder %s51, %s53
      %p60 = scmp.eq.s32.totalorder %s22, 1
      %p61 = por %p59, %p60
      %p62 = scmp.ne.s32.totalorder %s53, %s54
      %p63 = scmp.eq.s32.totalorder %s22, 0
      %p64 = por %p62, %p63
      %p65 = scmp.ne.s32.totalorder %s53, %s54
      %p66 = scmp.eq.s32.totalorder %s23, 1
      %p67 = por %p65, %p66
      %p69 = scmp.ne.s32.totalorder %s54, %s68
      %p70 = scmp.eq.s32.totalorder %s23, 0
      %p71 = por %p69, %p70
      %s73 = sadd.s32 %s72, 1
      %p76 = scmp.eq.s32.totalorder %s17, 1
      %p77 = scmp.ne.s32.totalorder %s72, %s74
      %p78 = scmp.eq.s32.totalorder %s17, 0
      %p79 = por %p77, %p78
      %p80 = scmp.ne.s32.totalorder %s72, %s74
      %p81 = scmp.eq.s32.totalorder %s22, 1
      %p82 = por %p80, %p81
      %p83 = scmp.ne.s32.totalorder %s74, %s75
      %p84 = scmp.eq.s32.totalorder %s22, 0
      %p85 = por %p83, %p84
      %p86 = scmp.ne.s32.totalorder %s74, %s75
      %p87 = scmp.eq.s32.totalorder %s23, 1
      %p88 = por %p86, %p87
      %p90 = scmp.ne.s32.totalorder %s75, %s89
      %p91 = scmp.eq.s32.totalorder %s23, 0
      %p92 = por %p90, %p91
      %s94 = sadd.s32 %s93, 1
      %p97 = scmp.eq.s32.totalorder %s17, 1
      %p98 = scmp.ne.s32.totalorder %s93, %s95
      %p99 = scmp.eq.s32.totalorder %s17, 0
      %p100 = por %p98, %p99
      %p101 = scmp.ne.s32.totalorder %s93, %s95
      %p102 = scmp.eq.s32.totalorder %s22, 1
      %p103 = por %p101, %p102
      %p104 = scmp.ne.s32.totalorder %s95, %s96
      %p105 = scmp.eq.s32.totalorder %s22, 0
      %p106 = por %p104, %p105
      %p107 = scmp.ne.s32.totalorder %s95, %s96
      %p108 = scmp.eq.s32.totalorder %s23, 1
      %p109 = por %p107, %p108
      %p111 = scmp.ne.s32.totalorder %s96, %s110
      %p112 = scmp.eq.s32.totalorder %s23, 0
      %p113 = por %p111, %p112
      %s115 = sadd.s32 %s114, 1
      %p118 = scmp.eq.s32.totalorder %s17, 1
      %p119 = scmp.ne.s32.totalorder %s114, %s116
      %p120 = scmp.eq.s32.totalorder %s17, 0
      %p121 = por %p119, %p120
      %p122 = scmp.ne.s32.totalorder %s114, %s116
      %p123 = scmp.eq.s32.totalorder %s22, 1
      %p124 = por %p122, %p123
      %p125 = scmp.ne.s32.totalorder %s116, %s117
      %p126 = scmp.eq.s32.totalorder %s22, 0
      %p127 = por %p125, %p126
      %p128 = scmp.ne.s32.totalorder %s116, %s117
      %p129 = scmp.eq.s32.totalorder %s23, 1
      %p130 = por %p128, %p129
      %p132 = scmp.ne.s32.totalorder %s117, %s131
      %p133 = scmp.eq.s32.totalorder %s23, 0
      %p134 = por %p132, %p133
      %s136 = sadd.s32 %s135, 1
      %p139 = scmp.eq.s32.totalorder %s17, 1
      %p140 = scmp.ne.s32.totalorder %s135, %s137
      %p141 = scmp.eq.s32.totalorder %s17, 0
      %p142 = por %p140, %p141
      %p143 = scmp.ne.s32.totalorder %s135, %s137
      %p144 = scmp.eq.s32.totalorder %s22, 1
      %p145 = por %p143, %p144
      %p146 = scmp.ne.s32.totalorder %s137, %s138
      %p147 = scmp.eq.s32.totalorder %s22, 0
      %p148 = por %p146, %p147
      %p149 = scmp.ne.s32.totalorder %s137, %s138
      %p150 = scmp.eq.s32.totalorder %s23, 1
      %p151 = por %p149, %p150
      %p153 = scmp.ne.s32.totalorder %s138, %s152
      %p154 = scmp.eq.s32.totalorder %s23, 0
      %p155 = por %p153, %p154
      %s157 = sadd.s32 %s156, 1
      %p160 = scmp.eq.s32.totalorder %s17, 1
      %p161 = scmp.ne.s32.totalorder %s156, %s158
      %p162 = scmp.eq.s32.totalorder %s17, 0
      %p163 = por %p161, %p162
      %p164 = scmp.ne.s32.totalorder %s156, %s158
      %p165 = scmp.eq.s32.totalorder %s22, 1
      %p166 = por %p164, %p165
      %p167 = scmp.ne.s32.totalorder %s158, %s159
      %p168 = scmp.eq.s32.totalorder %s22, 0
      %p169 = por %p167, %p168
      %p170 = scmp.ne.s32.totalorder %s158, %s159
      %p171 = scmp.eq.s32.totalorder %s23, 1
      %p172 = por %p170, %p171
      %p174 = scmp.ne.s32.totalorder %s159, %s173
      %p175 = scmp.eq.s32.totalorder %s23, 0
      %p176 = por %p174, %p175
      %s177 = ssub.s32 %s17, %s24
      %p178 = scmp.eq.s32.totalorder %s177, 0
      %s180 = sadd.s32 %s179, 1
      %s181 = scalar_select %p178, %s179, %s180
      %p184 = pneg %p178
      %p185 = scmp.eq.s32.totalorder %s17, 1
      %p186 = por %p184, %p185
      %p187 = scmp.ne.s32.totalorder %s179, %s182
      %p188 = scmp.eq.s32.totalorder %s17, 0
      %p189 = por %p187, %p188
      %p190 = scmp.ne.s32.totalorder %s179, %s182
      %p191 = scmp.eq.s32.totalorder %s22, 1
      %p192 = por %p190, %p191
      %p193 = scmp.ne.s32.totalorder %s182, %s183
      %p194 = scmp.eq.s32.totalorder %s22, 0
      %p195 = por %p193, %p194
      %p196 = scmp.ne.s32.totalorder %s182, %s183
      %p197 = scmp.eq.s32.totalorder %s23, 1
      %p198 = por %p196, %p197
      %p200 = scmp.ne.s32.totalorder %s183, %s199
      %p201 = scmp.eq.s32.totalorder %s23, 0
      %p202 = por %p200, %p201
      %p203 = scmp.le.s32.totalorder 1, %s17
      %p204 = scmp.lt.s32.totalorder %s17, 3
      %p205 = pnand %p203, %p204
      %p206 = pneg %p205
      // Predicated region
      $region9: #{cnn_forward.2} parent=5 // pred_check
        _
      $region10: #{cnn_forward.2} parent=5 // pred_check_branch
        %208 = sbr.rel (%p205) target = $region12
      $region11: #{cnn_forward.2} parent=5 // pred_region
        %s209 = ssub.s32 %s17, 1
        // Predicated region
        $region13: #{cnn_forward.2} parent=11 // pred_check
          %p210 = pneg %p64
        $region14: #{cnn_forward.2} parent=11 // pred_check_branch
          %212 = sbr.rel (%p210) target = $region16
        $region15: #{cnn_forward.2} parent=11 // pred_region
          %s214 = ssub.s32 64, 64
          %215 = vsyncadd [#allocation8], %s214
          %s217 = sshll.u32 [#allocation7], 4
          %s218 = int_to_ptr.vmem [resolvable:$true] %s217
          %220 = dma.hbm_to_vmem [thread:$0]  %s1, 64, %s218, [#allocation8]
        $region16: #{cnn_forward.2} parent=11 // pred_fallthru
          _
        // Predicated region
        $region17: #{cnn_forward.2} parent=11 // pred_check
          %p221 = pneg %p85
        $region18: #{cnn_forward.2} parent=11 // pred_check_branch
          %223 = sbr.rel (%p221) target = $region20
        $region19: #{cnn_forward.2} parent=11 // pred_region
          %s225 = ssub.s32 16, 16
          %226 = vsyncadd [#allocation10], %s225
          %s228 = sshll.u32 [#allocation9], 4
          %s229 = int_to_ptr.vmem [resolvable:$true] %s228
          %231 = dma.hbm_to_vmem [thread:$0]  %s2, 16, %s229, [#allocation10]
        $region20: #{cnn_forward.2} parent=11 // pred_fallthru
          _
        // Predicated region
        $region21: #{cnn_forward.2} parent=11 // pred_check
          %p232 = pneg %p106
        $region22: #{cnn_forward.2} parent=11 // pred_check_branch
          %234 = sbr.rel (%p232) target = $region24
        $region23: #{cnn_forward.2} parent=11 // pred_region
          %s236 = ssub.s32 1536, 1536
          %237 = vsyncadd [#allocation10], %s236
          %s238 = sshll.u32 [#allocation11], 4
          %s239 = int_to_ptr.vmem [resolvable:$true] %s238
          %244 = dma.hbm_to_vmem [thread:$0]  %s3, 1536, %s239, [#allocation10], 128, 128, 8
        $region24: #{cnn_forward.2} parent=11 // pred_fallthru
          _
        // Predicated region
        $region25: #{cnn_forward.2} parent=11 // pred_check
          %p245 = pneg %p127
        $region26: #{cnn_forward.2} parent=11 // pred_check_branch
          %247 = sbr.rel (%p245) target = $region28
        $region27: #{cnn_forward.2} parent=11 // pred_region
          %s249 = ssub.s32 16, 16
          %250 = vsyncadd [#allocation13], %s249
          %s252 = sshll.u32 [#allocation12], 4
          %s253 = int_to_ptr.vmem [resolvable:$true] %s252
          %255 = dma.hbm_to_vmem [thread:$0]  %s4, 16, %s253, [#allocation13]
        $region28: #{cnn_forward.2} parent=11 // pred_fallthru
          _
        // Predicated region
        $region29: #{cnn_forward.2} parent=11 // pred_check
          %p256 = pneg %p148
        $region30: #{cnn_forward.2} parent=11 // pred_check_branch
          %258 = sbr.rel (%p256) target = $region32
        $region31: #{cnn_forward.2} parent=11 // pred_region
          %s260 = ssub.s32 3072, 3072
          %261 = vsyncadd [#allocation13], %s260
          %s262 = sshll.u32 [#allocation14], 4
          %s263 = int_to_ptr.vmem [resolvable:$true] %s262
          %268 = dma.hbm_to_vmem [thread:$0]  %s5, 3072, %s263, [#allocation13], 128, 128, 8
        $region32: #{cnn_forward.2} parent=11 // pred_fallthru
          _
        // Predicated region
        $region33: #{cnn_forward.2} parent=11 // pred_check
          %p269 = pneg %p169
        $region34: #{cnn_forward.2} parent=11 // pred_check_branch
          %271 = sbr.rel (%p269) target = $region36
        $region35: #{cnn_forward.2} parent=11 // pred_region
          %s273 = ssub.s32 16, 16
          %274 = vsyncadd [#allocation16], %s273
          %s276 = sshll.u32 [#allocation15], 4
          %s277 = int_to_ptr.vmem [resolvable:$true] %s276
          %279 = dma.hbm_to_vmem [thread:$0]  %s6, 16, %s277, [#allocation16]
        $region36: #{cnn_forward.2} parent=11 // pred_fallthru
          _
      $region12: #{cnn_forward.2} parent=5 // pred_fallthru
        _
      %p280 = scmp.lt.s32.totalorder %s17, 2
      // Predicated region
      $region37: #{cnn_forward.2} parent=5 // pred_check
        %p281 = pneg %p280
      $region38: #{cnn_forward.2} parent=5 // pred_check_branch
        %283 = sbr.rel (%p281) target = $region40
      $region39: #{cnn_forward.2} parent=5 // pred_region
        // Predicated region
        $region41: #{cnn_forward.2} parent=39 // pred_check
          %p284 = pneg %p37
        $region42: #{cnn_forward.2} parent=39 // pred_check_branch
          %286 = sbr.rel (%p284) target = $region44
        $region43: #{cnn_forward.2} parent=39 // pred_region
          %p287 = scmp.lt.s32.totalorder %s17, 1
          %s288 = scalar_select %p287, %s17, 1
          %s289 = smul.addr %s288, 200
          %s290 = smul.addr %s289, 8
          %s291 = scalar_lea.vmem %s0, %s290
        $region44: #{cnn_forward.2} parent=39 // pred_fallthru
          _
      $region40: #{cnn_forward.2} parent=5 // pred_fallthru
        _
      %p292 = scmp.le.s32.totalorder 1, %s17
      %p293 = scmp.lt.s32.totalorder %s17, 3
      %p294 = pnand %p292, %p293
      %p295 = pneg %p294
      // Predicated region
      $region45: #{cnn_forward.2} parent=5 // pred_check
        _
      $region46: #{cnn_forward.2} parent=5 // pred_check_branch
        %297 = sbr.rel (%p294) target = $region48
      $region47: #{cnn_forward.2} parent=5 // pred_region
        %s298 = ssub.s32 %s17, 1
        // Predicated region
        $region49: #{cnn_forward.2} parent=47 // pred_check
          %p299 = pneg %p64
        $region50: #{cnn_forward.2} parent=47 // pred_check_branch
          %301 = sbr.rel (%p299) target = $region52
        $region51: #{cnn_forward.2} parent=47 // pred_region
          %302 = dma.done [#allocation8], 64
        $region52: #{cnn_forward.2} parent=47 // pred_fallthru
          _
        // Predicated region
        $region53: #{cnn_forward.2} parent=47 // pred_check
          %p303 = pneg %p85
        $region54: #{cnn_forward.2} parent=47 // pred_check_branch
          %305 = sbr.rel (%p303) target = $region56
        $region55: #{cnn_forward.2} parent=47 // pred_region
          %306 = dma.done [#allocation10], 16
        $region56: #{cnn_forward.2} parent=47 // pred_fallthru
          _
        // Predicated region
        $region57: #{cnn_forward.2} parent=47 // pred_check
          %p307 = pneg %p106
        $region58: #{cnn_forward.2} parent=47 // pred_check_branch
          %309 = sbr.rel (%p307) target = $region60
        $region59: #{cnn_forward.2} parent=47 // pred_region
          %310 = dma.done [#allocation10], 1536
        $region60: #{cnn_forward.2} parent=47 // pred_fallthru
          _
        // Predicated region
        $region61: #{cnn_forward.2} parent=47 // pred_check
          %p311 = pneg %p127
        $region62: #{cnn_forward.2} parent=47 // pred_check_branch
          %313 = sbr.rel (%p311) target = $region64
        $region63: #{cnn_forward.2} parent=47 // pred_region
          %314 = dma.done [#allocation13], 16
        $region64: #{cnn_forward.2} parent=47 // pred_fallthru
          _
        // Predicated region
        $region65: #{cnn_forward.2} parent=47 // pred_check
          %p315 = pneg %p148
        $region66: #{cnn_forward.2} parent=47 // pred_check_branch
          %317 = sbr.rel (%p315) target = $region68
        $region67: #{cnn_forward.2} parent=47 // pred_region
          %318 = dma.done [#allocation13], 3072
        $region68: #{cnn_forward.2} parent=47 // pred_fallthru
          _
        // Predicated region
        $region69: #{cnn_forward.2} parent=47 // pred_check
          %p319 = pneg %p169
        $region70: #{cnn_forward.2} parent=47 // pred_check_branch
          %321 = sbr.rel (%p319) target = $region72
        $region71: #{cnn_forward.2} parent=47 // pred_region
          %322 = dma.done [#allocation16], 16
        $region72: #{cnn_forward.2} parent=47 // pred_fallthru
          _
        %p323 = scmp.lt.s32.totalorder %s22, 1
        %s324 = scalar_select %p323, %s22, 1
        %s325 = smul.addr %s324, 200
        %s326 = smul.addr %s325, 8
        %s327 = scalar_lea.vmem %s0, %s326
        %p328 = pneg %p43
        %p329 = pneg %p40
        %p330 = pneg %p64
        %p331 = pneg %p61
        %p332 = pneg %p85
        %p333 = pneg %p82
        %p334 = pneg %p106
        %p335 = pneg %p103
        %p336 = pneg %p127
        %p337 = pneg %p124
        %p338 = pneg %p148
        %p339 = pneg %p145
        %p340 = pneg %p169
        %p341 = pneg %p166
        %p342 = pneg %p195
        %p343 = pneg %p192
        %p344 = scmp.lt.s32.totalorder %s22, 1
        %s345 = scalar_select %p344, %s22, 1
        %s346 = smul.addr %s345, 8
        %s347 = smul.addr %s346, 8
        %s348 = scalar_lea.vmem %s7, %s347
        %p349 = scmp.lt.s32.totalorder %s22, 1
        %s350 = scalar_select %p349, %s22, 1
        %s351 = smul.addr %s350, 200
        %s352 = smul.addr %s351, 8
        %s353 = scalar_lea.vmem %s0, %s352
        %p354 = scmp.lt.s32.totalorder %s22, 1
        %s355 = scalar_select %p354, %s22, 1
        %s356 = smul.addr %s355, 8
        %s357 = smul.addr %s356, 8
        %s358 = scalar_lea.vmem %s7, %s357
        %v359 = vld [vmem:[%s353] sm:$0xff]
        %v360 = vld [vmem:[%s353 + $0x8] sm:$0xff]
        %v361 = vld [vmem:[%s353 + $0x10] sm:$0xff]
        %v362 = vld [vmem:[%s353 + $0x18] sm:$0xff]
        %v363 = vld [vmem:[%s353 + $0x20] sm:$0xff]
        %v364 = vld [vmem:[%s353 + $0x28] sm:$0xff]
        %v365 = vld [vmem:[%s353 + $0x30] sm:$0xff]
        %v366 = vld [vmem:[%s353 + $0x38] sm:$0xff]
        %v367 = vld [vmem:[%s353 + $0x40] sm:$0xff]
        %v368 = vld [vmem:[%s353 + $0x48] sm:$0xff]
        %v369 = vld [vmem:[%s353 + $0x50] sm:$0xff]
        %v370 = vld [vmem:[%s353 + $0x58] sm:$0xff]
        %v371 = vld [vmem:[%s353 + $0x60] sm:$0xff]
        %v372 = vld [vmem:[%s353 + $0x68] sm:$0xff]
        %v373 = vld [vmem:[%s353 + $0x70] sm:$0xff]
        %v374 = vld [vmem:[%s353 + $0x78] sm:$0xff]
        %v375 = vld [vmem:[%s353 + $0x80] sm:$0xff]
        %v376 = vld [vmem:[%s353 + $0x88] sm:$0xff]
        %v377 = vld [vmem:[%s353 + $0x90] sm:$0xff]
        %v378 = vld [vmem:[%s353 + $0x98] sm:$0xff]
        %v379 = vld [vmem:[%s353 + $0xa0] sm:$0xff]
        %v380 = vld [vmem:[%s353 + $0xa8] sm:$0xff]
        %v381 = vld [vmem:[%s353 + $0xb0] sm:$0xff]
        %v382 = vld [vmem:[%s353 + $0xb8] sm:$0xff]
        %v383 = vld [vmem:[%s353 + $0xc0] sm:$0xff]
        %v384 = vld [vmem:[%s353 + $0xc8] sm:$0xff]
        %v385 = vld [vmem:[%s353 + $0xd0] sm:$0xff]
        %v386 = vld [vmem:[%s353 + $0xd8] sm:$0xff]
        %v387 = vld [vmem:[%s353 + $0xe0] sm:$0xff]
        %v388 = vld [vmem:[%s353 + $0xe8] sm:$0xff]
        %v389 = vld [vmem:[%s353 + $0xf0] sm:$0xff]
        %v390 = vld [vmem:[%s353 + $0xf8] sm:$0xff]
        %v391 = vld [vmem:[%s353 + $0x100] sm:$0xff]
        %v392 = vld [vmem:[%s353 + $0x108] sm:$0xff]
        %v393 = vld [vmem:[%s353 + $0x110] sm:$0xff]
        %v394 = vld [vmem:[%s353 + $0x118] sm:$0xff]
        %v395 = vld [vmem:[%s353 + $0x120] sm:$0xff]
        %v396 = vld [vmem:[%s353 + $0x128] sm:$0xff]
        %v397 = vld [vmem:[%s353 + $0x130] sm:$0xff]
        %v398 = vld [vmem:[%s353 + $0x138] sm:$0xff]
        %v399 = vld [vmem:[%s353 + $0x140] sm:$0xff]
        %v400 = vld [vmem:[%s353 + $0x148] sm:$0xff]
        %v401 = vld [vmem:[%s353 + $0x150] sm:$0xff]
        %v402 = vld [vmem:[%s353 + $0x158] sm:$0xff]
        %v403 = vld [vmem:[%s353 + $0x160] sm:$0xff]
        %v404 = vld [vmem:[%s353 + $0x168] sm:$0xff]
        %v405 = vld [vmem:[%s353 + $0x170] sm:$0xff]
        %v406 = vld [vmem:[%s353 + $0x178] sm:$0xff]
        %v407 = vld [vmem:[%s353 + $0x180] sm:$0xff]
        %v408 = vld [vmem:[%s353 + $0x188] sm:$0xff]
        %v409 = vld [vmem:[%s353 + $0x190] sm:$0xff]
        %v410 = vld [vmem:[%s353 + $0x198] sm:$0xff]
        %v411 = vld [vmem:[%s353 + $0x1a0] sm:$0xff]
        %v412 = vld [vmem:[%s353 + $0x1a8] sm:$0xff]
        %v413 = vld [vmem:[%s353 + $0x1b0] sm:$0xff]
        %v414 = vld [vmem:[%s353 + $0x1b8] sm:$0xff]
        %v415 = vld [vmem:[%s353 + $0x1c0] sm:$0xff]
        %v416 = vld [vmem:[%s353 + $0x1c8] sm:$0xff]
        %v417 = vld [vmem:[%s353 + $0x1d0] sm:$0xff]
        %v418 = vld [vmem:[%s353 + $0x1d8] sm:$0xff]
        %v419 = vld [vmem:[%s353 + $0x1e0] sm:$0xff]
        %v420 = vld [vmem:[%s353 + $0x1e8] sm:$0xff]
        %v421 = vld [vmem:[%s353 + $0x1f0] sm:$0xff]
        %v422 = vld [vmem:[%s353 + $0x1f8] sm:$0xff]
        %v423 = vld [vmem:[%s353 + $0x200] sm:$0xff]
        %v424 = vld [vmem:[%s353 + $0x208] sm:$0xff]
        %v425 = vld [vmem:[%s353 + $0x210] sm:$0xff]
        %v426 = vld [vmem:[%s353 + $0x218] sm:$0xff]
        %v427 = vld [vmem:[%s353 + $0x220] sm:$0xff]
        %v428 = vld [vmem:[%s353 + $0x228] sm:$0xff]
        %v429 = vld [vmem:[%s353 + $0x230] sm:$0xff]
        %v430 = vld [vmem:[%s353 + $0x238] sm:$0xff]
        %v431 = vld [vmem:[%s353 + $0x240] sm:$0xff]
        %v432 = vld [vmem:[%s353 + $0x248] sm:$0xff]
        %v433 = vld [vmem:[%s353 + $0x250] sm:$0xff]
        %v434 = vld [vmem:[%s353 + $0x258] sm:$0xff]
        %v435 = vld [vmem:[%s353 + $0x260] sm:$0xff]
        %v436 = vld [vmem:[%s353 + $0x268] sm:$0xff]
        %v437 = vld [vmem:[%s353 + $0x270] sm:$0xff]
        %v438 = vld [vmem:[%s353 + $0x278] sm:$0xff]
        %v439 = vld [vmem:[%s353 + $0x280] sm:$0xff]
        %v440 = vld [vmem:[%s353 + $0x288] sm:$0xff]
        %v441 = vld [vmem:[%s353 + $0x290] sm:$0xff]
        %v442 = vld [vmem:[%s353 + $0x298] sm:$0xff]
        %v443 = vld [vmem:[%s353 + $0x2a0] sm:$0xff]
        %v444 = vld [vmem:[%s353 + $0x2a8] sm:$0xff]
        %v445 = vld [vmem:[%s353 + $0x2b0] sm:$0xff]
        %v446 = vld [vmem:[%s353 + $0x2b8] sm:$0xff]
        %v447 = vld [vmem:[%s353 + $0x2c0] sm:$0xff]
        %v448 = vld [vmem:[%s353 + $0x2c8] sm:$0xff]
        %v449 = vld [vmem:[%s353 + $0x2d0] sm:$0xff]
        %v450 = vld [vmem:[%s353 + $0x2d8] sm:$0xff]
        %v451 = vld [vmem:[%s353 + $0x2e0] sm:$0xff]
        %v452 = vld [vmem:[%s353 + $0x2e8] sm:$0xff]
        %v453 = vld [vmem:[%s353 + $0x2f0] sm:$0xff]
        %v454 = vld [vmem:[%s353 + $0x2f8] sm:$0xff]
        %v455 = vld [vmem:[%s353 + $0x300] sm:$0xff]
        %v456 = vld [vmem:[%s353 + $0x308] sm:$0xff]
        %v457 = vld [vmem:[%s353 + $0x310] sm:$0xff]
        %v458 = vld [vmem:[%s353 + $0x318] sm:$0xff]
        %v459 = vld [vmem:[%s353 + $0x320] sm:$0xff]
        %v460 = vld [vmem:[%s353 + $0x328] sm:$0xff]
        %v461 = vld [vmem:[%s353 + $0x330] sm:$0xff]
        %v462 = vld [vmem:[%s353 + $0x338] sm:$0xff]
        %v463 = vld [vmem:[%s353 + $0x340] sm:$0xff]
        %v464 = vld [vmem:[%s353 + $0x348] sm:$0xff]
        %v465 = vld [vmem:[%s353 + $0x350] sm:$0xff]
        %v466 = vld [vmem:[%s353 + $0x358] sm:$0xff]
        %v467 = vld [vmem:[%s353 + $0x360] sm:$0xff]
        %v468 = vld [vmem:[%s353 + $0x368] sm:$0xff]
        %v469 = vld [vmem:[%s353 + $0x370] sm:$0xff]
        %v470 = vld [vmem:[%s353 + $0x378] sm:$0xff]
        %v471 = vld [vmem:[%s353 + $0x380] sm:$0xff]
        %v472 = vld [vmem:[%s353 + $0x388] sm:$0xff]
        %v473 = vld [vmem:[%s353 + $0x390] sm:$0xff]
        %v474 = vld [vmem:[%s353 + $0x398] sm:$0xff]
        %v475 = vld [vmem:[%s353 + $0x3a0] sm:$0xff]
        %v476 = vld [vmem:[%s353 + $0x3a8] sm:$0xff]
        %v477 = vld [vmem:[%s353 + $0x3b0] sm:$0xff]
        %v478 = vld [vmem:[%s353 + $0x3b8] sm:$0xff]
        %v479 = vld [vmem:[%s353 + $0x3c0] sm:$0xff]
        %v480 = vld [vmem:[%s353 + $0x3c8] sm:$0xff]
        %v481 = vld [vmem:[%s353 + $0x3d0] sm:$0xff]
        %v482 = vld [vmem:[%s353 + $0x3d8] sm:$0xff]
        %v483 = vld [vmem:[%s353 + $0x3e0] sm:$0xff]
        %v484 = vld [vmem:[%s353 + $0x3e8] sm:$0xff]
        %v485 = vld [vmem:[%s353 + $0x3f0] sm:$0xff]
        %v486 = vld [vmem:[%s353 + $0x3f8] sm:$0xff]
        %v487 = vld [vmem:[%s353 + $0x400] sm:$0xff]
        %v488 = vld [vmem:[%s353 + $0x408] sm:$0xff]
        %v489 = vld [vmem:[%s353 + $0x410] sm:$0xff]
        %v490 = vld [vmem:[%s353 + $0x418] sm:$0xff]
        %v491 = vld [vmem:[%s353 + $0x420] sm:$0xff]
        %v492 = vld [vmem:[%s353 + $0x428] sm:$0xff]
        %v493 = vld [vmem:[%s353 + $0x430] sm:$0xff]
        %v494 = vld [vmem:[%s353 + $0x438] sm:$0xff]
        %v495 = vld [vmem:[%s353 + $0x440] sm:$0xff]
        %v496 = vld [vmem:[%s353 + $0x448] sm:$0xff]
        %v497 = vld [vmem:[%s353 + $0x450] sm:$0xff]
        %v498 = vld [vmem:[%s353 + $0x458] sm:$0xff]
        %v499 = vld [vmem:[%s353 + $0x460] sm:$0xff]
        %v500 = vld [vmem:[%s353 + $0x468] sm:$0xff]
        %v501 = vld [vmem:[%s353 + $0x470] sm:$0xff]
        %v502 = vld [vmem:[%s353 + $0x478] sm:$0xff]
        %v503 = vld [vmem:[%s353 + $0x480] sm:$0xff]
        %v504 = vld [vmem:[%s353 + $0x488] sm:$0xff]
        %v505 = vld [vmem:[%s353 + $0x490] sm:$0xff]
        %v506 = vld [vmem:[%s353 + $0x498] sm:$0xff]
        %v507 = vld [vmem:[%s353 + $0x4a0] sm:$0xff]
        %v508 = vld [vmem:[%s353 + $0x4a8] sm:$0xff]
        %v509 = vld [vmem:[%s353 + $0x4b0] sm:$0xff]
        %v510 = vld [vmem:[%s353 + $0x4b8] sm:$0xff]
        %v511 = vld [vmem:[%s353 + $0x4c0] sm:$0xff]
        %v512 = vld [vmem:[%s353 + $0x4c8] sm:$0xff]
        %v513 = vld [vmem:[%s353 + $0x4d0] sm:$0xff]
        %v514 = vld [vmem:[%s353 + $0x4d8] sm:$0xff]
        %v515 = vld [vmem:[%s353 + $0x4e0] sm:$0xff]
        %v516 = vld [vmem:[%s353 + $0x4e8] sm:$0xff]
        %v517 = vld [vmem:[%s353 + $0x4f0] sm:$0xff]
        %v518 = vld [vmem:[%s353 + $0x4f8] sm:$0xff]
        %v519 = vld [vmem:[%s353 + $0x500] sm:$0xff]
        %v520 = vld [vmem:[%s353 + $0x508] sm:$0xff]
        %v521 = vld [vmem:[%s353 + $0x510] sm:$0xff]
        %v522 = vld [vmem:[%s353 + $0x518] sm:$0xff]
        %v523 = vld [vmem:[%s353 + $0x520] sm:$0xff]
        %v524 = vld [vmem:[%s353 + $0x528] sm:$0xff]
        %v525 = vld [vmem:[%s353 + $0x530] sm:$0xff]
        %v526 = vld [vmem:[%s353 + $0x538] sm:$0xff]
        %v527 = vld [vmem:[%s353 + $0x540] sm:$0xff]
        %v528 = vld [vmem:[%s353 + $0x548] sm:$0xff]
        %v529 = vld [vmem:[%s353 + $0x550] sm:$0xff]
        %v530 = vld [vmem:[%s353 + $0x558] sm:$0xff]
        %v531 = vld [vmem:[%s353 + $0x560] sm:$0xff]
        %v532 = vld [vmem:[%s353 + $0x568] sm:$0xff]
        %v533 = vld [vmem:[%s353 + $0x570] sm:$0xff]
        %v534 = vld [vmem:[%s353 + $0x578] sm:$0xff]
        %v535 = vld [vmem:[%s353 + $0x580] sm:$0xff]
        %v536 = vld [vmem:[%s353 + $0x588] sm:$0xff]
        %v537 = vld [vmem:[%s353 + $0x590] sm:$0xff]
        %v538 = vld [vmem:[%s353 + $0x598] sm:$0xff]
        %v539 = vld [vmem:[%s353 + $0x5a0] sm:$0xff]
        %v540 = vld [vmem:[%s353 + $0x5a8] sm:$0xff]
        %v541 = vld [vmem:[%s353 + $0x5b0] sm:$0xff]
        %v542 = vld [vmem:[%s353 + $0x5b8] sm:$0xff]
        %v543 = vld [vmem:[%s353 + $0x5c0] sm:$0xff]
        %v544 = vld [vmem:[%s353 + $0x5c8] sm:$0xff]
        %v545 = vld [vmem:[%s353 + $0x5d0] sm:$0xff]
        %v546 = vld [vmem:[%s353 + $0x5d8] sm:$0xff]
        %v547 = vld [vmem:[%s353 + $0x5e0] sm:$0xff]
        %v548 = vld [vmem:[%s353 + $0x5e8] sm:$0xff]
        %v549 = vld [vmem:[%s353 + $0x5f0] sm:$0xff]
        %v550 = vld [vmem:[%s353 + $0x5f8] sm:$0xff]
        %v551 = vld [vmem:[%s353 + $0x600] sm:$0xff]
        %v552 = vld [vmem:[%s353 + $0x608] sm:$0xff]
        %v553 = vld [vmem:[%s353 + $0x610] sm:$0xff]
        %v554 = vld [vmem:[%s353 + $0x618] sm:$0xff]
        %v555 = vld [vmem:[%s353 + $0x620] sm:$0xff]
        %v556 = vld [vmem:[%s353 + $0x628] sm:$0xff]
        %v557 = vld [vmem:[%s353 + $0x630] sm:$0xff]
        %v558 = vld [vmem:[%s353 + $0x638] sm:$0x3f]
        %v559 = vld [vmem:[#allocation7] sm:$0x1]
        %561 = vset.pattern.permute.xlu0 0
        %562 = vperm.xlu0 %561, %v359
        %v563 = vpop.permute.xlu0 %562
        %566 = vset.pattern.permute.xlu0 0
        %567 = vperm.xlu0 %566, %v360
        %v568 = vpop.permute.xlu0 %567
        %571 = vset.pattern.permute.xlu0 0
        %572 = vperm.xlu0 %571, %v361
        %v573 = vpop.permute.xlu0 %572
        %576 = vset.pattern.permute.xlu0 0
        %577 = vperm.xlu0 %576, %v362
        %v578 = vpop.permute.xlu0 %577
        %581 = vset.pattern.permute.xlu0 0
        %582 = vperm.xlu0 %581, %v363
        %v583 = vpop.permute.xlu0 %582
        %586 = vset.pattern.permute.xlu0 0
        %587 = vperm.xlu0 %586, %v364
        %v588 = vpop.permute.xlu0 %587
        %591 = vset.pattern.permute.xlu0 0
        %592 = vperm.xlu0 %591, %v365
        %v593 = vpop.permute.xlu0 %592
        %596 = vset.pattern.permute.xlu0 0
        %597 = vperm.xlu0 %596, %v366
        %v598 = vpop.permute.xlu0 %597
        %601 = vset.pattern.permute.xlu0 0
        %602 = vperm.xlu0 %601, %v367
        %v603 = vpop.permute.xlu0 %602
        %606 = vset.pattern.permute.xlu0 0
        %607 = vperm.xlu0 %606, %v368
        %v608 = vpop.permute.xlu0 %607
        %611 = vset.pattern.permute.xlu0 0
        %612 = vperm.xlu0 %611, %v369
        %v613 = vpop.permute.xlu0 %612
        %616 = vset.pattern.permute.xlu0 0
        %617 = vperm.xlu0 %616, %v370
        %v618 = vpop.permute.xlu0 %617
        %621 = vset.pattern.permute.xlu0 0
        %622 = vperm.xlu0 %621, %v371
        %v623 = vpop.permute.xlu0 %622
        %626 = vset.pattern.permute.xlu0 0
        %627 = vperm.xlu0 %626, %v372
        %v628 = vpop.permute.xlu0 %627
        %631 = vset.pattern.permute.xlu0 0
        %632 = vperm.xlu0 %631, %v373
        %v633 = vpop.permute.xlu0 %632
        %636 = vset.pattern.permute.xlu0 0
        %637 = vperm.xlu0 %636, %v374
        %v638 = vpop.permute.xlu0 %637
        %641 = vset.pattern.permute.xlu0 0
        %642 = vperm.xlu0 %641, %v375
        %v643 = vpop.permute.xlu0 %642
        %646 = vset.pattern.permute.xlu0 0
        %647 = vperm.xlu0 %646, %v376
        %v648 = vpop.permute.xlu0 %647
        %651 = vset.pattern.permute.xlu0 0
        %652 = vperm.xlu0 %651, %v377
        %v653 = vpop.permute.xlu0 %652
        %656 = vset.pattern.permute.xlu0 0
        %657 = vperm.xlu0 %656, %v378
        %v658 = vpop.permute.xlu0 %657
        %661 = vset.pattern.permute.xlu0 0
        %662 = vperm.xlu0 %661, %v379
        %v663 = vpop.permute.xlu0 %662
        %666 = vset.pattern.permute.xlu0 0
        %667 = vperm.xlu0 %666, %v380
        %v668 = vpop.permute.xlu0 %667
        %671 = vset.pattern.permute.xlu0 0
        %672 = vperm.xlu0 %671, %v381
        %v673 = vpop.permute.xlu0 %672
        %676 = vset.pattern.permute.xlu0 0
        %677 = vperm.xlu0 %676, %v382
        %v678 = vpop.permute.xlu0 %677
        %681 = vset.pattern.permute.xlu0 0
        %682 = vperm.xlu0 %681, %v383
        %v683 = vpop.permute.xlu0 %682
        %686 = vset.pattern.permute.xlu0 0
        %687 = vperm.xlu0 %686, %v384
        %v688 = vpop.permute.xlu0 %687
        %691 = vset.pattern.permute.xlu0 0
        %692 = vperm.xlu0 %691, %v385
        %v693 = vpop.permute.xlu0 %692
        %696 = vset.pattern.permute.xlu0 0
        %697 = vperm.xlu0 %696, %v386
        %v698 = vpop.permute.xlu0 %697
        %701 = vset.pattern.permute.xlu0 0
        %702 = vperm.xlu0 %701, %v387
        %v703 = vpop.permute.xlu0 %702
        %706 = vset.pattern.permute.xlu0 0
        %707 = vperm.xlu0 %706, %v388
        %v708 = vpop.permute.xlu0 %707
        %711 = vset.pattern.permute.xlu0 0
        %712 = vperm.xlu0 %711, %v389
        %v713 = vpop.permute.xlu0 %712
        %716 = vset.pattern.permute.xlu0 0
        %717 = vperm.xlu0 %716, %v390
        %v718 = vpop.permute.xlu0 %717
        %721 = vset.pattern.permute.xlu0 0
        %722 = vperm.xlu0 %721, %v391
        %v723 = vpop.permute.xlu0 %722
        %726 = vset.pattern.permute.xlu0 0
        %727 = vperm.xlu0 %726, %v392
        %v728 = vpop.permute.xlu0 %727
        %731 = vset.pattern.permute.xlu0 0
        %732 = vperm.xlu0 %731, %v393
        %v733 = vpop.permute.xlu0 %732
        %736 = vset.pattern.permute.xlu0 0
        %737 = vperm.xlu0 %736, %v394
        %v738 = vpop.permute.xlu0 %737
        %741 = vset.pattern.permute.xlu0 0
        %742 = vperm.xlu0 %741, %v395
        %v743 = vpop.permute.xlu0 %742
        %746 = vset.pattern.permute.xlu0 0
        %747 = vperm.xlu0 %746, %v396
        %v748 = vpop.permute.xlu0 %747
        %751 = vset.pattern.permute.xlu0 0
        %752 = vperm.xlu0 %751, %v397
        %v753 = vpop.permute.xlu0 %752
        %756 = vset.pattern.permute.xlu0 0
        %757 = vperm.xlu0 %756, %v398
        %v758 = vpop.permute.xlu0 %757
        %761 = vset.pattern.permute.xlu0 0
        %762 = vperm.xlu0 %761, %v399
        %v763 = vpop.permute.xlu0 %762
        %766 = vset.pattern.permute.xlu0 0
        %767 = vperm.xlu0 %766, %v400
        %v768 = vpop.permute.xlu0 %767
        %771 = vset.pattern.permute.xlu0 0
        %772 = vperm.xlu0 %771, %v401
        %v773 = vpop.permute.xlu0 %772
        %776 = vset.pattern.permute.xlu0 0
        %777 = vperm.xlu0 %776, %v402
        %v778 = vpop.permute.xlu0 %777
        %781 = vset.pattern.permute.xlu0 0
        %782 = vperm.xlu0 %781, %v403
        %v783 = vpop.permute.xlu0 %782
        %786 = vset.pattern.permute.xlu0 0
        %787 = vperm.xlu0 %786, %v404
        %v788 = vpop.permute.xlu0 %787
        %791 = vset.pattern.permute.xlu0 0
        %792 = vperm.xlu0 %791, %v405
        %v793 = vpop.permute.xlu0 %792
        %796 = vset.pattern.permute.xlu0 0
        %797 = vperm.xlu0 %796, %v406
        %v798 = vpop.permute.xlu0 %797
        %801 = vset.pattern.permute.xlu0 0
        %802 = vperm.xlu0 %801, %v407
        %v803 = vpop.permute.xlu0 %802
        %806 = vset.pattern.permute.xlu0 0
        %807 = vperm.xlu0 %806, %v408
        %v808 = vpop.permute.xlu0 %807
        %811 = vset.pattern.permute.xlu0 0
        %812 = vperm.xlu0 %811, %v409
        %v813 = vpop.permute.xlu0 %812
        %816 = vset.pattern.permute.xlu0 0
        %817 = vperm.xlu0 %816, %v410
        %v818 = vpop.permute.xlu0 %817
        %821 = vset.pattern.permute.xlu0 0
        %822 = vperm.xlu0 %821, %v411
        %v823 = vpop.permute.xlu0 %822
        %826 = vset.pattern.permute.xlu0 0
        %827 = vperm.xlu0 %826, %v412
        %v828 = vpop.permute.xlu0 %827
        %831 = vset.pattern.permute.xlu0 0
        %832 = vperm.xlu0 %831, %v413
        %v833 = vpop.permute.xlu0 %832
        %836 = vset.pattern.permute.xlu0 0
        %837 = vperm.xlu0 %836, %v414
        %v838 = vpop.permute.xlu0 %837
        %841 = vset.pattern.permute.xlu0 0
        %842 = vperm.xlu0 %841, %v415
        %v843 = vpop.permute.xlu0 %842
        %846 = vset.pattern.permute.xlu0 0
        %847 = vperm.xlu0 %846, %v416
        %v848 = vpop.permute.xlu0 %847
        %851 = vset.pattern.permute.xlu0 0
        %852 = vperm.xlu0 %851, %v417
        %v853 = vpop.permute.xlu0 %852
        %856 = vset.pattern.permute.xlu0 0
        %857 = vperm.xlu0 %856, %v418
        %v858 = vpop.permute.xlu0 %857
        %861 = vset.pattern.permute.xlu0 0
        %862 = vperm.xlu0 %861, %v419
        %v863 = vpop.permute.xlu0 %862
        %866 = vset.pattern.permute.xlu0 0
        %867 = vperm.xlu0 %866, %v420
        %v868 = vpop.permute.xlu0 %867
        %871 = vset.pattern.permute.xlu0 0
        %872 = vperm.xlu0 %871, %v421
        %v873 = vpop.permute.xlu0 %872
        %876 = vset.pattern.permute.xlu0 0
        %877 = vperm.xlu0 %876, %v422
        %v878 = vpop.permute.xlu0 %877
        %881 = vset.pattern.permute.xlu0 0
        %882 = vperm.xlu0 %881, %v423
        %v883 = vpop.permute.xlu0 %882
        %886 = vset.pattern.permute.xlu0 0
        %887 = vperm.xlu0 %886, %v424
        %v888 = vpop.permute.xlu0 %887
        %891 = vset.pattern.permute.xlu0 0
        %892 = vperm.xlu0 %891, %v425
        %v893 = vpop.permute.xlu0 %892
        %896 = vset.pattern.permute.xlu0 0
        %897 = vperm.xlu0 %896, %v426
        %v898 = vpop.permute.xlu0 %897
        %901 = vset.pattern.permute.xlu0 0
        %902 = vperm.xlu0 %901, %v427
        %v903 = vpop.permute.xlu0 %902
        %906 = vset.pattern.permute.xlu0 0
        %907 = vperm.xlu0 %906, %v428
        %v908 = vpop.permute.xlu0 %907
        %911 = vset.pattern.permute.xlu0 0
        %912 = vperm.xlu0 %911, %v429
        %v913 = vpop.permute.xlu0 %912
        %916 = vset.pattern.permute.xlu0 0
        %917 = vperm.xlu0 %916, %v430
        %v918 = vpop.permute.xlu0 %917
        %921 = vset.pattern.permute.xlu0 0
        %922 = vperm.xlu0 %921, %v431
        %v923 = vpop.permute.xlu0 %922
        %926 = vset.pattern.permute.xlu0 0
        %927 = vperm.xlu0 %926, %v432
        %v928 = vpop.permute.xlu0 %927
        %931 = vset.pattern.permute.xlu0 0
        %932 = vperm.xlu0 %931, %v433
        %v933 = vpop.permute.xlu0 %932
        %936 = vset.pattern.permute.xlu0 0
        %937 = vperm.xlu0 %936, %v434
        %v938 = vpop.permute.xlu0 %937
        %941 = vset.pattern.permute.xlu0 0
        %942 = vperm.xlu0 %941, %v435
        %v943 = vpop.permute.xlu0 %942
        %946 = vset.pattern.permute.xlu0 0
        %947 = vperm.xlu0 %946, %v436
        %v948 = vpop.permute.xlu0 %947
        %951 = vset.pattern.permute.xlu0 0
        %952 = vperm.xlu0 %951, %v437
        %v953 = vpop.permute.xlu0 %952
        %956 = vset.pattern.permute.xlu0 0
        %957 = vperm.xlu0 %956, %v438
        %v958 = vpop.permute.xlu0 %957
        %961 = vset.pattern.permute.xlu0 0
        %962 = vperm.xlu0 %961, %v439
        %v963 = vpop.permute.xlu0 %962
        %966 = vset.pattern.permute.xlu0 0
        %967 = vperm.xlu0 %966, %v440
        %v968 = vpop.permute.xlu0 %967
        %971 = vset.pattern.permute.xlu0 0
        %972 = vperm.xlu0 %971, %v441
        %v973 = vpop.permute.xlu0 %972
        %976 = vset.pattern.permute.xlu0 0
        %977 = vperm.xlu0 %976, %v442
        %v978 = vpop.permute.xlu0 %977
        %981 = vset.pattern.permute.xlu0 0
        %982 = vperm.xlu0 %981, %v443
        %v983 = vpop.permute.xlu0 %982
        %986 = vset.pattern.permute.xlu0 0
        %987 = vperm.xlu0 %986, %v444
        %v988 = vpop.permute.xlu0 %987
        %991 = vset.pattern.permute.xlu0 0
        %992 = vperm.xlu0 %991, %v445
        %v993 = vpop.permute.xlu0 %992
        %996 = vset.pattern.permute.xlu0 0
        %997 = vperm.xlu0 %996, %v446
        %v998 = vpop.permute.xlu0 %997
        %1001 = vset.pattern.permute.xlu0 0
        %1002 = vperm.xlu0 %1001, %v447
        %v1003 = vpop.permute.xlu0 %1002
        %1006 = vset.pattern.permute.xlu0 0
        %1007 = vperm.xlu0 %1006, %v448
        %v1008 = vpop.permute.xlu0 %1007
        %1011 = vset.pattern.permute.xlu0 0
        %1012 = vperm.xlu0 %1011, %v449
        %v1013 = vpop.permute.xlu0 %1012
        %1016 = vset.pattern.permute.xlu0 0
        %1017 = vperm.xlu0 %1016, %v450
        %v1018 = vpop.permute.xlu0 %1017
        %1021 = vset.pattern.permute.xlu0 0
        %1022 = vperm.xlu0 %1021, %v451
        %v1023 = vpop.permute.xlu0 %1022
        %1026 = vset.pattern.permute.xlu0 0
        %1027 = vperm.xlu0 %1026, %v452
        %v1028 = vpop.permute.xlu0 %1027
        %1031 = vset.pattern.permute.xlu0 0
        %1032 = vperm.xlu0 %1031, %v453
        %v1033 = vpop.permute.xlu0 %1032
        %1036 = vset.pattern.permute.xlu0 0
        %1037 = vperm.xlu0 %1036, %v454
        %v1038 = vpop.permute.xlu0 %1037
        %1041 = vset.pattern.permute.xlu0 0
        %1042 = vperm.xlu0 %1041, %v455
        %v1043 = vpop.permute.xlu0 %1042
        %1046 = vset.pattern.permute.xlu0 0
        %1047 = vperm.xlu0 %1046, %v456
        %v1048 = vpop.permute.xlu0 %1047
        %1051 = vset.pattern.permute.xlu0 0
        %1052 = vperm.xlu0 %1051, %v457
        %v1053 = vpop.permute.xlu0 %1052
        %1056 = vset.pattern.permute.xlu0 0
        %1057 = vperm.xlu0 %1056, %v458
        %v1058 = vpop.permute.xlu0 %1057
        %1061 = vset.pattern.permute.xlu0 0
        %1062 = vperm.xlu0 %1061, %v459
        %v1063 = vpop.permute.xlu0 %1062
        %1066 = vset.pattern.permute.xlu0 0
        %1067 = vperm.xlu0 %1066, %v460
        %v1068 = vpop.permute.xlu0 %1067
        %1071 = vset.pattern.permute.xlu0 0
        %1072 = vperm.xlu0 %1071, %v461
        %v1073 = vpop.permute.xlu0 %1072
        %1076 = vset.pattern.permute.xlu0 0
        %1077 = vperm.xlu0 %1076, %v462
        %v1078 = vpop.permute.xlu0 %1077
        %1081 = vset.pattern.permute.xlu0 0
        %1082 = vperm.xlu0 %1081, %v463
        %v1083 = vpop.permute.xlu0 %1082
        %1086 = vset.pattern.permute.xlu0 0
        %1087 = vperm.xlu0 %1086, %v464
        %v1088 = vpop.permute.xlu0 %1087
        %1091 = vset.pattern.permute.xlu0 0
        %1092 = vperm.xlu0 %1091, %v465
        %v1093 = vpop.permute.xlu0 %1092
        %1096 = vset.pattern.permute.xlu0 0
        %1097 = vperm.xlu0 %1096, %v466
        %v1098 = vpop.permute.xlu0 %1097
        %1101 = vset.pattern.permute.xlu0 0
        %1102 = vperm.xlu0 %1101, %v467
        %v1103 = vpop.permute.xlu0 %1102
        %1106 = vset.pattern.permute.xlu0 0
        %1107 = vperm.xlu0 %1106, %v468
        %v1108 = vpop.permute.xlu0 %1107
        %1111 = vset.pattern.permute.xlu0 0
        %1112 = vperm.xlu0 %1111, %v469
        %v1113 = vpop.permute.xlu0 %1112
        %1116 = vset.pattern.permute.xlu0 0
        %1117 = vperm.xlu0 %1116, %v470
        %v1118 = vpop.permute.xlu0 %1117
        %1121 = vset.pattern.permute.xlu0 0
        %1122 = vperm.xlu0 %1121, %v471
        %v1123 = vpop.permute.xlu0 %1122
        %1126 = vset.pattern.permute.xlu0 0
        %1127 = vperm.xlu0 %1126, %v472
        %v1128 = vpop.permute.xlu0 %1127
        %1131 = vset.pattern.permute.xlu0 0
        %1132 = vperm.xlu0 %1131, %v473
        %v1133 = vpop.permute.xlu0 %1132
        %1136 = vset.pattern.permute.xlu0 0
        %1137 = vperm.xlu0 %1136, %v474
        %v1138 = vpop.permute.xlu0 %1137
        %1141 = vset.pattern.permute.xlu0 0
        %1142 = vperm.xlu0 %1141, %v475
        %v1143 = vpop.permute.xlu0 %1142
        %1146 = vset.pattern.permute.xlu0 0
        %1147 = vperm.xlu0 %1146, %v476
        %v1148 = vpop.permute.xlu0 %1147
        %1151 = vset.pattern.permute.xlu0 0
        %1152 = vperm.xlu0 %1151, %v477
        %v1153 = vpop.permute.xlu0 %1152
        %1156 = vset.pattern.permute.xlu0 0
        %1157 = vperm.xlu0 %1156, %v478
        %v1158 = vpop.permute.xlu0 %1157
        %1161 = vset.pattern.permute.xlu0 0
        %1162 = vperm.xlu0 %1161, %v479
        %v1163 = vpop.permute.xlu0 %1162
        %1166 = vset.pattern.permute.xlu0 0
        %1167 = vperm.xlu0 %1166, %v480
        %v1168 = vpop.permute.xlu0 %1167
        %1171 = vset.pattern.permute.xlu0 0
        %1172 = vperm.xlu0 %1171, %v481
        %v1173 = vpop.permute.xlu0 %1172
        %1176 = vset.pattern.permute.xlu0 0
        %1177 = vperm.xlu0 %1176, %v482
        %v1178 = vpop.permute.xlu0 %1177
        %1181 = vset.pattern.permute.xlu0 0
        %1182 = vperm.xlu0 %1181, %v483
        %v1183 = vpop.permute.xlu0 %1182
        %1186 = vset.pattern.permute.xlu0 0
        %1187 = vperm.xlu0 %1186, %v484
        %v1188 = vpop.permute.xlu0 %1187
        %1191 = vset.pattern.permute.xlu0 0
        %1192 = vperm.xlu0 %1191, %v485
        %v1193 = vpop.permute.xlu0 %1192
        %1196 = vset.pattern.permute.xlu0 0
        %1197 = vperm.xlu0 %1196, %v486
        %v1198 = vpop.permute.xlu0 %1197
        %1201 = vset.pattern.permute.xlu0 0
        %1202 = vperm.xlu0 %1201, %v487
        %v1203 = vpop.permute.xlu0 %1202
        %1206 = vset.pattern.permute.xlu0 0
        %1207 = vperm.xlu0 %1206, %v488
        %v1208 = vpop.permute.xlu0 %1207
        %1211 = vset.pattern.permute.xlu0 0
        %1212 = vperm.xlu0 %1211, %v489
        %v1213 = vpop.permute.xlu0 %1212
        %1216 = vset.pattern.permute.xlu0 0
        %1217 = vperm.xlu0 %1216, %v490
        %v1218 = vpop.permute.xlu0 %1217
        %1221 = vset.pattern.permute.xlu0 0
        %1222 = vperm.xlu0 %1221, %v491
        %v1223 = vpop.permute.xlu0 %1222
        %1226 = vset.pattern.permute.xlu0 0
        %1227 = vperm.xlu0 %1226, %v492
        %v1228 = vpop.permute.xlu0 %1227
        %1231 = vset.pattern.permute.xlu0 0
        %1232 = vperm.xlu0 %1231, %v493
        %v1233 = vpop.permute.xlu0 %1232
        %1236 = vset.pattern.permute.xlu0 0
        %1237 = vperm.xlu0 %1236, %v494
        %v1238 = vpop.permute.xlu0 %1237
        %1241 = vset.pattern.permute.xlu0 0
        %1242 = vperm.xlu0 %1241, %v495
        %v1243 = vpop.permute.xlu0 %1242
        %1246 = vset.pattern.permute.xlu0 0
        %1247 = vperm.xlu0 %1246, %v496
        %v1248 = vpop.permute.xlu0 %1247
        %1251 = vset.pattern.permute.xlu0 0
        %1252 = vperm.xlu0 %1251, %v497
        %v1253 = vpop.permute.xlu0 %1252
        %1256 = vset.pattern.permute.xlu0 0
        %1257 = vperm.xlu0 %1256, %v498
        %v1258 = vpop.permute.xlu0 %1257
        %1261 = vset.pattern.permute.xlu0 0
        %1262 = vperm.xlu0 %1261, %v499
        %v1263 = vpop.permute.xlu0 %1262
        %1266 = vset.pattern.permute.xlu0 0
        %1267 = vperm.xlu0 %1266, %v500
        %v1268 = vpop.permute.xlu0 %1267
        %1271 = vset.pattern.permute.xlu0 0
        %1272 = vperm.xlu0 %1271, %v501
        %v1273 = vpop.permute.xlu0 %1272
        %1276 = vset.pattern.permute.xlu0 0
        %1277 = vperm.xlu0 %1276, %v502
        %v1278 = vpop.permute.xlu0 %1277
        %1281 = vset.pattern.permute.xlu0 0
        %1282 = vperm.xlu0 %1281, %v503
        %v1283 = vpop.permute.xlu0 %1282
        %1286 = vset.pattern.permute.xlu0 0
        %1287 = vperm.xlu0 %1286, %v504
        %v1288 = vpop.permute.xlu0 %1287
        %1291 = vset.pattern.permute.xlu0 0
        %1292 = vperm.xlu0 %1291, %v505
        %v1293 = vpop.permute.xlu0 %1292
        %1296 = vset.pattern.permute.xlu0 0
        %1297 = vperm.xlu0 %1296, %v506
        %v1298 = vpop.permute.xlu0 %1297
        %1301 = vset.pattern.permute.xlu0 0
        %1302 = vperm.xlu0 %1301, %v507
        %v1303 = vpop.permute.xlu0 %1302
        %1306 = vset.pattern.permute.xlu0 0
        %1307 = vperm.xlu0 %1306, %v508
        %v1308 = vpop.permute.xlu0 %1307
        %1311 = vset.pattern.permute.xlu0 0
        %1312 = vperm.xlu0 %1311, %v509
        %v1313 = vpop.permute.xlu0 %1312
        %1316 = vset.pattern.permute.xlu0 0
        %1317 = vperm.xlu0 %1316, %v510
        %v1318 = vpop.permute.xlu0 %1317
        %1321 = vset.pattern.permute.xlu0 0
        %1322 = vperm.xlu0 %1321, %v511
        %v1323 = vpop.permute.xlu0 %1322
        %1326 = vset.pattern.permute.xlu0 0
        %1327 = vperm.xlu0 %1326, %v512
        %v1328 = vpop.permute.xlu0 %1327
        %1331 = vset.pattern.permute.xlu0 0
        %1332 = vperm.xlu0 %1331, %v513
        %v1333 = vpop.permute.xlu0 %1332
        %1336 = vset.pattern.permute.xlu0 0
        %1337 = vperm.xlu0 %1336, %v514
        %v1338 = vpop.permute.xlu0 %1337
        %1341 = vset.pattern.permute.xlu0 0
        %1342 = vperm.xlu0 %1341, %v515
        %v1343 = vpop.permute.xlu0 %1342
        %1346 = vset.pattern.permute.xlu0 0
        %1347 = vperm.xlu0 %1346, %v516
        %v1348 = vpop.permute.xlu0 %1347
        %1351 = vset.pattern.permute.xlu0 0
        %1352 = vperm.xlu0 %1351, %v517
        %v1353 = vpop.permute.xlu0 %1352
        %1356 = vset.pattern.permute.xlu0 0
        %1357 = vperm.xlu0 %1356, %v518
        %v1358 = vpop.permute.xlu0 %1357
        %1361 = vset.pattern.permute.xlu0 0
        %1362 = vperm.xlu0 %1361, %v519
        %v1363 = vpop.permute.xlu0 %1362
        %1366 = vset.pattern.permute.xlu0 0
        %1367 = vperm.xlu0 %1366, %v520
        %v1368 = vpop.permute.xlu0 %1367
        %1371 = vset.pattern.permute.xlu0 0
        %1372 = vperm.xlu0 %1371, %v521
        %v1373 = vpop.permute.xlu0 %1372
        %1376 = vset.pattern.permute.xlu0 0
        %1377 = vperm.xlu0 %1376, %v522
        %v1378 = vpop.permute.xlu0 %1377
        %1381 = vset.pattern.permute.xlu0 0
        %1382 = vperm.xlu0 %1381, %v523
        %v1383 = vpop.permute.xlu0 %1382
        %1386 = vset.pattern.permute.xlu0 0
        %1387 = vperm.xlu0 %1386, %v524
        %v1388 = vpop.permute.xlu0 %1387
        %1391 = vset.pattern.permute.xlu0 0
        %1392 = vperm.xlu0 %1391, %v525
        %v1393 = vpop.permute.xlu0 %1392
        %1396 = vset.pattern.permute.xlu0 0
        %1397 = vperm.xlu0 %1396, %v526
        %v1398 = vpop.permute.xlu0 %1397
        %1401 = vset.pattern.permute.xlu0 0
        %1402 = vperm.xlu0 %1401, %v527
        %v1403 = vpop.permute.xlu0 %1402
        %1406 = vset.pattern.permute.xlu0 0
        %1407 = vperm.xlu0 %1406, %v528
        %v1408 = vpop.permute.xlu0 %1407
        %1411 = vset.pattern.permute.xlu0 0
        %1412 = vperm.xlu0 %1411, %v529
        %v1413 = vpop.permute.xlu0 %1412
        %1416 = vset.pattern.permute.xlu0 0
        %1417 = vperm.xlu0 %1416, %v530
        %v1418 = vpop.permute.xlu0 %1417
        %1421 = vset.pattern.permute.xlu0 0
        %1422 = vperm.xlu0 %1421, %v531
        %v1423 = vpop.permute.xlu0 %1422
        %1426 = vset.pattern.permute.xlu0 0
        %1427 = vperm.xlu0 %1426, %v532
        %v1428 = vpop.permute.xlu0 %1427
        %1431 = vset.pattern.permute.xlu0 0
        %1432 = vperm.xlu0 %1431, %v533
        %v1433 = vpop.permute.xlu0 %1432
        %1436 = vset.pattern.permute.xlu0 0
        %1437 = vperm.xlu0 %1436, %v534
        %v1438 = vpop.permute.xlu0 %1437
        %1441 = vset.pattern.permute.xlu0 0
        %1442 = vperm.xlu0 %1441, %v535
        %v1443 = vpop.permute.xlu0 %1442
        %1446 = vset.pattern.permute.xlu0 0
        %1447 = vperm.xlu0 %1446, %v536
        %v1448 = vpop.permute.xlu0 %1447
        %1451 = vset.pattern.permute.xlu0 0
        %1452 = vperm.xlu0 %1451, %v537
        %v1453 = vpop.permute.xlu0 %1452
        %1456 = vset.pattern.permute.xlu0 0
        %1457 = vperm.xlu0 %1456, %v538
        %v1458 = vpop.permute.xlu0 %1457
        %1461 = vset.pattern.permute.xlu0 0
        %1462 = vperm.xlu0 %1461, %v539
        %v1463 = vpop.permute.xlu0 %1462
        %1466 = vset.pattern.permute.xlu0 0
        %1467 = vperm.xlu0 %1466, %v540
        %v1468 = vpop.permute.xlu0 %1467
        %1471 = vset.pattern.permute.xlu0 0
        %1472 = vperm.xlu0 %1471, %v541
        %v1473 = vpop.permute.xlu0 %1472
        %1476 = vset.pattern.permute.xlu0 0
        %1477 = vperm.xlu0 %1476, %v542
        %v1478 = vpop.permute.xlu0 %1477
        %1481 = vset.pattern.permute.xlu0 0
        %1482 = vperm.xlu0 %1481, %v543
        %v1483 = vpop.permute.xlu0 %1482
        %1486 = vset.pattern.permute.xlu0 0
        %1487 = vperm.xlu0 %1486, %v544
        %v1488 = vpop.permute.xlu0 %1487
        %1491 = vset.pattern.permute.xlu0 0
        %1492 = vperm.xlu0 %1491, %v545
        %v1493 = vpop.permute.xlu0 %1492
        %1496 = vset.pattern.permute.xlu0 0
        %1497 = vperm.xlu0 %1496, %v546
        %v1498 = vpop.permute.xlu0 %1497
        %1501 = vset.pattern.permute.xlu0 0
        %1502 = vperm.xlu0 %1501, %v547
        %v1503 = vpop.permute.xlu0 %1502
        %1506 = vset.pattern.permute.xlu0 0
        %1507 = vperm.xlu0 %1506, %v548
        %v1508 = vpop.permute.xlu0 %1507
        %1511 = vset.pattern.permute.xlu0 0
        %1512 = vperm.xlu0 %1511, %v549
        %v1513 = vpop.permute.xlu0 %1512
        %1516 = vset.pattern.permute.xlu0 0
        %1517 = vperm.xlu0 %1516, %v550
        %v1518 = vpop.permute.xlu0 %1517
        %1521 = vset.pattern.permute.xlu0 0
        %1522 = vperm.xlu0 %1521, %v551
        %v1523 = vpop.permute.xlu0 %1522
        %1526 = vset.pattern.permute.xlu0 0
        %1527 = vperm.xlu0 %1526, %v552
        %v1528 = vpop.permute.xlu0 %1527
        %1531 = vset.pattern.permute.xlu0 0
        %1532 = vperm.xlu0 %1531, %v553
        %v1533 = vpop.permute.xlu0 %1532
        %1536 = vset.pattern.permute.xlu0 0
        %1537 = vperm.xlu0 %1536, %v554
        %v1538 = vpop.permute.xlu0 %1537
        %1541 = vset.pattern.permute.xlu0 0
        %1542 = vperm.xlu0 %1541, %v555
        %v1543 = vpop.permute.xlu0 %1542
        %1546 = vset.pattern.permute.xlu0 0
        %1547 = vperm.xlu0 %1546, %v556
        %v1548 = vpop.permute.xlu0 %1547
        %1551 = vset.pattern.permute.xlu0 0
        %1552 = vperm.xlu0 %1551, %v557
        %v1553 = vpop.permute.xlu0 %1552
        %1556 = vset.pattern.permute.xlu0 0
        %1557 = vperm.xlu0 %1556, %v558
        %v1558 = vpop.permute.xlu0 %1557
        %v1560 = vlaneseq
        %v1561 = vshrl.u32 %v1560, 7
        %v1562 = vsub.s32 0, %v1561
        %v1563 = vrot.slane %v559, %v1562
        %v1564 = vmul.f32 %v563, %v1563
        %v1565 = vmul.f32 %v568, %v1563
        %v1566 = vmul.f32 %v573, %v1563
        %v1567 = vmul.f32 %v578, %v1563
        %v1568 = vmul.f32 %v583, %v1563
        %v1569 = vmul.f32 %v588, %v1563
        %v1570 = vmul.f32 %v593, %v1563
        %v1571 = vmul.f32 %v598, %v1563
        %v1572 = vmul.f32 %v603, %v1563
        %v1573 = vmul.f32 %v608, %v1563
        %v1574 = vmul.f32 %v613, %v1563
        %v1575 = vmul.f32 %v618, %v1563
        %v1576 = vmul.f32 %v623, %v1563
        %v1577 = vmul.f32 %v628, %v1563
        %v1578 = vmul.f32 %v633, %v1563
        %v1579 = vmul.f32 %v638, %v1563
        %v1580 = vmul.f32 %v643, %v1563
        %v1581 = vmul.f32 %v648, %v1563
        %v1582 = vmul.f32 %v653, %v1563
        %v1583 = vmul.f32 %v658, %v1563
        %v1584 = vmul.f32 %v663, %v1563
        %v1585 = vmul.f32 %v668, %v1563
        %v1586 = vmul.f32 %v673, %v1563
        %v1587 = vmul.f32 %v678, %v1563
        %v1588 = vmul.f32 %v683, %v1563
        %v1589 = vmul.f32 %v688, %v1563
        %v1590 = vmul.f32 %v693, %v1563
        %v1591 = vmul.f32 %v698, %v1563
        %v1592 = vmul.f32 %v703, %v1563
        %v1593 = vmul.f32 %v708, %v1563
        %v1594 = vmul.f32 %v713, %v1563
        %v1595 = vmul.f32 %v718, %v1563
        %v1596 = vmul.f32 %v723, %v1563
        %v1597 = vmul.f32 %v728, %v1563
        %v1598 = vmul.f32 %v733, %v1563
        %v1599 = vmul.f32 %v738, %v1563
        %v1600 = vmul.f32 %v743, %v1563
        %v1601 = vmul.f32 %v748, %v1563
        %v1602 = vmul.f32 %v753, %v1563
        %v1603 = vmul.f32 %v758, %v1563
        %v1604 = vmul.f32 %v763, %v1563
        %v1605 = vmul.f32 %v768, %v1563
        %v1606 = vmul.f32 %v773, %v1563
        %v1607 = vmul.f32 %v778, %v1563
        %v1608 = vmul.f32 %v783, %v1563
        %v1609 = vmul.f32 %v788, %v1563
        %v1610 = vmul.f32 %v793, %v1563
        %v1611 = vmul.f32 %v798, %v1563
        %v1612 = vmul.f32 %v803, %v1563
        %v1613 = vmul.f32 %v808, %v1563
        %v1614 = vmul.f32 %v813, %v1563
        %v1615 = vmul.f32 %v818, %v1563
        %v1616 = vmul.f32 %v823, %v1563
        %v1617 = vmul.f32 %v828, %v1563
        %v1618 = vmul.f32 %v833, %v1563
        %v1619 = vmul.f32 %v838, %v1563
        %v1620 = vmul.f32 %v843, %v1563
        %v1621 = vmul.f32 %v848, %v1563
        %v1622 = vmul.f32 %v853, %v1563
        %v1623 = vmul.f32 %v858, %v1563
        %v1624 = vmul.f32 %v863, %v1563
        %v1625 = vmul.f32 %v868, %v1563
        %v1626 = vmul.f32 %v873, %v1563
        %v1627 = vmul.f32 %v878, %v1563
        %v1628 = vmul.f32 %v883, %v1563
        %v1629 = vmul.f32 %v888, %v1563
        %v1630 = vmul.f32 %v893, %v1563
        %v1631 = vmul.f32 %v898, %v1563
        %v1632 = vmul.f32 %v903, %v1563
        %v1633 = vmul.f32 %v908, %v1563
        %v1634 = vmul.f32 %v913, %v1563
        %v1635 = vmul.f32 %v918, %v1563
        %v1636 = vmul.f32 %v923, %v1563
        %v1637 = vmul.f32 %v928, %v1563
        %v1638 = vmul.f32 %v933, %v1563
        %v1639 = vmul.f32 %v938, %v1563
        %v1640 = vmul.f32 %v943, %v1563
        %v1641 = vmul.f32 %v948, %v1563
        %v1642 = vmul.f32 %v953, %v1563
        %v1643 = vmul.f32 %v958, %v1563
        %v1644 = vmul.f32 %v963, %v1563
        %v1645 = vmul.f32 %v968, %v1563
        %v1646 = vmul.f32 %v973, %v1563
        %v1647 = vmul.f32 %v978, %v1563
        %v1648 = vmul.f32 %v983, %v1563
        %v1649 = vmul.f32 %v988, %v1563
        %v1650 = vmul.f32 %v993, %v1563
        %v1651 = vmul.f32 %v998, %v1563
        %v1652 = vmul.f32 %v1003, %v1563
        %v1653 = vmul.f32 %v1008, %v1563
        %v1654 = vmul.f32 %v1013, %v1563
        %v1655 = vmul.f32 %v1018, %v1563
        %v1656 = vmul.f32 %v1023, %v1563
        %v1657 = vmul.f32 %v1028, %v1563
        %v1658 = vmul.f32 %v1033, %v1563
        %v1659 = vmul.f32 %v1038, %v1563
        %v1660 = vmul.f32 %v1043, %v1563
        %v1661 = vmul.f32 %v1048, %v1563
        %v1662 = vmul.f32 %v1053, %v1563
        %v1663 = vmul.f32 %v1058, %v1563
        %v1664 = vmul.f32 %v1063, %v1563
        %v1665 = vmul.f32 %v1068, %v1563
        %v1666 = vmul.f32 %v1073, %v1563
        %v1667 = vmul.f32 %v1078, %v1563
        %v1668 = vmul.f32 %v1083, %v1563
        %v1669 = vmul.f32 %v1088, %v1563
        %v1670 = vmul.f32 %v1093, %v1563
        %v1671 = vmul.f32 %v1098, %v1563
        %v1672 = vmul.f32 %v1103, %v1563
        %v1673 = vmul.f32 %v1108, %v1563
        %v1674 = vmul.f32 %v1113, %v1563
        %v1675 = vmul.f32 %v1118, %v1563
        %v1676 = vmul.f32 %v1123, %v1563
        %v1677 = vmul.f32 %v1128, %v1563
        %v1678 = vmul.f32 %v1133, %v1563
        %v1679 = vmul.f32 %v1138, %v1563
        %v1680 = vmul.f32 %v1143, %v1563
        %v1681 = vmul.f32 %v1148, %v1563
        %v1682 = vmul.f32 %v1153, %v1563
        %v1683 = vmul.f32 %v1158, %v1563
        %v1684 = vmul.f32 %v1163, %v1563
        %v1685 = vmul.f32 %v1168, %v1563
        %v1686 = vmul.f32 %v1173, %v1563
        %v1687 = vmul.f32 %v1178, %v1563
        %v1688 = vmul.f32 %v1183, %v1563
        %v1689 = vmul.f32 %v1188, %v1563
        %v1690 = vmul.f32 %v1193, %v1563
        %v1691 = vmul.f32 %v1198, %v1563
        %v1692 = vmul.f32 %v1203, %v1563
        %v1693 = vmul.f32 %v1208, %v1563
        %v1694 = vmul.f32 %v1213, %v1563
        %v1695 = vmul.f32 %v1218, %v1563
        %v1696 = vmul.f32 %v1223, %v1563
        %v1697 = vmul.f32 %v1228, %v1563
        %v1698 = vmul.f32 %v1233, %v1563
        %v1699 = vmul.f32 %v1238, %v1563
        %v1700 = vmul.f32 %v1243, %v1563
        %v1701 = vmul.f32 %v1248, %v1563
        %v1702 = vmul.f32 %v1253, %v1563
        %v1703 = vmul.f32 %v1258, %v1563
        %v1704 = vmul.f32 %v1263, %v1563
        %v1705 = vmul.f32 %v1268, %v1563
        %v1706 = vmul.f32 %v1273, %v1563
        %v1707 = vmul.f32 %v1278, %v1563
        %v1708 = vmul.f32 %v1283, %v1563
        %v1709 = vmul.f32 %v1288, %v1563
        %v1710 = vmul.f32 %v1293, %v1563
        %v1711 = vmul.f32 %v1298, %v1563
        %v1712 = vmul.f32 %v1303, %v1563
        %v1713 = vmul.f32 %v1308, %v1563
        %v1714 = vmul.f32 %v1313, %v1563
        %v1715 = vmul.f32 %v1318, %v1563
        %v1716 = vmul.f32 %v1323, %v1563
        %v1717 = vmul.f32 %v1328, %v1563
        %v1718 = vmul.f32 %v1333, %v1563
        %v1719 = vmul.f32 %v1338, %v1563
        %v1720 = vmul.f32 %v1343, %v1563
        %v1721 = vmul.f32 %v1348, %v1563
        %v1722 = vmul.f32 %v1353, %v1563
        %v1723 = vmul.f32 %v1358, %v1563
        %v1724 = vmul.f32 %v1363, %v1563
        %v1725 = vmul.f32 %v1368, %v1563
        %v1726 = vmul.f32 %v1373, %v1563
        %v1727 = vmul.f32 %v1378, %v1563
        %v1728 = vmul.f32 %v1383, %v1563
        %v1729 = vmul.f32 %v1388, %v1563
        %v1730 = vmul.f32 %v1393, %v1563
        %v1731 = vmul.f32 %v1398, %v1563
        %v1732 = vmul.f32 %v1403, %v1563
        %v1733 = vmul.f32 %v1408, %v1563
        %v1734 = vmul.f32 %v1413, %v1563
        %v1735 = vmul.f32 %v1418, %v1563
        %v1736 = vmul.f32 %v1423, %v1563
        %v1737 = vmul.f32 %v1428, %v1563
        %v1738 = vmul.f32 %v1433, %v1563
        %v1739 = vmul.f32 %v1438, %v1563
        %v1740 = vmul.f32 %v1443, %v1563
        %v1741 = vmul.f32 %v1448, %v1563
        %v1742 = vmul.f32 %v1453, %v1563
        %v1743 = vmul.f32 %v1458, %v1563
        %v1744 = vmul.f32 %v1463, %v1563
        %v1745 = vmul.f32 %v1468, %v1563
        %v1746 = vmul.f32 %v1473, %v1563
        %v1747 = vmul.f32 %v1478, %v1563
        %v1748 = vmul.f32 %v1483, %v1563
        %v1749 = vmul.f32 %v1488, %v1563
        %v1750 = vmul.f32 %v1493, %v1563
        %v1751 = vmul.f32 %v1498, %v1563
        %v1752 = vmul.f32 %v1503, %v1563
        %v1753 = vmul.f32 %v1508, %v1563
        %v1754 = vmul.f32 %v1513, %v1563
        %v1755 = vmul.f32 %v1518, %v1563
        %v1756 = vmul.f32 %v1523, %v1563
        %v1757 = vmul.f32 %v1528, %v1563
        %v1758 = vmul.f32 %v1533, %v1563
        %v1759 = vmul.f32 %v1538, %v1563
        %v1760 = vmul.f32 %v1543, %v1563
        %v1761 = vmul.f32 %v1548, %v1563
        %v1762 = vmul.f32 %v1553, %v1563
        %v1763 = vmul.f32 %v1558, %v1563
        %v1764 = vld [vmem:[%s353 + $0x1] sm:$0xff]
        %v1765 = vld [vmem:[%s353 + $0x9] sm:$0xff]
        %v1766 = vld [vmem:[%s353 + $0x11] sm:$0xff]
        %v1767 = vld [vmem:[%s353 + $0x19] sm:$0xff]
        %v1768 = vld [vmem:[%s353 + $0x21] sm:$0xff]
        %v1769 = vld [vmem:[%s353 + $0x29] sm:$0xff]
        %v1770 = vld [vmem:[%s353 + $0x31] sm:$0xff]
        %v1771 = vld [vmem:[%s353 + $0x39] sm:$0xff]
        %v1772 = vld [vmem:[%s353 + $0x41] sm:$0xff]
        %v1773 = vld [vmem:[%s353 + $0x49] sm:$0xff]
        %v1774 = vld [vmem:[%s353 + $0x51] sm:$0xff]
        %v1775 = vld [vmem:[%s353 + $0x59] sm:$0xff]
        %v1776 = vld [vmem:[%s353 + $0x61] sm:$0xff]
        %v1777 = vld [vmem:[%s353 + $0x69] sm:$0xff]
        %v1778 = vld [vmem:[%s353 + $0x71] sm:$0xff]
        %v1779 = vld [vmem:[%s353 + $0x79] sm:$0xff]
        %v1780 = vld [vmem:[%s353 + $0x81] sm:$0xff]
        %v1781 = vld [vmem:[%s353 + $0x89] sm:$0xff]
        %v1782 = vld [vmem:[%s353 + $0x91] sm:$0xff]
        %v1783 = vld [vmem:[%s353 + $0x99] sm:$0xff]
        %v1784 = vld [vmem:[%s353 + $0xa1] sm:$0xff]
        %v1785 = vld [vmem:[%s353 + $0xa9] sm:$0xff]
        %v1786 = vld [vmem:[%s353 + $0xb1] sm:$0xff]
        %v1787 = vld [vmem:[%s353 + $0xb9] sm:$0xff]
        %v1788 = vld [vmem:[%s353 + $0xc1] sm:$0xff]
        %v1789 = vld [vmem:[%s353 + $0xc9] sm:$0xff]
        %v1790 = vld [vmem:[%s353 + $0xd1] sm:$0xff]
        %v1791 = vld [vmem:[%s353 + $0xd9] sm:$0xff]
        %v1792 = vld [vmem:[%s353 + $0xe1] sm:$0xff]
        %v1793 = vld [vmem:[%s353 + $0xe9] sm:$0xff]
        %v1794 = vld [vmem:[%s353 + $0xf1] sm:$0xff]
        %v1795 = vld [vmem:[%s353 + $0xf9] sm:$0xff]
        %v1796 = vld [vmem:[%s353 + $0x101] sm:$0xff]
        %v1797 = vld [vmem:[%s353 + $0x109] sm:$0xff]
        %v1798 = vld [vmem:[%s353 + $0x111] sm:$0xff]
        %v1799 = vld [vmem:[%s353 + $0x119] sm:$0xff]
        %v1800 = vld [vmem:[%s353 + $0x121] sm:$0xff]
        %v1801 = vld [vmem:[%s353 + $0x129] sm:$0xff]
        %v1802 = vld [vmem:[%s353 + $0x131] sm:$0xff]
        %v1803 = vld [vmem:[%s353 + $0x139] sm:$0xff]
        %v1804 = vld [vmem:[%s353 + $0x141] sm:$0xff]
        %v1805 = vld [vmem:[%s353 + $0x149] sm:$0xff]
        %v1806 = vld [vmem:[%s353 + $0x151] sm:$0xff]
        %v1807 = vld [vmem:[%s353 + $0x159] sm:$0xff]
        %v1808 = vld [vmem:[%s353 + $0x161] sm:$0xff]
        %v1809 = vld [vmem:[%s353 + $0x169] sm:$0xff]
        %v1810 = vld [vmem:[%s353 + $0x171] sm:$0xff]
        %v1811 = vld [vmem:[%s353 + $0x179] sm:$0xff]
        %v1812 = vld [vmem:[%s353 + $0x181] sm:$0xff]
        %v1813 = vld [vmem:[%s353 + $0x189] sm:$0xff]
        %v1814 = vld [vmem:[%s353 + $0x191] sm:$0xff]
        %v1815 = vld [vmem:[%s353 + $0x199] sm:$0xff]
        %v1816 = vld [vmem:[%s353 + $0x1a1] sm:$0xff]
        %v1817 = vld [vmem:[%s353 + $0x1a9] sm:$0xff]
        %v1818 = vld [vmem:[%s353 + $0x1b1] sm:$0xff]
        %v1819 = vld [vmem:[%s353 + $0x1b9] sm:$0xff]
        %v1820 = vld [vmem:[%s353 + $0x1c1] sm:$0xff]
        %v1821 = vld [vmem:[%s353 + $0x1c9] sm:$0xff]
        %v1822 = vld [vmem:[%s353 + $0x1d1] sm:$0xff]
        %v1823 = vld [vmem:[%s353 + $0x1d9] sm:$0xff]
        %v1824 = vld [vmem:[%s353 + $0x1e1] sm:$0xff]
        %v1825 = vld [vmem:[%s353 + $0x1e9] sm:$0xff]
        %v1826 = vld [vmem:[%s353 + $0x1f1] sm:$0xff]
        %v1827 = vld [vmem:[%s353 + $0x1f9] sm:$0xff]
        %v1828 = vld [vmem:[%s353 + $0x201] sm:$0xff]
        %v1829 = vld [vmem:[%s353 + $0x209] sm:$0xff]
        %v1830 = vld [vmem:[%s353 + $0x211] sm:$0xff]
        %v1831 = vld [vmem:[%s353 + $0x219] sm:$0xff]
        %v1832 = vld [vmem:[%s353 + $0x221] sm:$0xff]
        %v1833 = vld [vmem:[%s353 + $0x229] sm:$0xff]
        %v1834 = vld [vmem:[%s353 + $0x231] sm:$0xff]
        %v1835 = vld [vmem:[%s353 + $0x239] sm:$0xff]
        %v1836 = vld [vmem:[%s353 + $0x241] sm:$0xff]
        %v1837 = vld [vmem:[%s353 + $0x249] sm:$0xff]
        %v1838 = vld [vmem:[%s353 + $0x251] sm:$0xff]
        %v1839 = vld [vmem:[%s353 + $0x259] sm:$0xff]
        %v1840 = vld [vmem:[%s353 + $0x261] sm:$0xff]
        %v1841 = vld [vmem:[%s353 + $0x269] sm:$0xff]
        %v1842 = vld [vmem:[%s353 + $0x271] sm:$0xff]
        %v1843 = vld [vmem:[%s353 + $0x279] sm:$0xff]
        %v1844 = vld [vmem:[%s353 + $0x281] sm:$0xff]
        %v1845 = vld [vmem:[%s353 + $0x289] sm:$0xff]
        %v1846 = vld [vmem:[%s353 + $0x291] sm:$0xff]
        %v1847 = vld [vmem:[%s353 + $0x299] sm:$0xff]
        %v1848 = vld [vmem:[%s353 + $0x2a1] sm:$0xff]
        %v1849 = vld [vmem:[%s353 + $0x2a9] sm:$0xff]
        %v1850 = vld [vmem:[%s353 + $0x2b1] sm:$0xff]
        %v1851 = vld [vmem:[%s353 + $0x2b9] sm:$0xff]
        %v1852 = vld [vmem:[%s353 + $0x2c1] sm:$0xff]
        %v1853 = vld [vmem:[%s353 + $0x2c9] sm:$0xff]
        %v1854 = vld [vmem:[%s353 + $0x2d1] sm:$0xff]
        %v1855 = vld [vmem:[%s353 + $0x2d9] sm:$0xff]
        %v1856 = vld [vmem:[%s353 + $0x2e1] sm:$0xff]
        %v1857 = vld [vmem:[%s353 + $0x2e9] sm:$0xff]
        %v1858 = vld [vmem:[%s353 + $0x2f1] sm:$0xff]
        %v1859 = vld [vmem:[%s353 + $0x2f9] sm:$0xff]
        %v1860 = vld [vmem:[%s353 + $0x301] sm:$0xff]
        %v1861 = vld [vmem:[%s353 + $0x309] sm:$0xff]
        %v1862 = vld [vmem:[%s353 + $0x311] sm:$0xff]
        %v1863 = vld [vmem:[%s353 + $0x319] sm:$0xff]
        %v1864 = vld [vmem:[%s353 + $0x321] sm:$0xff]
        %v1865 = vld [vmem:[%s353 + $0x329] sm:$0xff]
        %v1866 = vld [vmem:[%s353 + $0x331] sm:$0xff]
        %v1867 = vld [vmem:[%s353 + $0x339] sm:$0xff]
        %v1868 = vld [vmem:[%s353 + $0x341] sm:$0xff]
        %v1869 = vld [vmem:[%s353 + $0x349] sm:$0xff]
        %v1870 = vld [vmem:[%s353 + $0x351] sm:$0xff]
        %v1871 = vld [vmem:[%s353 + $0x359] sm:$0xff]
        %v1872 = vld [vmem:[%s353 + $0x361] sm:$0xff]
        %v1873 = vld [vmem:[%s353 + $0x369] sm:$0xff]
        %v1874 = vld [vmem:[%s353 + $0x371] sm:$0xff]
        %v1875 = vld [vmem:[%s353 + $0x379] sm:$0xff]
        %v1876 = vld [vmem:[%s353 + $0x381] sm:$0xff]
        %v1877 = vld [vmem:[%s353 + $0x389] sm:$0xff]
        %v1878 = vld [vmem:[%s353 + $0x391] sm:$0xff]
        %v1879 = vld [vmem:[%s353 + $0x399] sm:$0xff]
        %v1880 = vld [vmem:[%s353 + $0x3a1] sm:$0xff]
        %v1881 = vld [vmem:[%s353 + $0x3a9] sm:$0xff]
        %v1882 = vld [vmem:[%s353 + $0x3b1] sm:$0xff]
        %v1883 = vld [vmem:[%s353 + $0x3b9] sm:$0xff]
        %v1884 = vld [vmem:[%s353 + $0x3c1] sm:$0xff]
        %v1885 = vld [vmem:[%s353 + $0x3c9] sm:$0xff]
        %v1886 = vld [vmem:[%s353 + $0x3d1] sm:$0xff]
        %v1887 = vld [vmem:[%s353 + $0x3d9] sm:$0xff]
        %v1888 = vld [vmem:[%s353 + $0x3e1] sm:$0xff]
        %v1889 = vld [vmem:[%s353 + $0x3e9] sm:$0xff]
        %v1890 = vld [vmem:[%s353 + $0x3f1] sm:$0xff]
        %v1891 = vld [vmem:[%s353 + $0x3f9] sm:$0xff]
        %v1892 = vld [vmem:[%s353 + $0x401] sm:$0xff]
        %v1893 = vld [vmem:[%s353 + $0x409] sm:$0xff]
        %v1894 = vld [vmem:[%s353 + $0x411] sm:$0xff]
        %v1895 = vld [vmem:[%s353 + $0x419] sm:$0xff]
        %v1896 = vld [vmem:[%s353 + $0x421] sm:$0xff]
        %v1897 = vld [vmem:[%s353 + $0x429] sm:$0xff]
        %v1898 = vld [vmem:[%s353 + $0x431] sm:$0xff]
        %v1899 = vld [vmem:[%s353 + $0x439] sm:$0xff]
        %v1900 = vld [vmem:[%s353 + $0x441] sm:$0xff]
        %v1901 = vld [vmem:[%s353 + $0x449] sm:$0xff]
        %v1902 = vld [vmem:[%s353 + $0x451] sm:$0xff]
        %v1903 = vld [vmem:[%s353 + $0x459] sm:$0xff]
        %v1904 = vld [vmem:[%s353 + $0x461] sm:$0xff]
        %v1905 = vld [vmem:[%s353 + $0x469] sm:$0xff]
        %v1906 = vld [vmem:[%s353 + $0x471] sm:$0xff]
        %v1907 = vld [vmem:[%s353 + $0x479] sm:$0xff]
        %v1908 = vld [vmem:[%s353 + $0x481] sm:$0xff]
        %v1909 = vld [vmem:[%s353 + $0x489] sm:$0xff]
        %v1910 = vld [vmem:[%s353 + $0x491] sm:$0xff]
        %v1911 = vld [vmem:[%s353 + $0x499] sm:$0xff]
        %v1912 = vld [vmem:[%s353 + $0x4a1] sm:$0xff]
        %v1913 = vld [vmem:[%s353 + $0x4a9] sm:$0xff]
        %v1914 = vld [vmem:[%s353 + $0x4b1] sm:$0xff]
        %v1915 = vld [vmem:[%s353 + $0x4b9] sm:$0xff]
        %v1916 = vld [vmem:[%s353 + $0x4c1] sm:$0xff]
        %v1917 = vld [vmem:[%s353 + $0x4c9] sm:$0xff]
        %v1918 = vld [vmem:[%s353 + $0x4d1] sm:$0xff]
        %v1919 = vld [vmem:[%s353 + $0x4d9] sm:$0xff]
        %v1920 = vld [vmem:[%s353 + $0x4e1] sm:$0xff]
        %v1921 = vld [vmem:[%s353 + $0x4e9] sm:$0xff]
        %v1922 = vld [vmem:[%s353 + $0x4f1] sm:$0xff]
        %v1923 = vld [vmem:[%s353 + $0x4f9] sm:$0xff]
        %v1924 = vld [vmem:[%s353 + $0x501] sm:$0xff]
        %v1925 = vld [vmem:[%s353 + $0x509] sm:$0xff]
        %v1926 = vld [vmem:[%s353 + $0x511] sm:$0xff]
        %v1927 = vld [vmem:[%s353 + $0x519] sm:$0xff]
        %v1928 = vld [vmem:[%s353 + $0x521] sm:$0xff]
        %v1929 = vld [vmem:[%s353 + $0x529] sm:$0xff]
        %v1930 = vld [vmem:[%s353 + $0x531] sm:$0xff]
        %v1931 = vld [vmem:[%s353 + $0x539] sm:$0xff]
        %v1932 = vld [vmem:[%s353 + $0x541] sm:$0xff]
        %v1933 = vld [vmem:[%s353 + $0x549] sm:$0xff]
        %v1934 = vld [vmem:[%s353 + $0x551] sm:$0xff]
        %v1935 = vld [vmem:[%s353 + $0x559] sm:$0xff]
        %v1936 = vld [vmem:[%s353 + $0x561] sm:$0xff]
        %v1937 = vld [vmem:[%s353 + $0x569] sm:$0xff]
        %v1938 = vld [vmem:[%s353 + $0x571] sm:$0xff]
        %v1939 = vld [vmem:[%s353 + $0x579] sm:$0xff]
        %v1940 = vld [vmem:[%s353 + $0x581] sm:$0xff]
        %v1941 = vld [vmem:[%s353 + $0x589] sm:$0xff]
        %v1942 = vld [vmem:[%s353 + $0x591] sm:$0xff]
        %v1943 = vld [vmem:[%s353 + $0x599] sm:$0xff]
        %v1944 = vld [vmem:[%s353 + $0x5a1] sm:$0xff]
        %v1945 = vld [vmem:[%s353 + $0x5a9] sm:$0xff]
        %v1946 = vld [vmem:[%s353 + $0x5b1] sm:$0xff]
        %v1947 = vld [vmem:[%s353 + $0x5b9] sm:$0xff]
        %v1948 = vld [vmem:[%s353 + $0x5c1] sm:$0xff]
        %v1949 = vld [vmem:[%s353 + $0x5c9] sm:$0xff]
        %v1950 = vld [vmem:[%s353 + $0x5d1] sm:$0xff]
        %v1951 = vld [vmem:[%s353 + $0x5d9] sm:$0xff]
        %v1952 = vld [vmem:[%s353 + $0x5e1] sm:$0xff]
        %v1953 = vld [vmem:[%s353 + $0x5e9] sm:$0xff]
        %v1954 = vld [vmem:[%s353 + $0x5f1] sm:$0xff]
        %v1955 = vld [vmem:[%s353 + $0x5f9] sm:$0xff]
        %v1956 = vld [vmem:[%s353 + $0x601] sm:$0xff]
        %v1957 = vld [vmem:[%s353 + $0x609] sm:$0xff]
        %v1958 = vld [vmem:[%s353 + $0x611] sm:$0xff]
        %v1959 = vld [vmem:[%s353 + $0x619] sm:$0xff]
        %v1960 = vld [vmem:[%s353 + $0x621] sm:$0xff]
        %v1961 = vld [vmem:[%s353 + $0x629] sm:$0xff]
        %v1962 = vld [vmem:[%s353 + $0x631] sm:$0xff]
        %v1963 = vld [vmem:[%s353 + $0x639] sm:$0x3f]
        %v1964 = vld [vmem:[#allocation7 + $0x1] sm:$0x1]
        %1966 = vset.pattern.permute.xlu0 0
        %1967 = vperm.xlu0 %1966, %v1764
        %v1968 = vpop.permute.xlu0 %1967
        %1971 = vset.pattern.permute.xlu0 0
        %1972 = vperm.xlu0 %1971, %v1765
        %v1973 = vpop.permute.xlu0 %1972
        %1976 = vset.pattern.permute.xlu0 0
        %1977 = vperm.xlu0 %1976, %v1766
        %v1978 = vpop.permute.xlu0 %1977
        %1981 = vset.pattern.permute.xlu0 0
        %1982 = vperm.xlu0 %1981, %v1767
        %v1983 = vpop.permute.xlu0 %1982
        %1986 = vset.pattern.permute.xlu0 0
        %1987 = vperm.xlu0 %1986, %v1768
        %v1988 = vpop.permute.xlu0 %1987
        %1991 = vset.pattern.permute.xlu0 0
        %1992 = vperm.xlu0 %1991, %v1769
        %v1993 = vpop.permute.xlu0 %1992
        %1996 = vset.pattern.permute.xlu0 0
        %1997 = vperm.xlu0 %1996, %v1770
        %v1998 = vpop.permute.xlu0 %1997
        %2001 = vset.pattern.permute.xlu0 0
        %2002 = vperm.xlu0 %2001, %v1771
        %v2003 = vpop.permute.xlu0 %2002
        %2006 = vset.pattern.permute.xlu0 0
        %2007 = vperm.xlu0 %2006, %v1772
        %v2008 = vpop.permute.xlu0 %2007
        %2011 = vset.pattern.permute.xlu0 0
        %2012 = vperm.xlu0 %2011, %v1773
        %v2013 = vpop.permute.xlu0 %2012
        %2016 = vset.pattern.permute.xlu0 0
        %2017 = vperm.xlu0 %2016, %v1774
        %v2018 = vpop.permute.xlu0 %2017
        %2021 = vset.pattern.permute.xlu0 0
        %2022 = vperm.xlu0 %2021, %v1775
        %v2023 = vpop.permute.xlu0 %2022
        %2026 = vset.pattern.permute.xlu0 0
        %2027 = vperm.xlu0 %2026, %v1776
        %v2028 = vpop.permute.xlu0 %2027
        %2031 = vset.pattern.permute.xlu0 0
        %2032 = vperm.xlu0 %2031, %v1777
        %v2033 = vpop.permute.xlu0 %2032
        %2036 = vset.pattern.permute.xlu0 0
        %2037 = vperm.xlu0 %2036, %v1778
        %v2038 = vpop.permute.xlu0 %2037
        %2041 = vset.pattern.permute.xlu0 0
        %2042 = vperm.xlu0 %2041, %v1779
        %v2043 = vpop.permute.xlu0 %2042
        %2046 = vset.pattern.permute.xlu0 0
        %2047 = vperm.xlu0 %2046, %v1780
        %v2048 = vpop.permute.xlu0 %2047
        %2051 = vset.pattern.permute.xlu0 0
        %2052 = vperm.xlu0 %2051, %v1781
        %v2053 = vpop.permute.xlu0 %2052
        %2056 = vset.pattern.permute.xlu0 0
        %2057 = vperm.xlu0 %2056, %v1782
        %v2058 = vpop.permute.xlu0 %2057
        %2061 = vset.pattern.permute.xlu0 0
        %2062 = vperm.xlu0 %2061, %v1783
        %v2063 = vpop.permute.xlu0 %2062
        %2066 = vset.pattern.permute.xlu0 0
        %2067 = vperm.xlu0 %2066, %v1784
        %v2068 = vpop.permute.xlu0 %2067
        %2071 = vset.pattern.permute.xlu0 0
        %2072 = vperm.xlu0 %2071, %v1785
        %v2073 = vpop.permute.xlu0 %2072
        %2076 = vset.pattern.permute.xlu0 0
        %2077 = vperm.xlu0 %2076, %v1786
        %v2078 = vpop.permute.xlu0 %2077
        %2081 = vset.pattern.permute.xlu0 0
        %2082 = vperm.xlu0 %2081, %v1787
        %v2083 = vpop.permute.xlu0 %2082
        %2086 = vset.pattern.permute.xlu0 0
        %2087 = vperm.xlu0 %2086, %v1788
        %v2088 = vpop.permute.xlu0 %2087
        %2091 = vset.pattern.permute.xlu0 0
        %2092 = vperm.xlu0 %2091, %v1789
        %v2093 = vpop.permute.xlu0 %2092
        %2096 = vset.pattern.permute.xlu0 0
        %2097 = vperm.xlu0 %2096, %v1790
        %v2098 = vpop.permute.xlu0 %2097
        %2101 = vset.pattern.permute.xlu0 0
        %2102 = vperm.xlu0 %2101, %v1791
        %v2103 = vpop.permute.xlu0 %2102
        %2106 = vset.pattern.permute.xlu0 0
        %2107 = vperm.xlu0 %2106, %v1792
        %v2108 = vpop.permute.xlu0 %2107
        %2111 = vset.pattern.permute.xlu0 0
        %2112 = vperm.xlu0 %2111, %v1793
        %v2113 = vpop.permute.xlu0 %2112
        %2116 = vset.pattern.permute.xlu0 0
        %2117 = vperm.xlu0 %2116, %v1794
        %v2118 = vpop.permute.xlu0 %2117
        %2121 = vset.pattern.permute.xlu0 0
        %2122 = vperm.xlu0 %2121, %v1795
        %v2123 = vpop.permute.xlu0 %2122
        %2126 = vset.pattern.permute.xlu0 0
        %2127 = vperm.xlu0 %2126, %v1796
        %v2128 = vpop.permute.xlu0 %2127
        %2131 = vset.pattern.permute.xlu0 0
        %2132 = vperm.xlu0 %2131, %v1797
        %v2133 = vpop.permute.xlu0 %2132
        %2136 = vset.pattern.permute.xlu0 0
        %2137 = vperm.xlu0 %2136, %v1798
        %v2138 = vpop.permute.xlu0 %2137
        %2141 = vset.pattern.permute.xlu0 0
        %2142 = vperm.xlu0 %2141, %v1799
        %v2143 = vpop.permute.xlu0 %2142
        %2146 = vset.pattern.permute.xlu0 0
        %2147 = vperm.xlu0 %2146, %v1800
        %v2148 = vpop.permute.xlu0 %2147
        %2151 = vset.pattern.permute.xlu0 0
        %2152 = vperm.xlu0 %2151, %v1801
        %v2153 = vpop.permute.xlu0 %2152
        %2156 = vset.pattern.permute.xlu0 0
        %2157 = vperm.xlu0 %2156, %v1802
        %v2158 = vpop.permute.xlu0 %2157
        %2161 = vset.pattern.permute.xlu0 0
        %2162 = vperm.xlu0 %2161, %v1803
        %v2163 = vpop.permute.xlu0 %2162
        %2166 = vset.pattern.permute.xlu0 0
        %2167 = vperm.xlu0 %2166, %v1804
        %v2168 = vpop.permute.xlu0 %2167
        %2171 = vset.pattern.permute.xlu0 0
        %2172 = vperm.xlu0 %2171, %v1805
        %v2173 = vpop.permute.xlu0 %2172
        %2176 = vset.pattern.permute.xlu0 0
        %2177 = vperm.xlu0 %2176, %v1806
        %v2178 = vpop.permute.xlu0 %2177
        %2181 = vset.pattern.permute.xlu0 0
        %2182 = vperm.xlu0 %2181, %v1807
        %v2183 = vpop.permute.xlu0 %2182
        %2186 = vset.pattern.permute.xlu0 0
        %2187 = vperm.xlu0 %2186, %v1808
        %v2188 = vpop.permute.xlu0 %2187
        %2191 = vset.pattern.permute.xlu0 0
        %2192 = vperm.xlu0 %2191, %v1809
        %v2193 = vpop.permute.xlu0 %2192
        %2196 = vset.pattern.permute.xlu0 0
        %2197 = vperm.xlu0 %2196, %v1810
        %v2198 = vpop.permute.xlu0 %2197
        %2201 = vset.pattern.permute.xlu0 0
        %2202 = vperm.xlu0 %2201, %v1811
        %v2203 = vpop.permute.xlu0 %2202
        %2206 = vset.pattern.permute.xlu0 0
        %2207 = vperm.xlu0 %2206, %v1812
        %v2208 = vpop.permute.xlu0 %2207
        %2211 = vset.pattern.permute.xlu0 0
        %2212 = vperm.xlu0 %2211, %v1813
        %v2213 = vpop.permute.xlu0 %2212
        %2216 = vset.pattern.permute.xlu0 0
        %2217 = vperm.xlu0 %2216, %v1814
        %v2218 = vpop.permute.xlu0 %2217
        %2221 = vset.pattern.permute.xlu0 0
        %2222 = vperm.xlu0 %2221, %v1815
        %v2223 = vpop.permute.xlu0 %2222
        %2226 = vset.pattern.permute.xlu0 0
        %2227 = vperm.xlu0 %2226, %v1816
        %v2228 = vpop.permute.xlu0 %2227
        %2231 = vset.pattern.permute.xlu0 0
        %2232 = vperm.xlu0 %2231, %v1817
        %v2233 = vpop.permute.xlu0 %2232
        %2236 = vset.pattern.permute.xlu0 0
        %2237 = vperm.xlu0 %2236, %v1818
        %v2238 = vpop.permute.xlu0 %2237
        %2241 = vset.pattern.permute.xlu0 0
        %2242 = vperm.xlu0 %2241, %v1819
        %v2243 = vpop.permute.xlu0 %2242
        %2246 = vset.pattern.permute.xlu0 0
        %2247 = vperm.xlu0 %2246, %v1820
        %v2248 = vpop.permute.xlu0 %2247
        %2251 = vset.pattern.permute.xlu0 0
        %2252 = vperm.xlu0 %2251, %v1821
        %v2253 = vpop.permute.xlu0 %2252
        %2256 = vset.pattern.permute.xlu0 0
        %2257 = vperm.xlu0 %2256, %v1822
        %v2258 = vpop.permute.xlu0 %2257
        %2261 = vset.pattern.permute.xlu0 0
        %2262 = vperm.xlu0 %2261, %v1823
        %v2263 = vpop.permute.xlu0 %2262
        %2266 = vset.pattern.permute.xlu0 0
        %2267 = vperm.xlu0 %2266, %v1824
        %v2268 = vpop.permute.xlu0 %2267
        %2271 = vset.pattern.permute.xlu0 0
        %2272 = vperm.xlu0 %2271, %v1825
        %v2273 = vpop.permute.xlu0 %2272
        %2276 = vset.pattern.permute.xlu0 0
        %2277 = vperm.xlu0 %2276, %v1826
        %v2278 = vpop.permute.xlu0 %2277
        %2281 = vset.pattern.permute.xlu0 0
        %2282 = vperm.xlu0 %2281, %v1827
        %v2283 = vpop.permute.xlu0 %2282
        %2286 = vset.pattern.permute.xlu0 0
        %2287 = vperm.xlu0 %2286, %v1828
        %v2288 = vpop.permute.xlu0 %2287
        %2291 = vset.pattern.permute.xlu0 0
        %2292 = vperm.xlu0 %2291, %v1829
        %v2293 = vpop.permute.xlu0 %2292
        %2296 = vset.pattern.permute.xlu0 0
        %2297 = vperm.xlu0 %2296, %v1830
        %v2298 = vpop.permute.xlu0 %2297
        %2301 = vset.pattern.permute.xlu0 0
        %2302 = vperm.xlu0 %2301, %v1831
        %v2303 = vpop.permute.xlu0 %2302
        %2306 = vset.pattern.permute.xlu0 0
        %2307 = vperm.xlu0 %2306, %v1832
        %v2308 = vpop.permute.xlu0 %2307
        %2311 = vset.pattern.permute.xlu0 0
        %2312 = vperm.xlu0 %2311, %v1833
        %v2313 = vpop.permute.xlu0 %2312
        %2316 = vset.pattern.permute.xlu0 0
        %2317 = vperm.xlu0 %2316, %v1834
        %v2318 = vpop.permute.xlu0 %2317
        %2321 = vset.pattern.permute.xlu0 0
        %2322 = vperm.xlu0 %2321, %v1835
        %v2323 = vpop.permute.xlu0 %2322
        %2326 = vset.pattern.permute.xlu0 0
        %2327 = vperm.xlu0 %2326, %v1836
        %v2328 = vpop.permute.xlu0 %2327
        %2331 = vset.pattern.permute.xlu0 0
        %2332 = vperm.xlu0 %2331, %v1837
        %v2333 = vpop.permute.xlu0 %2332
        %2336 = vset.pattern.permute.xlu0 0
        %2337 = vperm.xlu0 %2336, %v1838
        %v2338 = vpop.permute.xlu0 %2337
        %2341 = vset.pattern.permute.xlu0 0
        %2342 = vperm.xlu0 %2341, %v1839
        %v2343 = vpop.permute.xlu0 %2342
        %2346 = vset.pattern.permute.xlu0 0
        %2347 = vperm.xlu0 %2346, %v1840
        %v2348 = vpop.permute.xlu0 %2347
        %2351 = vset.pattern.permute.xlu0 0
        %2352 = vperm.xlu0 %2351, %v1841
        %v2353 = vpop.permute.xlu0 %2352
        %2356 = vset.pattern.permute.xlu0 0
        %2357 = vperm.xlu0 %2356, %v1842
        %v2358 = vpop.permute.xlu0 %2357
        %2361 = vset.pattern.permute.xlu0 0
        %2362 = vperm.xlu0 %2361, %v1843
        %v2363 = vpop.permute.xlu0 %2362
        %2366 = vset.pattern.permute.xlu0 0
        %2367 = vperm.xlu0 %2366, %v1844
        %v2368 = vpop.permute.xlu0 %2367
        %2371 = vset.pattern.permute.xlu0 0
        %2372 = vperm.xlu0 %2371, %v1845
        %v2373 = vpop.permute.xlu0 %2372
        %2376 = vset.pattern.permute.xlu0 0
        %2377 = vperm.xlu0 %2376, %v1846
        %v2378 = vpop.permute.xlu0 %2377
        %2381 = vset.pattern.permute.xlu0 0
        %2382 = vperm.xlu0 %2381, %v1847
        %v2383 = vpop.permute.xlu0 %2382
        %2386 = vset.pattern.permute.xlu0 0
        %2387 = vperm.xlu0 %2386, %v1848
        %v2388 = vpop.permute.xlu0 %2387
        %2391 = vset.pattern.permute.xlu0 0
        %2392 = vperm.xlu0 %2391, %v1849
        %v2393 = vpop.permute.xlu0 %2392
        %2396 = vset.pattern.permute.xlu0 0
        %2397 = vperm.xlu0 %2396, %v1850
        %v2398 = vpop.permute.xlu0 %2397
        %2401 = vset.pattern.permute.xlu0 0
        %2402 = vperm.xlu0 %2401, %v1851
        %v2403 = vpop.permute.xlu0 %2402
        %2406 = vset.pattern.permute.xlu0 0
        %2407 = vperm.xlu0 %2406, %v1852
        %v2408 = vpop.permute.xlu0 %2407
        %2411 = vset.pattern.permute.xlu0 0
        %2412 = vperm.xlu0 %2411, %v1853
        %v2413 = vpop.permute.xlu0 %2412
        %2416 = vset.pattern.permute.xlu0 0
        %2417 = vperm.xlu0 %2416, %v1854
        %v2418 = vpop.permute.xlu0 %2417
        %2421 = vset.pattern.permute.xlu0 0
        %2422 = vperm.xlu0 %2421, %v1855
        %v2423 = vpop.permute.xlu0 %2422
        %2426 = vset.pattern.permute.xlu0 0
        %2427 = vperm.xlu0 %2426, %v1856
        %v2428 = vpop.permute.xlu0 %2427
        %2431 = vset.pattern.permute.xlu0 0
        %2432 = vperm.xlu0 %2431, %v1857
        %v2433 = vpop.permute.xlu0 %2432
        %2436 = vset.pattern.permute.xlu0 0
        %2437 = vperm.xlu0 %2436, %v1858
        %v2438 = vpop.permute.xlu0 %2437
        %2441 = vset.pattern.permute.xlu0 0
        %2442 = vperm.xlu0 %2441, %v1859
        %v2443 = vpop.permute.xlu0 %2442
        %2446 = vset.pattern.permute.xlu0 0
        %2447 = vperm.xlu0 %2446, %v1860
        %v2448 = vpop.permute.xlu0 %2447
        %2451 = vset.pattern.permute.xlu0 0
        %2452 = vperm.xlu0 %2451, %v1861
        %v2453 = vpop.permute.xlu0 %2452
        %2456 = vset.pattern.permute.xlu0 0
        %2457 = vperm.xlu0 %2456, %v1862
        %v2458 = vpop.permute.xlu0 %2457
        %2461 = vset.pattern.permute.xlu0 0
        %2462 = vperm.xlu0 %2461, %v1863
        %v2463 = vpop.permute.xlu0 %2462
        %2466 = vset.pattern.permute.xlu0 0
        %2467 = vperm.xlu0 %2466, %v1864
        %v2468 = vpop.permute.xlu0 %2467
        %2471 = vset.pattern.permute.xlu0 0
        %2472 = vperm.xlu0 %2471, %v1865
        %v2473 = vpop.permute.xlu0 %2472
        %2476 = vset.pattern.permute.xlu0 0
        %2477 = vperm.xlu0 %2476, %v1866
        %v2478 = vpop.permute.xlu0 %2477
        %2481 = vset.pattern.permute.xlu0 0
        %2482 = vperm.xlu0 %2481, %v1867
        %v2483 = vpop.permute.xlu0 %2482
        %2486 = vset.pattern.permute.xlu0 0
        %2487 = vperm.xlu0 %2486, %v1868
        %v2488 = vpop.permute.xlu0 %2487
        %2491 = vset.pattern.permute.xlu0 0
        %2492 = vperm.xlu0 %2491, %v1869
        %v2493 = vpop.permute.xlu0 %2492
        %2496 = vset.pattern.permute.xlu0 0
        %2497 = vperm.xlu0 %2496, %v1870
        %v2498 = vpop.permute.xlu0 %2497
        %2501 = vset.pattern.permute.xlu0 0
        %2502 = vperm.xlu0 %2501, %v1871
        %v2503 = vpop.permute.xlu0 %2502
        %2506 = vset.pattern.permute.xlu0 0
        %2507 = vperm.xlu0 %2506, %v1872
        %v2508 = vpop.permute.xlu0 %2507
        %2511 = vset.pattern.permute.xlu0 0
        %2512 = vperm.xlu0 %2511, %v1873
        %v2513 = vpop.permute.xlu0 %2512
        %2516 = vset.pattern.permute.xlu0 0
        %2517 = vperm.xlu0 %2516, %v1874
        %v2518 = vpop.permute.xlu0 %2517
        %2521 = vset.pattern.permute.xlu0 0
        %2522 = vperm.xlu0 %2521, %v1875
        %v2523 = vpop.permute.xlu0 %2522
        %2526 = vset.pattern.permute.xlu0 0
        %2527 = vperm.xlu0 %2526, %v1876
        %v2528 = vpop.permute.xlu0 %2527
        %2531 = vset.pattern.permute.xlu0 0
        %2532 = vperm.xlu0 %2531, %v1877
        %v2533 = vpop.permute.xlu0 %2532
        %2536 = vset.pattern.permute.xlu0 0
        %2537 = vperm.xlu0 %2536, %v1878
        %v2538 = vpop.permute.xlu0 %2537
        %2541 = vset.pattern.permute.xlu0 0
        %2542 = vperm.xlu0 %2541, %v1879
        %v2543 = vpop.permute.xlu0 %2542
        %2546 = vset.pattern.permute.xlu0 0
        %2547 = vperm.xlu0 %2546, %v1880
        %v2548 = vpop.permute.xlu0 %2547
        %2551 = vset.pattern.permute.xlu0 0
        %2552 = vperm.xlu0 %2551, %v1881
        %v2553 = vpop.permute.xlu0 %2552
        %2556 = vset.pattern.permute.xlu0 0
        %2557 = vperm.xlu0 %2556, %v1882
        %v2558 = vpop.permute.xlu0 %2557
        %2561 = vset.pattern.permute.xlu0 0
        %2562 = vperm.xlu0 %2561, %v1883
        %v2563 = vpop.permute.xlu0 %2562
        %2566 = vset.pattern.permute.xlu0 0
        %2567 = vperm.xlu0 %2566, %v1884
        %v2568 = vpop.permute.xlu0 %2567
        %2571 = vset.pattern.permute.xlu0 0
        %2572 = vperm.xlu0 %2571, %v1885
        %v2573 = vpop.permute.xlu0 %2572
        %2576 = vset.pattern.permute.xlu0 0
        %2577 = vperm.xlu0 %2576, %v1886
        %v2578 = vpop.permute.xlu0 %2577
        %2581 = vset.pattern.permute.xlu0 0
        %2582 = vperm.xlu0 %2581, %v1887
        %v2583 = vpop.permute.xlu0 %2582
        %2586 = vset.pattern.permute.xlu0 0
        %2587 = vperm.xlu0 %2586, %v1888
        %v2588 = vpop.permute.xlu0 %2587
        %2591 = vset.pattern.permute.xlu0 0
        %2592 = vperm.xlu0 %2591, %v1889
        %v2593 = vpop.permute.xlu0 %2592
        %2596 = vset.pattern.permute.xlu0 0
        %2597 = vperm.xlu0 %2596, %v1890
        %v2598 = vpop.permute.xlu0 %2597
        %2601 = vset.pattern.permute.xlu0 0
        %2602 = vperm.xlu0 %2601, %v1891
        %v2603 = vpop.permute.xlu0 %2602
        %2606 = vset.pattern.permute.xlu0 0
        %2607 = vperm.xlu0 %2606, %v1892
        %v2608 = vpop.permute.xlu0 %2607
        %2611 = vset.pattern.permute.xlu0 0
        %2612 = vperm.xlu0 %2611, %v1893
        %v2613 = vpop.permute.xlu0 %2612
        %2616 = vset.pattern.permute.xlu0 0
        %2617 = vperm.xlu0 %2616, %v1894
        %v2618 = vpop.permute.xlu0 %2617
        %2621 = vset.pattern.permute.xlu0 0
        %2622 = vperm.xlu0 %2621, %v1895
        %v2623 = vpop.permute.xlu0 %2622
        %2626 = vset.pattern.permute.xlu0 0
        %2627 = vperm.xlu0 %2626, %v1896
        %v2628 = vpop.permute.xlu0 %2627
        %2631 = vset.pattern.permute.xlu0 0
        %2632 = vperm.xlu0 %2631, %v1897
        %v2633 = vpop.permute.xlu0 %2632
        %2636 = vset.pattern.permute.xlu0 0
        %2637 = vperm.xlu0 %2636, %v1898
        %v2638 = vpop.permute.xlu0 %2637
        %2641 = vset.pattern.permute.xlu0 0
        %2642 = vperm.xlu0 %2641, %v1899
        %v2643 = vpop.permute.xlu0 %2642
        %2646 = vset.pattern.permute.xlu0 0
        %2647 = vperm.xlu0 %2646, %v1900
        %v2648 = vpop.permute.xlu0 %2647
        %2651 = vset.pattern.permute.xlu0 0
        %2652 = vperm.xlu0 %2651, %v1901
        %v2653 = vpop.permute.xlu0 %2652
        %2656 = vset.pattern.permute.xlu0 0
        %2657 = vperm.xlu0 %2656, %v1902
        %v2658 = vpop.permute.xlu0 %2657
        %2661 = vset.pattern.permute.xlu0 0
        %2662 = vperm.xlu0 %2661, %v1903
        %v2663 = vpop.permute.xlu0 %2662
        %2666 = vset.pattern.permute.xlu0 0
        %2667 = vperm.xlu0 %2666, %v1904
        %v2668 = vpop.permute.xlu0 %2667
        %2671 = vset.pattern.permute.xlu0 0
        %2672 = vperm.xlu0 %2671, %v1905
        %v2673 = vpop.permute.xlu0 %2672
        %2676 = vset.pattern.permute.xlu0 0
        %2677 = vperm.xlu0 %2676, %v1906
        %v2678 = vpop.permute.xlu0 %2677
        %2681 = vset.pattern.permute.xlu0 0
        %2682 = vperm.xlu0 %2681, %v1907
        %v2683 = vpop.permute.xlu0 %2682
        %2686 = vset.pattern.permute.xlu0 0
        %2687 = vperm.xlu0 %2686, %v1908
        %v2688 = vpop.permute.xlu0 %2687
        %2691 = vset.pattern.permute.xlu0 0
        %2692 = vperm.xlu0 %2691, %v1909
        %v2693 = vpop.permute.xlu0 %2692
        %2696 = vset.pattern.permute.xlu0 0
        %2697 = vperm.xlu0 %2696, %v1910
        %v2698 = vpop.permute.xlu0 %2697
        %2701 = vset.pattern.permute.xlu0 0
        %2702 = vperm.xlu0 %2701, %v1911
        %v2703 = vpop.permute.xlu0 %2702
        %2706 = vset.pattern.permute.xlu0 0
        %2707 = vperm.xlu0 %2706, %v1912
        %v2708 = vpop.permute.xlu0 %2707
        %2711 = vset.pattern.permute.xlu0 0
        %2712 = vperm.xlu0 %2711, %v1913
        %v2713 = vpop.permute.xlu0 %2712
        %2716 = vset.pattern.permute.xlu0 0
        %2717 = vperm.xlu0 %2716, %v1914
        %v2718 = vpop.permute.xlu0 %2717
        %2721 = vset.pattern.permute.xlu0 0
        %2722 = vperm.xlu0 %2721, %v1915
        %v2723 = vpop.permute.xlu0 %2722
        %2726 = vset.pattern.permute.xlu0 0
        %2727 = vperm.xlu0 %2726, %v1916
        %v2728 = vpop.permute.xlu0 %2727
        %2731 = vset.pattern.permute.xlu0 0
        %2732 = vperm.xlu0 %2731, %v1917
        %v2733 = vpop.permute.xlu0 %2732
        %2736 = vset.pattern.permute.xlu0 0
        %2737 = vperm.xlu0 %2736, %v1918
        %v2738 = vpop.permute.xlu0 %2737
        %2741 = vset.pattern.permute.xlu0 0
        %2742 = vperm.xlu0 %2741, %v1919
        %v2743 = vpop.permute.xlu0 %2742
        %2746 = vset.pattern.permute.xlu0 0
        %2747 = vperm.xlu0 %2746, %v1920
        %v2748 = vpop.permute.xlu0 %2747
        %2751 = vset.pattern.permute.xlu0 0
        %2752 = vperm.xlu0 %2751, %v1921
        %v2753 = vpop.permute.xlu0 %2752
        %2756 = vset.pattern.permute.xlu0 0
        %2757 = vperm.xlu0 %2756, %v1922
        %v2758 = vpop.permute.xlu0 %2757
        %2761 = vset.pattern.permute.xlu0 0
        %2762 = vperm.xlu0 %2761, %v1923
        %v2763 = vpop.permute.xlu0 %2762
        %2766 = vset.pattern.permute.xlu0 0
        %2767 = vperm.xlu0 %2766, %v1924
        %v2768 = vpop.permute.xlu0 %2767
        %2771 = vset.pattern.permute.xlu0 0
        %2772 = vperm.xlu0 %2771, %v1925
        %v2773 = vpop.permute.xlu0 %2772
        %2776 = vset.pattern.permute.xlu0 0
        %2777 = vperm.xlu0 %2776, %v1926
        %v2778 = vpop.permute.xlu0 %2777
        %2781 = vset.pattern.permute.xlu0 0
        %2782 = vperm.xlu0 %2781, %v1927
        %v2783 = vpop.permute.xlu0 %2782
        %2786 = vset.pattern.permute.xlu0 0
        %2787 = vperm.xlu0 %2786, %v1928
        %v2788 = vpop.permute.xlu0 %2787
        %2791 = vset.pattern.permute.xlu0 0
        %2792 = vperm.xlu0 %2791, %v1929
        %v2793 = vpop.permute.xlu0 %2792
        %2796 = vset.pattern.permute.xlu0 0
        %2797 = vperm.xlu0 %2796, %v1930
        %v2798 = vpop.permute.xlu0 %2797
        %2801 = vset.pattern.permute.xlu0 0
        %2802 = vperm.xlu0 %2801, %v1931
        %v2803 = vpop.permute.xlu0 %2802
        %2806 = vset.pattern.permute.xlu0 0
        %2807 = vperm.xlu0 %2806, %v1932
        %v2808 = vpop.permute.xlu0 %2807
        %2811 = vset.pattern.permute.xlu0 0
        %2812 = vperm.xlu0 %2811, %v1933
        %v2813 = vpop.permute.xlu0 %2812
        %2816 = vset.pattern.permute.xlu0 0
        %2817 = vperm.xlu0 %2816, %v1934
        %v2818 = vpop.permute.xlu0 %2817
        %2821 = vset.pattern.permute.xlu0 0
        %2822 = vperm.xlu0 %2821, %v1935
        %v2823 = vpop.permute.xlu0 %2822
        %2826 = vset.pattern.permute.xlu0 0
        %2827 = vperm.xlu0 %2826, %v1936
        %v2828 = vpop.permute.xlu0 %2827
        %2831 = vset.pattern.permute.xlu0 0
        %2832 = vperm.xlu0 %2831, %v1937
        %v2833 = vpop.permute.xlu0 %2832
        %2836 = vset.pattern.permute.xlu0 0
        %2837 = vperm.xlu0 %2836, %v1938
        %v2838 = vpop.permute.xlu0 %2837
        %2841 = vset.pattern.permute.xlu0 0
        %2842 = vperm.xlu0 %2841, %v1939
        %v2843 = vpop.permute.xlu0 %2842
        %2846 = vset.pattern.permute.xlu0 0
        %2847 = vperm.xlu0 %2846, %v1940
        %v2848 = vpop.permute.xlu0 %2847
        %2851 = vset.pattern.permute.xlu0 0
        %2852 = vperm.xlu0 %2851, %v1941
        %v2853 = vpop.permute.xlu0 %2852
        %2856 = vset.pattern.permute.xlu0 0
        %2857 = vperm.xlu0 %2856, %v1942
        %v2858 = vpop.permute.xlu0 %2857
        %2861 = vset.pattern.permute.xlu0 0
        %2862 = vperm.xlu0 %2861, %v1943
        %v2863 = vpop.permute.xlu0 %2862
        %2866 = vset.pattern.permute.xlu0 0
        %2867 = vperm.xlu0 %2866, %v1944
        %v2868 = vpop.permute.xlu0 %2867
        %2871 = vset.pattern.permute.xlu0 0
        %2872 = vperm.xlu0 %2871, %v1945
        %v2873 = vpop.permute.xlu0 %2872
        %2876 = vset.pattern.permute.xlu0 0
        %2877 = vperm.xlu0 %2876, %v1946
        %v2878 = vpop.permute.xlu0 %2877
        %2881 = vset.pattern.permute.xlu0 0
        %2882 = vperm.xlu0 %2881, %v1947
        %v2883 = vpop.permute.xlu0 %2882
        %2886 = vset.pattern.permute.xlu0 0
        %2887 = vperm.xlu0 %2886, %v1948
        %v2888 = vpop.permute.xlu0 %2887
        %2891 = vset.pattern.permute.xlu0 0
        %2892 = vperm.xlu0 %2891, %v1949
        %v2893 = vpop.permute.xlu0 %2892
        %2896 = vset.pattern.permute.xlu0 0
        %2897 = vperm.xlu0 %2896, %v1950
        %v2898 = vpop.permute.xlu0 %2897
        %2901 = vset.pattern.permute.xlu0 0
        %2902 = vperm.xlu0 %2901, %v1951
        %v2903 = vpop.permute.xlu0 %2902
        %2906 = vset.pattern.permute.xlu0 0
        %2907 = vperm.xlu0 %2906, %v1952
        %v2908 = vpop.permute.xlu0 %2907
        %2911 = vset.pattern.permute.xlu0 0
        %2912 = vperm.xlu0 %2911, %v1953
        %v2913 = vpop.permute.xlu0 %2912
        %2916 = vset.pattern.permute.xlu0 0
        %2917 = vperm.xlu0 %2916, %v1954
        %v2918 = vpop.permute.xlu0 %2917
        %2921 = vset.pattern.permute.xlu0 0
        %2922 = vperm.xlu0 %2921, %v1955
        %v2923 = vpop.permute.xlu0 %2922
        %2926 = vset.pattern.permute.xlu0 0
        %2927 = vperm.xlu0 %2926, %v1956
        %v2928 = vpop.permute.xlu0 %2927
        %2931 = vset.pattern.permute.xlu0 0
        %2932 = vperm.xlu0 %2931, %v1957
        %v2933 = vpop.permute.xlu0 %2932
        %2936 = vset.pattern.permute.xlu0 0
        %2937 = vperm.xlu0 %2936, %v1958
        %v2938 = vpop.permute.xlu0 %2937
        %2941 = vset.pattern.permute.xlu0 0
        %2942 = vperm.xlu0 %2941, %v1959
        %v2943 = vpop.permute.xlu0 %2942
        %2946 = vset.pattern.permute.xlu0 0
        %2947 = vperm.xlu0 %2946, %v1960
        %v2948 = vpop.permute.xlu0 %2947
        %2951 = vset.pattern.permute.xlu0 0
        %2952 = vperm.xlu0 %2951, %v1961
        %v2953 = vpop.permute.xlu0 %2952
        %2956 = vset.pattern.permute.xlu0 0
        %2957 = vperm.xlu0 %2956, %v1962
        %v2958 = vpop.permute.xlu0 %2957
        %2961 = vset.pattern.permute.xlu0 0
        %2962 = vperm.xlu0 %2961, %v1963
        %v2963 = vpop.permute.xlu0 %2962
        %v2965 = vlaneseq
        %v2966 = vshrl.u32 %v2965, 7
        %v2967 = vsub.s32 0, %v2966
        %v2968 = vrot.slane %v1964, %v2967
        %v2969 = vmul.f32 %v1968, %v2968
        %v2970 = vmul.f32 %v1973, %v2968
        %v2971 = vmul.f32 %v1978, %v2968
        %v2972 = vmul.f32 %v1983, %v2968
        %v2973 = vmul.f32 %v1988, %v2968
        %v2974 = vmul.f32 %v1993, %v2968
        %v2975 = vmul.f32 %v1998, %v2968
        %v2976 = vmul.f32 %v2003, %v2968
        %v2977 = vmul.f32 %v2008, %v2968
        %v2978 = vmul.f32 %v2013, %v2968
        %v2979 = vmul.f32 %v2018, %v2968
        %v2980 = vmul.f32 %v2023, %v2968
        %v2981 = vmul.f32 %v2028, %v2968
        %v2982 = vmul.f32 %v2033, %v2968
        %v2983 = vmul.f32 %v2038, %v2968
        %v2984 = vmul.f32 %v2043, %v2968
        %v2985 = vmul.f32 %v2048, %v2968
        %v2986 = vmul.f32 %v2053, %v2968
        %v2987 = vmul.f32 %v2058, %v2968
        %v2988 = vmul.f32 %v2063, %v2968
        %v2989 = vmul.f32 %v2068, %v2968
        %v2990 = vmul.f32 %v2073, %v2968
        %v2991 = vmul.f32 %v2078, %v2968
        %v2992 = vmul.f32 %v2083, %v2968
        %v2993 = vmul.f32 %v2088, %v2968
        %v2994 = vmul.f32 %v2093, %v2968
        %v2995 = vmul.f32 %v2098, %v2968
        %v2996 = vmul.f32 %v2103, %v2968
        %v2997 = vmul.f32 %v2108, %v2968
        %v2998 = vmul.f32 %v2113, %v2968
        %v2999 = vmul.f32 %v2118, %v2968
        %v3000 = vmul.f32 %v2123, %v2968
        %v3001 = vmul.f32 %v2128, %v2968
        %v3002 = vmul.f32 %v2133, %v2968
        %v3003 = vmul.f32 %v2138, %v2968
        %v3004 = vmul.f32 %v2143, %v2968
        %v3005 = vmul.f32 %v2148, %v2968
        %v3006 = vmul.f32 %v2153, %v2968
        %v3007 = vmul.f32 %v2158, %v2968
        %v3008 = vmul.f32 %v2163, %v2968
        %v3009 = vmul.f32 %v2168, %v2968
        %v3010 = vmul.f32 %v2173, %v2968
        %v3011 = vmul.f32 %v2178, %v2968
        %v3012 = vmul.f32 %v2183, %v2968
        %v3013 = vmul.f32 %v2188, %v2968
        %v3014 = vmul.f32 %v2193, %v2968
        %v3015 = vmul.f32 %v2198, %v2968
        %v3016 = vmul.f32 %v2203, %v2968
        %v3017 = vmul.f32 %v2208, %v2968
        %v3018 = vmul.f32 %v2213, %v2968
        %v3019 = vmul.f32 %v2218, %v2968
        %v3020 = vmul.f32 %v2223, %v2968
        %v3021 = vmul.f32 %v2228, %v2968
        %v3022 = vmul.f32 %v2233, %v2968
        %v3023 = vmul.f32 %v2238, %v2968
        %v3024 = vmul.f32 %v2243, %v2968
        %v3025 = vmul.f32 %v2248, %v2968
        %v3026 = vmul.f32 %v2253, %v2968
        %v3027 = vmul.f32 %v2258, %v2968
        %v3028 = vmul.f32 %v2263, %v2968
        %v3029 = vmul.f32 %v2268, %v2968
        %v3030 = vmul.f32 %v2273, %v2968
        %v3031 = vmul.f32 %v2278, %v2968
        %v3032 = vmul.f32 %v2283, %v2968
        %v3033 = vmul.f32 %v2288, %v2968
        %v3034 = vmul.f32 %v2293, %v2968
        %v3035 = vmul.f32 %v2298, %v2968
        %v3036 = vmul.f32 %v2303, %v2968
        %v3037 = vmul.f32 %v2308, %v2968
        %v3038 = vmul.f32 %v2313, %v2968
        %v3039 = vmul.f32 %v2318, %v2968
        %v3040 = vmul.f32 %v2323, %v2968
        %v3041 = vmul.f32 %v2328, %v2968
        %v3042 = vmul.f32 %v2333, %v2968
        %v3043 = vmul.f32 %v2338, %v2968
        %v3044 = vmul.f32 %v2343, %v2968
        %v3045 = vmul.f32 %v2348, %v2968
        %v3046 = vmul.f32 %v2353, %v2968
        %v3047 = vmul.f32 %v2358, %v2968
        %v3048 = vmul.f32 %v2363, %v2968
        %v3049 = vmul.f32 %v2368, %v2968
        %v3050 = vmul.f32 %v2373, %v2968
        %v3051 = vmul.f32 %v2378, %v2968
        %v3052 = vmul.f32 %v2383, %v2968
        %v3053 = vmul.f32 %v2388, %v2968
        %v3054 = vmul.f32 %v2393, %v2968
        %v3055 = vmul.f32 %v2398, %v2968
        %v3056 = vmul.f32 %v2403, %v2968
        %v3057 = vmul.f32 %v2408, %v2968
        %v3058 = vmul.f32 %v2413, %v2968
        %v3059 = vmul.f32 %v2418, %v2968
        %v3060 = vmul.f32 %v2423, %v2968
        %v3061 = vmul.f32 %v2428, %v2968
        %v3062 = vmul.f32 %v2433, %v2968
        %v3063 = vmul.f32 %v2438, %v2968
        %v3064 = vmul.f32 %v2443, %v2968
        %v3065 = vmul.f32 %v2448, %v2968
        %v3066 = vmul.f32 %v2453, %v2968
        %v3067 = vmul.f32 %v2458, %v2968
        %v3068 = vmul.f32 %v2463, %v2968
        %v3069 = vmul.f32 %v2468, %v2968
        %v3070 = vmul.f32 %v2473, %v2968
        %v3071 = vmul.f32 %v2478, %v2968
        %v3072 = vmul.f32 %v2483, %v2968
        %v3073 = vmul.f32 %v2488, %v2968
        %v3074 = vmul.f32 %v2493, %v2968
        %v3075 = vmul.f32 %v2498, %v2968
        %v3076 = vmul.f32 %v2503, %v2968
        %v3077 = vmul.f32 %v2508, %v2968
        %v3078 = vmul.f32 %v2513, %v2968
        %v3079 = vmul.f32 %v2518, %v2968
        %v3080 = vmul.f32 %v2523, %v2968
        %v3081 = vmul.f32 %v2528, %v2968
        %v3082 = vmul.f32 %v2533, %v2968
        %v3083 = vmul.f32 %v2538, %v2968
        %v3084 = vmul.f32 %v2543, %v2968
        %v3085 = vmul.f32 %v2548, %v2968
        %v3086 = vmul.f32 %v2553, %v2968
        %v3087 = vmul.f32 %v2558, %v2968
        %v3088 = vmul.f32 %v2563, %v2968
        %v3089 = vmul.f32 %v2568, %v2968
        %v3090 = vmul.f32 %v2573, %v2968
        %v3091 = vmul.f32 %v2578, %v2968
        %v3092 = vmul.f32 %v2583, %v2968
        %v3093 = vmul.f32 %v2588, %v2968
        %v3094 = vmul.f32 %v2593, %v2968
        %v3095 = vmul.f32 %v2598, %v2968
        %v3096 = vmul.f32 %v2603, %v2968
        %v3097 = vmul.f32 %v2608, %v2968
        %v3098 = vmul.f32 %v2613, %v2968
        %v3099 = vmul.f32 %v2618, %v2968
        %v3100 = vmul.f32 %v2623, %v2968
        %v3101 = vmul.f32 %v2628, %v2968
        %v3102 = vmul.f32 %v2633, %v2968
        %v3103 = vmul.f32 %v2638, %v2968
        %v3104 = vmul.f32 %v2643, %v2968
        %v3105 = vmul.f32 %v2648, %v2968
        %v3106 = vmul.f32 %v2653, %v2968
        %v3107 = vmul.f32 %v2658, %v2968
        %v3108 = vmul.f32 %v2663, %v2968
        %v3109 = vmul.f32 %v2668, %v2968
        %v3110 = vmul.f32 %v2673, %v2968
        %v3111 = vmul.f32 %v2678, %v2968
        %v3112 = vmul.f32 %v2683, %v2968
        %v3113 = vmul.f32 %v2688, %v2968
        %v3114 = vmul.f32 %v2693, %v2968
        %v3115 = vmul.f32 %v2698, %v2968
        %v3116 = vmul.f32 %v2703, %v2968
        %v3117 = vmul.f32 %v2708, %v2968
        %v3118 = vmul.f32 %v2713, %v2968
        %v3119 = vmul.f32 %v2718, %v2968
        %v3120 = vmul.f32 %v2723, %v2968
        %v3121 = vmul.f32 %v2728, %v2968
        %v3122 = vmul.f32 %v2733, %v2968
        %v3123 = vmul.f32 %v2738, %v2968
        %v3124 = vmul.f32 %v2743, %v2968
        %v3125 = vmul.f32 %v2748, %v2968
        %v3126 = vmul.f32 %v2753, %v2968
        %v3127 = vmul.f32 %v2758, %v2968
        %v3128 = vmul.f32 %v2763, %v2968
        %v3129 = vmul.f32 %v2768, %v2968
        %v3130 = vmul.f32 %v2773, %v2968
        %v3131 = vmul.f32 %v2778, %v2968
        %v3132 = vmul.f32 %v2783, %v2968
        %v3133 = vmul.f32 %v2788, %v2968
        %v3134 = vmul.f32 %v2793, %v2968
        %v3135 = vmul.f32 %v2798, %v2968
        %v3136 = vmul.f32 %v2803, %v2968
        %v3137 = vmul.f32 %v2808, %v2968
        %v3138 = vmul.f32 %v2813, %v2968
        %v3139 = vmul.f32 %v2818, %v2968
        %v3140 = vmul.f32 %v2823, %v2968
        %v3141 = vmul.f32 %v2828, %v2968
        %v3142 = vmul.f32 %v2833, %v2968
        %v3143 = vmul.f32 %v2838, %v2968
        %v3144 = vmul.f32 %v2843, %v2968
        %v3145 = vmul.f32 %v2848, %v2968
        %v3146 = vmul.f32 %v2853, %v2968
        %v3147 = vmul.f32 %v2858, %v2968
        %v3148 = vmul.f32 %v2863, %v2968
        %v3149 = vmul.f32 %v2868, %v2968
        %v3150 = vmul.f32 %v2873, %v2968
        %v3151 = vmul.f32 %v2878, %v2968
        %v3152 = vmul.f32 %v2883, %v2968
        %v3153 = vmul.f32 %v2888, %v2968
        %v3154 = vmul.f32 %v2893, %v2968
        %v3155 = vmul.f32 %v2898, %v2968
        %v3156 = vmul.f32 %v2903, %v2968
        %v3157 = vmul.f32 %v2908, %v2968
        %v3158 = vmul.f32 %v2913, %v2968
        %v3159 = vmul.f32 %v2918, %v2968
        %v3160 = vmul.f32 %v2923, %v2968
        %v3161 = vmul.f32 %v2928, %v2968
        %v3162 = vmul.f32 %v2933, %v2968
        %v3163 = vmul.f32 %v2938, %v2968
        %v3164 = vmul.f32 %v2943, %v2968
        %v3165 = vmul.f32 %v2948, %v2968
        %v3166 = vmul.f32 %v2953, %v2968
        %v3167 = vmul.f32 %v2958, %v2968
        %v3168 = vmul.f32 %v2963, %v2968
        %v3169 = vadd.f32 %v1564, %v2969
        %v3170 = vadd.f32 %v1565, %v2970
        %v3171 = vadd.f32 %v1566, %v2971
        %v3172 = vadd.f32 %v1567, %v2972
        %v3173 = vadd.f32 %v1568, %v2973
        %v3174 = vadd.f32 %v1569, %v2974
        %v3175 = vadd.f32 %v1570, %v2975
        %v3176 = vadd.f32 %v1571, %v2976
        %v3177 = vadd.f32 %v1572, %v2977
        %v3178 = vadd.f32 %v1573, %v2978
        %v3179 = vadd.f32 %v1574, %v2979
        %v3180 = vadd.f32 %v1575, %v2980
        %v3181 = vadd.f32 %v1576, %v2981
        %v3182 = vadd.f32 %v1577, %v2982
        %v3183 = vadd.f32 %v1578, %v2983
        %v3184 = vadd.f32 %v1579, %v2984
        %v3185 = vadd.f32 %v1580, %v2985
        %v3186 = vadd.f32 %v1581, %v2986
        %v3187 = vadd.f32 %v1582, %v2987
        %v3188 = vadd.f32 %v1583, %v2988
        %v3189 = vadd.f32 %v1584, %v2989
        %v3190 = vadd.f32 %v1585, %v2990
        %v3191 = vadd.f32 %v1586, %v2991
        %v3192 = vadd.f32 %v1587, %v2992
        %v3193 = vadd.f32 %v1588, %v2993
        %v3194 = vadd.f32 %v1589, %v2994
        %v3195 = vadd.f32 %v1590, %v2995
        %v3196 = vadd.f32 %v1591, %v2996
        %v3197 = vadd.f32 %v1592, %v2997
        %v3198 = vadd.f32 %v1593, %v2998
        %v3199 = vadd.f32 %v1594, %v2999
        %v3200 = vadd.f32 %v1595, %v3000
        %v3201 = vadd.f32 %v1596, %v3001
        %v3202 = vadd.f32 %v1597, %v3002
        %v3203 = vadd.f32 %v1598, %v3003
        %v3204 = vadd.f32 %v1599, %v3004
        %v3205 = vadd.f32 %v1600, %v3005
        %v3206 = vadd.f32 %v1601, %v3006
        %v3207 = vadd.f32 %v1602, %v3007
        %v3208 = vadd.f32 %v1603, %v3008
        %v3209 = vadd.f32 %v1604, %v3009
        %v3210 = vadd.f32 %v1605, %v3010
        %v3211 = vadd.f32 %v1606, %v3011
        %v3212 = vadd.f32 %v1607, %v3012
        %v3213 = vadd.f32 %v1608, %v3013
        %v3214 = vadd.f32 %v1609, %v3014
        %v3215 = vadd.f32 %v1610, %v3015
        %v3216 = vadd.f32 %v1611, %v3016
        %v3217 = vadd.f32 %v1612, %v3017
        %v3218 = vadd.f32 %v1613, %v3018
        %v3219 = vadd.f32 %v1614, %v3019
        %v3220 = vadd.f32 %v1615, %v3020
        %v3221 = vadd.f32 %v1616, %v3021
        %v3222 = vadd.f32 %v1617, %v3022
        %v3223 = vadd.f32 %v1618, %v3023
        %v3224 = vadd.f32 %v1619, %v3024
        %v3225 = vadd.f32 %v1620, %v3025
        %v3226 = vadd.f32 %v1621, %v3026
        %v3227 = vadd.f32 %v1622, %v3027
        %v3228 = vadd.f32 %v1623, %v3028
        %v3229 = vadd.f32 %v1624, %v3029
        %v3230 = vadd.f32 %v1625, %v3030
        %v3231 = vadd.f32 %v1626, %v3031
        %v3232 = vadd.f32 %v1627, %v3032
        %v3233 = vadd.f32 %v1628, %v3033
        %v3234 = vadd.f32 %v1629, %v3034
        %v3235 = vadd.f32 %v1630, %v3035
        %v3236 = vadd.f32 %v1631, %v3036
        %v3237 = vadd.f32 %v1632, %v3037
        %v3238 = vadd.f32 %v1633, %v3038
        %v3239 = vadd.f32 %v1634, %v3039
        %v3240 = vadd.f32 %v1635, %v3040
        %v3241 = vadd.f32 %v1636, %v3041
        %v3242 = vadd.f32 %v1637, %v3042
        %v3243 = vadd.f32 %v1638, %v3043
        %v3244 = vadd.f32 %v1639, %v3044
        %v3245 = vadd.f32 %v1640, %v3045
        %v3246 = vadd.f32 %v1641, %v3046
        %v3247 = vadd.f32 %v1642, %v3047
        %v3248 = vadd.f32 %v1643, %v3048
        %v3249 = vadd.f32 %v1644, %v3049
        %v3250 = vadd.f32 %v1645, %v3050
        %v3251 = vadd.f32 %v1646, %v3051
        %v3252 = vadd.f32 %v1647, %v3052
        %v3253 = vadd.f32 %v1648, %v3053
        %v3254 = vadd.f32 %v1649, %v3054
        %v3255 = vadd.f32 %v1650, %v3055
        %v3256 = vadd.f32 %v1651, %v3056
        %v3257 = vadd.f32 %v1652, %v3057
        %v3258 = vadd.f32 %v1653, %v3058
        %v3259 = vadd.f32 %v1654, %v3059
        %v3260 = vadd.f32 %v1655, %v3060
        %v3261 = vadd.f32 %v1656, %v3061
        %v3262 = vadd.f32 %v1657, %v3062
        %v3263 = vadd.f32 %v1658, %v3063
        %v3264 = vadd.f32 %v1659, %v3064
        %v3265 = vadd.f32 %v1660, %v3065
        %v3266 = vadd.f32 %v1661, %v3066
        %v3267 = vadd.f32 %v1662, %v3067
        %v3268 = vadd.f32 %v1663, %v3068
        %v3269 = vadd.f32 %v1664, %v3069
        %v3270 = vadd.f32 %v1665, %v3070
        %v3271 = vadd.f32 %v1666, %v3071
        %v3272 = vadd.f32 %v1667, %v3072
        %v3273 = vadd.f32 %v1668, %v3073
        %v3274 = vadd.f32 %v1669, %v3074
        %v3275 = vadd.f32 %v1670, %v3075
        %v3276 = vadd.f32 %v1671, %v3076
        %v3277 = vadd.f32 %v1672, %v3077
        %v3278 = vadd.f32 %v1673, %v3078
        %v3279 = vadd.f32 %v1674, %v3079
        %v3280 = vadd.f32 %v1675, %v3080
        %v3281 = vadd.f32 %v1676, %v3081
        %v3282 = vadd.f32 %v1677, %v3082
        %v3283 = vadd.f32 %v1678, %v3083
        %v3284 = vadd.f32 %v1679, %v3084
        %v3285 = vadd.f32 %v1680, %v3085
        %v3286 = vadd.f32 %v1681, %v3086
        %v3287 = vadd.f32 %v1682, %v3087
        %v3288 = vadd.f32 %v1683, %v3088
        %v3289 = vadd.f32 %v1684, %v3089
        %v3290 = vadd.f32 %v1685, %v3090
        %v3291 = vadd.f32 %v1686, %v3091
        %v3292 = vadd.f32 %v1687, %v3092
        %v3293 = vadd.f32 %v1688, %v3093
        %v3294 = vadd.f32 %v1689, %v3094
        %v3295 = vadd.f32 %v1690, %v3095
        %v3296 = vadd.f32 %v1691, %v3096
        %v3297 = vadd.f32 %v1692, %v3097
        %v3298 = vadd.f32 %v1693, %v3098
        %v3299 = vadd.f32 %v1694, %v3099
        %v3300 = vadd.f32 %v1695, %v3100
        %v3301 = vadd.f32 %v1696, %v3101
        %v3302 = vadd.f32 %v1697, %v3102
        %v3303 = vadd.f32 %v1698, %v3103
        %v3304 = vadd.f32 %v1699, %v3104
        %v3305 = vadd.f32 %v1700, %v3105
        %v3306 = vadd.f32 %v1701, %v3106
        %v3307 = vadd.f32 %v1702, %v3107
        %v3308 = vadd.f32 %v1703, %v3108
        %v3309 = vadd.f32 %v1704, %v3109
        %v3310 = vadd.f32 %v1705, %v3110
        %v3311 = vadd.f32 %v1706, %v3111
        %v3312 = vadd.f32 %v1707, %v3112
        %v3313 = vadd.f32 %v1708, %v3113
        %v3314 = vadd.f32 %v1709, %v3114
        %v3315 = vadd.f32 %v1710, %v3115
        %v3316 = vadd.f32 %v1711, %v3116
        %v3317 = vadd.f32 %v1712, %v3117
        %v3318 = vadd.f32 %v1713, %v3118
        %v3319 = vadd.f32 %v1714, %v3119
        %v3320 = vadd.f32 %v1715, %v3120
        %v3321 = vadd.f32 %v1716, %v3121
        %v3322 = vadd.f32 %v1717, %v3122
        %v3323 = vadd.f32 %v1718, %v3123
        %v3324 = vadd.f32 %v1719, %v3124
        %v3325 = vadd.f32 %v1720, %v3125
        %v3326 = vadd.f32 %v1721, %v3126
        %v3327 = vadd.f32 %v1722, %v3127
        %v3328 = vadd.f32 %v1723, %v3128
        %v3329 = vadd.f32 %v1724, %v3129
        %v3330 = vadd.f32 %v1725, %v3130
        %v3331 = vadd.f32 %v1726, %v3131
        %v3332 = vadd.f32 %v1727, %v3132
        %v3333 = vadd.f32 %v1728, %v3133
        %v3334 = vadd.f32 %v1729, %v3134
        %v3335 = vadd.f32 %v1730, %v3135
        %v3336 = vadd.f32 %v1731, %v3136
        %v3337 = vadd.f32 %v1732, %v3137
        %v3338 = vadd.f32 %v1733, %v3138
        %v3339 = vadd.f32 %v1734, %v3139
        %v3340 = vadd.f32 %v1735, %v3140
        %v3341 = vadd.f32 %v1736, %v3141
        %v3342 = vadd.f32 %v1737, %v3142
        %v3343 = vadd.f32 %v1738, %v3143
        %v3344 = vadd.f32 %v1739, %v3144
        %v3345 = vadd.f32 %v1740, %v3145
        %v3346 = vadd.f32 %v1741, %v3146
        %v3347 = vadd.f32 %v1742, %v3147
        %v3348 = vadd.f32 %v1743, %v3148
        %v3349 = vadd.f32 %v1744, %v3149
        %v3350 = vadd.f32 %v1745, %v3150
        %v3351 = vadd.f32 %v1746, %v3151
        %v3352 = vadd.f32 %v1747, %v3152
        %v3353 = vadd.f32 %v1748, %v3153
        %v3354 = vadd.f32 %v1749, %v3154
        %v3355 = vadd.f32 %v1750, %v3155
        %v3356 = vadd.f32 %v1751, %v3156
        %v3357 = vadd.f32 %v1752, %v3157
        %v3358 = vadd.f32 %v1753, %v3158
        %v3359 = vadd.f32 %v1754, %v3159
        %v3360 = vadd.f32 %v1755, %v3160
        %v3361 = vadd.f32 %v1756, %v3161
        %v3362 = vadd.f32 %v1757, %v3162
        %v3363 = vadd.f32 %v1758, %v3163
        %v3364 = vadd.f32 %v1759, %v3164
        %v3365 = vadd.f32 %v1760, %v3165
        %v3366 = vadd.f32 %v1761, %v3166
        %v3367 = vadd.f32 %v1762, %v3167
        %v3368 = vadd.f32 %v1763, %v3168
        %v3369 = vld [vmem:[%s353 + $0x2] sm:$0xff]
        %v3370 = vld [vmem:[%s353 + $0xa] sm:$0xff]
        %v3371 = vld [vmem:[%s353 + $0x12] sm:$0xff]
        %v3372 = vld [vmem:[%s353 + $0x1a] sm:$0xff]
        %v3373 = vld [vmem:[%s353 + $0x22] sm:$0xff]
        %v3374 = vld [vmem:[%s353 + $0x2a] sm:$0xff]
        %v3375 = vld [vmem:[%s353 + $0x32] sm:$0xff]
        %v3376 = vld [vmem:[%s353 + $0x3a] sm:$0xff]
        %v3377 = vld [vmem:[%s353 + $0x42] sm:$0xff]
        %v3378 = vld [vmem:[%s353 + $0x4a] sm:$0xff]
        %v3379 = vld [vmem:[%s353 + $0x52] sm:$0xff]
        %v3380 = vld [vmem:[%s353 + $0x5a] sm:$0xff]
        %v3381 = vld [vmem:[%s353 + $0x62] sm:$0xff]
        %v3382 = vld [vmem:[%s353 + $0x6a] sm:$0xff]
        %v3383 = vld [vmem:[%s353 + $0x72] sm:$0xff]
        %v3384 = vld [vmem:[%s353 + $0x7a] sm:$0xff]
        %v3385 = vld [vmem:[%s353 + $0x82] sm:$0xff]
        %v3386 = vld [vmem:[%s353 + $0x8a] sm:$0xff]
        %v3387 = vld [vmem:[%s353 + $0x92] sm:$0xff]
        %v3388 = vld [vmem:[%s353 + $0x9a] sm:$0xff]
        %v3389 = vld [vmem:[%s353 + $0xa2] sm:$0xff]
        %v3390 = vld [vmem:[%s353 + $0xaa] sm:$0xff]
        %v3391 = vld [vmem:[%s353 + $0xb2] sm:$0xff]
        %v3392 = vld [vmem:[%s353 + $0xba] sm:$0xff]
        %v3393 = vld [vmem:[%s353 + $0xc2] sm:$0xff]
        %v3394 = vld [vmem:[%s353 + $0xca] sm:$0xff]
        %v3395 = vld [vmem:[%s353 + $0xd2] sm:$0xff]
        %v3396 = vld [vmem:[%s353 + $0xda] sm:$0xff]
        %v3397 = vld [vmem:[%s353 + $0xe2] sm:$0xff]
        %v3398 = vld [vmem:[%s353 + $0xea] sm:$0xff]
        %v3399 = vld [vmem:[%s353 + $0xf2] sm:$0xff]
        %v3400 = vld [vmem:[%s353 + $0xfa] sm:$0xff]
        %v3401 = vld [vmem:[%s353 + $0x102] sm:$0xff]
        %v3402 = vld [vmem:[%s353 + $0x10a] sm:$0xff]
        %v3403 = vld [vmem:[%s353 + $0x112] sm:$0xff]
        %v3404 = vld [vmem:[%s353 + $0x11a] sm:$0xff]
        %v3405 = vld [vmem:[%s353 + $0x122] sm:$0xff]
        %v3406 = vld [vmem:[%s353 + $0x12a] sm:$0xff]
        %v3407 = vld [vmem:[%s353 + $0x132] sm:$0xff]
        %v3408 = vld [vmem:[%s353 + $0x13a] sm:$0xff]
        %v3409 = vld [vmem:[%s353 + $0x142] sm:$0xff]
        %v3410 = vld [vmem:[%s353 + $0x14a] sm:$0xff]
        %v3411 = vld [vmem:[%s353 + $0x152] sm:$0xff]
        %v3412 = vld [vmem:[%s353 + $0x15a] sm:$0xff]
        %v3413 = vld [vmem:[%s353 + $0x162] sm:$0xff]
        %v3414 = vld [vmem:[%s353 + $0x16a] sm:$0xff]
        %v3415 = vld [vmem:[%s353 + $0x172] sm:$0xff]
        %v3416 = vld [vmem:[%s353 + $0x17a] sm:$0xff]
        %v3417 = vld [vmem:[%s353 + $0x182] sm:$0xff]
        %v3418 = vld [vmem:[%s353 + $0x18a] sm:$0xff]
        %v3419 = vld [vmem:[%s353 + $0x192] sm:$0xff]
        %v3420 = vld [vmem:[%s353 + $0x19a] sm:$0xff]
        %v3421 = vld [vmem:[%s353 + $0x1a2] sm:$0xff]
        %v3422 = vld [vmem:[%s353 + $0x1aa] sm:$0xff]
        %v3423 = vld [vmem:[%s353 + $0x1b2] sm:$0xff]
        %v3424 = vld [vmem:[%s353 + $0x1ba] sm:$0xff]
        %v3425 = vld [vmem:[%s353 + $0x1c2] sm:$0xff]
        %v3426 = vld [vmem:[%s353 + $0x1ca] sm:$0xff]
        %v3427 = vld [vmem:[%s353 + $0x1d2] sm:$0xff]
        %v3428 = vld [vmem:[%s353 + $0x1da] sm:$0xff]
        %v3429 = vld [vmem:[%s353 + $0x1e2] sm:$0xff]
        %v3430 = vld [vmem:[%s353 + $0x1ea] sm:$0xff]
        %v3431 = vld [vmem:[%s353 + $0x1f2] sm:$0xff]
        %v3432 = vld [vmem:[%s353 + $0x1fa] sm:$0xff]
        %v3433 = vld [vmem:[%s353 + $0x202] sm:$0xff]
        %v3434 = vld [vmem:[%s353 + $0x20a] sm:$0xff]
        %v3435 = vld [vmem:[%s353 + $0x212] sm:$0xff]
        %v3436 = vld [vmem:[%s353 + $0x21a] sm:$0xff]
        %v3437 = vld [vmem:[%s353 + $0x222] sm:$0xff]
        %v3438 = vld [vmem:[%s353 + $0x22a] sm:$0xff]
        %v3439 = vld [vmem:[%s353 + $0x232] sm:$0xff]
        %v3440 = vld [vmem:[%s353 + $0x23a] sm:$0xff]
        %v3441 = vld [vmem:[%s353 + $0x242] sm:$0xff]
        %v3442 = vld [vmem:[%s353 + $0x24a] sm:$0xff]
        %v3443 = vld [vmem:[%s353 + $0x252] sm:$0xff]
        %v3444 = vld [vmem:[%s353 + $0x25a] sm:$0xff]
        %v3445 = vld [vmem:[%s353 + $0x262] sm:$0xff]
        %v3446 = vld [vmem:[%s353 + $0x26a] sm:$0xff]
        %v3447 = vld [vmem:[%s353 + $0x272] sm:$0xff]
        %v3448 = vld [vmem:[%s353 + $0x27a] sm:$0xff]
        %v3449 = vld [vmem:[%s353 + $0x282] sm:$0xff]
        %v3450 = vld [vmem:[%s353 + $0x28a] sm:$0xff]
        %v3451 = vld [vmem:[%s353 + $0x292] sm:$0xff]
        %v3452 = vld [vmem:[%s353 + $0x29a] sm:$0xff]
        %v3453 = vld [vmem:[%s353 + $0x2a2] sm:$0xff]
        %v3454 = vld [vmem:[%s353 + $0x2aa] sm:$0xff]
        %v3455 = vld [vmem:[%s353 + $0x2b2] sm:$0xff]
        %v3456 = vld [vmem:[%s353 + $0x2ba] sm:$0xff]
        %v3457 = vld [vmem:[%s353 + $0x2c2] sm:$0xff]
        %v3458 = vld [vmem:[%s353 + $0x2ca] sm:$0xff]
        %v3459 = vld [vmem:[%s353 + $0x2d2] sm:$0xff]
        %v3460 = vld [vmem:[%s353 + $0x2da] sm:$0xff]
        %v3461 = vld [vmem:[%s353 + $0x2e2] sm:$0xff]
        %v3462 = vld [vmem:[%s353 + $0x2ea] sm:$0xff]
        %v3463 = vld [vmem:[%s353 + $0x2f2] sm:$0xff]
        %v3464 = vld [vmem:[%s353 + $0x2fa] sm:$0xff]
        %v3465 = vld [vmem:[%s353 + $0x302] sm:$0xff]
        %v3466 = vld [vmem:[%s353 + $0x30a] sm:$0xff]
        %v3467 = vld [vmem:[%s353 + $0x312] sm:$0xff]
        %v3468 = vld [vmem:[%s353 + $0x31a] sm:$0xff]
        %v3469 = vld [vmem:[%s353 + $0x322] sm:$0xff]
        %v3470 = vld [vmem:[%s353 + $0x32a] sm:$0xff]
        %v3471 = vld [vmem:[%s353 + $0x332] sm:$0xff]
        %v3472 = vld [vmem:[%s353 + $0x33a] sm:$0xff]
        %v3473 = vld [vmem:[%s353 + $0x342] sm:$0xff]
        %v3474 = vld [vmem:[%s353 + $0x34a] sm:$0xff]
        %v3475 = vld [vmem:[%s353 + $0x352] sm:$0xff]
        %v3476 = vld [vmem:[%s353 + $0x35a] sm:$0xff]
        %v3477 = vld [vmem:[%s353 + $0x362] sm:$0xff]
        %v3478 = vld [vmem:[%s353 + $0x36a] sm:$0xff]
        %v3479 = vld [vmem:[%s353 + $0x372] sm:$0xff]
        %v3480 = vld [vmem:[%s353 + $0x37a] sm:$0xff]
        %v3481 = vld [vmem:[%s353 + $0x382] sm:$0xff]
        %v3482 = vld [vmem:[%s353 + $0x38a] sm:$0xff]
        %v3483 = vld [vmem:[%s353 + $0x392] sm:$0xff]
        %v3484 = vld [vmem:[%s353 + $0x39a] sm:$0xff]
        %v3485 = vld [vmem:[%s353 + $0x3a2] sm:$0xff]
        %v3486 = vld [vmem:[%s353 + $0x3aa] sm:$0xff]
        %v3487 = vld [vmem:[%s353 + $0x3b2] sm:$0xff]
        %v3488 = vld [vmem:[%s353 + $0x3ba] sm:$0xff]
        %v3489 = vld [vmem:[%s353 + $0x3c2] sm:$0xff]
        %v3490 = vld [vmem:[%s353 + $0x3ca] sm:$0xff]
        %v3491 = vld [vmem:[%s353 + $0x3d2] sm:$0xff]
        %v3492 = vld [vmem:[%s353 + $0x3da] sm:$0xff]
        %v3493 = vld [vmem:[%s353 + $0x3e2] sm:$0xff]
        %v3494 = vld [vmem:[%s353 + $0x3ea] sm:$0xff]
        %v3495 = vld [vmem:[%s353 + $0x3f2] sm:$0xff]
        %v3496 = vld [vmem:[%s353 + $0x3fa] sm:$0xff]
        %v3497 = vld [vmem:[%s353 + $0x402] sm:$0xff]
        %v3498 = vld [vmem:[%s353 + $0x40a] sm:$0xff]
        %v3499 = vld [vmem:[%s353 + $0x412] sm:$0xff]
        %v3500 = vld [vmem:[%s353 + $0x41a] sm:$0xff]
        %v3501 = vld [vmem:[%s353 + $0x422] sm:$0xff]
        %v3502 = vld [vmem:[%s353 + $0x42a] sm:$0xff]
        %v3503 = vld [vmem:[%s353 + $0x432] sm:$0xff]
        %v3504 = vld [vmem:[%s353 + $0x43a] sm:$0xff]
        %v3505 = vld [vmem:[%s353 + $0x442] sm:$0xff]
        %v3506 = vld [vmem:[%s353 + $0x44a] sm:$0xff]
        %v3507 = vld [vmem:[%s353 + $0x452] sm:$0xff]
        %v3508 = vld [vmem:[%s353 + $0x45a] sm:$0xff]
        %v3509 = vld [vmem:[%s353 + $0x462] sm:$0xff]
        %v3510 = vld [vmem:[%s353 + $0x46a] sm:$0xff]
        %v3511 = vld [vmem:[%s353 + $0x472] sm:$0xff]
        %v3512 = vld [vmem:[%s353 + $0x47a] sm:$0xff]
        %v3513 = vld [vmem:[%s353 + $0x482] sm:$0xff]
        %v3514 = vld [vmem:[%s353 + $0x48a] sm:$0xff]
        %v3515 = vld [vmem:[%s353 + $0x492] sm:$0xff]
        %v3516 = vld [vmem:[%s353 + $0x49a] sm:$0xff]
        %v3517 = vld [vmem:[%s353 + $0x4a2] sm:$0xff]
        %v3518 = vld [vmem:[%s353 + $0x4aa] sm:$0xff]
        %v3519 = vld [vmem:[%s353 + $0x4b2] sm:$0xff]
        %v3520 = vld [vmem:[%s353 + $0x4ba] sm:$0xff]
        %v3521 = vld [vmem:[%s353 + $0x4c2] sm:$0xff]
        %v3522 = vld [vmem:[%s353 + $0x4ca] sm:$0xff]
        %v3523 = vld [vmem:[%s353 + $0x4d2] sm:$0xff]
        %v3524 = vld [vmem:[%s353 + $0x4da] sm:$0xff]
        %v3525 = vld [vmem:[%s353 + $0x4e2] sm:$0xff]
        %v3526 = vld [vmem:[%s353 + $0x4ea] sm:$0xff]
        %v3527 = vld [vmem:[%s353 + $0x4f2] sm:$0xff]
        %v3528 = vld [vmem:[%s353 + $0x4fa] sm:$0xff]
        %v3529 = vld [vmem:[%s353 + $0x502] sm:$0xff]
        %v3530 = vld [vmem:[%s353 + $0x50a] sm:$0xff]
        %v3531 = vld [vmem:[%s353 + $0x512] sm:$0xff]
        %v3532 = vld [vmem:[%s353 + $0x51a] sm:$0xff]
        %v3533 = vld [vmem:[%s353 + $0x522] sm:$0xff]
        %v3534 = vld [vmem:[%s353 + $0x52a] sm:$0xff]
        %v3535 = vld [vmem:[%s353 + $0x532] sm:$0xff]
        %v3536 = vld [vmem:[%s353 + $0x53a] sm:$0xff]
        %v3537 = vld [vmem:[%s353 + $0x542] sm:$0xff]
        %v3538 = vld [vmem:[%s353 + $0x54a] sm:$0xff]
        %v3539 = vld [vmem:[%s353 + $0x552] sm:$0xff]
        %v3540 = vld [vmem:[%s353 + $0x55a] sm:$0xff]
        %v3541 = vld [vmem:[%s353 + $0x562] sm:$0xff]
        %v3542 = vld [vmem:[%s353 + $0x56a] sm:$0xff]
        %v3543 = vld [vmem:[%s353 + $0x572] sm:$0xff]
        %v3544 = vld [vmem:[%s353 + $0x57a] sm:$0xff]
        %v3545 = vld [vmem:[%s353 + $0x582] sm:$0xff]
        %v3546 = vld [vmem:[%s353 + $0x58a] sm:$0xff]
        %v3547 = vld [vmem:[%s353 + $0x592] sm:$0xff]
        %v3548 = vld [vmem:[%s353 + $0x59a] sm:$0xff]
        %v3549 = vld [vmem:[%s353 + $0x5a2] sm:$0xff]
        %v3550 = vld [vmem:[%s353 + $0x5aa] sm:$0xff]
        %v3551 = vld [vmem:[%s353 + $0x5b2] sm:$0xff]
        %v3552 = vld [vmem:[%s353 + $0x5ba] sm:$0xff]
        %v3553 = vld [vmem:[%s353 + $0x5c2] sm:$0xff]
        %v3554 = vld [vmem:[%s353 + $0x5ca] sm:$0xff]
        %v3555 = vld [vmem:[%s353 + $0x5d2] sm:$0xff]
        %v3556 = vld [vmem:[%s353 + $0x5da] sm:$0xff]
        %v3557 = vld [vmem:[%s353 + $0x5e2] sm:$0xff]
        %v3558 = vld [vmem:[%s353 + $0x5ea] sm:$0xff]
        %v3559 = vld [vmem:[%s353 + $0x5f2] sm:$0xff]
        %v3560 = vld [vmem:[%s353 + $0x5fa] sm:$0xff]
        %v3561 = vld [vmem:[%s353 + $0x602] sm:$0xff]
        %v3562 = vld [vmem:[%s353 + $0x60a] sm:$0xff]
        %v3563 = vld [vmem:[%s353 + $0x612] sm:$0xff]
        %v3564 = vld [vmem:[%s353 + $0x61a] sm:$0xff]
        %v3565 = vld [vmem:[%s353 + $0x622] sm:$0xff]
        %v3566 = vld [vmem:[%s353 + $0x62a] sm:$0xff]
        %v3567 = vld [vmem:[%s353 + $0x632] sm:$0xff]
        %v3568 = vld [vmem:[%s353 + $0x63a] sm:$0x3f]
        %v3569 = vld [vmem:[#allocation7 + $0x2] sm:$0x1]
        %3571 = vset.pattern.permute.xlu0 0
        %3572 = vperm.xlu0 %3571, %v3369
        %v3573 = vpop.permute.xlu0 %3572
        %3576 = vset.pattern.permute.xlu0 0
        %3577 = vperm.xlu0 %3576, %v3370
        %v3578 = vpop.permute.xlu0 %3577
        %3581 = vset.pattern.permute.xlu0 0
        %3582 = vperm.xlu0 %3581, %v3371
        %v3583 = vpop.permute.xlu0 %3582
        %3586 = vset.pattern.permute.xlu0 0
        %3587 = vperm.xlu0 %3586, %v3372
        %v3588 = vpop.permute.xlu0 %3587
        %3591 = vset.pattern.permute.xlu0 0
        %3592 = vperm.xlu0 %3591, %v3373
        %v3593 = vpop.permute.xlu0 %3592
        %3596 = vset.pattern.permute.xlu0 0
        %3597 = vperm.xlu0 %3596, %v3374
        %v3598 = vpop.permute.xlu0 %3597
        %3601 = vset.pattern.permute.xlu0 0
        %3602 = vperm.xlu0 %3601, %v3375
        %v3603 = vpop.permute.xlu0 %3602
        %3606 = vset.pattern.permute.xlu0 0
        %3607 = vperm.xlu0 %3606, %v3376
        %v3608 = vpop.permute.xlu0 %3607
        %3611 = vset.pattern.permute.xlu0 0
        %3612 = vperm.xlu0 %3611, %v3377
        %v3613 = vpop.permute.xlu0 %3612
        %3616 = vset.pattern.permute.xlu0 0
        %3617 = vperm.xlu0 %3616, %v3378
        %v3618 = vpop.permute.xlu0 %3617
        %3621 = vset.pattern.permute.xlu0 0
        %3622 = vperm.xlu0 %3621, %v3379
        %v3623 = vpop.permute.xlu0 %3622
        %3626 = vset.pattern.permute.xlu0 0
        %3627 = vperm.xlu0 %3626, %v3380
        %v3628 = vpop.permute.xlu0 %3627
        %3631 = vset.pattern.permute.xlu0 0
        %3632 = vperm.xlu0 %3631, %v3381
        %v3633 = vpop.permute.xlu0 %3632
        %3636 = vset.pattern.permute.xlu0 0
        %3637 = vperm.xlu0 %3636, %v3382
        %v3638 = vpop.permute.xlu0 %3637
        %3641 = vset.pattern.permute.xlu0 0
        %3642 = vperm.xlu0 %3641, %v3383
        %v3643 = vpop.permute.xlu0 %3642
        %3646 = vset.pattern.permute.xlu0 0
        %3647 = vperm.xlu0 %3646, %v3384
        %v3648 = vpop.permute.xlu0 %3647
        %3651 = vset.pattern.permute.xlu0 0
        %3652 = vperm.xlu0 %3651, %v3385
        %v3653 = vpop.permute.xlu0 %3652
        %3656 = vset.pattern.permute.xlu0 0
        %3657 = vperm.xlu0 %3656, %v3386
        %v3658 = vpop.permute.xlu0 %3657
        %3661 = vset.pattern.permute.xlu0 0
        %3662 = vperm.xlu0 %3661, %v3387
        %v3663 = vpop.permute.xlu0 %3662
        %3666 = vset.pattern.permute.xlu0 0
        %3667 = vperm.xlu0 %3666, %v3388
        %v3668 = vpop.permute.xlu0 %3667
        %3671 = vset.pattern.permute.xlu0 0
        %3672 = vperm.xlu0 %3671, %v3389
        %v3673 = vpop.permute.xlu0 %3672
        %3676 = vset.pattern.permute.xlu0 0
        %3677 = vperm.xlu0 %3676, %v3390
        %v3678 = vpop.permute.xlu0 %3677
        %3681 = vset.pattern.permute.xlu0 0
        %3682 = vperm.xlu0 %3681, %v3391
        %v3683 = vpop.permute.xlu0 %3682
        %3686 = vset.pattern.permute.xlu0 0
        %3687 = vperm.xlu0 %3686, %v3392
        %v3688 = vpop.permute.xlu0 %3687
        %3691 = vset.pattern.permute.xlu0 0
        %3692 = vperm.xlu0 %3691, %v3393
        %v3693 = vpop.permute.xlu0 %3692
        %3696 = vset.pattern.permute.xlu0 0
        %3697 = vperm.xlu0 %3696, %v3394
        %v3698 = vpop.permute.xlu0 %3697
        %3701 = vset.pattern.permute.xlu0 0
        %3702 = vperm.xlu0 %3701, %v3395
        %v3703 = vpop.permute.xlu0 %3702
        %3706 = vset.pattern.permute.xlu0 0
        %3707 = vperm.xlu0 %3706, %v3396
        %v3708 = vpop.permute.xlu0 %3707
        %3711 = vset.pattern.permute.xlu0 0
        %3712 = vperm.xlu0 %3711, %v3397
        %v3713 = vpop.permute.xlu0 %3712
        %3716 = vset.pattern.permute.xlu0 0
        %3717 = vperm.xlu0 %3716, %v3398
        %v3718 = vpop.permute.xlu0 %3717
        %3721 = vset.pattern.permute.xlu0 0
        %3722 = vperm.xlu0 %3721, %v3399
        %v3723 = vpop.permute.xlu0 %3722
        %3726 = vset.pattern.permute.xlu0 0
        %3727 = vperm.xlu0 %3726, %v3400
        %v3728 = vpop.permute.xlu0 %3727
        %3731 = vset.pattern.permute.xlu0 0
        %3732 = vperm.xlu0 %3731, %v3401
        %v3733 = vpop.permute.xlu0 %3732
        %3736 = vset.pattern.permute.xlu0 0
        %3737 = vperm.xlu0 %3736, %v3402
        %v3738 = vpop.permute.xlu0 %3737
        %3741 = vset.pattern.permute.xlu0 0
        %3742 = vperm.xlu0 %3741, %v3403
        %v3743 = vpop.permute.xlu0 %3742
        %3746 = vset.pattern.permute.xlu0 0
        %3747 = vperm.xlu0 %3746, %v3404
        %v3748 = vpop.permute.xlu0 %3747
        %3751 = vset.pattern.permute.xlu0 0
        %3752 = vperm.xlu0 %3751, %v3405
        %v3753 = vpop.permute.xlu0 %3752
        %3756 = vset.pattern.permute.xlu0 0
        %3757 = vperm.xlu0 %3756, %v3406
        %v3758 = vpop.permute.xlu0 %3757
        %3761 = vset.pattern.permute.xlu0 0
        %3762 = vperm.xlu0 %3761, %v3407
        %v3763 = vpop.permute.xlu0 %3762
        %3766 = vset.pattern.permute.xlu0 0
        %3767 = vperm.xlu0 %3766, %v3408
        %v3768 = vpop.permute.xlu0 %3767
        %3771 = vset.pattern.permute.xlu0 0
        %3772 = vperm.xlu0 %3771, %v3409
        %v3773 = vpop.permute.xlu0 %3772
        %3776 = vset.pattern.permute.xlu0 0
        %3777 = vperm.xlu0 %3776, %v3410
        %v3778 = vpop.permute.xlu0 %3777
        %3781 = vset.pattern.permute.xlu0 0
        %3782 = vperm.xlu0 %3781, %v3411
        %v3783 = vpop.permute.xlu0 %3782
        %3786 = vset.pattern.permute.xlu0 0
        %3787 = vperm.xlu0 %3786, %v3412
        %v3788 = vpop.permute.xlu0 %3787
        %3791 = vset.pattern.permute.xlu0 0
        %3792 = vperm.xlu0 %3791, %v3413
        %v3793 = vpop.permute.xlu0 %3792
        %3796 = vset.pattern.permute.xlu0 0
        %3797 = vperm.xlu0 %3796, %v3414
        %v3798 = vpop.permute.xlu0 %3797
        %3801 = vset.pattern.permute.xlu0 0
        %3802 = vperm.xlu0 %3801, %v3415
        %v3803 = vpop.permute.xlu0 %3802
        %3806 = vset.pattern.permute.xlu0 0
        %3807 = vperm.xlu0 %3806, %v3416
        %v3808 = vpop.permute.xlu0 %3807
        %3811 = vset.pattern.permute.xlu0 0
        %3812 = vperm.xlu0 %3811, %v3417
        %v3813 = vpop.permute.xlu0 %3812
        %3816 = vset.pattern.permute.xlu0 0
        %3817 = vperm.xlu0 %3816, %v3418
        %v3818 = vpop.permute.xlu0 %3817
        %3821 = vset.pattern.permute.xlu0 0
        %3822 = vperm.xlu0 %3821, %v3419
        %v3823 = vpop.permute.xlu0 %3822
        %3826 = vset.pattern.permute.xlu0 0
        %3827 = vperm.xlu0 %3826, %v3420
        %v3828 = vpop.permute.xlu0 %3827
        %3831 = vset.pattern.permute.xlu0 0
        %3832 = vperm.xlu0 %3831, %v3421
        %v3833 = vpop.permute.xlu0 %3832
        %3836 = vset.pattern.permute.xlu0 0
        %3837 = vperm.xlu0 %3836, %v3422
        %v3838 = vpop.permute.xlu0 %3837
        %3841 = vset.pattern.permute.xlu0 0
        %3842 = vperm.xlu0 %3841, %v3423
        %v3843 = vpop.permute.xlu0 %3842
        %3846 = vset.pattern.permute.xlu0 0
        %3847 = vperm.xlu0 %3846, %v3424
        %v3848 = vpop.permute.xlu0 %3847
        %3851 = vset.pattern.permute.xlu0 0
        %3852 = vperm.xlu0 %3851, %v3425
        %v3853 = vpop.permute.xlu0 %3852
        %3856 = vset.pattern.permute.xlu0 0
        %3857 = vperm.xlu0 %3856, %v3426
        %v3858 = vpop.permute.xlu0 %3857
        %3861 = vset.pattern.permute.xlu0 0
        %3862 = vperm.xlu0 %3861, %v3427
        %v3863 = vpop.permute.xlu0 %3862
        %3866 = vset.pattern.permute.xlu0 0
        %3867 = vperm.xlu0 %3866, %v3428
        %v3868 = vpop.permute.xlu0 %3867
        %3871 = vset.pattern.permute.xlu0 0
        %3872 = vperm.xlu0 %3871, %v3429
        %v3873 = vpop.permute.xlu0 %3872
        %3876 = vset.pattern.permute.xlu0 0
        %3877 = vperm.xlu0 %3876, %v3430
        %v3878 = vpop.permute.xlu0 %3877
        %3881 = vset.pattern.permute.xlu0 0
        %3882 = vperm.xlu0 %3881, %v3431
        %v3883 = vpop.permute.xlu0 %3882
        %3886 = vset.pattern.permute.xlu0 0
        %3887 = vperm.xlu0 %3886, %v3432
        %v3888 = vpop.permute.xlu0 %3887
        %3891 = vset.pattern.permute.xlu0 0
        %3892 = vperm.xlu0 %3891, %v3433
        %v3893 = vpop.permute.xlu0 %3892
        %3896 = vset.pattern.permute.xlu0 0
        %3897 = vperm.xlu0 %3896, %v3434
        %v3898 = vpop.permute.xlu0 %3897
        %3901 = vset.pattern.permute.xlu0 0
        %3902 = vperm.xlu0 %3901, %v3435
        %v3903 = vpop.permute.xlu0 %3902
        %3906 = vset.pattern.permute.xlu0 0
        %3907 = vperm.xlu0 %3906, %v3436
        %v3908 = vpop.permute.xlu0 %3907
        %3911 = vset.pattern.permute.xlu0 0
        %3912 = vperm.xlu0 %3911, %v3437
        %v3913 = vpop.permute.xlu0 %3912
        %3916 = vset.pattern.permute.xlu0 0
        %3917 = vperm.xlu0 %3916, %v3438
        %v3918 = vpop.permute.xlu0 %3917
        %3921 = vset.pattern.permute.xlu0 0
        %3922 = vperm.xlu0 %3921, %v3439
        %v3923 = vpop.permute.xlu0 %3922
        %3926 = vset.pattern.permute.xlu0 0
        %3927 = vperm.xlu0 %3926, %v3440
        %v3928 = vpop.permute.xlu0 %3927
        %3931 = vset.pattern.permute.xlu0 0
        %3932 = vperm.xlu0 %3931, %v3441
        %v3933 = vpop.permute.xlu0 %3932
        %3936 = vset.pattern.permute.xlu0 0
        %3937 = vperm.xlu0 %3936, %v3442
        %v3938 = vpop.permute.xlu0 %3937
        %3941 = vset.pattern.permute.xlu0 0
        %3942 = vperm.xlu0 %3941, %v3443
        %v3943 = vpop.permute.xlu0 %3942
        %3946 = vset.pattern.permute.xlu0 0
        %3947 = vperm.xlu0 %3946, %v3444
        %v3948 = vpop.permute.xlu0 %3947
        %3951 = vset.pattern.permute.xlu0 0
        %3952 = vperm.xlu0 %3951, %v3445
        %v3953 = vpop.permute.xlu0 %3952
        %3956 = vset.pattern.permute.xlu0 0
        %3957 = vperm.xlu0 %3956, %v3446
        %v3958 = vpop.permute.xlu0 %3957
        %3961 = vset.pattern.permute.xlu0 0
        %3962 = vperm.xlu0 %3961, %v3447
        %v3963 = vpop.permute.xlu0 %3962
        %3966 = vset.pattern.permute.xlu0 0
        %3967 = vperm.xlu0 %3966, %v3448
        %v3968 = vpop.permute.xlu0 %3967
        %3971 = vset.pattern.permute.xlu0 0
        %3972 = vperm.xlu0 %3971, %v3449
        %v3973 = vpop.permute.xlu0 %3972
        %3976 = vset.pattern.permute.xlu0 0
        %3977 = vperm.xlu0 %3976, %v3450
        %v3978 = vpop.permute.xlu0 %3977
        %3981 = vset.pattern.permute.xlu0 0
        %3982 = vperm.xlu0 %3981, %v3451
        %v3983 = vpop.permute.xlu0 %3982
        %3986 = vset.pattern.permute.xlu0 0
        %3987 = vperm.xlu0 %3986, %v3452
        %v3988 = vpop.permute.xlu0 %3987
        %3991 = vset.pattern.permute.xlu0 0
        %3992 = vperm.xlu0 %3991, %v3453
        %v3993 = vpop.permute.xlu0 %3992
        %3996 = vset.pattern.permute.xlu0 0
        %3997 = vperm.xlu0 %3996, %v3454
        %v3998 = vpop.permute.xlu0 %3997
        %4001 = vset.pattern.permute.xlu0 0
        %4002 = vperm.xlu0 %4001, %v3455
        %v4003 = vpop.permute.xlu0 %4002
        %4006 = vset.pattern.permute.xlu0 0
        %4007 = vperm.xlu0 %4006, %v3456
        %v4008 = vpop.permute.xlu0 %4007
        %4011 = vset.pattern.permute.xlu0 0
        %4012 = vperm.xlu0 %4011, %v3457
        %v4013 = vpop.permute.xlu0 %4012
        %4016 = vset.pattern.permute.xlu0 0
        %4017 = vperm.xlu0 %4016, %v3458
        %v4018 = vpop.permute.xlu0 %4017
        %4021 = vset.pattern.permute.xlu0 0
        %4022 = vperm.xlu0 %4021, %v3459
        %v4023 = vpop.permute.xlu0 %4022
        %4026 = vset.pattern.permute.xlu0 0
        %4027 = vperm.xlu0 %4026, %v3460
        %v4028 = vpop.permute.xlu0 %4027
        %4031 = vset.pattern.permute.xlu0 0
        %4032 = vperm.xlu0 %4031, %v3461
        %v4033 = vpop.permute.xlu0 %4032
        %4036 = vset.pattern.permute.xlu0 0
        %4037 = vperm.xlu0 %4036, %v3462
        %v4038 = vpop.permute.xlu0 %4037
        %4041 = vset.pattern.permute.xlu0 0
        %4042 = vperm.xlu0 %4041, %v3463
        %v4043 = vpop.permute.xlu0 %4042
        %4046 = vset.pattern.permute.xlu0 0
        %4047 = vperm.xlu0 %4046, %v3464
        %v4048 = vpop.permute.xlu0 %4047
        %4051 = vset.pattern.permute.xlu0 0
        %4052 = vperm.xlu0 %4051, %v3465
        %v4053 = vpop.permute.xlu0 %4052
        %4056 = vset.pattern.permute.xlu0 0
        %4057 = vperm.xlu0 %4056, %v3466
        %v4058 = vpop.permute.xlu0 %4057
        %4061 = vset.pattern.permute.xlu0 0
        %4062 = vperm.xlu0 %4061, %v3467
        %v4063 = vpop.permute.xlu0 %4062
        %4066 = vset.pattern.permute.xlu0 0
        %4067 = vperm.xlu0 %4066, %v3468
        %v4068 = vpop.permute.xlu0 %4067
        %4071 = vset.pattern.permute.xlu0 0
        %4072 = vperm.xlu0 %4071, %v3469
        %v4073 = vpop.permute.xlu0 %4072
        %4076 = vset.pattern.permute.xlu0 0
        %4077 = vperm.xlu0 %4076, %v3470
        %v4078 = vpop.permute.xlu0 %4077
        %4081 = vset.pattern.permute.xlu0 0
        %4082 = vperm.xlu0 %4081, %v3471
        %v4083 = vpop.permute.xlu0 %4082
        %4086 = vset.pattern.permute.xlu0 0
        %4087 = vperm.xlu0 %4086, %v3472
        %v4088 = vpop.permute.xlu0 %4087
        %4091 = vset.pattern.permute.xlu0 0
        %4092 = vperm.xlu0 %4091, %v3473
        %v4093 = vpop.permute.xlu0 %4092
        %4096 = vset.pattern.permute.xlu0 0
        %4097 = vperm.xlu0 %4096, %v3474
        %v4098 = vpop.permute.xlu0 %4097
        %4101 = vset.pattern.permute.xlu0 0
        %4102 = vperm.xlu0 %4101, %v3475
        %v4103 = vpop.permute.xlu0 %4102
        %4106 = vset.pattern.permute.xlu0 0
        %4107 = vperm.xlu0 %4106, %v3476
        %v4108 = vpop.permute.xlu0 %4107
        %4111 = vset.pattern.permute.xlu0 0
        %4112 = vperm.xlu0 %4111, %v3477
        %v4113 = vpop.permute.xlu0 %4112
        %4116 = vset.pattern.permute.xlu0 0
        %4117 = vperm.xlu0 %4116, %v3478
        %v4118 = vpop.permute.xlu0 %4117
        %4121 = vset.pattern.permute.xlu0 0
        %4122 = vperm.xlu0 %4121, %v3479
        %v4123 = vpop.permute.xlu0 %4122
        %4126 = vset.pattern.permute.xlu0 0
        %4127 = vperm.xlu0 %4126, %v3480
        %v4128 = vpop.permute.xlu0 %4127
        %4131 = vset.pattern.permute.xlu0 0
        %4132 = vperm.xlu0 %4131, %v3481
        %v4133 = vpop.permute.xlu0 %4132
        %4136 = vset.pattern.permute.xlu0 0
        %4137 = vperm.xlu0 %4136, %v3482
        %v4138 = vpop.permute.xlu0 %4137
        %4141 = vset.pattern.permute.xlu0 0
        %4142 = vperm.xlu0 %4141, %v3483
        %v4143 = vpop.permute.xlu0 %4142
        %4146 = vset.pattern.permute.xlu0 0
        %4147 = vperm.xlu0 %4146, %v3484
        %v4148 = vpop.permute.xlu0 %4147
        %4151 = vset.pattern.permute.xlu0 0
        %4152 = vperm.xlu0 %4151, %v3485
        %v4153 = vpop.permute.xlu0 %4152
        %4156 = vset.pattern.permute.xlu0 0
        %4157 = vperm.xlu0 %4156, %v3486
        %v4158 = vpop.permute.xlu0 %4157
        %4161 = vset.pattern.permute.xlu0 0
        %4162 = vperm.xlu0 %4161, %v3487
        %v4163 = vpop.permute.xlu0 %4162
        %4166 = vset.pattern.permute.xlu0 0
        %4167 = vperm.xlu0 %4166, %v3488
        %v4168 = vpop.permute.xlu0 %4167
        %4171 = vset.pattern.permute.xlu0 0
        %4172 = vperm.xlu0 %4171, %v3489
        %v4173 = vpop.permute.xlu0 %4172
        %4176 = vset.pattern.permute.xlu0 0
        %4177 = vperm.xlu0 %4176, %v3490
        %v4178 = vpop.permute.xlu0 %4177
        %4181 = vset.pattern.permute.xlu0 0
        %4182 = vperm.xlu0 %4181, %v3491
        %v4183 = vpop.permute.xlu0 %4182
        %4186 = vset.pattern.permute.xlu0 0
        %4187 = vperm.xlu0 %4186, %v3492
        %v4188 = vpop.permute.xlu0 %4187
        %4191 = vset.pattern.permute.xlu0 0
        %4192 = vperm.xlu0 %4191, %v3493
        %v4193 = vpop.permute.xlu0 %4192
        %4196 = vset.pattern.permute.xlu0 0
        %4197 = vperm.xlu0 %4196, %v3494
        %v4198 = vpop.permute.xlu0 %4197
        %4201 = vset.pattern.permute.xlu0 0
        %4202 = vperm.xlu0 %4201, %v3495
        %v4203 = vpop.permute.xlu0 %4202
        %4206 = vset.pattern.permute.xlu0 0
        %4207 = vperm.xlu0 %4206, %v3496
        %v4208 = vpop.permute.xlu0 %4207
        %4211 = vset.pattern.permute.xlu0 0
        %4212 = vperm.xlu0 %4211, %v3497
        %v4213 = vpop.permute.xlu0 %4212
        %4216 = vset.pattern.permute.xlu0 0
        %4217 = vperm.xlu0 %4216, %v3498
        %v4218 = vpop.permute.xlu0 %4217
        %4221 = vset.pattern.permute.xlu0 0
        %4222 = vperm.xlu0 %4221, %v3499
        %v4223 = vpop.permute.xlu0 %4222
        %4226 = vset.pattern.permute.xlu0 0
        %4227 = vperm.xlu0 %4226, %v3500
        %v4228 = vpop.permute.xlu0 %4227
        %4231 = vset.pattern.permute.xlu0 0
        %4232 = vperm.xlu0 %4231, %v3501
        %v4233 = vpop.permute.xlu0 %4232
        %4236 = vset.pattern.permute.xlu0 0
        %4237 = vperm.xlu0 %4236, %v3502
        %v4238 = vpop.permute.xlu0 %4237
        %4241 = vset.pattern.permute.xlu0 0
        %4242 = vperm.xlu0 %4241, %v3503
        %v4243 = vpop.permute.xlu0 %4242
        %4246 = vset.pattern.permute.xlu0 0
        %4247 = vperm.xlu0 %4246, %v3504
        %v4248 = vpop.permute.xlu0 %4247
        %4251 = vset.pattern.permute.xlu0 0
        %4252 = vperm.xlu0 %4251, %v3505
        %v4253 = vpop.permute.xlu0 %4252
        %4256 = vset.pattern.permute.xlu0 0
        %4257 = vperm.xlu0 %4256, %v3506
        %v4258 = vpop.permute.xlu0 %4257
        %4261 = vset.pattern.permute.xlu0 0
        %4262 = vperm.xlu0 %4261, %v3507
        %v4263 = vpop.permute.xlu0 %4262
        %4266 = vset.pattern.permute.xlu0 0
        %4267 = vperm.xlu0 %4266, %v3508
        %v4268 = vpop.permute.xlu0 %4267
        %4271 = vset.pattern.permute.xlu0 0
        %4272 = vperm.xlu0 %4271, %v3509
        %v4273 = vpop.permute.xlu0 %4272
        %4276 = vset.pattern.permute.xlu0 0
        %4277 = vperm.xlu0 %4276, %v3510
        %v4278 = vpop.permute.xlu0 %4277
        %4281 = vset.pattern.permute.xlu0 0
        %4282 = vperm.xlu0 %4281, %v3511
        %v4283 = vpop.permute.xlu0 %4282
        %4286 = vset.pattern.permute.xlu0 0
        %4287 = vperm.xlu0 %4286, %v3512
        %v4288 = vpop.permute.xlu0 %4287
        %4291 = vset.pattern.permute.xlu0 0
        %4292 = vperm.xlu0 %4291, %v3513
        %v4293 = vpop.permute.xlu0 %4292
        %4296 = vset.pattern.permute.xlu0 0
        %4297 = vperm.xlu0 %4296, %v3514
        %v4298 = vpop.permute.xlu0 %4297
        %4301 = vset.pattern.permute.xlu0 0
        %4302 = vperm.xlu0 %4301, %v3515
        %v4303 = vpop.permute.xlu0 %4302
        %4306 = vset.pattern.permute.xlu0 0
        %4307 = vperm.xlu0 %4306, %v3516
        %v4308 = vpop.permute.xlu0 %4307
        %4311 = vset.pattern.permute.xlu0 0
        %4312 = vperm.xlu0 %4311, %v3517
        %v4313 = vpop.permute.xlu0 %4312
        %4316 = vset.pattern.permute.xlu0 0
        %4317 = vperm.xlu0 %4316, %v3518
        %v4318 = vpop.permute.xlu0 %4317
        %4321 = vset.pattern.permute.xlu0 0
        %4322 = vperm.xlu0 %4321, %v3519
        %v4323 = vpop.permute.xlu0 %4322
        %4326 = vset.pattern.permute.xlu0 0
        %4327 = vperm.xlu0 %4326, %v3520
        %v4328 = vpop.permute.xlu0 %4327
        %4331 = vset.pattern.permute.xlu0 0
        %4332 = vperm.xlu0 %4331, %v3521
        %v4333 = vpop.permute.xlu0 %4332
        %4336 = vset.pattern.permute.xlu0 0
        %4337 = vperm.xlu0 %4336, %v3522
        %v4338 = vpop.permute.xlu0 %4337
        %4341 = vset.pattern.permute.xlu0 0
        %4342 = vperm.xlu0 %4341, %v3523
        %v4343 = vpop.permute.xlu0 %4342
        %4346 = vset.pattern.permute.xlu0 0
        %4347 = vperm.xlu0 %4346, %v3524
        %v4348 = vpop.permute.xlu0 %4347
        %4351 = vset.pattern.permute.xlu0 0
        %4352 = vperm.xlu0 %4351, %v3525
        %v4353 = vpop.permute.xlu0 %4352
        %4356 = vset.pattern.permute.xlu0 0
        %4357 = vperm.xlu0 %4356, %v3526
        %v4358 = vpop.permute.xlu0 %4357
        %4361 = vset.pattern.permute.xlu0 0
        %4362 = vperm.xlu0 %4361, %v3527
        %v4363 = vpop.permute.xlu0 %4362
        %4366 = vset.pattern.permute.xlu0 0
        %4367 = vperm.xlu0 %4366, %v3528
        %v4368 = vpop.permute.xlu0 %4367
        %4371 = vset.pattern.permute.xlu0 0
        %4372 = vperm.xlu0 %4371, %v3529
        %v4373 = vpop.permute.xlu0 %4372
        %4376 = vset.pattern.permute.xlu0 0
        %4377 = vperm.xlu0 %4376, %v3530
        %v4378 = vpop.permute.xlu0 %4377
        %4381 = vset.pattern.permute.xlu0 0
        %4382 = vperm.xlu0 %4381, %v3531
        %v4383 = vpop.permute.xlu0 %4382
        %4386 = vset.pattern.permute.xlu0 0
        %4387 = vperm.xlu0 %4386, %v3532
        %v4388 = vpop.permute.xlu0 %4387
        %4391 = vset.pattern.permute.xlu0 0
        %4392 = vperm.xlu0 %4391, %v3533
        %v4393 = vpop.permute.xlu0 %4392
        %4396 = vset.pattern.permute.xlu0 0
        %4397 = vperm.xlu0 %4396, %v3534
        %v4398 = vpop.permute.xlu0 %4397
        %4401 = vset.pattern.permute.xlu0 0
        %4402 = vperm.xlu0 %4401, %v3535
        %v4403 = vpop.permute.xlu0 %4402
        %4406 = vset.pattern.permute.xlu0 0
        %4407 = vperm.xlu0 %4406, %v3536
        %v4408 = vpop.permute.xlu0 %4407
        %4411 = vset.pattern.permute.xlu0 0
        %4412 = vperm.xlu0 %4411, %v3537
        %v4413 = vpop.permute.xlu0 %4412
        %4416 = vset.pattern.permute.xlu0 0
        %4417 = vperm.xlu0 %4416, %v3538
        %v4418 = vpop.permute.xlu0 %4417
        %4421 = vset.pattern.permute.xlu0 0
        %4422 = vperm.xlu0 %4421, %v3539
        %v4423 = vpop.permute.xlu0 %4422
        %4426 = vset.pattern.permute.xlu0 0
        %4427 = vperm.xlu0 %4426, %v3540
        %v4428 = vpop.permute.xlu0 %4427
        %4431 = vset.pattern.permute.xlu0 0
        %4432 = vperm.xlu0 %4431, %v3541
        %v4433 = vpop.permute.xlu0 %4432
        %4436 = vset.pattern.permute.xlu0 0
        %4437 = vperm.xlu0 %4436, %v3542
        %v4438 = vpop.permute.xlu0 %4437
        %4441 = vset.pattern.permute.xlu0 0
        %4442 = vperm.xlu0 %4441, %v3543
        %v4443 = vpop.permute.xlu0 %4442
        %4446 = vset.pattern.permute.xlu0 0
        %4447 = vperm.xlu0 %4446, %v3544
        %v4448 = vpop.permute.xlu0 %4447
        %4451 = vset.pattern.permute.xlu0 0
        %4452 = vperm.xlu0 %4451, %v3545
        %v4453 = vpop.permute.xlu0 %4452
        %4456 = vset.pattern.permute.xlu0 0
        %4457 = vperm.xlu0 %4456, %v3546
        %v4458 = vpop.permute.xlu0 %4457
        %4461 = vset.pattern.permute.xlu0 0
        %4462 = vperm.xlu0 %4461, %v3547
        %v4463 = vpop.permute.xlu0 %4462
        %4466 = vset.pattern.permute.xlu0 0
        %4467 = vperm.xlu0 %4466, %v3548
        %v4468 = vpop.permute.xlu0 %4467
        %4471 = vset.pattern.permute.xlu0 0
        %4472 = vperm.xlu0 %4471, %v3549
        %v4473 = vpop.permute.xlu0 %4472
        %4476 = vset.pattern.permute.xlu0 0
        %4477 = vperm.xlu0 %4476, %v3550
        %v4478 = vpop.permute.xlu0 %4477
        %4481 = vset.pattern.permute.xlu0 0
        %4482 = vperm.xlu0 %4481, %v3551
        %v4483 = vpop.permute.xlu0 %4482
        %4486 = vset.pattern.permute.xlu0 0
        %4487 = vperm.xlu0 %4486, %v3552
        %v4488 = vpop.permute.xlu0 %4487
        %4491 = vset.pattern.permute.xlu0 0
        %4492 = vperm.xlu0 %4491, %v3553
        %v4493 = vpop.permute.xlu0 %4492
        %4496 = vset.pattern.permute.xlu0 0
        %4497 = vperm.xlu0 %4496, %v3554
        %v4498 = vpop.permute.xlu0 %4497
        %4501 = vset.pattern.permute.xlu0 0
        %4502 = vperm.xlu0 %4501, %v3555
        %v4503 = vpop.permute.xlu0 %4502
        %4506 = vset.pattern.permute.xlu0 0
        %4507 = vperm.xlu0 %4506, %v3556
        %v4508 = vpop.permute.xlu0 %4507
        %4511 = vset.pattern.permute.xlu0 0
        %4512 = vperm.xlu0 %4511, %v3557
        %v4513 = vpop.permute.xlu0 %4512
        %4516 = vset.pattern.permute.xlu0 0
        %4517 = vperm.xlu0 %4516, %v3558
        %v4518 = vpop.permute.xlu0 %4517
        %4521 = vset.pattern.permute.xlu0 0
        %4522 = vperm.xlu0 %4521, %v3559
        %v4523 = vpop.permute.xlu0 %4522
        %4526 = vset.pattern.permute.xlu0 0
        %4527 = vperm.xlu0 %4526, %v3560
        %v4528 = vpop.permute.xlu0 %4527
        %4531 = vset.pattern.permute.xlu0 0
        %4532 = vperm.xlu0 %4531, %v3561
        %v4533 = vpop.permute.xlu0 %4532
        %4536 = vset.pattern.permute.xlu0 0
        %4537 = vperm.xlu0 %4536, %v3562
        %v4538 = vpop.permute.xlu0 %4537
        %4541 = vset.pattern.permute.xlu0 0
        %4542 = vperm.xlu0 %4541, %v3563
        %v4543 = vpop.permute.xlu0 %4542
        %4546 = vset.pattern.permute.xlu0 0
        %4547 = vperm.xlu0 %4546, %v3564
        %v4548 = vpop.permute.xlu0 %4547
        %4551 = vset.pattern.permute.xlu0 0
        %4552 = vperm.xlu0 %4551, %v3565
        %v4553 = vpop.permute.xlu0 %4552
        %4556 = vset.pattern.permute.xlu0 0
        %4557 = vperm.xlu0 %4556, %v3566
        %v4558 = vpop.permute.xlu0 %4557
        %4561 = vset.pattern.permute.xlu0 0
        %4562 = vperm.xlu0 %4561, %v3567
        %v4563 = vpop.permute.xlu0 %4562
        %4566 = vset.pattern.permute.xlu0 0
        %4567 = vperm.xlu0 %4566, %v3568
        %v4568 = vpop.permute.xlu0 %4567
        %v4570 = vlaneseq
        %v4571 = vshrl.u32 %v4570, 7
        %v4572 = vsub.s32 0, %v4571
        %v4573 = vrot.slane %v3569, %v4572
        %v4574 = vmul.f32 %v3573, %v4573
        %v4575 = vmul.f32 %v3578, %v4573
        %v4576 = vmul.f32 %v3583, %v4573
        %v4577 = vmul.f32 %v3588, %v4573
        %v4578 = vmul.f32 %v3593, %v4573
        %v4579 = vmul.f32 %v3598, %v4573
        %v4580 = vmul.f32 %v3603, %v4573
        %v4581 = vmul.f32 %v3608, %v4573
        %v4582 = vmul.f32 %v3613, %v4573
        %v4583 = vmul.f32 %v3618, %v4573
        %v4584 = vmul.f32 %v3623, %v4573
        %v4585 = vmul.f32 %v3628, %v4573
        %v4586 = vmul.f32 %v3633, %v4573
        %v4587 = vmul.f32 %v3638, %v4573
        %v4588 = vmul.f32 %v3643, %v4573
        %v4589 = vmul.f32 %v3648, %v4573
        %v4590 = vmul.f32 %v3653, %v4573
        %v4591 = vmul.f32 %v3658, %v4573
        %v4592 = vmul.f32 %v3663, %v4573
        %v4593 = vmul.f32 %v3668, %v4573
        %v4594 = vmul.f32 %v3673, %v4573
        %v4595 = vmul.f32 %v3678, %v4573
        %v4596 = vmul.f32 %v3683, %v4573
        %v4597 = vmul.f32 %v3688, %v4573
        %v4598 = vmul.f32 %v3693, %v4573
        %v4599 = vmul.f32 %v3698, %v4573
        %v4600 = vmul.f32 %v3703, %v4573
        %v4601 = vmul.f32 %v3708, %v4573
        %v4602 = vmul.f32 %v3713, %v4573
        %v4603 = vmul.f32 %v3718, %v4573
        %v4604 = vmul.f32 %v3723, %v4573
        %v4605 = vmul.f32 %v3728, %v4573
        %v4606 = vmul.f32 %v3733, %v4573
        %v4607 = vmul.f32 %v3738, %v4573
        %v4608 = vmul.f32 %v3743, %v4573
        %v4609 = vmul.f32 %v3748, %v4573
        %v4610 = vmul.f32 %v3753, %v4573
        %v4611 = vmul.f32 %v3758, %v4573
        %v4612 = vmul.f32 %v3763, %v4573
        %v4613 = vmul.f32 %v3768, %v4573
        %v4614 = vmul.f32 %v3773, %v4573
        %v4615 = vmul.f32 %v3778, %v4573
        %v4616 = vmul.f32 %v3783, %v4573
        %v4617 = vmul.f32 %v3788, %v4573
        %v4618 = vmul.f32 %v3793, %v4573
        %v4619 = vmul.f32 %v3798, %v4573
        %v4620 = vmul.f32 %v3803, %v4573
        %v4621 = vmul.f32 %v3808, %v4573
        %v4622 = vmul.f32 %v3813, %v4573
        %v4623 = vmul.f32 %v3818, %v4573
        %v4624 = vmul.f32 %v3823, %v4573
        %v4625 = vmul.f32 %v3828, %v4573
        %v4626 = vmul.f32 %v3833, %v4573
        %v4627 = vmul.f32 %v3838, %v4573
        %v4628 = vmul.f32 %v3843, %v4573
        %v4629 = vmul.f32 %v3848, %v4573
        %v4630 = vmul.f32 %v3853, %v4573
        %v4631 = vmul.f32 %v3858, %v4573
        %v4632 = vmul.f32 %v3863, %v4573
        %v4633 = vmul.f32 %v3868, %v4573
        %v4634 = vmul.f32 %v3873, %v4573
        %v4635 = vmul.f32 %v3878, %v4573
        %v4636 = vmul.f32 %v3883, %v4573
        %v4637 = vmul.f32 %v3888, %v4573
        %v4638 = vmul.f32 %v3893, %v4573
        %v4639 = vmul.f32 %v3898, %v4573
        %v4640 = vmul.f32 %v3903, %v4573
        %v4641 = vmul.f32 %v3908, %v4573
        %v4642 = vmul.f32 %v3913, %v4573
        %v4643 = vmul.f32 %v3918, %v4573
        %v4644 = vmul.f32 %v3923, %v4573
        %v4645 = vmul.f32 %v3928, %v4573
        %v4646 = vmul.f32 %v3933, %v4573
        %v4647 = vmul.f32 %v3938, %v4573
        %v4648 = vmul.f32 %v3943, %v4573
        %v4649 = vmul.f32 %v3948, %v4573
        %v4650 = vmul.f32 %v3953, %v4573
        %v4651 = vmul.f32 %v3958, %v4573
        %v4652 = vmul.f32 %v3963, %v4573
        %v4653 = vmul.f32 %v3968, %v4573
        %v4654 = vmul.f32 %v3973, %v4573
        %v4655 = vmul.f32 %v3978, %v4573
        %v4656 = vmul.f32 %v3983, %v4573
        %v4657 = vmul.f32 %v3988, %v4573
        %v4658 = vmul.f32 %v3993, %v4573
        %v4659 = vmul.f32 %v3998, %v4573
        %v4660 = vmul.f32 %v4003, %v4573
        %v4661 = vmul.f32 %v4008, %v4573
        %v4662 = vmul.f32 %v4013, %v4573
        %v4663 = vmul.f32 %v4018, %v4573
        %v4664 = vmul.f32 %v4023, %v4573
        %v4665 = vmul.f32 %v4028, %v4573
        %v4666 = vmul.f32 %v4033, %v4573
        %v4667 = vmul.f32 %v4038, %v4573
        %v4668 = vmul.f32 %v4043, %v4573
        %v4669 = vmul.f32 %v4048, %v4573
        %v4670 = vmul.f32 %v4053, %v4573
        %v4671 = vmul.f32 %v4058, %v4573
        %v4672 = vmul.f32 %v4063, %v4573
        %v4673 = vmul.f32 %v4068, %v4573
        %v4674 = vmul.f32 %v4073, %v4573
        %v4675 = vmul.f32 %v4078, %v4573
        %v4676 = vmul.f32 %v4083, %v4573
        %v4677 = vmul.f32 %v4088, %v4573
        %v4678 = vmul.f32 %v4093, %v4573
        %v4679 = vmul.f32 %v4098, %v4573
        %v4680 = vmul.f32 %v4103, %v4573
        %v4681 = vmul.f32 %v4108, %v4573
        %v4682 = vmul.f32 %v4113, %v4573
        %v4683 = vmul.f32 %v4118, %v4573
        %v4684 = vmul.f32 %v4123, %v4573
        %v4685 = vmul.f32 %v4128, %v4573
        %v4686 = vmul.f32 %v4133, %v4573
        %v4687 = vmul.f32 %v4138, %v4573
        %v4688 = vmul.f32 %v4143, %v4573
        %v4689 = vmul.f32 %v4148, %v4573
        %v4690 = vmul.f32 %v4153, %v4573
        %v4691 = vmul.f32 %v4158, %v4573
        %v4692 = vmul.f32 %v4163, %v4573
        %v4693 = vmul.f32 %v4168, %v4573
        %v4694 = vmul.f32 %v4173, %v4573
        %v4695 = vmul.f32 %v4178, %v4573
        %v4696 = vmul.f32 %v4183, %v4573
        %v4697 = vmul.f32 %v4188, %v4573
        %v4698 = vmul.f32 %v4193, %v4573
        %v4699 = vmul.f32 %v4198, %v4573
        %v4700 = vmul.f32 %v4203, %v4573
        %v4701 = vmul.f32 %v4208, %v4573
        %v4702 = vmul.f32 %v4213, %v4573
        %v4703 = vmul.f32 %v4218, %v4573
        %v4704 = vmul.f32 %v4223, %v4573
        %v4705 = vmul.f32 %v4228, %v4573
        %v4706 = vmul.f32 %v4233, %v4573
        %v4707 = vmul.f32 %v4238, %v4573
        %v4708 = vmul.f32 %v4243, %v4573
        %v4709 = vmul.f32 %v4248, %v4573
        %v4710 = vmul.f32 %v4253, %v4573
        %v4711 = vmul.f32 %v4258, %v4573
        %v4712 = vmul.f32 %v4263, %v4573
        %v4713 = vmul.f32 %v4268, %v4573
        %v4714 = vmul.f32 %v4273, %v4573
        %v4715 = vmul.f32 %v4278, %v4573
        %v4716 = vmul.f32 %v4283, %v4573
        %v4717 = vmul.f32 %v4288, %v4573
        %v4718 = vmul.f32 %v4293, %v4573
        %v4719 = vmul.f32 %v4298, %v4573
        %v4720 = vmul.f32 %v4303, %v4573
        %v4721 = vmul.f32 %v4308, %v4573
        %v4722 = vmul.f32 %v4313, %v4573
        %v4723 = vmul.f32 %v4318, %v4573
        %v4724 = vmul.f32 %v4323, %v4573
        %v4725 = vmul.f32 %v4328, %v4573
        %v4726 = vmul.f32 %v4333, %v4573
        %v4727 = vmul.f32 %v4338, %v4573
        %v4728 = vmul.f32 %v4343, %v4573
        %v4729 = vmul.f32 %v4348, %v4573
        %v4730 = vmul.f32 %v4353, %v4573
        %v4731 = vmul.f32 %v4358, %v4573
        %v4732 = vmul.f32 %v4363, %v4573
        %v4733 = vmul.f32 %v4368, %v4573
        %v4734 = vmul.f32 %v4373, %v4573
        %v4735 = vmul.f32 %v4378, %v4573
        %v4736 = vmul.f32 %v4383, %v4573
        %v4737 = vmul.f32 %v4388, %v4573
        %v4738 = vmul.f32 %v4393, %v4573
        %v4739 = vmul.f32 %v4398, %v4573
        %v4740 = vmul.f32 %v4403, %v4573
        %v4741 = vmul.f32 %v4408, %v4573
        %v4742 = vmul.f32 %v4413, %v4573
        %v4743 = vmul.f32 %v4418, %v4573
        %v4744 = vmul.f32 %v4423, %v4573
        %v4745 = vmul.f32 %v4428, %v4573
        %v4746 = vmul.f32 %v4433, %v4573
        %v4747 = vmul.f32 %v4438, %v4573
        %v4748 = vmul.f32 %v4443, %v4573
        %v4749 = vmul.f32 %v4448, %v4573
        %v4750 = vmul.f32 %v4453, %v4573
        %v4751 = vmul.f32 %v4458, %v4573
        %v4752 = vmul.f32 %v4463, %v4573
        %v4753 = vmul.f32 %v4468, %v4573
        %v4754 = vmul.f32 %v4473, %v4573
        %v4755 = vmul.f32 %v4478, %v4573
        %v4756 = vmul.f32 %v4483, %v4573
        %v4757 = vmul.f32 %v4488, %v4573
        %v4758 = vmul.f32 %v4493, %v4573
        %v4759 = vmul.f32 %v4498, %v4573
        %v4760 = vmul.f32 %v4503, %v4573
        %v4761 = vmul.f32 %v4508, %v4573
        %v4762 = vmul.f32 %v4513, %v4573
        %v4763 = vmul.f32 %v4518, %v4573
        %v4764 = vmul.f32 %v4523, %v4573
        %v4765 = vmul.f32 %v4528, %v4573
        %v4766 = vmul.f32 %v4533, %v4573
        %v4767 = vmul.f32 %v4538, %v4573
        %v4768 = vmul.f32 %v4543, %v4573
        %v4769 = vmul.f32 %v4548, %v4573
        %v4770 = vmul.f32 %v4553, %v4573
        %v4771 = vmul.f32 %v4558, %v4573
        %v4772 = vmul.f32 %v4563, %v4573
        %v4773 = vmul.f32 %v4568, %v4573
        %v4774 = vadd.f32 %v3169, %v4574
        %v4775 = vadd.f32 %v3170, %v4575
        %v4776 = vadd.f32 %v3171, %v4576
        %v4777 = vadd.f32 %v3172, %v4577
        %v4778 = vadd.f32 %v3173, %v4578
        %v4779 = vadd.f32 %v3174, %v4579
        %v4780 = vadd.f32 %v3175, %v4580
        %v4781 = vadd.f32 %v3176, %v4581
        %v4782 = vadd.f32 %v3177, %v4582
        %v4783 = vadd.f32 %v3178, %v4583
        %v4784 = vadd.f32 %v3179, %v4584
        %v4785 = vadd.f32 %v3180, %v4585
        %v4786 = vadd.f32 %v3181, %v4586
        %v4787 = vadd.f32 %v3182, %v4587
        %v4788 = vadd.f32 %v3183, %v4588
        %v4789 = vadd.f32 %v3184, %v4589
        %v4790 = vadd.f32 %v3185, %v4590
        %v4791 = vadd.f32 %v3186, %v4591
        %v4792 = vadd.f32 %v3187, %v4592
        %v4793 = vadd.f32 %v3188, %v4593
        %v4794 = vadd.f32 %v3189, %v4594
        %v4795 = vadd.f32 %v3190, %v4595
        %v4796 = vadd.f32 %v3191, %v4596
        %v4797 = vadd.f32 %v3192, %v4597
        %v4798 = vadd.f32 %v3193, %v4598
        %v4799 = vadd.f32 %v3194, %v4599
        %v4800 = vadd.f32 %v3195, %v4600
        %v4801 = vadd.f32 %v3196, %v4601
        %v4802 = vadd.f32 %v3197, %v4602
        %v4803 = vadd.f32 %v3198, %v4603
        %v4804 = vadd.f32 %v3199, %v4604
        %v4805 = vadd.f32 %v3200, %v4605
        %v4806 = vadd.f32 %v3201, %v4606
        %v4807 = vadd.f32 %v3202, %v4607
        %v4808 = vadd.f32 %v3203, %v4608
        %v4809 = vadd.f32 %v3204, %v4609
        %v4810 = vadd.f32 %v3205, %v4610
        %v4811 = vadd.f32 %v3206, %v4611
        %v4812 = vadd.f32 %v3207, %v4612
        %v4813 = vadd.f32 %v3208, %v4613
        %v4814 = vadd.f32 %v3209, %v4614
        %v4815 = vadd.f32 %v3210, %v4615
        %v4816 = vadd.f32 %v3211, %v4616
        %v4817 = vadd.f32 %v3212, %v4617
        %v4818 = vadd.f32 %v3213, %v4618
        %v4819 = vadd.f32 %v3214, %v4619
        %v4820 = vadd.f32 %v3215, %v4620
        %v4821 = vadd.f32 %v3216, %v4621
        %v4822 = vadd.f32 %v3217, %v4622
        %v4823 = vadd.f32 %v3218, %v4623
        %v4824 = vadd.f32 %v3219, %v4624
        %v4825 = vadd.f32 %v3220, %v4625
        %v4826 = vadd.f32 %v3221, %v4626
        %v4827 = vadd.f32 %v3222, %v4627
        %v4828 = vadd.f32 %v3223, %v4628
        %v4829 = vadd.f32 %v3224, %v4629
        %v4830 = vadd.f32 %v3225, %v4630
        %v4831 = vadd.f32 %v3226, %v4631
        %v4832 = vadd.f32 %v3227, %v4632
        %v4833 = vadd.f32 %v3228, %v4633
        %v4834 = vadd.f32 %v3229, %v4634
        %v4835 = vadd.f32 %v3230, %v4635
        %v4836 = vadd.f32 %v3231, %v4636
        %v4837 = vadd.f32 %v3232, %v4637
        %v4838 = vadd.f32 %v3233, %v4638
        %v4839 = vadd.f32 %v3234, %v4639
        %v4840 = vadd.f32 %v3235, %v4640
        %v4841 = vadd.f32 %v3236, %v4641
        %v4842 = vadd.f32 %v3237, %v4642
        %v4843 = vadd.f32 %v3238, %v4643
        %v4844 = vadd.f32 %v3239, %v4644
        %v4845 = vadd.f32 %v3240, %v4645
        %v4846 = vadd.f32 %v3241, %v4646
        %v4847 = vadd.f32 %v3242, %v4647
        %v4848 = vadd.f32 %v3243, %v4648
        %v4849 = vadd.f32 %v3244, %v4649
        %v4850 = vadd.f32 %v3245, %v4650
        %v4851 = vadd.f32 %v3246, %v4651
        %v4852 = vadd.f32 %v3247, %v4652
        %v4853 = vadd.f32 %v3248, %v4653
        %v4854 = vadd.f32 %v3249, %v4654
        %v4855 = vadd.f32 %v3250, %v4655
        %v4856 = vadd.f32 %v3251, %v4656
        %v4857 = vadd.f32 %v3252, %v4657
        %v4858 = vadd.f32 %v3253, %v4658
        %v4859 = vadd.f32 %v3254, %v4659
        %v4860 = vadd.f32 %v3255, %v4660
        %v4861 = vadd.f32 %v3256, %v4661
        %v4862 = vadd.f32 %v3257, %v4662
        %v4863 = vadd.f32 %v3258, %v4663
        %v4864 = vadd.f32 %v3259, %v4664
        %v4865 = vadd.f32 %v3260, %v4665
        %v4866 = vadd.f32 %v3261, %v4666
        %v4867 = vadd.f32 %v3262, %v4667
        %v4868 = vadd.f32 %v3263, %v4668
        %v4869 = vadd.f32 %v3264, %v4669
        %v4870 = vadd.f32 %v3265, %v4670
        %v4871 = vadd.f32 %v3266, %v4671
        %v4872 = vadd.f32 %v3267, %v4672
        %v4873 = vadd.f32 %v3268, %v4673
        %v4874 = vadd.f32 %v3269, %v4674
        %v4875 = vadd.f32 %v3270, %v4675
        %v4876 = vadd.f32 %v3271, %v4676
        %v4877 = vadd.f32 %v3272, %v4677
        %v4878 = vadd.f32 %v3273, %v4678
        %v4879 = vadd.f32 %v3274, %v4679
        %v4880 = vadd.f32 %v3275, %v4680
        %v4881 = vadd.f32 %v3276, %v4681
        %v4882 = vadd.f32 %v3277, %v4682
        %v4883 = vadd.f32 %v3278, %v4683
        %v4884 = vadd.f32 %v3279, %v4684
        %v4885 = vadd.f32 %v3280, %v4685
        %v4886 = vadd.f32 %v3281, %v4686
        %v4887 = vadd.f32 %v3282, %v4687
        %v4888 = vadd.f32 %v3283, %v4688
        %v4889 = vadd.f32 %v3284, %v4689
        %v4890 = vadd.f32 %v3285, %v4690
        %v4891 = vadd.f32 %v3286, %v4691
        %v4892 = vadd.f32 %v3287, %v4692
        %v4893 = vadd.f32 %v3288, %v4693
        %v4894 = vadd.f32 %v3289, %v4694
        %v4895 = vadd.f32 %v3290, %v4695
        %v4896 = vadd.f32 %v3291, %v4696
        %v4897 = vadd.f32 %v3292, %v4697
        %v4898 = vadd.f32 %v3293, %v4698
        %v4899 = vadd.f32 %v3294, %v4699
        %v4900 = vadd.f32 %v3295, %v4700
        %v4901 = vadd.f32 %v3296, %v4701
        %v4902 = vadd.f32 %v3297, %v4702
        %v4903 = vadd.f32 %v3298, %v4703
        %v4904 = vadd.f32 %v3299, %v4704
        %v4905 = vadd.f32 %v3300, %v4705
        %v4906 = vadd.f32 %v3301, %v4706
        %v4907 = vadd.f32 %v3302, %v4707
        %v4908 = vadd.f32 %v3303, %v4708
        %v4909 = vadd.f32 %v3304, %v4709
        %v4910 = vadd.f32 %v3305, %v4710
        %v4911 = vadd.f32 %v3306, %v4711
        %v4912 = vadd.f32 %v3307, %v4712
        %v4913 = vadd.f32 %v3308, %v4713
        %v4914 = vadd.f32 %v3309, %v4714
        %v4915 = vadd.f32 %v3310, %v4715
        %v4916 = vadd.f32 %v3311, %v4716
        %v4917 = vadd.f32 %v3312, %v4717
        %v4918 = vadd.f32 %v3313, %v4718
        %v4919 = vadd.f32 %v3314, %v4719
        %v4920 = vadd.f32 %v3315, %v4720
        %v4921 = vadd.f32 %v3316, %v4721
        %v4922 = vadd.f32 %v3317, %v4722
        %v4923 = vadd.f32 %v3318, %v4723
        %v4924 = vadd.f32 %v3319, %v4724
        %v4925 = vadd.f32 %v3320, %v4725
        %v4926 = vadd.f32 %v3321, %v4726
        %v4927 = vadd.f32 %v3322, %v4727
        %v4928 = vadd.f32 %v3323, %v4728
        %v4929 = vadd.f32 %v3324, %v4729
        %v4930 = vadd.f32 %v3325, %v4730
        %v4931 = vadd.f32 %v3326, %v4731
        %v4932 = vadd.f32 %v3327, %v4732
        %v4933 = vadd.f32 %v3328, %v4733
        %v4934 = vadd.f32 %v3329, %v4734
        %v4935 = vadd.f32 %v3330, %v4735
        %v4936 = vadd.f32 %v3331, %v4736
        %v4937 = vadd.f32 %v3332, %v4737
        %v4938 = vadd.f32 %v3333, %v4738
        %v4939 = vadd.f32 %v3334, %v4739
        %v4940 = vadd.f32 %v3335, %v4740
        %v4941 = vadd.f32 %v3336, %v4741
        %v4942 = vadd.f32 %v3337, %v4742
        %v4943 = vadd.f32 %v3338, %v4743
        %v4944 = vadd.f32 %v3339, %v4744
        %v4945 = vadd.f32 %v3340, %v4745
        %v4946 = vadd.f32 %v3341, %v4746
        %v4947 = vadd.f32 %v3342, %v4747
        %v4948 = vadd.f32 %v3343, %v4748
        %v4949 = vadd.f32 %v3344, %v4749
        %v4950 = vadd.f32 %v3345, %v4750
        %v4951 = vadd.f32 %v3346, %v4751
        %v4952 = vadd.f32 %v3347, %v4752
        %v4953 = vadd.f32 %v3348, %v4753
        %v4954 = vadd.f32 %v3349, %v4754
        %v4955 = vadd.f32 %v3350, %v4755
        %v4956 = vadd.f32 %v3351, %v4756
        %v4957 = vadd.f32 %v3352, %v4757
        %v4958 = vadd.f32 %v3353, %v4758
        %v4959 = vadd.f32 %v3354, %v4759
        %v4960 = vadd.f32 %v3355, %v4760
        %v4961 = vadd.f32 %v3356, %v4761
        %v4962 = vadd.f32 %v3357, %v4762
        %v4963 = vadd.f32 %v3358, %v4763
        %v4964 = vadd.f32 %v3359, %v4764
        %v4965 = vadd.f32 %v3360, %v4765
        %v4966 = vadd.f32 %v3361, %v4766
        %v4967 = vadd.f32 %v3362, %v4767
        %v4968 = vadd.f32 %v3363, %v4768
        %v4969 = vadd.f32 %v3364, %v4769
        %v4970 = vadd.f32 %v3365, %v4770
        %v4971 = vadd.f32 %v3366, %v4771
        %v4972 = vadd.f32 %v3367, %v4772
        %v4973 = vadd.f32 %v3368, %v4773
        %v4974 = vld [vmem:[#allocation9] sm:$0x1]
        %v4976 = vlaneseq
        %v4977 = vshrl.u32 %v4976, 7
        %v4978 = vsub.s32 0, %v4977
        %v4979 = vrot.slane %v4974, %v4978
        %v4981 = vadd.f32 %v4774, %v4979
        %v4982 = vadd.f32 %v4775, %v4979
        %v4983 = vadd.f32 %v4776, %v4979
        %v4984 = vadd.f32 %v4777, %v4979
        %v4985 = vadd.f32 %v4778, %v4979
        %v4986 = vadd.f32 %v4779, %v4979
        %v4987 = vadd.f32 %v4780, %v4979
        %v4988 = vadd.f32 %v4781, %v4979
        %v4989 = vadd.f32 %v4782, %v4979
        %v4990 = vadd.f32 %v4783, %v4979
        %v4991 = vadd.f32 %v4784, %v4979
        %v4992 = vadd.f32 %v4785, %v4979
        %v4993 = vadd.f32 %v4786, %v4979
        %v4994 = vadd.f32 %v4787, %v4979
        %v4995 = vadd.f32 %v4788, %v4979
        %v4996 = vadd.f32 %v4789, %v4979
        %v4997 = vadd.f32 %v4790, %v4979
        %v4998 = vadd.f32 %v4791, %v4979
        %v4999 = vadd.f32 %v4792, %v4979
        %v5000 = vadd.f32 %v4793, %v4979
        %v5001 = vadd.f32 %v4794, %v4979
        %v5002 = vadd.f32 %v4795, %v4979
        %v5003 = vadd.f32 %v4796, %v4979
        %v5004 = vadd.f32 %v4797, %v4979
        %v5005 = vadd.f32 %v4798, %v4979
        %v5006 = vadd.f32 %v4799, %v4979
        %v5007 = vadd.f32 %v4800, %v4979
        %v5008 = vadd.f32 %v4801, %v4979
        %v5009 = vadd.f32 %v4802, %v4979
        %v5010 = vadd.f32 %v4803, %v4979
        %v5011 = vadd.f32 %v4804, %v4979
        %v5012 = vadd.f32 %v4805, %v4979
        %v5013 = vadd.f32 %v4806, %v4979
        %v5014 = vadd.f32 %v4807, %v4979
        %v5015 = vadd.f32 %v4808, %v4979
        %v5016 = vadd.f32 %v4809, %v4979
        %v5017 = vadd.f32 %v4810, %v4979
        %v5018 = vadd.f32 %v4811, %v4979
        %v5019 = vadd.f32 %v4812, %v4979
        %v5020 = vadd.f32 %v4813, %v4979
        %v5021 = vadd.f32 %v4814, %v4979
        %v5022 = vadd.f32 %v4815, %v4979
        %v5023 = vadd.f32 %v4816, %v4979
        %v5024 = vadd.f32 %v4817, %v4979
        %v5025 = vadd.f32 %v4818, %v4979
        %v5026 = vadd.f32 %v4819, %v4979
        %v5027 = vadd.f32 %v4820, %v4979
        %v5028 = vadd.f32 %v4821, %v4979
        %v5029 = vadd.f32 %v4822, %v4979
        %v5030 = vadd.f32 %v4823, %v4979
        %v5031 = vadd.f32 %v4824, %v4979
        %v5032 = vadd.f32 %v4825, %v4979
        %v5033 = vadd.f32 %v4826, %v4979
        %v5034 = vadd.f32 %v4827, %v4979
        %v5035 = vadd.f32 %v4828, %v4979
        %v5036 = vadd.f32 %v4829, %v4979
        %v5037 = vadd.f32 %v4830, %v4979
        %v5038 = vadd.f32 %v4831, %v4979
        %v5039 = vadd.f32 %v4832, %v4979
        %v5040 = vadd.f32 %v4833, %v4979
        %v5041 = vadd.f32 %v4834, %v4979
        %v5042 = vadd.f32 %v4835, %v4979
        %v5043 = vadd.f32 %v4836, %v4979
        %v5044 = vadd.f32 %v4837, %v4979
        %v5045 = vadd.f32 %v4838, %v4979
        %v5046 = vadd.f32 %v4839, %v4979
        %v5047 = vadd.f32 %v4840, %v4979
        %v5048 = vadd.f32 %v4841, %v4979
        %v5049 = vadd.f32 %v4842, %v4979
        %v5050 = vadd.f32 %v4843, %v4979
        %v5051 = vadd.f32 %v4844, %v4979
        %v5052 = vadd.f32 %v4845, %v4979
        %v5053 = vadd.f32 %v4846, %v4979
        %v5054 = vadd.f32 %v4847, %v4979
        %v5055 = vadd.f32 %v4848, %v4979
        %v5056 = vadd.f32 %v4849, %v4979
        %v5057 = vadd.f32 %v4850, %v4979
        %v5058 = vadd.f32 %v4851, %v4979
        %v5059 = vadd.f32 %v4852, %v4979
        %v5060 = vadd.f32 %v4853, %v4979
        %v5061 = vadd.f32 %v4854, %v4979
        %v5062 = vadd.f32 %v4855, %v4979
        %v5063 = vadd.f32 %v4856, %v4979
        %v5064 = vadd.f32 %v4857, %v4979
        %v5065 = vadd.f32 %v4858, %v4979
        %v5066 = vadd.f32 %v4859, %v4979
        %v5067 = vadd.f32 %v4860, %v4979
        %v5068 = vadd.f32 %v4861, %v4979
        %v5069 = vadd.f32 %v4862, %v4979
        %v5070 = vadd.f32 %v4863, %v4979
        %v5071 = vadd.f32 %v4864, %v4979
        %v5072 = vadd.f32 %v4865, %v4979
        %v5073 = vadd.f32 %v4866, %v4979
        %v5074 = vadd.f32 %v4867, %v4979
        %v5075 = vadd.f32 %v4868, %v4979
        %v5076 = vadd.f32 %v4869, %v4979
        %v5077 = vadd.f32 %v4870, %v4979
        %v5078 = vadd.f32 %v4871, %v4979
        %v5079 = vadd.f32 %v4872, %v4979
        %v5080 = vadd.f32 %v4873, %v4979
        %v5081 = vadd.f32 %v4874, %v4979
        %v5082 = vadd.f32 %v4875, %v4979
        %v5083 = vadd.f32 %v4876, %v4979
        %v5084 = vadd.f32 %v4877, %v4979
        %v5085 = vadd.f32 %v4878, %v4979
        %v5086 = vadd.f32 %v4879, %v4979
        %v5087 = vadd.f32 %v4880, %v4979
        %v5088 = vadd.f32 %v4881, %v4979
        %v5089 = vadd.f32 %v4882, %v4979
        %v5090 = vadd.f32 %v4883, %v4979
        %v5091 = vadd.f32 %v4884, %v4979
        %v5092 = vadd.f32 %v4885, %v4979
        %v5093 = vadd.f32 %v4886, %v4979
        %v5094 = vadd.f32 %v4887, %v4979
        %v5095 = vadd.f32 %v4888, %v4979
        %v5096 = vadd.f32 %v4889, %v4979
        %v5097 = vadd.f32 %v4890, %v4979
        %v5098 = vadd.f32 %v4891, %v4979
        %v5099 = vadd.f32 %v4892, %v4979
        %v5100 = vadd.f32 %v4893, %v4979
        %v5101 = vadd.f32 %v4894, %v4979
        %v5102 = vadd.f32 %v4895, %v4979
        %v5103 = vadd.f32 %v4896, %v4979
        %v5104 = vadd.f32 %v4897, %v4979
        %v5105 = vadd.f32 %v4898, %v4979
        %v5106 = vadd.f32 %v4899, %v4979
        %v5107 = vadd.f32 %v4900, %v4979
        %v5108 = vadd.f32 %v4901, %v4979
        %v5109 = vadd.f32 %v4902, %v4979
        %v5110 = vadd.f32 %v4903, %v4979
        %v5111 = vadd.f32 %v4904, %v4979
        %v5112 = vadd.f32 %v4905, %v4979
        %v5113 = vadd.f32 %v4906, %v4979
        %v5114 = vadd.f32 %v4907, %v4979
        %v5115 = vadd.f32 %v4908, %v4979
        %v5116 = vadd.f32 %v4909, %v4979
        %v5117 = vadd.f32 %v4910, %v4979
        %v5118 = vadd.f32 %v4911, %v4979
        %v5119 = vadd.f32 %v4912, %v4979
        %v5120 = vadd.f32 %v4913, %v4979
        %v5121 = vadd.f32 %v4914, %v4979
        %v5122 = vadd.f32 %v4915, %v4979
        %v5123 = vadd.f32 %v4916, %v4979
        %v5124 = vadd.f32 %v4917, %v4979
        %v5125 = vadd.f32 %v4918, %v4979
        %v5126 = vadd.f32 %v4919, %v4979
        %v5127 = vadd.f32 %v4920, %v4979
        %v5128 = vadd.f32 %v4921, %v4979
        %v5129 = vadd.f32 %v4922, %v4979
        %v5130 = vadd.f32 %v4923, %v4979
        %v5131 = vadd.f32 %v4924, %v4979
        %v5132 = vadd.f32 %v4925, %v4979
        %v5133 = vadd.f32 %v4926, %v4979
        %v5134 = vadd.f32 %v4927, %v4979
        %v5135 = vadd.f32 %v4928, %v4979
        %v5136 = vadd.f32 %v4929, %v4979
        %v5137 = vadd.f32 %v4930, %v4979
        %v5138 = vadd.f32 %v4931, %v4979
        %v5139 = vadd.f32 %v4932, %v4979
        %v5140 = vadd.f32 %v4933, %v4979
        %v5141 = vadd.f32 %v4934, %v4979
        %v5142 = vadd.f32 %v4935, %v4979
        %v5143 = vadd.f32 %v4936, %v4979
        %v5144 = vadd.f32 %v4937, %v4979
        %v5145 = vadd.f32 %v4938, %v4979
        %v5146 = vadd.f32 %v4939, %v4979
        %v5147 = vadd.f32 %v4940, %v4979
        %v5148 = vadd.f32 %v4941, %v4979
        %v5149 = vadd.f32 %v4942, %v4979
        %v5150 = vadd.f32 %v4943, %v4979
        %v5151 = vadd.f32 %v4944, %v4979
        %v5152 = vadd.f32 %v4945, %v4979
        %v5153 = vadd.f32 %v4946, %v4979
        %v5154 = vadd.f32 %v4947, %v4979
        %v5155 = vadd.f32 %v4948, %v4979
        %v5156 = vadd.f32 %v4949, %v4979
        %v5157 = vadd.f32 %v4950, %v4979
        %v5158 = vadd.f32 %v4951, %v4979
        %v5159 = vadd.f32 %v4952, %v4979
        %v5160 = vadd.f32 %v4953, %v4979
        %v5161 = vadd.f32 %v4954, %v4979
        %v5162 = vadd.f32 %v4955, %v4979
        %v5163 = vadd.f32 %v4956, %v4979
        %v5164 = vadd.f32 %v4957, %v4979
        %v5165 = vadd.f32 %v4958, %v4979
        %v5166 = vadd.f32 %v4959, %v4979
        %v5167 = vadd.f32 %v4960, %v4979
        %v5168 = vadd.f32 %v4961, %v4979
        %v5169 = vadd.f32 %v4962, %v4979
        %v5170 = vadd.f32 %v4963, %v4979
        %v5171 = vadd.f32 %v4964, %v4979
        %v5172 = vadd.f32 %v4965, %v4979
        %v5173 = vadd.f32 %v4966, %v4979
        %v5174 = vadd.f32 %v4967, %v4979
        %v5175 = vadd.f32 %v4968, %v4979
        %v5176 = vadd.f32 %v4969, %v4979
        %v5177 = vadd.f32 %v4970, %v4979
        %v5178 = vadd.f32 %v4971, %v4979
        %v5179 = vadd.f32 %v4972, %v4979
        %v5180 = vadd.f32 %v4973, %v4979
        %vm5181 = vcmask 261120
        %5182 = vst.msk [vmem:[#allocation2] sm:$0xff] %vm5181, %v4981
        %5183 = vst.msk [vmem:[#allocation2 + $0x8] sm:$0xff] %vm5181, %v4982
        %5184 = vst.msk [vmem:[#allocation2 + $0x10] sm:$0xff] %vm5181, %v4983
        %5185 = vst.msk [vmem:[#allocation2 + $0x18] sm:$0xff] %vm5181, %v4984
        %5186 = vst.msk [vmem:[#allocation2 + $0x20] sm:$0xff] %vm5181, %v4985
        %5187 = vst.msk [vmem:[#allocation2 + $0x28] sm:$0xff] %vm5181, %v4986
        %5188 = vst.msk [vmem:[#allocation2 + $0x30] sm:$0xff] %vm5181, %v4987
        %5189 = vst.msk [vmem:[#allocation2 + $0x38] sm:$0xff] %vm5181, %v4988
        %5190 = vst.msk [vmem:[#allocation2 + $0x40] sm:$0xff] %vm5181, %v4989
        %5191 = vst.msk [vmem:[#allocation2 + $0x48] sm:$0xff] %vm5181, %v4990
        %5192 = vst.msk [vmem:[#allocation2 + $0x50] sm:$0xff] %vm5181, %v4991
        %5193 = vst.msk [vmem:[#allocation2 + $0x58] sm:$0xff] %vm5181, %v4992
        %5194 = vst.msk [vmem:[#allocation2 + $0x60] sm:$0xff] %vm5181, %v4993
        %5195 = vst.msk [vmem:[#allocation2 + $0x68] sm:$0xff] %vm5181, %v4994
        %5196 = vst.msk [vmem:[#allocation2 + $0x70] sm:$0xff] %vm5181, %v4995
        %5197 = vst.msk [vmem:[#allocation2 + $0x78] sm:$0xff] %vm5181, %v4996
        %5198 = vst.msk [vmem:[#allocation2 + $0x80] sm:$0xff] %vm5181, %v4997
        %5199 = vst.msk [vmem:[#allocation2 + $0x88] sm:$0xff] %vm5181, %v4998
        %5200 = vst.msk [vmem:[#allocation2 + $0x90] sm:$0xff] %vm5181, %v4999
        %5201 = vst.msk [vmem:[#allocation2 + $0x98] sm:$0xff] %vm5181, %v5000
        %5202 = vst.msk [vmem:[#allocation2 + $0xa0] sm:$0xff] %vm5181, %v5001
        %5203 = vst.msk [vmem:[#allocation2 + $0xa8] sm:$0xff] %vm5181, %v5002
        %5204 = vst.msk [vmem:[#allocation2 + $0xb0] sm:$0xff] %vm5181, %v5003
        %5205 = vst.msk [vmem:[#allocation2 + $0xb8] sm:$0xff] %vm5181, %v5004
        %5206 = vst.msk [vmem:[#allocation2 + $0xc0] sm:$0xff] %vm5181, %v5005
        %5207 = vst.msk [vmem:[#allocation2 + $0xc8] sm:$0xff] %vm5181, %v5006
        %5208 = vst.msk [vmem:[#allocation2 + $0xd0] sm:$0xff] %vm5181, %v5007
        %5209 = vst.msk [vmem:[#allocation2 + $0xd8] sm:$0xff] %vm5181, %v5008
        %5210 = vst.msk [vmem:[#allocation2 + $0xe0] sm:$0xff] %vm5181, %v5009
        %5211 = vst.msk [vmem:[#allocation2 + $0xe8] sm:$0xff] %vm5181, %v5010
        %5212 = vst.msk [vmem:[#allocation2 + $0xf0] sm:$0xff] %vm5181, %v5011
        %5213 = vst.msk [vmem:[#allocation2 + $0xf8] sm:$0xff] %vm5181, %v5012
        %5214 = vst.msk [vmem:[#allocation2 + $0x100] sm:$0xff] %vm5181, %v5013
        %5215 = vst.msk [vmem:[#allocation2 + $0x108] sm:$0xff] %vm5181, %v5014
        %5216 = vst.msk [vmem:[#allocation2 + $0x110] sm:$0xff] %vm5181, %v5015
        %5217 = vst.msk [vmem:[#allocation2 + $0x118] sm:$0xff] %vm5181, %v5016
        %5218 = vst.msk [vmem:[#allocation2 + $0x120] sm:$0xff] %vm5181, %v5017
        %5219 = vst.msk [vmem:[#allocation2 + $0x128] sm:$0xff] %vm5181, %v5018
        %5220 = vst.msk [vmem:[#allocation2 + $0x130] sm:$0xff] %vm5181, %v5019
        %5221 = vst.msk [vmem:[#allocation2 + $0x138] sm:$0xff] %vm5181, %v5020
        %5222 = vst.msk [vmem:[#allocation2 + $0x140] sm:$0xff] %vm5181, %v5021
        %5223 = vst.msk [vmem:[#allocation2 + $0x148] sm:$0xff] %vm5181, %v5022
        %5224 = vst.msk [vmem:[#allocation2 + $0x150] sm:$0xff] %vm5181, %v5023
        %5225 = vst.msk [vmem:[#allocation2 + $0x158] sm:$0xff] %vm5181, %v5024
        %5226 = vst.msk [vmem:[#allocation2 + $0x160] sm:$0xff] %vm5181, %v5025
        %5227 = vst.msk [vmem:[#allocation2 + $0x168] sm:$0xff] %vm5181, %v5026
        %5228 = vst.msk [vmem:[#allocation2 + $0x170] sm:$0xff] %vm5181, %v5027
        %5229 = vst.msk [vmem:[#allocation2 + $0x178] sm:$0xff] %vm5181, %v5028
        %5230 = vst.msk [vmem:[#allocation2 + $0x180] sm:$0xff] %vm5181, %v5029
        %5231 = vst.msk [vmem:[#allocation2 + $0x188] sm:$0xff] %vm5181, %v5030
        %5232 = vst.msk [vmem:[#allocation2 + $0x190] sm:$0xff] %vm5181, %v5031
        %5233 = vst.msk [vmem:[#allocation2 + $0x198] sm:$0xff] %vm5181, %v5032
        %5234 = vst.msk [vmem:[#allocation2 + $0x1a0] sm:$0xff] %vm5181, %v5033
        %5235 = vst.msk [vmem:[#allocation2 + $0x1a8] sm:$0xff] %vm5181, %v5034
        %5236 = vst.msk [vmem:[#allocation2 + $0x1b0] sm:$0xff] %vm5181, %v5035
        %5237 = vst.msk [vmem:[#allocation2 + $0x1b8] sm:$0xff] %vm5181, %v5036
        %5238 = vst.msk [vmem:[#allocation2 + $0x1c0] sm:$0xff] %vm5181, %v5037
        %5239 = vst.msk [vmem:[#allocation2 + $0x1c8] sm:$0xff] %vm5181, %v5038
        %5240 = vst.msk [vmem:[#allocation2 + $0x1d0] sm:$0xff] %vm5181, %v5039
        %5241 = vst.msk [vmem:[#allocation2 + $0x1d8] sm:$0xff] %vm5181, %v5040
        %5242 = vst.msk [vmem:[#allocation2 + $0x1e0] sm:$0xff] %vm5181, %v5041
        %5243 = vst.msk [vmem:[#allocation2 + $0x1e8] sm:$0xff] %vm5181, %v5042
        %5244 = vst.msk [vmem:[#allocation2 + $0x1f0] sm:$0xff] %vm5181, %v5043
        %5245 = vst.msk [vmem:[#allocation2 + $0x1f8] sm:$0xff] %vm5181, %v5044
        %5246 = vst.msk [vmem:[#allocation2 + $0x200] sm:$0xff] %vm5181, %v5045
        %5247 = vst.msk [vmem:[#allocation2 + $0x208] sm:$0xff] %vm5181, %v5046
        %5248 = vst.msk [vmem:[#allocation2 + $0x210] sm:$0xff] %vm5181, %v5047
        %5249 = vst.msk [vmem:[#allocation2 + $0x218] sm:$0xff] %vm5181, %v5048
        %5250 = vst.msk [vmem:[#allocation2 + $0x220] sm:$0xff] %vm5181, %v5049
        %5251 = vst.msk [vmem:[#allocation2 + $0x228] sm:$0xff] %vm5181, %v5050
        %5252 = vst.msk [vmem:[#allocation2 + $0x230] sm:$0xff] %vm5181, %v5051
        %5253 = vst.msk [vmem:[#allocation2 + $0x238] sm:$0xff] %vm5181, %v5052
        %5254 = vst.msk [vmem:[#allocation2 + $0x240] sm:$0xff] %vm5181, %v5053
        %5255 = vst.msk [vmem:[#allocation2 + $0x248] sm:$0xff] %vm5181, %v5054
        %5256 = vst.msk [vmem:[#allocation2 + $0x250] sm:$0xff] %vm5181, %v5055
        %5257 = vst.msk [vmem:[#allocation2 + $0x258] sm:$0xff] %vm5181, %v5056
        %5258 = vst.msk [vmem:[#allocation2 + $0x260] sm:$0xff] %vm5181, %v5057
        %5259 = vst.msk [vmem:[#allocation2 + $0x268] sm:$0xff] %vm5181, %v5058
        %5260 = vst.msk [vmem:[#allocation2 + $0x270] sm:$0xff] %vm5181, %v5059
        %5261 = vst.msk [vmem:[#allocation2 + $0x278] sm:$0xff] %vm5181, %v5060
        %5262 = vst.msk [vmem:[#allocation2 + $0x280] sm:$0xff] %vm5181, %v5061
        %5263 = vst.msk [vmem:[#allocation2 + $0x288] sm:$0xff] %vm5181, %v5062
        %5264 = vst.msk [vmem:[#allocation2 + $0x290] sm:$0xff] %vm5181, %v5063
        %5265 = vst.msk [vmem:[#allocation2 + $0x298] sm:$0xff] %vm5181, %v5064
        %5266 = vst.msk [vmem:[#allocation2 + $0x2a0] sm:$0xff] %vm5181, %v5065
        %5267 = vst.msk [vmem:[#allocation2 + $0x2a8] sm:$0xff] %vm5181, %v5066
        %5268 = vst.msk [vmem:[#allocation2 + $0x2b0] sm:$0xff] %vm5181, %v5067
        %5269 = vst.msk [vmem:[#allocation2 + $0x2b8] sm:$0xff] %vm5181, %v5068
        %5270 = vst.msk [vmem:[#allocation2 + $0x2c0] sm:$0xff] %vm5181, %v5069
        %5271 = vst.msk [vmem:[#allocation2 + $0x2c8] sm:$0xff] %vm5181, %v5070
        %5272 = vst.msk [vmem:[#allocation2 + $0x2d0] sm:$0xff] %vm5181, %v5071
        %5273 = vst.msk [vmem:[#allocation2 + $0x2d8] sm:$0xff] %vm5181, %v5072
        %5274 = vst.msk [vmem:[#allocation2 + $0x2e0] sm:$0xff] %vm5181, %v5073
        %5275 = vst.msk [vmem:[#allocation2 + $0x2e8] sm:$0xff] %vm5181, %v5074
        %5276 = vst.msk [vmem:[#allocation2 + $0x2f0] sm:$0xff] %vm5181, %v5075
        %5277 = vst.msk [vmem:[#allocation2 + $0x2f8] sm:$0xff] %vm5181, %v5076
        %5278 = vst.msk [vmem:[#allocation2 + $0x300] sm:$0xff] %vm5181, %v5077
        %5279 = vst.msk [vmem:[#allocation2 + $0x308] sm:$0xff] %vm5181, %v5078
        %5280 = vst.msk [vmem:[#allocation2 + $0x310] sm:$0xff] %vm5181, %v5079
        %5281 = vst.msk [vmem:[#allocation2 + $0x318] sm:$0xff] %vm5181, %v5080
        %5282 = vst.msk [vmem:[#allocation2 + $0x320] sm:$0xff] %vm5181, %v5081
        %5283 = vst.msk [vmem:[#allocation2 + $0x328] sm:$0xff] %vm5181, %v5082
        %5284 = vst.msk [vmem:[#allocation2 + $0x330] sm:$0xff] %vm5181, %v5083
        %5285 = vst.msk [vmem:[#allocation2 + $0x338] sm:$0xff] %vm5181, %v5084
        %5286 = vst.msk [vmem:[#allocation2 + $0x340] sm:$0xff] %vm5181, %v5085
        %5287 = vst.msk [vmem:[#allocation2 + $0x348] sm:$0xff] %vm5181, %v5086
        %5288 = vst.msk [vmem:[#allocation2 + $0x350] sm:$0xff] %vm5181, %v5087
        %5289 = vst.msk [vmem:[#allocation2 + $0x358] sm:$0xff] %vm5181, %v5088
        %5290 = vst.msk [vmem:[#allocation2 + $0x360] sm:$0xff] %vm5181, %v5089
        %5291 = vst.msk [vmem:[#allocation2 + $0x368] sm:$0xff] %vm5181, %v5090
        %5292 = vst.msk [vmem:[#allocation2 + $0x370] sm:$0xff] %vm5181, %v5091
        %5293 = vst.msk [vmem:[#allocation2 + $0x378] sm:$0xff] %vm5181, %v5092
        %5294 = vst.msk [vmem:[#allocation2 + $0x380] sm:$0xff] %vm5181, %v5093
        %5295 = vst.msk [vmem:[#allocation2 + $0x388] sm:$0xff] %vm5181, %v5094
        %5296 = vst.msk [vmem:[#allocation2 + $0x390] sm:$0xff] %vm5181, %v5095
        %5297 = vst.msk [vmem:[#allocation2 + $0x398] sm:$0xff] %vm5181, %v5096
        %5298 = vst.msk [vmem:[#allocation2 + $0x3a0] sm:$0xff] %vm5181, %v5097
        %5299 = vst.msk [vmem:[#allocation2 + $0x3a8] sm:$0xff] %vm5181, %v5098
        %5300 = vst.msk [vmem:[#allocation2 + $0x3b0] sm:$0xff] %vm5181, %v5099
        %5301 = vst.msk [vmem:[#allocation2 + $0x3b8] sm:$0xff] %vm5181, %v5100
        %5302 = vst.msk [vmem:[#allocation2 + $0x3c0] sm:$0xff] %vm5181, %v5101
        %5303 = vst.msk [vmem:[#allocation2 + $0x3c8] sm:$0xff] %vm5181, %v5102
        %5304 = vst.msk [vmem:[#allocation2 + $0x3d0] sm:$0xff] %vm5181, %v5103
        %5305 = vst.msk [vmem:[#allocation2 + $0x3d8] sm:$0xff] %vm5181, %v5104
        %5306 = vst.msk [vmem:[#allocation2 + $0x3e0] sm:$0xff] %vm5181, %v5105
        %5307 = vst.msk [vmem:[#allocation2 + $0x3e8] sm:$0xff] %vm5181, %v5106
        %5308 = vst.msk [vmem:[#allocation2 + $0x3f0] sm:$0xff] %vm5181, %v5107
        %5309 = vst.msk [vmem:[#allocation2 + $0x3f8] sm:$0xff] %vm5181, %v5108
        %5310 = vst.msk [vmem:[#allocation2 + $0x400] sm:$0xff] %vm5181, %v5109
        %5311 = vst.msk [vmem:[#allocation2 + $0x408] sm:$0xff] %vm5181, %v5110
        %5312 = vst.msk [vmem:[#allocation2 + $0x410] sm:$0xff] %vm5181, %v5111
        %5313 = vst.msk [vmem:[#allocation2 + $0x418] sm:$0xff] %vm5181, %v5112
        %5314 = vst.msk [vmem:[#allocation2 + $0x420] sm:$0xff] %vm5181, %v5113
        %5315 = vst.msk [vmem:[#allocation2 + $0x428] sm:$0xff] %vm5181, %v5114
        %5316 = vst.msk [vmem:[#allocation2 + $0x430] sm:$0xff] %vm5181, %v5115
        %5317 = vst.msk [vmem:[#allocation2 + $0x438] sm:$0xff] %vm5181, %v5116
        %5318 = vst.msk [vmem:[#allocation2 + $0x440] sm:$0xff] %vm5181, %v5117
        %5319 = vst.msk [vmem:[#allocation2 + $0x448] sm:$0xff] %vm5181, %v5118
        %5320 = vst.msk [vmem:[#allocation2 + $0x450] sm:$0xff] %vm5181, %v5119
        %5321 = vst.msk [vmem:[#allocation2 + $0x458] sm:$0xff] %vm5181, %v5120
        %5322 = vst.msk [vmem:[#allocation2 + $0x460] sm:$0xff] %vm5181, %v5121
        %5323 = vst.msk [vmem:[#allocation2 + $0x468] sm:$0xff] %vm5181, %v5122
        %5324 = vst.msk [vmem:[#allocation2 + $0x470] sm:$0xff] %vm5181, %v5123
        %5325 = vst.msk [vmem:[#allocation2 + $0x478] sm:$0xff] %vm5181, %v5124
        %5326 = vst.msk [vmem:[#allocation2 + $0x480] sm:$0xff] %vm5181, %v5125
        %5327 = vst.msk [vmem:[#allocation2 + $0x488] sm:$0xff] %vm5181, %v5126
        %5328 = vst.msk [vmem:[#allocation2 + $0x490] sm:$0xff] %vm5181, %v5127
        %5329 = vst.msk [vmem:[#allocation2 + $0x498] sm:$0xff] %vm5181, %v5128
        %5330 = vst.msk [vmem:[#allocation2 + $0x4a0] sm:$0xff] %vm5181, %v5129
        %5331 = vst.msk [vmem:[#allocation2 + $0x4a8] sm:$0xff] %vm5181, %v5130
        %5332 = vst.msk [vmem:[#allocation2 + $0x4b0] sm:$0xff] %vm5181, %v5131
        %5333 = vst.msk [vmem:[#allocation2 + $0x4b8] sm:$0xff] %vm5181, %v5132
        %5334 = vst.msk [vmem:[#allocation2 + $0x4c0] sm:$0xff] %vm5181, %v5133
        %5335 = vst.msk [vmem:[#allocation2 + $0x4c8] sm:$0xff] %vm5181, %v5134
        %5336 = vst.msk [vmem:[#allocation2 + $0x4d0] sm:$0xff] %vm5181, %v5135
        %5337 = vst.msk [vmem:[#allocation2 + $0x4d8] sm:$0xff] %vm5181, %v5136
        %5338 = vst.msk [vmem:[#allocation2 + $0x4e0] sm:$0xff] %vm5181, %v5137
        %5339 = vst.msk [vmem:[#allocation2 + $0x4e8] sm:$0xff] %vm5181, %v5138
        %5340 = vst.msk [vmem:[#allocation2 + $0x4f0] sm:$0xff] %vm5181, %v5139
        %5341 = vst.msk [vmem:[#allocation2 + $0x4f8] sm:$0xff] %vm5181, %v5140
        %5342 = vst.msk [vmem:[#allocation2 + $0x500] sm:$0xff] %vm5181, %v5141
        %5343 = vst.msk [vmem:[#allocation2 + $0x508] sm:$0xff] %vm5181, %v5142
        %5344 = vst.msk [vmem:[#allocation2 + $0x510] sm:$0xff] %vm5181, %v5143
        %5345 = vst.msk [vmem:[#allocation2 + $0x518] sm:$0xff] %vm5181, %v5144
        %5346 = vst.msk [vmem:[#allocation2 + $0x520] sm:$0xff] %vm5181, %v5145
        %5347 = vst.msk [vmem:[#allocation2 + $0x528] sm:$0xff] %vm5181, %v5146
        %5348 = vst.msk [vmem:[#allocation2 + $0x530] sm:$0xff] %vm5181, %v5147
        %5349 = vst.msk [vmem:[#allocation2 + $0x538] sm:$0xff] %vm5181, %v5148
        %5350 = vst.msk [vmem:[#allocation2 + $0x540] sm:$0xff] %vm5181, %v5149
        %5351 = vst.msk [vmem:[#allocation2 + $0x548] sm:$0xff] %vm5181, %v5150
        %5352 = vst.msk [vmem:[#allocation2 + $0x550] sm:$0xff] %vm5181, %v5151
        %5353 = vst.msk [vmem:[#allocation2 + $0x558] sm:$0xff] %vm5181, %v5152
        %5354 = vst.msk [vmem:[#allocation2 + $0x560] sm:$0xff] %vm5181, %v5153
        %5355 = vst.msk [vmem:[#allocation2 + $0x568] sm:$0xff] %vm5181, %v5154
        %5356 = vst.msk [vmem:[#allocation2 + $0x570] sm:$0xff] %vm5181, %v5155
        %5357 = vst.msk [vmem:[#allocation2 + $0x578] sm:$0xff] %vm5181, %v5156
        %5358 = vst.msk [vmem:[#allocation2 + $0x580] sm:$0xff] %vm5181, %v5157
        %5359 = vst.msk [vmem:[#allocation2 + $0x588] sm:$0xff] %vm5181, %v5158
        %5360 = vst.msk [vmem:[#allocation2 + $0x590] sm:$0xff] %vm5181, %v5159
        %5361 = vst.msk [vmem:[#allocation2 + $0x598] sm:$0xff] %vm5181, %v5160
        %5362 = vst.msk [vmem:[#allocation2 + $0x5a0] sm:$0xff] %vm5181, %v5161
        %5363 = vst.msk [vmem:[#allocation2 + $0x5a8] sm:$0xff] %vm5181, %v5162
        %5364 = vst.msk [vmem:[#allocation2 + $0x5b0] sm:$0xff] %vm5181, %v5163
        %5365 = vst.msk [vmem:[#allocation2 + $0x5b8] sm:$0xff] %vm5181, %v5164
        %5366 = vst.msk [vmem:[#allocation2 + $0x5c0] sm:$0xff] %vm5181, %v5165
        %5367 = vst.msk [vmem:[#allocation2 + $0x5c8] sm:$0xff] %vm5181, %v5166
        %5368 = vst.msk [vmem:[#allocation2 + $0x5d0] sm:$0xff] %vm5181, %v5167
        %5369 = vst.msk [vmem:[#allocation2 + $0x5d8] sm:$0xff] %vm5181, %v5168
        %5370 = vst.msk [vmem:[#allocation2 + $0x5e0] sm:$0xff] %vm5181, %v5169
        %5371 = vst.msk [vmem:[#allocation2 + $0x5e8] sm:$0xff] %vm5181, %v5170
        %5372 = vst.msk [vmem:[#allocation2 + $0x5f0] sm:$0xff] %vm5181, %v5171
        %5373 = vst.msk [vmem:[#allocation2 + $0x5f8] sm:$0xff] %vm5181, %v5172
        %5374 = vst.msk [vmem:[#allocation2 + $0x600] sm:$0xff] %vm5181, %v5173
        %5375 = vst.msk [vmem:[#allocation2 + $0x608] sm:$0xff] %vm5181, %v5174
        %5376 = vst.msk [vmem:[#allocation2 + $0x610] sm:$0xff] %vm5181, %v5175
        %5377 = vst.msk [vmem:[#allocation2 + $0x618] sm:$0xff] %vm5181, %v5176
        %5378 = vst.msk [vmem:[#allocation2 + $0x620] sm:$0xff] %vm5181, %v5177
        %5379 = vst.msk [vmem:[#allocation2 + $0x628] sm:$0xff] %vm5181, %v5178
        %5380 = vst.msk [vmem:[#allocation2 + $0x630] sm:$0xff] %vm5181, %v5179
        %vm5381 = vcmask 259072
        %5382 = vst.msk [vmem:[#allocation2 + $0x638] sm:$0x3f] %vm5381, %v5180
        %v5383 = vld [vmem:[#allocation2] ss:$3 sm:$0xff]
        %s5384 = scalar_lea.vmem [#allocation2], 24
        %v5385 = vld [vmem:[%s5384] ss:$3 sm:$0xff]
        %s5386 = scalar_lea.vmem [#allocation2], 48
        %v5387 = vld [vmem:[%s5386] ss:$3 sm:$0xff]
        %s5388 = scalar_lea.vmem [#allocation2], 72
        %v5389 = vld [vmem:[%s5388] ss:$3 sm:$0xff]
        %s5390 = scalar_lea.vmem [#allocation2], 96
        %v5391 = vld [vmem:[%s5390] ss:$3 sm:$0xff]
        %s5392 = scalar_lea.vmem [#allocation2], 120
        %v5393 = vld [vmem:[%s5392] ss:$3 sm:$0xff]
        %s5394 = scalar_lea.vmem [#allocation2], 144
        %v5395 = vld [vmem:[%s5394] ss:$3 sm:$0xff]
        %s5396 = scalar_lea.vmem [#allocation2], 168
        %v5397 = vld [vmem:[%s5396] ss:$3 sm:$0xff]
        %s5398 = scalar_lea.vmem [#allocation2], 192
        %v5399 = vld [vmem:[%s5398] ss:$3 sm:$0xff]
        %s5400 = scalar_lea.vmem [#allocation2], 216
        %v5401 = vld [vmem:[%s5400] ss:$3 sm:$0xff]
        %s5402 = scalar_lea.vmem [#allocation2], 240
        %v5403 = vld [vmem:[%s5402] ss:$3 sm:$0xff]
        %s5404 = scalar_lea.vmem [#allocation2], 264
        %v5405 = vld [vmem:[%s5404] ss:$3 sm:$0xff]
        %s5406 = scalar_lea.vmem [#allocation2], 288
        %v5407 = vld [vmem:[%s5406] ss:$3 sm:$0xff]
        %s5408 = scalar_lea.vmem [#allocation2], 312
        %v5409 = vld [vmem:[%s5408] ss:$3 sm:$0xff]
        %s5410 = scalar_lea.vmem [#allocation2], 336
        %v5411 = vld [vmem:[%s5410] ss:$3 sm:$0xff]
        %s5412 = scalar_lea.vmem [#allocation2], 360
        %v5413 = vld [vmem:[%s5412] ss:$3 sm:$0xff]
        %s5414 = scalar_lea.vmem [#allocation2], 384
        %v5415 = vld [vmem:[%s5414] ss:$3 sm:$0xff]
        %s5416 = scalar_lea.vmem [#allocation2], 408
        %v5417 = vld [vmem:[%s5416] ss:$3 sm:$0xff]
        %s5418 = scalar_lea.vmem [#allocation2], 432
        %v5419 = vld [vmem:[%s5418] ss:$3 sm:$0xff]
        %s5420 = scalar_lea.vmem [#allocation2], 456
        %v5421 = vld [vmem:[%s5420] ss:$3 sm:$0xff]
        %s5422 = scalar_lea.vmem [#allocation2], 480
        %v5423 = vld [vmem:[%s5422] ss:$3 sm:$0xff]
        %s5424 = scalar_lea.vmem [#allocation2], 504
        %v5425 = vld [vmem:[%s5424] ss:$3 sm:$0xff]
        %s5426 = scalar_lea.vmem [#allocation2], 528
        %v5427 = vld [vmem:[%s5426] ss:$3 sm:$0xff]
        %s5428 = scalar_lea.vmem [#allocation2], 552
        %v5429 = vld [vmem:[%s5428] ss:$3 sm:$0xff]
        %s5430 = scalar_lea.vmem [#allocation2], 576
        %v5431 = vld [vmem:[%s5430] ss:$3 sm:$0xff]
        %s5432 = scalar_lea.vmem [#allocation2], 600
        %v5433 = vld [vmem:[%s5432] ss:$3 sm:$0xff]
        %s5434 = scalar_lea.vmem [#allocation2], 624
        %v5435 = vld [vmem:[%s5434] ss:$3 sm:$0xff]
        %s5436 = scalar_lea.vmem [#allocation2], 648
        %v5437 = vld [vmem:[%s5436] ss:$3 sm:$0xff]
        %s5438 = scalar_lea.vmem [#allocation2], 672
        %v5439 = vld [vmem:[%s5438] ss:$3 sm:$0xff]
        %s5440 = scalar_lea.vmem [#allocation2], 696
        %v5441 = vld [vmem:[%s5440] ss:$3 sm:$0xff]
        %s5442 = scalar_lea.vmem [#allocation2], 720
        %v5443 = vld [vmem:[%s5442] ss:$3 sm:$0xff]
        %s5444 = scalar_lea.vmem [#allocation2], 744
        %v5445 = vld [vmem:[%s5444] ss:$3 sm:$0xff]
        %s5446 = scalar_lea.vmem [#allocation2], 768
        %v5447 = vld [vmem:[%s5446] ss:$3 sm:$0xff]
        %s5448 = scalar_lea.vmem [#allocation2], 792
        %v5449 = vld [vmem:[%s5448] ss:$3 sm:$0xff]
        %s5450 = scalar_lea.vmem [#allocation2], 816
        %v5451 = vld [vmem:[%s5450] ss:$3 sm:$0xff]
        %s5452 = scalar_lea.vmem [#allocation2], 840
        %v5453 = vld [vmem:[%s5452] ss:$3 sm:$0xff]
        %s5454 = scalar_lea.vmem [#allocation2], 864
        %v5455 = vld [vmem:[%s5454] ss:$3 sm:$0xff]
        %s5456 = scalar_lea.vmem [#allocation2], 888
        %v5457 = vld [vmem:[%s5456] ss:$3 sm:$0xff]
        %s5458 = scalar_lea.vmem [#allocation2], 912
        %v5459 = vld [vmem:[%s5458] ss:$3 sm:$0xff]
        %s5460 = scalar_lea.vmem [#allocation2], 936
        %v5461 = vld [vmem:[%s5460] ss:$3 sm:$0xff]
        %s5462 = scalar_lea.vmem [#allocation2], 960
        %v5463 = vld [vmem:[%s5462] ss:$3 sm:$0xff]
        %s5464 = scalar_lea.vmem [#allocation2], 984
        %v5465 = vld [vmem:[%s5464] ss:$3 sm:$0xff]
        %s5466 = scalar_lea.vmem [#allocation2], 1008
        %v5467 = vld [vmem:[%s5466] ss:$3 sm:$0xff]
        %s5468 = scalar_lea.vmem [#allocation2], 1032
        %v5469 = vld [vmem:[%s5468] ss:$3 sm:$0xff]
        %s5470 = scalar_lea.vmem [#allocation2], 1056
        %v5471 = vld [vmem:[%s5470] ss:$3 sm:$0xff]
        %s5472 = scalar_lea.vmem [#allocation2], 1080
        %v5473 = vld [vmem:[%s5472] ss:$3 sm:$0xff]
        %s5474 = scalar_lea.vmem [#allocation2], 1104
        %v5475 = vld [vmem:[%s5474] ss:$3 sm:$0xff]
        %s5476 = scalar_lea.vmem [#allocation2], 1128
        %v5477 = vld [vmem:[%s5476] ss:$3 sm:$0xff]
        %s5478 = scalar_lea.vmem [#allocation2], 1152
        %v5479 = vld [vmem:[%s5478] ss:$3 sm:$0xff]
        %s5480 = scalar_lea.vmem [#allocation2], 1176
        %v5481 = vld [vmem:[%s5480] ss:$3 sm:$0xff]
        %s5482 = scalar_lea.vmem [#allocation2], 1200
        %v5483 = vld [vmem:[%s5482] ss:$3 sm:$0xff]
        %s5484 = scalar_lea.vmem [#allocation2], 1224
        %v5485 = vld [vmem:[%s5484] ss:$3 sm:$0xff]
        %s5486 = scalar_lea.vmem [#allocation2], 1248
        %v5487 = vld [vmem:[%s5486] ss:$3 sm:$0xff]
        %s5488 = scalar_lea.vmem [#allocation2], 1272
        %v5489 = vld [vmem:[%s5488] ss:$3 sm:$0xff]
        %s5490 = scalar_lea.vmem [#allocation2], 1296
        %v5491 = vld [vmem:[%s5490] ss:$3 sm:$0xff]
        %s5492 = scalar_lea.vmem [#allocation2], 1320
        %v5493 = vld [vmem:[%s5492] ss:$3 sm:$0xff]
        %s5494 = scalar_lea.vmem [#allocation2], 1344
        %v5495 = vld [vmem:[%s5494] ss:$3 sm:$0xff]
        %s5496 = scalar_lea.vmem [#allocation2], 1368
        %v5497 = vld [vmem:[%s5496] ss:$3 sm:$0xff]
        %s5498 = scalar_lea.vmem [#allocation2], 1392
        %v5499 = vld [vmem:[%s5498] ss:$3 sm:$0xff]
        %s5500 = scalar_lea.vmem [#allocation2], 1416
        %v5501 = vld [vmem:[%s5500] ss:$3 sm:$0xff]
        %s5502 = scalar_lea.vmem [#allocation2], 1440
        %v5503 = vld [vmem:[%s5502] ss:$3 sm:$0xff]
        %s5504 = scalar_lea.vmem [#allocation2], 1464
        %v5505 = vld [vmem:[%s5504] ss:$3 sm:$0xff]
        %s5506 = scalar_lea.vmem [#allocation2], 1488
        %v5507 = vld [vmem:[%s5506] ss:$3 sm:$0xff]
        %s5508 = scalar_lea.vmem [#allocation2], 1512
        %v5509 = vld [vmem:[%s5508] ss:$3 sm:$0xff]
        %s5510 = scalar_lea.vmem [#allocation2], 1536
        %v5511 = vld [vmem:[%s5510] ss:$3 sm:$0xff]
        %s5512 = scalar_lea.vmem [#allocation2], 1560
        %v5513 = vld [vmem:[%s5512] ss:$3 sm:$0xff]
        %s5514 = scalar_lea.vmem [#allocation2], 1584
        %v5515 = vld [vmem:[%s5514] ss:$3 sm:$0xf]
        %s5516 = scalar_lea.vmem [#allocation2], 1
        %v5517 = vld [vmem:[%s5516] ss:$3 sm:$0xff]
        %s5518 = scalar_lea.vmem [#allocation2], 25
        %v5519 = vld [vmem:[%s5518] ss:$3 sm:$0xff]
        %s5520 = scalar_lea.vmem [#allocation2], 49
        %v5521 = vld [vmem:[%s5520] ss:$3 sm:$0xff]
        %s5522 = scalar_lea.vmem [#allocation2], 73
        %v5523 = vld [vmem:[%s5522] ss:$3 sm:$0xff]
        %s5524 = scalar_lea.vmem [#allocation2], 97
        %v5525 = vld [vmem:[%s5524] ss:$3 sm:$0xff]
        %s5526 = scalar_lea.vmem [#allocation2], 121
        %v5527 = vld [vmem:[%s5526] ss:$3 sm:$0xff]
        %s5528 = scalar_lea.vmem [#allocation2], 145
        %v5529 = vld [vmem:[%s5528] ss:$3 sm:$0xff]
        %s5530 = scalar_lea.vmem [#allocation2], 169
        %v5531 = vld [vmem:[%s5530] ss:$3 sm:$0xff]
        %s5532 = scalar_lea.vmem [#allocation2], 193
        %v5533 = vld [vmem:[%s5532] ss:$3 sm:$0xff]
        %s5534 = scalar_lea.vmem [#allocation2], 217
        %v5535 = vld [vmem:[%s5534] ss:$3 sm:$0xff]
        %s5536 = scalar_lea.vmem [#allocation2], 241
        %v5537 = vld [vmem:[%s5536] ss:$3 sm:$0xff]
        %s5538 = scalar_lea.vmem [#allocation2], 265
        %v5539 = vld [vmem:[%s5538] ss:$3 sm:$0xff]
        %s5540 = scalar_lea.vmem [#allocation2], 289
        %v5541 = vld [vmem:[%s5540] ss:$3 sm:$0xff]
        %s5542 = scalar_lea.vmem [#allocation2], 313
        %v5543 = vld [vmem:[%s5542] ss:$3 sm:$0xff]
        %s5544 = scalar_lea.vmem [#allocation2], 337
        %v5545 = vld [vmem:[%s5544] ss:$3 sm:$0xff]
        %s5546 = scalar_lea.vmem [#allocation2], 361
        %v5547 = vld [vmem:[%s5546] ss:$3 sm:$0xff]
        %s5548 = scalar_lea.vmem [#allocation2], 385
        %v5549 = vld [vmem:[%s5548] ss:$3 sm:$0xff]
        %s5550 = scalar_lea.vmem [#allocation2], 409
        %v5551 = vld [vmem:[%s5550] ss:$3 sm:$0xff]
        %s5552 = scalar_lea.vmem [#allocation2], 433
        %v5553 = vld [vmem:[%s5552] ss:$3 sm:$0xff]
        %s5554 = scalar_lea.vmem [#allocation2], 457
        %v5555 = vld [vmem:[%s5554] ss:$3 sm:$0xff]
        %s5556 = scalar_lea.vmem [#allocation2], 481
        %v5557 = vld [vmem:[%s5556] ss:$3 sm:$0xff]
        %s5558 = scalar_lea.vmem [#allocation2], 505
        %v5559 = vld [vmem:[%s5558] ss:$3 sm:$0xff]
        %s5560 = scalar_lea.vmem [#allocation2], 529
        %v5561 = vld [vmem:[%s5560] ss:$3 sm:$0xff]
        %s5562 = scalar_lea.vmem [#allocation2], 553
        %v5563 = vld [vmem:[%s5562] ss:$3 sm:$0xff]
        %s5564 = scalar_lea.vmem [#allocation2], 577
        %v5565 = vld [vmem:[%s5564] ss:$3 sm:$0xff]
        %s5566 = scalar_lea.vmem [#allocation2], 601
        %v5567 = vld [vmem:[%s5566] ss:$3 sm:$0xff]
        %s5568 = scalar_lea.vmem [#allocation2], 625
        %v5569 = vld [vmem:[%s5568] ss:$3 sm:$0xff]
        %s5570 = scalar_lea.vmem [#allocation2], 649
        %v5571 = vld [vmem:[%s5570] ss:$3 sm:$0xff]
        %s5572 = scalar_lea.vmem [#allocation2], 673
        %v5573 = vld [vmem:[%s5572] ss:$3 sm:$0xff]
        %s5574 = scalar_lea.vmem [#allocation2], 697
        %v5575 = vld [vmem:[%s5574] ss:$3 sm:$0xff]
        %s5576 = scalar_lea.vmem [#allocation2], 721
        %v5577 = vld [vmem:[%s5576] ss:$3 sm:$0xff]
        %s5578 = scalar_lea.vmem [#allocation2], 745
        %v5579 = vld [vmem:[%s5578] ss:$3 sm:$0xff]
        %s5580 = scalar_lea.vmem [#allocation2], 769
        %v5581 = vld [vmem:[%s5580] ss:$3 sm:$0xff]
        %s5582 = scalar_lea.vmem [#allocation2], 793
        %v5583 = vld [vmem:[%s5582] ss:$3 sm:$0xff]
        %s5584 = scalar_lea.vmem [#allocation2], 817
        %v5585 = vld [vmem:[%s5584] ss:$3 sm:$0xff]
        %s5586 = scalar_lea.vmem [#allocation2], 841
        %v5587 = vld [vmem:[%s5586] ss:$3 sm:$0xff]
        %s5588 = scalar_lea.vmem [#allocation2], 865
        %v5589 = vld [vmem:[%s5588] ss:$3 sm:$0xff]
        %s5590 = scalar_lea.vmem [#allocation2], 889
        %v5591 = vld [vmem:[%s5590] ss:$3 sm:$0xff]
        %s5592 = scalar_lea.vmem [#allocation2], 913
        %v5593 = vld [vmem:[%s5592] ss:$3 sm:$0xff]
        %s5594 = scalar_lea.vmem [#allocation2], 937
        %v5595 = vld [vmem:[%s5594] ss:$3 sm:$0xff]
        %s5596 = scalar_lea.vmem [#allocation2], 961
        %v5597 = vld [vmem:[%s5596] ss:$3 sm:$0xff]
        %s5598 = scalar_lea.vmem [#allocation2], 985
        %v5599 = vld [vmem:[%s5598] ss:$3 sm:$0xff]
        %s5600 = scalar_lea.vmem [#allocation2], 1009
        %v5601 = vld [vmem:[%s5600] ss:$3 sm:$0xff]
        %s5602 = scalar_lea.vmem [#allocation2], 1033
        %v5603 = vld [vmem:[%s5602] ss:$3 sm:$0xff]
        %s5604 = scalar_lea.vmem [#allocation2], 1057
        %v5605 = vld [vmem:[%s5604] ss:$3 sm:$0xff]
        %s5606 = scalar_lea.vmem [#allocation2], 1081
        %v5607 = vld [vmem:[%s5606] ss:$3 sm:$0xff]
        %s5608 = scalar_lea.vmem [#allocation2], 1105
        %v5609 = vld [vmem:[%s5608] ss:$3 sm:$0xff]
        %s5610 = scalar_lea.vmem [#allocation2], 1129
        %v5611 = vld [vmem:[%s5610] ss:$3 sm:$0xff]
        %s5612 = scalar_lea.vmem [#allocation2], 1153
        %v5613 = vld [vmem:[%s5612] ss:$3 sm:$0xff]
        %s5614 = scalar_lea.vmem [#allocation2], 1177
        %v5615 = vld [vmem:[%s5614] ss:$3 sm:$0xff]
        %s5616 = scalar_lea.vmem [#allocation2], 1201
        %v5617 = vld [vmem:[%s5616] ss:$3 sm:$0xff]
        %s5618 = scalar_lea.vmem [#allocation2], 1225
        %v5619 = vld [vmem:[%s5618] ss:$3 sm:$0xff]
        %s5620 = scalar_lea.vmem [#allocation2], 1249
        %v5621 = vld [vmem:[%s5620] ss:$3 sm:$0xff]
        %s5622 = scalar_lea.vmem [#allocation2], 1273
        %v5623 = vld [vmem:[%s5622] ss:$3 sm:$0xff]
        %s5624 = scalar_lea.vmem [#allocation2], 1297
        %v5625 = vld [vmem:[%s5624] ss:$3 sm:$0xff]
        %s5626 = scalar_lea.vmem [#allocation2], 1321
        %v5627 = vld [vmem:[%s5626] ss:$3 sm:$0xff]
        %s5628 = scalar_lea.vmem [#allocation2], 1345
        %v5629 = vld [vmem:[%s5628] ss:$3 sm:$0xff]
        %s5630 = scalar_lea.vmem [#allocation2], 1369
        %v5631 = vld [vmem:[%s5630] ss:$3 sm:$0xff]
        %s5632 = scalar_lea.vmem [#allocation2], 1393
        %v5633 = vld [vmem:[%s5632] ss:$3 sm:$0xff]
        %s5634 = scalar_lea.vmem [#allocation2], 1417
        %v5635 = vld [vmem:[%s5634] ss:$3 sm:$0xff]
        %s5636 = scalar_lea.vmem [#allocation2], 1441
        %v5637 = vld [vmem:[%s5636] ss:$3 sm:$0xff]
        %s5638 = scalar_lea.vmem [#allocation2], 1465
        %v5639 = vld [vmem:[%s5638] ss:$3 sm:$0xff]
        %s5640 = scalar_lea.vmem [#allocation2], 1489
        %v5641 = vld [vmem:[%s5640] ss:$3 sm:$0xff]
        %s5642 = scalar_lea.vmem [#allocation2], 1513
        %v5643 = vld [vmem:[%s5642] ss:$3 sm:$0xff]
        %s5644 = scalar_lea.vmem [#allocation2], 1537
        %v5645 = vld [vmem:[%s5644] ss:$3 sm:$0xff]
        %s5646 = scalar_lea.vmem [#allocation2], 1561
        %v5647 = vld [vmem:[%s5646] ss:$3 sm:$0xff]
        %s5648 = scalar_lea.vmem [#allocation2], 1585
        %v5649 = vld [vmem:[%s5648] ss:$3 sm:$0xf]
        %v5650 = vmax.f32 %v5383, %v5517
        %v5651 = vmax.f32 %v5385, %v5519
        %v5652 = vmax.f32 %v5387, %v5521
        %v5653 = vmax.f32 %v5389, %v5523
        %v5654 = vmax.f32 %v5391, %v5525
        %v5655 = vmax.f32 %v5393, %v5527
        %v5656 = vmax.f32 %v5395, %v5529
        %v5657 = vmax.f32 %v5397, %v5531
        %v5658 = vmax.f32 %v5399, %v5533
        %v5659 = vmax.f32 %v5401, %v5535
        %v5660 = vmax.f32 %v5403, %v5537
        %v5661 = vmax.f32 %v5405, %v5539
        %v5662 = vmax.f32 %v5407, %v5541
        %v5663 = vmax.f32 %v5409, %v5543
        %v5664 = vmax.f32 %v5411, %v5545
        %v5665 = vmax.f32 %v5413, %v5547
        %v5666 = vmax.f32 %v5415, %v5549
        %v5667 = vmax.f32 %v5417, %v5551
        %v5668 = vmax.f32 %v5419, %v5553
        %v5669 = vmax.f32 %v5421, %v5555
        %v5670 = vmax.f32 %v5423, %v5557
        %v5671 = vmax.f32 %v5425, %v5559
        %v5672 = vmax.f32 %v5427, %v5561
        %v5673 = vmax.f32 %v5429, %v5563
        %v5674 = vmax.f32 %v5431, %v5565
        %v5675 = vmax.f32 %v5433, %v5567
        %v5676 = vmax.f32 %v5435, %v5569
        %v5677 = vmax.f32 %v5437, %v5571
        %v5678 = vmax.f32 %v5439, %v5573
        %v5679 = vmax.f32 %v5441, %v5575
        %v5680 = vmax.f32 %v5443, %v5577
        %v5681 = vmax.f32 %v5445, %v5579
        %v5682 = vmax.f32 %v5447, %v5581
        %v5683 = vmax.f32 %v5449, %v5583
        %v5684 = vmax.f32 %v5451, %v5585
        %v5685 = vmax.f32 %v5453, %v5587
        %v5686 = vmax.f32 %v5455, %v5589
        %v5687 = vmax.f32 %v5457, %v5591
        %v5688 = vmax.f32 %v5459, %v5593
        %v5689 = vmax.f32 %v5461, %v5595
        %v5690 = vmax.f32 %v5463, %v5597
        %v5691 = vmax.f32 %v5465, %v5599
        %v5692 = vmax.f32 %v5467, %v5601
        %v5693 = vmax.f32 %v5469, %v5603
        %v5694 = vmax.f32 %v5471, %v5605
        %v5695 = vmax.f32 %v5473, %v5607
        %v5696 = vmax.f32 %v5475, %v5609
        %v5697 = vmax.f32 %v5477, %v5611
        %v5698 = vmax.f32 %v5479, %v5613
        %v5699 = vmax.f32 %v5481, %v5615
        %v5700 = vmax.f32 %v5483, %v5617
        %v5701 = vmax.f32 %v5485, %v5619
        %v5702 = vmax.f32 %v5487, %v5621
        %v5703 = vmax.f32 %v5489, %v5623
        %v5704 = vmax.f32 %v5491, %v5625
        %v5705 = vmax.f32 %v5493, %v5627
        %v5706 = vmax.f32 %v5495, %v5629
        %v5707 = vmax.f32 %v5497, %v5631
        %v5708 = vmax.f32 %v5499, %v5633
        %v5709 = vmax.f32 %v5501, %v5635
        %v5710 = vmax.f32 %v5503, %v5637
        %v5711 = vmax.f32 %v5505, %v5639
        %v5712 = vmax.f32 %v5507, %v5641
        %v5713 = vmax.f32 %v5509, %v5643
        %v5714 = vmax.f32 %v5511, %v5645
        %v5715 = vmax.f32 %v5513, %v5647
        %v5716 = vmax.f32 %v5515, %v5649
        %s5717 = scalar_lea.vmem [#allocation2], 2
        %v5718 = vld [vmem:[%s5717] ss:$3 sm:$0xff]
        %s5719 = scalar_lea.vmem [#allocation2], 26
        %v5720 = vld [vmem:[%s5719] ss:$3 sm:$0xff]
        %s5721 = scalar_lea.vmem [#allocation2], 50
        %v5722 = vld [vmem:[%s5721] ss:$3 sm:$0xff]
        %s5723 = scalar_lea.vmem [#allocation2], 74
        %v5724 = vld [vmem:[%s5723] ss:$3 sm:$0xff]
        %s5725 = scalar_lea.vmem [#allocation2], 98
        %v5726 = vld [vmem:[%s5725] ss:$3 sm:$0xff]
        %s5727 = scalar_lea.vmem [#allocation2], 122
        %v5728 = vld [vmem:[%s5727] ss:$3 sm:$0xff]
        %s5729 = scalar_lea.vmem [#allocation2], 146
        %v5730 = vld [vmem:[%s5729] ss:$3 sm:$0xff]
        %s5731 = scalar_lea.vmem [#allocation2], 170
        %v5732 = vld [vmem:[%s5731] ss:$3 sm:$0xff]
        %s5733 = scalar_lea.vmem [#allocation2], 194
        %v5734 = vld [vmem:[%s5733] ss:$3 sm:$0xff]
        %s5735 = scalar_lea.vmem [#allocation2], 218
        %v5736 = vld [vmem:[%s5735] ss:$3 sm:$0xff]
        %s5737 = scalar_lea.vmem [#allocation2], 242
        %v5738 = vld [vmem:[%s5737] ss:$3 sm:$0xff]
        %s5739 = scalar_lea.vmem [#allocation2], 266
        %v5740 = vld [vmem:[%s5739] ss:$3 sm:$0xff]
        %s5741 = scalar_lea.vmem [#allocation2], 290
        %v5742 = vld [vmem:[%s5741] ss:$3 sm:$0xff]
        %s5743 = scalar_lea.vmem [#allocation2], 314
        %v5744 = vld [vmem:[%s5743] ss:$3 sm:$0xff]
        %s5745 = scalar_lea.vmem [#allocation2], 338
        %v5746 = vld [vmem:[%s5745] ss:$3 sm:$0xff]
        %s5747 = scalar_lea.vmem [#allocation2], 362
        %v5748 = vld [vmem:[%s5747] ss:$3 sm:$0xff]
        %s5749 = scalar_lea.vmem [#allocation2], 386
        %v5750 = vld [vmem:[%s5749] ss:$3 sm:$0xff]
        %s5751 = scalar_lea.vmem [#allocation2], 410
        %v5752 = vld [vmem:[%s5751] ss:$3 sm:$0xff]
        %s5753 = scalar_lea.vmem [#allocation2], 434
        %v5754 = vld [vmem:[%s5753] ss:$3 sm:$0xff]
        %s5755 = scalar_lea.vmem [#allocation2], 458
        %v5756 = vld [vmem:[%s5755] ss:$3 sm:$0xff]
        %s5757 = scalar_lea.vmem [#allocation2], 482
        %v5758 = vld [vmem:[%s5757] ss:$3 sm:$0xff]
        %s5759 = scalar_lea.vmem [#allocation2], 506
        %v5760 = vld [vmem:[%s5759] ss:$3 sm:$0xff]
        %s5761 = scalar_lea.vmem [#allocation2], 530
        %v5762 = vld [vmem:[%s5761] ss:$3 sm:$0xff]
        %s5763 = scalar_lea.vmem [#allocation2], 554
        %v5764 = vld [vmem:[%s5763] ss:$3 sm:$0xff]
        %s5765 = scalar_lea.vmem [#allocation2], 578
        %v5766 = vld [vmem:[%s5765] ss:$3 sm:$0xff]
        %s5767 = scalar_lea.vmem [#allocation2], 602
        %v5768 = vld [vmem:[%s5767] ss:$3 sm:$0xff]
        %s5769 = scalar_lea.vmem [#allocation2], 626
        %v5770 = vld [vmem:[%s5769] ss:$3 sm:$0xff]
        %s5771 = scalar_lea.vmem [#allocation2], 650
        %v5772 = vld [vmem:[%s5771] ss:$3 sm:$0xff]
        %s5773 = scalar_lea.vmem [#allocation2], 674
        %v5774 = vld [vmem:[%s5773] ss:$3 sm:$0xff]
        %s5775 = scalar_lea.vmem [#allocation2], 698
        %v5776 = vld [vmem:[%s5775] ss:$3 sm:$0xff]
        %s5777 = scalar_lea.vmem [#allocation2], 722
        %v5778 = vld [vmem:[%s5777] ss:$3 sm:$0xff]
        %s5779 = scalar_lea.vmem [#allocation2], 746
        %v5780 = vld [vmem:[%s5779] ss:$3 sm:$0xff]
        %s5781 = scalar_lea.vmem [#allocation2], 770
        %v5782 = vld [vmem:[%s5781] ss:$3 sm:$0xff]
        %s5783 = scalar_lea.vmem [#allocation2], 794
        %v5784 = vld [vmem:[%s5783] ss:$3 sm:$0xff]
        %s5785 = scalar_lea.vmem [#allocation2], 818
        %v5786 = vld [vmem:[%s5785] ss:$3 sm:$0xff]
        %s5787 = scalar_lea.vmem [#allocation2], 842
        %v5788 = vld [vmem:[%s5787] ss:$3 sm:$0xff]
        %s5789 = scalar_lea.vmem [#allocation2], 866
        %v5790 = vld [vmem:[%s5789] ss:$3 sm:$0xff]
        %s5791 = scalar_lea.vmem [#allocation2], 890
        %v5792 = vld [vmem:[%s5791] ss:$3 sm:$0xff]
        %s5793 = scalar_lea.vmem [#allocation2], 914
        %v5794 = vld [vmem:[%s5793] ss:$3 sm:$0xff]
        %s5795 = scalar_lea.vmem [#allocation2], 938
        %v5796 = vld [vmem:[%s5795] ss:$3 sm:$0xff]
        %s5797 = scalar_lea.vmem [#allocation2], 962
        %v5798 = vld [vmem:[%s5797] ss:$3 sm:$0xff]
        %s5799 = scalar_lea.vmem [#allocation2], 986
        %v5800 = vld [vmem:[%s5799] ss:$3 sm:$0xff]
        %s5801 = scalar_lea.vmem [#allocation2], 1010
        %v5802 = vld [vmem:[%s5801] ss:$3 sm:$0xff]
        %s5803 = scalar_lea.vmem [#allocation2], 1034
        %v5804 = vld [vmem:[%s5803] ss:$3 sm:$0xff]
        %s5805 = scalar_lea.vmem [#allocation2], 1058
        %v5806 = vld [vmem:[%s5805] ss:$3 sm:$0xff]
        %s5807 = scalar_lea.vmem [#allocation2], 1082
        %v5808 = vld [vmem:[%s5807] ss:$3 sm:$0xff]
        %s5809 = scalar_lea.vmem [#allocation2], 1106
        %v5810 = vld [vmem:[%s5809] ss:$3 sm:$0xff]
        %s5811 = scalar_lea.vmem [#allocation2], 1130
        %v5812 = vld [vmem:[%s5811] ss:$3 sm:$0xff]
        %s5813 = scalar_lea.vmem [#allocation2], 1154
        %v5814 = vld [vmem:[%s5813] ss:$3 sm:$0xff]
        %s5815 = scalar_lea.vmem [#allocation2], 1178
        %v5816 = vld [vmem:[%s5815] ss:$3 sm:$0xff]
        %s5817 = scalar_lea.vmem [#allocation2], 1202
        %v5818 = vld [vmem:[%s5817] ss:$3 sm:$0xff]
        %s5819 = scalar_lea.vmem [#allocation2], 1226
        %v5820 = vld [vmem:[%s5819] ss:$3 sm:$0xff]
        %s5821 = scalar_lea.vmem [#allocation2], 1250
        %v5822 = vld [vmem:[%s5821] ss:$3 sm:$0xff]
        %s5823 = scalar_lea.vmem [#allocation2], 1274
        %v5824 = vld [vmem:[%s5823] ss:$3 sm:$0xff]
        %s5825 = scalar_lea.vmem [#allocation2], 1298
        %v5826 = vld [vmem:[%s5825] ss:$3 sm:$0xff]
        %s5827 = scalar_lea.vmem [#allocation2], 1322
        %v5828 = vld [vmem:[%s5827] ss:$3 sm:$0xff]
        %s5829 = scalar_lea.vmem [#allocation2], 1346
        %v5830 = vld [vmem:[%s5829] ss:$3 sm:$0xff]
        %s5831 = scalar_lea.vmem [#allocation2], 1370
        %v5832 = vld [vmem:[%s5831] ss:$3 sm:$0xff]
        %s5833 = scalar_lea.vmem [#allocation2], 1394
        %v5834 = vld [vmem:[%s5833] ss:$3 sm:$0xff]
        %s5835 = scalar_lea.vmem [#allocation2], 1418
        %v5836 = vld [vmem:[%s5835] ss:$3 sm:$0xff]
        %s5837 = scalar_lea.vmem [#allocation2], 1442
        %v5838 = vld [vmem:[%s5837] ss:$3 sm:$0xff]
        %s5839 = scalar_lea.vmem [#allocation2], 1466
        %v5840 = vld [vmem:[%s5839] ss:$3 sm:$0xff]
        %s5841 = scalar_lea.vmem [#allocation2], 1490
        %v5842 = vld [vmem:[%s5841] ss:$3 sm:$0xff]
        %s5843 = scalar_lea.vmem [#allocation2], 1514
        %v5844 = vld [vmem:[%s5843] ss:$3 sm:$0xff]
        %s5845 = scalar_lea.vmem [#allocation2], 1538
        %v5846 = vld [vmem:[%s5845] ss:$3 sm:$0xff]
        %s5847 = scalar_lea.vmem [#allocation2], 1562
        %v5848 = vld [vmem:[%s5847] ss:$3 sm:$0xff]
        %s5849 = scalar_lea.vmem [#allocation2], 1586
        %v5850 = vld [vmem:[%s5849] ss:$3 sm:$0xf]
        %v5851 = vmax.f32 %v5650, %v5718
        %v5852 = vmax.f32 %v5651, %v5720
        %v5853 = vmax.f32 %v5652, %v5722
        %v5854 = vmax.f32 %v5653, %v5724
        %v5855 = vmax.f32 %v5654, %v5726
        %v5856 = vmax.f32 %v5655, %v5728
        %v5857 = vmax.f32 %v5656, %v5730
        %v5858 = vmax.f32 %v5657, %v5732
        %v5859 = vmax.f32 %v5658, %v5734
        %v5860 = vmax.f32 %v5659, %v5736
        %v5861 = vmax.f32 %v5660, %v5738
        %v5862 = vmax.f32 %v5661, %v5740
        %v5863 = vmax.f32 %v5662, %v5742
        %v5864 = vmax.f32 %v5663, %v5744
        %v5865 = vmax.f32 %v5664, %v5746
        %v5866 = vmax.f32 %v5665, %v5748
        %v5867 = vmax.f32 %v5666, %v5750
        %v5868 = vmax.f32 %v5667, %v5752
        %v5869 = vmax.f32 %v5668, %v5754
        %v5870 = vmax.f32 %v5669, %v5756
        %v5871 = vmax.f32 %v5670, %v5758
        %v5872 = vmax.f32 %v5671, %v5760
        %v5873 = vmax.f32 %v5672, %v5762
        %v5874 = vmax.f32 %v5673, %v5764
        %v5875 = vmax.f32 %v5674, %v5766
        %v5876 = vmax.f32 %v5675, %v5768
        %v5877 = vmax.f32 %v5676, %v5770
        %v5878 = vmax.f32 %v5677, %v5772
        %v5879 = vmax.f32 %v5678, %v5774
        %v5880 = vmax.f32 %v5679, %v5776
        %v5881 = vmax.f32 %v5680, %v5778
        %v5882 = vmax.f32 %v5681, %v5780
        %v5883 = vmax.f32 %v5682, %v5782
        %v5884 = vmax.f32 %v5683, %v5784
        %v5885 = vmax.f32 %v5684, %v5786
        %v5886 = vmax.f32 %v5685, %v5788
        %v5887 = vmax.f32 %v5686, %v5790
        %v5888 = vmax.f32 %v5687, %v5792
        %v5889 = vmax.f32 %v5688, %v5794
        %v5890 = vmax.f32 %v5689, %v5796
        %v5891 = vmax.f32 %v5690, %v5798
        %v5892 = vmax.f32 %v5691, %v5800
        %v5893 = vmax.f32 %v5692, %v5802
        %v5894 = vmax.f32 %v5693, %v5804
        %v5895 = vmax.f32 %v5694, %v5806
        %v5896 = vmax.f32 %v5695, %v5808
        %v5897 = vmax.f32 %v5696, %v5810
        %v5898 = vmax.f32 %v5697, %v5812
        %v5899 = vmax.f32 %v5698, %v5814
        %v5900 = vmax.f32 %v5699, %v5816
        %v5901 = vmax.f32 %v5700, %v5818
        %v5902 = vmax.f32 %v5701, %v5820
        %v5903 = vmax.f32 %v5702, %v5822
        %v5904 = vmax.f32 %v5703, %v5824
        %v5905 = vmax.f32 %v5704, %v5826
        %v5906 = vmax.f32 %v5705, %v5828
        %v5907 = vmax.f32 %v5706, %v5830
        %v5908 = vmax.f32 %v5707, %v5832
        %v5909 = vmax.f32 %v5708, %v5834
        %v5910 = vmax.f32 %v5709, %v5836
        %v5911 = vmax.f32 %v5710, %v5838
        %v5912 = vmax.f32 %v5711, %v5840
        %v5913 = vmax.f32 %v5712, %v5842
        %v5914 = vmax.f32 %v5713, %v5844
        %v5915 = vmax.f32 %v5714, %v5846
        %v5916 = vmax.f32 %v5715, %v5848
        %v5917 = vmax.f32 %v5716, %v5850
        %5918 = vst.msk [vmem:[#allocation3] sm:$0xff] %vm5181, %v5851
        %5919 = vst.msk [vmem:[#allocation3 + $0x8] sm:$0xff] %vm5181, %v5852
        %5920 = vst.msk [vmem:[#allocation3 + $0x10] sm:$0xff] %vm5181, %v5853
        %5921 = vst.msk [vmem:[#allocation3 + $0x18] sm:$0xff] %vm5181, %v5854
        %5922 = vst.msk [vmem:[#allocation3 + $0x20] sm:$0xff] %vm5181, %v5855
        %5923 = vst.msk [vmem:[#allocation3 + $0x28] sm:$0xff] %vm5181, %v5856
        %5924 = vst.msk [vmem:[#allocation3 + $0x30] sm:$0xff] %vm5181, %v5857
        %5925 = vst.msk [vmem:[#allocation3 + $0x38] sm:$0xff] %vm5181, %v5858
        %5926 = vst.msk [vmem:[#allocation3 + $0x40] sm:$0xff] %vm5181, %v5859
        %5927 = vst.msk [vmem:[#allocation3 + $0x48] sm:$0xff] %vm5181, %v5860
        %5928 = vst.msk [vmem:[#allocation3 + $0x50] sm:$0xff] %vm5181, %v5861
        %5929 = vst.msk [vmem:[#allocation3 + $0x58] sm:$0xff] %vm5181, %v5862
        %5930 = vst.msk [vmem:[#allocation3 + $0x60] sm:$0xff] %vm5181, %v5863
        %5931 = vst.msk [vmem:[#allocation3 + $0x68] sm:$0xff] %vm5181, %v5864
        %5932 = vst.msk [vmem:[#allocation3 + $0x70] sm:$0xff] %vm5181, %v5865
        %5933 = vst.msk [vmem:[#allocation3 + $0x78] sm:$0xff] %vm5181, %v5866
        %5934 = vst.msk [vmem:[#allocation3 + $0x80] sm:$0xff] %vm5181, %v5867
        %5935 = vst.msk [vmem:[#allocation3 + $0x88] sm:$0xff] %vm5181, %v5868
        %5936 = vst.msk [vmem:[#allocation3 + $0x90] sm:$0xff] %vm5181, %v5869
        %5937 = vst.msk [vmem:[#allocation3 + $0x98] sm:$0xff] %vm5181, %v5870
        %5938 = vst.msk [vmem:[#allocation3 + $0xa0] sm:$0xff] %vm5181, %v5871
        %5939 = vst.msk [vmem:[#allocation3 + $0xa8] sm:$0xff] %vm5181, %v5872
        %5940 = vst.msk [vmem:[#allocation3 + $0xb0] sm:$0xff] %vm5181, %v5873
        %5941 = vst.msk [vmem:[#allocation3 + $0xb8] sm:$0xff] %vm5181, %v5874
        %5942 = vst.msk [vmem:[#allocation3 + $0xc0] sm:$0xff] %vm5181, %v5875
        %5943 = vst.msk [vmem:[#allocation3 + $0xc8] sm:$0xff] %vm5181, %v5876
        %5944 = vst.msk [vmem:[#allocation3 + $0xd0] sm:$0xff] %vm5181, %v5877
        %5945 = vst.msk [vmem:[#allocation3 + $0xd8] sm:$0xff] %vm5181, %v5878
        %5946 = vst.msk [vmem:[#allocation3 + $0xe0] sm:$0xff] %vm5181, %v5879
        %5947 = vst.msk [vmem:[#allocation3 + $0xe8] sm:$0xff] %vm5181, %v5880
        %5948 = vst.msk [vmem:[#allocation3 + $0xf0] sm:$0xff] %vm5181, %v5881
        %5949 = vst.msk [vmem:[#allocation3 + $0xf8] sm:$0xff] %vm5181, %v5882
        %5950 = vst.msk [vmem:[#allocation3 + $0x100] sm:$0xff] %vm5181, %v5883
        %5951 = vst.msk [vmem:[#allocation3 + $0x108] sm:$0xff] %vm5181, %v5884
        %5952 = vst.msk [vmem:[#allocation3 + $0x110] sm:$0xff] %vm5181, %v5885
        %5953 = vst.msk [vmem:[#allocation3 + $0x118] sm:$0xff] %vm5181, %v5886
        %5954 = vst.msk [vmem:[#allocation3 + $0x120] sm:$0xff] %vm5181, %v5887
        %5955 = vst.msk [vmem:[#allocation3 + $0x128] sm:$0xff] %vm5181, %v5888
        %5956 = vst.msk [vmem:[#allocation3 + $0x130] sm:$0xff] %vm5181, %v5889
        %5957 = vst.msk [vmem:[#allocation3 + $0x138] sm:$0xff] %vm5181, %v5890
        %5958 = vst.msk [vmem:[#allocation3 + $0x140] sm:$0xff] %vm5181, %v5891
        %5959 = vst.msk [vmem:[#allocation3 + $0x148] sm:$0xff] %vm5181, %v5892
        %5960 = vst.msk [vmem:[#allocation3 + $0x150] sm:$0xff] %vm5181, %v5893
        %5961 = vst.msk [vmem:[#allocation3 + $0x158] sm:$0xff] %vm5181, %v5894
        %5962 = vst.msk [vmem:[#allocation3 + $0x160] sm:$0xff] %vm5181, %v5895
        %5963 = vst.msk [vmem:[#allocation3 + $0x168] sm:$0xff] %vm5181, %v5896
        %5964 = vst.msk [vmem:[#allocation3 + $0x170] sm:$0xff] %vm5181, %v5897
        %5965 = vst.msk [vmem:[#allocation3 + $0x178] sm:$0xff] %vm5181, %v5898
        %5966 = vst.msk [vmem:[#allocation3 + $0x180] sm:$0xff] %vm5181, %v5899
        %5967 = vst.msk [vmem:[#allocation3 + $0x188] sm:$0xff] %vm5181, %v5900
        %5968 = vst.msk [vmem:[#allocation3 + $0x190] sm:$0xff] %vm5181, %v5901
        %5969 = vst.msk [vmem:[#allocation3 + $0x198] sm:$0xff] %vm5181, %v5902
        %5970 = vst.msk [vmem:[#allocation3 + $0x1a0] sm:$0xff] %vm5181, %v5903
        %5971 = vst.msk [vmem:[#allocation3 + $0x1a8] sm:$0xff] %vm5181, %v5904
        %5972 = vst.msk [vmem:[#allocation3 + $0x1b0] sm:$0xff] %vm5181, %v5905
        %5973 = vst.msk [vmem:[#allocation3 + $0x1b8] sm:$0xff] %vm5181, %v5906
        %5974 = vst.msk [vmem:[#allocation3 + $0x1c0] sm:$0xff] %vm5181, %v5907
        %5975 = vst.msk [vmem:[#allocation3 + $0x1c8] sm:$0xff] %vm5181, %v5908
        %5976 = vst.msk [vmem:[#allocation3 + $0x1d0] sm:$0xff] %vm5181, %v5909
        %5977 = vst.msk [vmem:[#allocation3 + $0x1d8] sm:$0xff] %vm5181, %v5910
        %5978 = vst.msk [vmem:[#allocation3 + $0x1e0] sm:$0xff] %vm5181, %v5911
        %5979 = vst.msk [vmem:[#allocation3 + $0x1e8] sm:$0xff] %vm5181, %v5912
        %5980 = vst.msk [vmem:[#allocation3 + $0x1f0] sm:$0xff] %vm5181, %v5913
        %5981 = vst.msk [vmem:[#allocation3 + $0x1f8] sm:$0xff] %vm5181, %v5914
        %5982 = vst.msk [vmem:[#allocation3 + $0x200] sm:$0xff] %vm5181, %v5915
        %5983 = vst.msk [vmem:[#allocation3 + $0x208] sm:$0xff] %vm5181, %v5916
        %vm5984 = vcmask 257024
        %5985 = vst.msk [vmem:[#allocation3 + $0x210] sm:$0xf] %vm5984, %v5917
        %v5986 = vld [vmem:[#allocation3] sm:$0xff]
        %v5987 = vld [vmem:[#allocation3 + $0x8] sm:$0xff]
        %v5988 = vld [vmem:[#allocation3 + $0x10] sm:$0xff]
        %v5989 = vld [vmem:[#allocation3 + $0x18] sm:$0xff]
        %v5990 = vld [vmem:[#allocation3 + $0x20] sm:$0xff]
        %v5991 = vld [vmem:[#allocation3 + $0x28] sm:$0xff]
        %v5992 = vld [vmem:[#allocation3 + $0x30] sm:$0xff]
        %v5993 = vld [vmem:[#allocation3 + $0x38] sm:$0xff]
        %v5994 = vld [vmem:[#allocation3 + $0x40] sm:$0xff]
        %v5995 = vld [vmem:[#allocation3 + $0x48] sm:$0xff]
        %v5996 = vld [vmem:[#allocation3 + $0x50] sm:$0xff]
        %v5997 = vld [vmem:[#allocation3 + $0x58] sm:$0xff]
        %v5998 = vld [vmem:[#allocation3 + $0x60] sm:$0xff]
        %v5999 = vld [vmem:[#allocation3 + $0x68] sm:$0xff]
        %v6000 = vld [vmem:[#allocation3 + $0x70] sm:$0xff]
        %v6001 = vld [vmem:[#allocation3 + $0x78] sm:$0xff]
        %v6002 = vld [vmem:[#allocation3 + $0x80] sm:$0xff]
        %v6003 = vld [vmem:[#allocation3 + $0x88] sm:$0xff]
        %v6004 = vld [vmem:[#allocation3 + $0x90] sm:$0xff]
        %v6005 = vld [vmem:[#allocation3 + $0x98] sm:$0xff]
        %v6006 = vld [vmem:[#allocation3 + $0xa0] sm:$0xff]
        %v6007 = vld [vmem:[#allocation3 + $0xa8] sm:$0xff]
        %v6008 = vld [vmem:[#allocation3 + $0xb0] sm:$0xff]
        %v6009 = vld [vmem:[#allocation3 + $0xb8] sm:$0xff]
        %v6010 = vld [vmem:[#allocation3 + $0xc0] sm:$0xff]
        %v6011 = vld [vmem:[#allocation3 + $0xc8] sm:$0xff]
        %v6012 = vld [vmem:[#allocation3 + $0xd0] sm:$0xff]
        %v6013 = vld [vmem:[#allocation3 + $0xd8] sm:$0xff]
        %v6014 = vld [vmem:[#allocation3 + $0xe0] sm:$0xff]
        %v6015 = vld [vmem:[#allocation3 + $0xe8] sm:$0xff]
        %v6016 = vld [vmem:[#allocation3 + $0xf0] sm:$0xff]
        %v6017 = vld [vmem:[#allocation3 + $0xf8] sm:$0xff]
        %v6018 = vld [vmem:[#allocation3 + $0x100] sm:$0xff]
        %v6019 = vld [vmem:[#allocation3 + $0x108] sm:$0xff]
        %v6020 = vld [vmem:[#allocation3 + $0x110] sm:$0xff]
        %v6021 = vld [vmem:[#allocation3 + $0x118] sm:$0xff]
        %v6022 = vld [vmem:[#allocation3 + $0x120] sm:$0xff]
        %v6023 = vld [vmem:[#allocation3 + $0x128] sm:$0xff]
        %v6024 = vld [vmem:[#allocation3 + $0x130] sm:$0xff]
        %v6025 = vld [vmem:[#allocation3 + $0x138] sm:$0xff]
        %v6026 = vld [vmem:[#allocation3 + $0x140] sm:$0xff]
        %v6027 = vld [vmem:[#allocation3 + $0x148] sm:$0xff]
        %v6028 = vld [vmem:[#allocation3 + $0x150] sm:$0xff]
        %v6029 = vld [vmem:[#allocation3 + $0x158] sm:$0xff]
        %v6030 = vld [vmem:[#allocation3 + $0x160] sm:$0xff]
        %v6031 = vld [vmem:[#allocation3 + $0x168] sm:$0xff]
        %v6032 = vld [vmem:[#allocation3 + $0x170] sm:$0xff]
        %v6033 = vld [vmem:[#allocation3 + $0x178] sm:$0xff]
        %v6034 = vld [vmem:[#allocation3 + $0x180] sm:$0xff]
        %v6035 = vld [vmem:[#allocation3 + $0x188] sm:$0xff]
        %v6036 = vld [vmem:[#allocation3 + $0x190] sm:$0xff]
        %v6037 = vld [vmem:[#allocation3 + $0x198] sm:$0xff]
        %v6038 = vld [vmem:[#allocation3 + $0x1a0] sm:$0xff]
        %v6039 = vld [vmem:[#allocation3 + $0x1a8] sm:$0xff]
        %v6040 = vld [vmem:[#allocation3 + $0x1b0] sm:$0xff]
        %v6041 = vld [vmem:[#allocation3 + $0x1b8] sm:$0xff]
        %v6042 = vld [vmem:[#allocation3 + $0x1c0] sm:$0xff]
        %v6043 = vld [vmem:[#allocation3 + $0x1c8] sm:$0xff]
        %v6044 = vld [vmem:[#allocation3 + $0x1d0] sm:$0xff]
        %v6045 = vld [vmem:[#allocation3 + $0x1d8] sm:$0xff]
        %v6046 = vld [vmem:[#allocation3 + $0x1e0] sm:$0xff]
        %v6047 = vld [vmem:[#allocation3 + $0x1e8] sm:$0xff]
        %v6048 = vld [vmem:[#allocation3 + $0x1f0] sm:$0xff]
        %v6049 = vld [vmem:[#allocation3 + $0x1f8] sm:$0xff]
        %v6050 = vld [vmem:[#allocation3 + $0x200] sm:$0xff]
        %v6051 = vld [vmem:[#allocation3 + $0x208] sm:$0xff]
        %v6052 = vld [vmem:[#allocation3 + $0x210] sm:$0x3]
        %v6053 = vld [vmem:[#allocation11] sm:$0xff]
        %v6054 = vld [vmem:[#allocation11 + $0x8] sm:$0xff]
        %v6055 = vld [vmem:[#allocation11 + $0x10] sm:$0xff]
        %v6056 = vld [vmem:[#allocation11 + $0x18] sm:$0xff]
        %v6057 = vld [vmem:[#allocation3 + $0x1] sm:$0xff]
        %v6058 = vld [vmem:[#allocation3 + $0x9] sm:$0xff]
        %v6059 = vld [vmem:[#allocation3 + $0x11] sm:$0xff]
        %v6060 = vld [vmem:[#allocation3 + $0x19] sm:$0xff]
        %v6061 = vld [vmem:[#allocation3 + $0x21] sm:$0xff]
        %v6062 = vld [vmem:[#allocation3 + $0x29] sm:$0xff]
        %v6063 = vld [vmem:[#allocation3 + $0x31] sm:$0xff]
        %v6064 = vld [vmem:[#allocation3 + $0x39] sm:$0xff]
        %v6065 = vld [vmem:[#allocation3 + $0x41] sm:$0xff]
        %v6066 = vld [vmem:[#allocation3 + $0x49] sm:$0xff]
        %v6067 = vld [vmem:[#allocation3 + $0x51] sm:$0xff]
        %v6068 = vld [vmem:[#allocation3 + $0x59] sm:$0xff]
        %v6069 = vld [vmem:[#allocation3 + $0x61] sm:$0xff]
        %v6070 = vld [vmem:[#allocation3 + $0x69] sm:$0xff]
        %v6071 = vld [vmem:[#allocation3 + $0x71] sm:$0xff]
        %v6072 = vld [vmem:[#allocation3 + $0x79] sm:$0xff]
        %v6073 = vld [vmem:[#allocation3 + $0x81] sm:$0xff]
        %v6074 = vld [vmem:[#allocation3 + $0x89] sm:$0xff]
        %v6075 = vld [vmem:[#allocation3 + $0x91] sm:$0xff]
        %v6076 = vld [vmem:[#allocation3 + $0x99] sm:$0xff]
        %v6077 = vld [vmem:[#allocation3 + $0xa1] sm:$0xff]
        %v6078 = vld [vmem:[#allocation3 + $0xa9] sm:$0xff]
        %v6079 = vld [vmem:[#allocation3 + $0xb1] sm:$0xff]
        %v6080 = vld [vmem:[#allocation3 + $0xb9] sm:$0xff]
        %v6081 = vld [vmem:[#allocation3 + $0xc1] sm:$0xff]
        %v6082 = vld [vmem:[#allocation3 + $0xc9] sm:$0xff]
        %v6083 = vld [vmem:[#allocation3 + $0xd1] sm:$0xff]
        %v6084 = vld [vmem:[#allocation3 + $0xd9] sm:$0xff]
        %v6085 = vld [vmem:[#allocation3 + $0xe1] sm:$0xff]
        %v6086 = vld [vmem:[#allocation3 + $0xe9] sm:$0xff]
        %v6087 = vld [vmem:[#allocation3 + $0xf1] sm:$0xff]
        %v6088 = vld [vmem:[#allocation3 + $0xf9] sm:$0xff]
        %v6089 = vld [vmem:[#allocation3 + $0x101] sm:$0xff]
        %v6090 = vld [vmem:[#allocation3 + $0x109] sm:$0xff]
        %v6091 = vld [vmem:[#allocation3 + $0x111] sm:$0xff]
        %v6092 = vld [vmem:[#allocation3 + $0x119] sm:$0xff]
        %v6093 = vld [vmem:[#allocation3 + $0x121] sm:$0xff]
        %v6094 = vld [vmem:[#allocation3 + $0x129] sm:$0xff]
        %v6095 = vld [vmem:[#allocation3 + $0x131] sm:$0xff]
        %v6096 = vld [vmem:[#allocation3 + $0x139] sm:$0xff]
        %v6097 = vld [vmem:[#allocation3 + $0x141] sm:$0xff]
        %v6098 = vld [vmem:[#allocation3 + $0x149] sm:$0xff]
        %v6099 = vld [vmem:[#allocation3 + $0x151] sm:$0xff]
        %v6100 = vld [vmem:[#allocation3 + $0x159] sm:$0xff]
        %v6101 = vld [vmem:[#allocation3 + $0x161] sm:$0xff]
        %v6102 = vld [vmem:[#allocation3 + $0x169] sm:$0xff]
        %v6103 = vld [vmem:[#allocation3 + $0x171] sm:$0xff]
        %v6104 = vld [vmem:[#allocation3 + $0x179] sm:$0xff]
        %v6105 = vld [vmem:[#allocation3 + $0x181] sm:$0xff]
        %v6106 = vld [vmem:[#allocation3 + $0x189] sm:$0xff]
        %v6107 = vld [vmem:[#allocation3 + $0x191] sm:$0xff]
        %v6108 = vld [vmem:[#allocation3 + $0x199] sm:$0xff]
        %v6109 = vld [vmem:[#allocation3 + $0x1a1] sm:$0xff]
        %v6110 = vld [vmem:[#allocation3 + $0x1a9] sm:$0xff]
        %v6111 = vld [vmem:[#allocation3 + $0x1b1] sm:$0xff]
        %v6112 = vld [vmem:[#allocation3 + $0x1b9] sm:$0xff]
        %v6113 = vld [vmem:[#allocation3 + $0x1c1] sm:$0xff]
        %v6114 = vld [vmem:[#allocation3 + $0x1c9] sm:$0xff]
        %v6115 = vld [vmem:[#allocation3 + $0x1d1] sm:$0xff]
        %v6116 = vld [vmem:[#allocation3 + $0x1d9] sm:$0xff]
        %v6117 = vld [vmem:[#allocation3 + $0x1e1] sm:$0xff]
        %v6118 = vld [vmem:[#allocation3 + $0x1e9] sm:$0xff]
        %v6119 = vld [vmem:[#allocation3 + $0x1f1] sm:$0xff]
        %v6120 = vld [vmem:[#allocation3 + $0x1f9] sm:$0xff]
        %v6121 = vld [vmem:[#allocation3 + $0x201] sm:$0xff]
        %v6122 = vld [vmem:[#allocation3 + $0x209] sm:$0xff]
        %v6123 = vld [vmem:[#allocation3 + $0x211] sm:$0x3]
        %s6124 = scalar_lea.vmem [#allocation11], 32
        %v6125 = vld [vmem:[%s6124] sm:$0xff]
        %v6126 = vld [vmem:[%s6124 + $0x8] sm:$0xff]
        %v6127 = vld [vmem:[%s6124 + $0x10] sm:$0xff]
        %v6128 = vld [vmem:[%s6124 + $0x18] sm:$0xff]
        %v6130 = vsel %vm5181, %v6057, 0
        %v6133 = vsel %vm5181, %v6058, 0
        %v6136 = vsel %vm5181, %v6059, 0
        %v6139 = vsel %vm5181, %v6060, 0
        %v6142 = vsel %vm5181, %v6061, 0
        %v6145 = vsel %vm5181, %v6062, 0
        %v6148 = vsel %vm5181, %v6063, 0
        %v6151 = vsel %vm5181, %v6064, 0
        %v6154 = vsel %vm5181, %v6065, 0
        %v6157 = vsel %vm5181, %v6066, 0
        %v6160 = vsel %vm5181, %v6067, 0
        %v6163 = vsel %vm5181, %v6068, 0
        %v6166 = vsel %vm5181, %v6069, 0
        %v6169 = vsel %vm5181, %v6070, 0
        %v6172 = vsel %vm5181, %v6071, 0
        %v6175 = vsel %vm5181, %v6072, 0
        %v6178 = vsel %vm5181, %v6073, 0
        %v6181 = vsel %vm5181, %v6074, 0
        %v6184 = vsel %vm5181, %v6075, 0
        %v6187 = vsel %vm5181, %v6076, 0
        %v6190 = vsel %vm5181, %v6077, 0
        %v6193 = vsel %vm5181, %v6078, 0
        %v6196 = vsel %vm5181, %v6079, 0
        %v6199 = vsel %vm5181, %v6080, 0
        %v6202 = vsel %vm5181, %v6081, 0
        %v6205 = vsel %vm5181, %v6082, 0
        %v6208 = vsel %vm5181, %v6083, 0
        %v6211 = vsel %vm5181, %v6084, 0
        %v6214 = vsel %vm5181, %v6085, 0
        %v6217 = vsel %vm5181, %v6086, 0
        %v6220 = vsel %vm5181, %v6087, 0
        %v6223 = vsel %vm5181, %v6088, 0
        %v6226 = vsel %vm5181, %v6089, 0
        %v6229 = vsel %vm5181, %v6090, 0
        %v6232 = vsel %vm5181, %v6091, 0
        %v6235 = vsel %vm5181, %v6092, 0
        %v6238 = vsel %vm5181, %v6093, 0
        %v6241 = vsel %vm5181, %v6094, 0
        %v6244 = vsel %vm5181, %v6095, 0
        %v6247 = vsel %vm5181, %v6096, 0
        %v6250 = vsel %vm5181, %v6097, 0
        %v6253 = vsel %vm5181, %v6098, 0
        %v6256 = vsel %vm5181, %v6099, 0
        %v6259 = vsel %vm5181, %v6100, 0
        %v6262 = vsel %vm5181, %v6101, 0
        %v6265 = vsel %vm5181, %v6102, 0
        %v6268 = vsel %vm5181, %v6103, 0
        %v6271 = vsel %vm5181, %v6104, 0
        %v6274 = vsel %vm5181, %v6105, 0
        %v6277 = vsel %vm5181, %v6106, 0
        %v6280 = vsel %vm5181, %v6107, 0
        %v6283 = vsel %vm5181, %v6108, 0
        %v6286 = vsel %vm5181, %v6109, 0
        %v6289 = vsel %vm5181, %v6110, 0
        %v6292 = vsel %vm5181, %v6111, 0
        %v6295 = vsel %vm5181, %v6112, 0
        %v6298 = vsel %vm5181, %v6113, 0
        %v6301 = vsel %vm5181, %v6114, 0
        %v6304 = vsel %vm5181, %v6115, 0
        %v6307 = vsel %vm5181, %v6116, 0
        %v6310 = vsel %vm5181, %v6117, 0
        %v6313 = vsel %vm5181, %v6118, 0
        %v6316 = vsel %vm5181, %v6119, 0
        %v6319 = vsel %vm5181, %v6120, 0
        %v6322 = vsel %vm5181, %v6121, 0
        %v6325 = vsel %vm5181, %v6122, 0
        %v6328 = vsel %vm5181, %v6123, 0
        %6330 = vmatprep.subr.mxu0 0.0
        %6331 = vmatpush1.msra.mxu0 0.0
        %6332 = vmatprep.subr.mxu0 0.0
        %6333 = vmatpush1.msra.mxu0 0.0
        %6334 = vmatprep.subr.mxu0 0.0
        %6335 = vmatpush1.msra.mxu0 0.0
        %6336 = vmatprep.subr.mxu0 0.0
        %6337 = vmatpush1.msra.mxu0 0.0
        %6338 = vmatprep.subr.mxu0 0.0
        %6339 = vmatpush1.msra.mxu0 0.0
        %6340 = vmatprep.subr.mxu0 0.0
        %6341 = vmatpush1.msra.mxu0 0.0
        %6342 = vmatprep.subr.mxu0 0.0
        %6343 = vmatpush1.msra.mxu0 0.0
        %6344 = vmatprep.subr.mxu0 0.0
        %6345 = vmatpush1.msra.mxu0 0.0
        %6346 = vmatprep.subr.mxu0 0.0
        %6347 = vmatpush1.msra.mxu0 0.0
        %6348 = vmatprep.subr.mxu0 0.0
        %6349 = vmatpush1.msra.mxu0 0.0
        %6350 = vmatprep.subr.mxu0 0.0
        %6351 = vmatpush1.msra.mxu0 0.0
        %6352 = vmatprep.subr.mxu0 0.0
        %6353 = vmatpush1.msra.mxu0 0.0
        %6354 = vmatprep.subr.mxu0 0.0
        %6355 = vmatpush1.msra.mxu0 %v6128
        %6356 = vmatprep.subr.mxu0 0.0
        %6357 = vmatpush1.msra.mxu0 %v6127
        %6358 = vmatprep.subr.mxu0 0.0
        %6359 = vmatpush1.msra.mxu0 %v6126
        %6360 = vmatprep.subr.mxu0 0.0
        %6361 = vmatpush1.msra.mxu0 %v6125
        %6362 = vmatprep.subr.mxu0 0.0
        %6363 = vmatpush2.msra.mxu0 0.0
        %6364 = vmatprep.subr.mxu0 0.0
        %6365 = vmatpush2.msra.mxu0 0.0
        %6366 = vmatprep.subr.mxu0 0.0
        %6367 = vmatpush2.msra.mxu0 0.0
        %6368 = vmatprep.subr.mxu0 0.0
        %6369 = vmatpush2.msra.mxu0 0.0
        %6370 = vmatprep.subr.mxu0 0.0
        %6371 = vmatpush2.msra.mxu0 0.0
        %6372 = vmatprep.subr.mxu0 0.0
        %6373 = vmatpush2.msra.mxu0 0.0
        %6374 = vmatprep.subr.mxu0 0.0
        %6375 = vmatpush2.msra.mxu0 0.0
        %6376 = vmatprep.subr.mxu0 0.0
        %6377 = vmatpush2.msra.mxu0 0.0
        %6378 = vmatprep.subr.mxu0 0.0
        %6379 = vmatpush2.msra.mxu0 0.0
        %6380 = vmatprep.subr.mxu0 0.0
        %6381 = vmatpush2.msra.mxu0 0.0
        %6382 = vmatprep.subr.mxu0 0.0
        %6383 = vmatpush2.msra.mxu0 0.0
        %6384 = vmatprep.subr.mxu0 0.0
        %6385 = vmatpush2.msra.mxu0 0.0
        %6386 = vmatprep.subr.mxu0 0.0
        %6387 = vmatpush2.msra.mxu0 0.0
        %6388 = vmatprep.subr.mxu0 0.0
        %6389 = vmatpush2.msra.mxu0 0.0
        %6390 = vmatprep.subr.mxu0 0.0
        %6391 = vmatpush2.msra.mxu0 0.0
        %6392 = vmatprep.subr.mxu0 0.0
        %6393 = vmatpush2.msra.mxu0 0.0
        %6394 = vmatprep.mubr.f32.mxu0 0.0
        %6395 = vmatmul.mubr.f32.gmra.mxu0 %v6130
        %v6396 = vpop.f32.mrf.mxu0
        %v6397 = vadd.f32 0.0, %v6396
        %v6398 = vpop.f32.mrf.mxu0
        %6399 = vmatprep.mubr.f32.mxu0 0.0
        %6400 = vmatmul.mubr.f32.gmra.mxu0 %v6133
        %v6401 = vpop.f32.mrf.mxu0
        %v6402 = vadd.f32 0.0, %v6401
        %v6403 = vpop.f32.mrf.mxu0
        %6404 = vmatprep.mubr.f32.mxu0 0.0
        %6405 = vmatmul.mubr.f32.gmra.mxu0 %v6136
        %v6406 = vpop.f32.mrf.mxu0
        %v6407 = vadd.f32 0.0, %v6406
        %v6408 = vpop.f32.mrf.mxu0
        %6409 = vmatprep.mubr.f32.mxu0 0.0
        %6410 = vmatmul.mubr.f32.gmra.mxu0 %v6139
        %v6411 = vpop.f32.mrf.mxu0
        %v6412 = vadd.f32 0.0, %v6411
        %v6413 = vpop.f32.mrf.mxu0
        %6414 = vmatprep.mubr.f32.mxu0 0.0
        %6415 = vmatmul.mubr.f32.gmra.mxu0 %v6142
        %v6416 = vpop.f32.mrf.mxu0
        %v6417 = vadd.f32 0.0, %v6416
        %v6418 = vpop.f32.mrf.mxu0
        %6419 = vmatprep.mubr.f32.mxu0 0.0
        %6420 = vmatmul.mubr.f32.gmra.mxu0 %v6145
        %v6421 = vpop.f32.mrf.mxu0
        %v6422 = vadd.f32 0.0, %v6421
        %v6423 = vpop.f32.mrf.mxu0
        %6424 = vmatprep.mubr.f32.mxu0 0.0
        %6425 = vmatmul.mubr.f32.gmra.mxu0 %v6148
        %v6426 = vpop.f32.mrf.mxu0
        %v6427 = vadd.f32 0.0, %v6426
        %v6428 = vpop.f32.mrf.mxu0
        %6429 = vmatprep.mubr.f32.mxu0 0.0
        %6430 = vmatmul.mubr.f32.gmra.mxu0 %v6151
        %v6431 = vpop.f32.mrf.mxu0
        %v6432 = vadd.f32 0.0, %v6431
        %v6433 = vpop.f32.mrf.mxu0
        %6434 = vmatprep.mubr.f32.mxu0 0.0
        %6435 = vmatmul.mubr.f32.gmra.mxu0 %v6154
        %v6436 = vpop.f32.mrf.mxu0
        %v6437 = vadd.f32 0.0, %v6436
        %v6438 = vpop.f32.mrf.mxu0
        %6439 = vmatprep.mubr.f32.mxu0 0.0
        %6440 = vmatmul.mubr.f32.gmra.mxu0 %v6157
        %v6441 = vpop.f32.mrf.mxu0
        %v6442 = vadd.f32 0.0, %v6441
        %v6443 = vpop.f32.mrf.mxu0
        %6444 = vmatprep.mubr.f32.mxu0 0.0
        %6445 = vmatmul.mubr.f32.gmra.mxu0 %v6160
        %v6446 = vpop.f32.mrf.mxu0
        %v6447 = vadd.f32 0.0, %v6446
        %v6448 = vpop.f32.mrf.mxu0
        %6449 = vmatprep.mubr.f32.mxu0 0.0
        %6450 = vmatmul.mubr.f32.gmra.mxu0 %v6163
        %v6451 = vpop.f32.mrf.mxu0
        %v6452 = vadd.f32 0.0, %v6451
        %v6453 = vpop.f32.mrf.mxu0
        %6454 = vmatprep.mubr.f32.mxu0 0.0
        %6455 = vmatmul.mubr.f32.gmra.mxu0 %v6166
        %v6456 = vpop.f32.mrf.mxu0
        %v6457 = vadd.f32 0.0, %v6456
        %v6458 = vpop.f32.mrf.mxu0
        %6459 = vmatprep.mubr.f32.mxu0 0.0
        %6460 = vmatmul.mubr.f32.gmra.mxu0 %v6169
        %v6461 = vpop.f32.mrf.mxu0
        %v6462 = vadd.f32 0.0, %v6461
        %v6463 = vpop.f32.mrf.mxu0
        %6464 = vmatprep.mubr.f32.mxu0 0.0
        %6465 = vmatmul.mubr.f32.gmra.mxu0 %v6172
        %v6466 = vpop.f32.mrf.mxu0
        %v6467 = vadd.f32 0.0, %v6466
        %v6468 = vpop.f32.mrf.mxu0
        %6469 = vmatprep.mubr.f32.mxu0 0.0
        %6470 = vmatmul.mubr.f32.gmra.mxu0 %v6175
        %v6471 = vpop.f32.mrf.mxu0
        %v6472 = vadd.f32 0.0, %v6471
        %v6473 = vpop.f32.mrf.mxu0
        %6474 = vmatprep.mubr.f32.mxu0 0.0
        %6475 = vmatmul.mubr.f32.gmra.mxu0 %v6178
        %v6476 = vpop.f32.mrf.mxu0
        %v6477 = vadd.f32 0.0, %v6476
        %v6478 = vpop.f32.mrf.mxu0
        %6479 = vmatprep.mubr.f32.mxu0 0.0
        %6480 = vmatmul.mubr.f32.gmra.mxu0 %v6181
        %v6481 = vpop.f32.mrf.mxu0
        %v6482 = vadd.f32 0.0, %v6481
        %v6483 = vpop.f32.mrf.mxu0
        %6484 = vmatprep.mubr.f32.mxu0 0.0
        %6485 = vmatmul.mubr.f32.gmra.mxu0 %v6184
        %v6486 = vpop.f32.mrf.mxu0
        %v6487 = vadd.f32 0.0, %v6486
        %v6488 = vpop.f32.mrf.mxu0
        %6489 = vmatprep.mubr.f32.mxu0 0.0
        %6490 = vmatmul.mubr.f32.gmra.mxu0 %v6187
        %v6491 = vpop.f32.mrf.mxu0
        %v6492 = vadd.f32 0.0, %v6491
        %v6493 = vpop.f32.mrf.mxu0
        %6494 = vmatprep.mubr.f32.mxu0 0.0
        %6495 = vmatmul.mubr.f32.gmra.mxu0 %v6190
        %v6496 = vpop.f32.mrf.mxu0
        %v6497 = vadd.f32 0.0, %v6496
        %v6498 = vpop.f32.mrf.mxu0
        %6499 = vmatprep.mubr.f32.mxu0 0.0
        %6500 = vmatmul.mubr.f32.gmra.mxu0 %v6193
        %v6501 = vpop.f32.mrf.mxu0
        %v6502 = vadd.f32 0.0, %v6501
        %v6503 = vpop.f32.mrf.mxu0
        %6504 = vmatprep.mubr.f32.mxu0 0.0
        %6505 = vmatmul.mubr.f32.gmra.mxu0 %v6196
        %v6506 = vpop.f32.mrf.mxu0
        %v6507 = vadd.f32 0.0, %v6506
        %v6508 = vpop.f32.mrf.mxu0
        %6509 = vmatprep.mubr.f32.mxu0 0.0
        %6510 = vmatmul.mubr.f32.gmra.mxu0 %v6199
        %v6511 = vpop.f32.mrf.mxu0
        %v6512 = vadd.f32 0.0, %v6511
        %v6513 = vpop.f32.mrf.mxu0
        %6514 = vmatprep.mubr.f32.mxu0 0.0
        %6515 = vmatmul.mubr.f32.gmra.mxu0 %v6202
        %v6516 = vpop.f32.mrf.mxu0
        %v6517 = vadd.f32 0.0, %v6516
        %v6518 = vpop.f32.mrf.mxu0
        %6519 = vmatprep.mubr.f32.mxu0 0.0
        %6520 = vmatmul.mubr.f32.gmra.mxu0 %v6205
        %v6521 = vpop.f32.mrf.mxu0
        %v6522 = vadd.f32 0.0, %v6521
        %v6523 = vpop.f32.mrf.mxu0
        %6524 = vmatprep.mubr.f32.mxu0 0.0
        %6525 = vmatmul.mubr.f32.gmra.mxu0 %v6208
        %v6526 = vpop.f32.mrf.mxu0
        %v6527 = vadd.f32 0.0, %v6526
        %v6528 = vpop.f32.mrf.mxu0
        %6529 = vmatprep.mubr.f32.mxu0 0.0
        %6530 = vmatmul.mubr.f32.gmra.mxu0 %v6211
        %v6531 = vpop.f32.mrf.mxu0
        %v6532 = vadd.f32 0.0, %v6531
        %v6533 = vpop.f32.mrf.mxu0
        %6534 = vmatprep.mubr.f32.mxu0 0.0
        %6535 = vmatmul.mubr.f32.gmra.mxu0 %v6214
        %v6536 = vpop.f32.mrf.mxu0
        %v6537 = vadd.f32 0.0, %v6536
        %v6538 = vpop.f32.mrf.mxu0
        %6539 = vmatprep.mubr.f32.mxu0 0.0
        %6540 = vmatmul.mubr.f32.gmra.mxu0 %v6217
        %v6541 = vpop.f32.mrf.mxu0
        %v6542 = vadd.f32 0.0, %v6541
        %v6543 = vpop.f32.mrf.mxu0
        %6544 = vmatprep.mubr.f32.mxu0 0.0
        %6545 = vmatmul.mubr.f32.gmra.mxu0 %v6220
        %v6546 = vpop.f32.mrf.mxu0
        %v6547 = vadd.f32 0.0, %v6546
        %v6548 = vpop.f32.mrf.mxu0
        %6549 = vmatprep.mubr.f32.mxu0 0.0
        %6550 = vmatmul.mubr.f32.gmra.mxu0 %v6223
        %v6551 = vpop.f32.mrf.mxu0
        %v6552 = vadd.f32 0.0, %v6551
        %v6553 = vpop.f32.mrf.mxu0
        %6554 = vmatprep.mubr.f32.mxu0 0.0
        %6555 = vmatmul.mubr.f32.gmra.mxu0 %v6226
        %v6556 = vpop.f32.mrf.mxu0
        %v6557 = vadd.f32 0.0, %v6556
        %v6558 = vpop.f32.mrf.mxu0
        %6559 = vmatprep.mubr.f32.mxu0 0.0
        %6560 = vmatmul.mubr.f32.gmra.mxu0 %v6229
        %v6561 = vpop.f32.mrf.mxu0
        %v6562 = vadd.f32 0.0, %v6561
        %v6563 = vpop.f32.mrf.mxu0
        %6564 = vmatprep.mubr.f32.mxu0 0.0
        %6565 = vmatmul.mubr.f32.gmra.mxu0 %v6232
        %v6566 = vpop.f32.mrf.mxu0
        %v6567 = vadd.f32 0.0, %v6566
        %v6568 = vpop.f32.mrf.mxu0
        %6569 = vmatprep.mubr.f32.mxu0 0.0
        %6570 = vmatmul.mubr.f32.gmra.mxu0 %v6235
        %v6571 = vpop.f32.mrf.mxu0
        %v6572 = vadd.f32 0.0, %v6571
        %v6573 = vpop.f32.mrf.mxu0
        %6574 = vmatprep.mubr.f32.mxu0 0.0
        %6575 = vmatmul.mubr.f32.gmra.mxu0 %v6238
        %v6576 = vpop.f32.mrf.mxu0
        %v6577 = vadd.f32 0.0, %v6576
        %v6578 = vpop.f32.mrf.mxu0
        %6579 = vmatprep.mubr.f32.mxu0 0.0
        %6580 = vmatmul.mubr.f32.gmra.mxu0 %v6241
        %v6581 = vpop.f32.mrf.mxu0
        %v6582 = vadd.f32 0.0, %v6581
        %v6583 = vpop.f32.mrf.mxu0
        %6584 = vmatprep.mubr.f32.mxu0 0.0
        %6585 = vmatmul.mubr.f32.gmra.mxu0 %v6244
        %v6586 = vpop.f32.mrf.mxu0
        %v6587 = vadd.f32 0.0, %v6586
        %v6588 = vpop.f32.mrf.mxu0
        %6589 = vmatprep.mubr.f32.mxu0 0.0
        %6590 = vmatmul.mubr.f32.gmra.mxu0 %v6247
        %v6591 = vpop.f32.mrf.mxu0
        %v6592 = vadd.f32 0.0, %v6591
        %v6593 = vpop.f32.mrf.mxu0
        %6594 = vmatprep.mubr.f32.mxu0 0.0
        %6595 = vmatmul.mubr.f32.gmra.mxu0 %v6250
        %v6596 = vpop.f32.mrf.mxu0
        %v6597 = vadd.f32 0.0, %v6596
        %v6598 = vpop.f32.mrf.mxu0
        %6599 = vmatprep.mubr.f32.mxu0 0.0
        %6600 = vmatmul.mubr.f32.gmra.mxu0 %v6253
        %v6601 = vpop.f32.mrf.mxu0
        %v6602 = vadd.f32 0.0, %v6601
        %v6603 = vpop.f32.mrf.mxu0
        %6604 = vmatprep.mubr.f32.mxu0 0.0
        %6605 = vmatmul.mubr.f32.gmra.mxu0 %v6256
        %v6606 = vpop.f32.mrf.mxu0
        %v6607 = vadd.f32 0.0, %v6606
        %v6608 = vpop.f32.mrf.mxu0
        %6609 = vmatprep.mubr.f32.mxu0 0.0
        %6610 = vmatmul.mubr.f32.gmra.mxu0 %v6259
        %v6611 = vpop.f32.mrf.mxu0
        %v6612 = vadd.f32 0.0, %v6611
        %v6613 = vpop.f32.mrf.mxu0
        %6614 = vmatprep.mubr.f32.mxu0 0.0
        %6615 = vmatmul.mubr.f32.gmra.mxu0 %v6262
        %v6616 = vpop.f32.mrf.mxu0
        %v6617 = vadd.f32 0.0, %v6616
        %v6618 = vpop.f32.mrf.mxu0
        %6619 = vmatprep.mubr.f32.mxu0 0.0
        %6620 = vmatmul.mubr.f32.gmra.mxu0 %v6265
        %v6621 = vpop.f32.mrf.mxu0
        %v6622 = vadd.f32 0.0, %v6621
        %v6623 = vpop.f32.mrf.mxu0
        %6624 = vmatprep.mubr.f32.mxu0 0.0
        %6625 = vmatmul.mubr.f32.gmra.mxu0 %v6268
        %v6626 = vpop.f32.mrf.mxu0
        %v6627 = vadd.f32 0.0, %v6626
        %v6628 = vpop.f32.mrf.mxu0
        %6629 = vmatprep.mubr.f32.mxu0 0.0
        %6630 = vmatmul.mubr.f32.gmra.mxu0 %v6271
        %v6631 = vpop.f32.mrf.mxu0
        %v6632 = vadd.f32 0.0, %v6631
        %v6633 = vpop.f32.mrf.mxu0
        %6634 = vmatprep.mubr.f32.mxu0 0.0
        %6635 = vmatmul.mubr.f32.gmra.mxu0 %v6274
        %v6636 = vpop.f32.mrf.mxu0
        %v6637 = vadd.f32 0.0, %v6636
        %v6638 = vpop.f32.mrf.mxu0
        %6639 = vmatprep.mubr.f32.mxu0 0.0
        %6640 = vmatmul.mubr.f32.gmra.mxu0 %v6277
        %v6641 = vpop.f32.mrf.mxu0
        %v6642 = vadd.f32 0.0, %v6641
        %v6643 = vpop.f32.mrf.mxu0
        %6644 = vmatprep.mubr.f32.mxu0 0.0
        %6645 = vmatmul.mubr.f32.gmra.mxu0 %v6280
        %v6646 = vpop.f32.mrf.mxu0
        %v6647 = vadd.f32 0.0, %v6646
        %v6648 = vpop.f32.mrf.mxu0
        %6649 = vmatprep.mubr.f32.mxu0 0.0
        %6650 = vmatmul.mubr.f32.gmra.mxu0 %v6283
        %v6651 = vpop.f32.mrf.mxu0
        %v6652 = vadd.f32 0.0, %v6651
        %v6653 = vpop.f32.mrf.mxu0
        %6654 = vmatprep.mubr.f32.mxu0 0.0
        %6655 = vmatmul.mubr.f32.gmra.mxu0 %v6286
        %v6656 = vpop.f32.mrf.mxu0
        %v6657 = vadd.f32 0.0, %v6656
        %v6658 = vpop.f32.mrf.mxu0
        %6659 = vmatprep.mubr.f32.mxu0 0.0
        %6660 = vmatmul.mubr.f32.gmra.mxu0 %v6289
        %v6661 = vpop.f32.mrf.mxu0
        %v6662 = vadd.f32 0.0, %v6661
        %v6663 = vpop.f32.mrf.mxu0
        %6664 = vmatprep.mubr.f32.mxu0 0.0
        %6665 = vmatmul.mubr.f32.gmra.mxu0 %v6292
        %v6666 = vpop.f32.mrf.mxu0
        %v6667 = vadd.f32 0.0, %v6666
        %v6668 = vpop.f32.mrf.mxu0
        %6669 = vmatprep.mubr.f32.mxu0 0.0
        %6670 = vmatmul.mubr.f32.gmra.mxu0 %v6295
        %v6671 = vpop.f32.mrf.mxu0
        %v6672 = vadd.f32 0.0, %v6671
        %v6673 = vpop.f32.mrf.mxu0
        %6674 = vmatprep.mubr.f32.mxu0 0.0
        %6675 = vmatmul.mubr.f32.gmra.mxu0 %v6298
        %v6676 = vpop.f32.mrf.mxu0
        %v6677 = vadd.f32 0.0, %v6676
        %v6678 = vpop.f32.mrf.mxu0
        %6679 = vmatprep.mubr.f32.mxu0 0.0
        %6680 = vmatmul.mubr.f32.gmra.mxu0 %v6301
        %v6681 = vpop.f32.mrf.mxu0
        %v6682 = vadd.f32 0.0, %v6681
        %v6683 = vpop.f32.mrf.mxu0
        %6684 = vmatprep.mubr.f32.mxu0 0.0
        %6685 = vmatmul.mubr.f32.gmra.mxu0 %v6304
        %v6686 = vpop.f32.mrf.mxu0
        %v6687 = vadd.f32 0.0, %v6686
        %v6688 = vpop.f32.mrf.mxu0
        %6689 = vmatprep.mubr.f32.mxu0 0.0
        %6690 = vmatmul.mubr.f32.gmra.mxu0 %v6307
        %v6691 = vpop.f32.mrf.mxu0
        %v6692 = vadd.f32 0.0, %v6691
        %v6693 = vpop.f32.mrf.mxu0
        %6694 = vmatprep.mubr.f32.mxu0 0.0
        %6695 = vmatmul.mubr.f32.gmra.mxu0 %v6310
        %v6696 = vpop.f32.mrf.mxu0
        %v6697 = vadd.f32 0.0, %v6696
        %v6698 = vpop.f32.mrf.mxu0
        %6699 = vmatprep.mubr.f32.mxu0 0.0
        %6700 = vmatmul.mubr.f32.gmra.mxu0 %v6313
        %v6701 = vpop.f32.mrf.mxu0
        %v6702 = vadd.f32 0.0, %v6701
        %v6703 = vpop.f32.mrf.mxu0
        %6704 = vmatprep.mubr.f32.mxu0 0.0
        %6705 = vmatmul.mubr.f32.gmra.mxu0 %v6316
        %v6706 = vpop.f32.mrf.mxu0
        %v6707 = vadd.f32 0.0, %v6706
        %v6708 = vpop.f32.mrf.mxu0
        %6709 = vmatprep.mubr.f32.mxu0 0.0
        %6710 = vmatmul.mubr.f32.gmra.mxu0 %v6319
        %v6711 = vpop.f32.mrf.mxu0
        %v6712 = vadd.f32 0.0, %v6711
        %v6713 = vpop.f32.mrf.mxu0
        %6714 = vmatprep.mubr.f32.mxu0 0.0
        %6715 = vmatmul.mubr.f32.gmra.mxu0 %v6322
        %v6716 = vpop.f32.mrf.mxu0
        %v6717 = vadd.f32 0.0, %v6716
        %v6718 = vpop.f32.mrf.mxu0
        %6719 = vmatprep.mubr.f32.mxu0 0.0
        %6720 = vmatmul.mubr.f32.gmra.mxu0 %v6325
        %v6721 = vpop.f32.mrf.mxu0
        %v6722 = vadd.f32 0.0, %v6721
        %v6723 = vpop.f32.mrf.mxu0
        %6724 = vmatprep.mubr.f32.mxu0 0.0
        %6725 = vmatmul.mubr.f32.gmra.mxu0 %v6328
        %v6726 = vpop.f32.mrf.mxu0
        %v6727 = vadd.f32 0.0, %v6726
        %v6728 = vpop.f32.mrf.mxu0
        %6729 = vdwg.mxu0
        %v6731 = vsel %vm5181, %v5986, 0
        %v6734 = vsel %vm5181, %v5987, 0
        %v6737 = vsel %vm5181, %v5988, 0
        %v6740 = vsel %vm5181, %v5989, 0
        %v6743 = vsel %vm5181, %v5990, 0
        %v6746 = vsel %vm5181, %v5991, 0
        %v6749 = vsel %vm5181, %v5992, 0
        %v6752 = vsel %vm5181, %v5993, 0
        %v6755 = vsel %vm5181, %v5994, 0
        %v6758 = vsel %vm5181, %v5995, 0
        %v6761 = vsel %vm5181, %v5996, 0
        %v6764 = vsel %vm5181, %v5997, 0
        %v6767 = vsel %vm5181, %v5998, 0
        %v6770 = vsel %vm5181, %v5999, 0
        %v6773 = vsel %vm5181, %v6000, 0
        %v6776 = vsel %vm5181, %v6001, 0
        %v6779 = vsel %vm5181, %v6002, 0
        %v6782 = vsel %vm5181, %v6003, 0
        %v6785 = vsel %vm5181, %v6004, 0
        %v6788 = vsel %vm5181, %v6005, 0
        %v6791 = vsel %vm5181, %v6006, 0
        %v6794 = vsel %vm5181, %v6007, 0
        %v6797 = vsel %vm5181, %v6008, 0
        %v6800 = vsel %vm5181, %v6009, 0
        %v6803 = vsel %vm5181, %v6010, 0
        %v6806 = vsel %vm5181, %v6011, 0
        %v6809 = vsel %vm5181, %v6012, 0
        %v6812 = vsel %vm5181, %v6013, 0
        %v6815 = vsel %vm5181, %v6014, 0
        %v6818 = vsel %vm5181, %v6015, 0
        %v6821 = vsel %vm5181, %v6016, 0
        %v6824 = vsel %vm5181, %v6017, 0
        %v6827 = vsel %vm5181, %v6018, 0
        %v6830 = vsel %vm5181, %v6019, 0
        %v6833 = vsel %vm5181, %v6020, 0
        %v6836 = vsel %vm5181, %v6021, 0
        %v6839 = vsel %vm5181, %v6022, 0
        %v6842 = vsel %vm5181, %v6023, 0
        %v6845 = vsel %vm5181, %v6024, 0
        %v6848 = vsel %vm5181, %v6025, 0
        %v6851 = vsel %vm5181, %v6026, 0
        %v6854 = vsel %vm5181, %v6027, 0
        %v6857 = vsel %vm5181, %v6028, 0
        %v6860 = vsel %vm5181, %v6029, 0
        %v6863 = vsel %vm5181, %v6030, 0
        %v6866 = vsel %vm5181, %v6031, 0
        %v6869 = vsel %vm5181, %v6032, 0
        %v6872 = vsel %vm5181, %v6033, 0
        %v6875 = vsel %vm5181, %v6034, 0
        %v6878 = vsel %vm5181, %v6035, 0
        %v6881 = vsel %vm5181, %v6036, 0
        %v6884 = vsel %vm5181, %v6037, 0
        %v6887 = vsel %vm5181, %v6038, 0
        %v6890 = vsel %vm5181, %v6039, 0
        %v6893 = vsel %vm5181, %v6040, 0
        %v6896 = vsel %vm5181, %v6041, 0
        %v6899 = vsel %vm5181, %v6042, 0
        %v6902 = vsel %vm5181, %v6043, 0
        %v6905 = vsel %vm5181, %v6044, 0
        %v6908 = vsel %vm5181, %v6045, 0
        %v6911 = vsel %vm5181, %v6046, 0
        %v6914 = vsel %vm5181, %v6047, 0
        %v6917 = vsel %vm5181, %v6048, 0
        %v6920 = vsel %vm5181, %v6049, 0
        %v6923 = vsel %vm5181, %v6050, 0
        %v6926 = vsel %vm5181, %v6051, 0
        %v6929 = vsel %vm5181, %v6052, 0
        %6931 = vmatprep.subr.mxu0 0.0
        %6932 = vmatpush1.msra.mxu0 0.0
        %6933 = vmatprep.subr.mxu0 0.0
        %6934 = vmatpush1.msra.mxu0 0.0
        %6935 = vmatprep.subr.mxu0 0.0
        %6936 = vmatpush1.msra.mxu0 0.0
        %6937 = vmatprep.subr.mxu0 0.0
        %6938 = vmatpush1.msra.mxu0 0.0
        %6939 = vmatprep.subr.mxu0 0.0
        %6940 = vmatpush1.msra.mxu0 0.0
        %6941 = vmatprep.subr.mxu0 0.0
        %6942 = vmatpush1.msra.mxu0 0.0
        %6943 = vmatprep.subr.mxu0 0.0
        %6944 = vmatpush1.msra.mxu0 0.0
        %6945 = vmatprep.subr.mxu0 0.0
        %6946 = vmatpush1.msra.mxu0 0.0
        %6947 = vmatprep.subr.mxu0 0.0
        %6948 = vmatpush1.msra.mxu0 0.0
        %6949 = vmatprep.subr.mxu0 0.0
        %6950 = vmatpush1.msra.mxu0 0.0
        %6951 = vmatprep.subr.mxu0 0.0
        %6952 = vmatpush1.msra.mxu0 0.0
        %6953 = vmatprep.subr.mxu0 0.0
        %6954 = vmatpush1.msra.mxu0 0.0
        %6955 = vmatprep.subr.mxu0 0.0
        %6956 = vmatpush1.msra.mxu0 %v6056
        %6957 = vmatprep.subr.mxu0 0.0
        %6958 = vmatpush1.msra.mxu0 %v6055
        %6959 = vmatprep.subr.mxu0 0.0
        %6960 = vmatpush1.msra.mxu0 %v6054
        %6961 = vmatprep.subr.mxu0 0.0
        %6962 = vmatpush1.msra.mxu0 %v6053
        %6963 = vmatprep.subr.mxu0 0.0
        %6964 = vmatpush2.msra.mxu0 0.0
        %6965 = vmatprep.subr.mxu0 0.0
        %6966 = vmatpush2.msra.mxu0 0.0
        %6967 = vmatprep.subr.mxu0 0.0
        %6968 = vmatpush2.msra.mxu0 0.0
        %6969 = vmatprep.subr.mxu0 0.0
        %6970 = vmatpush2.msra.mxu0 0.0
        %6971 = vmatprep.subr.mxu0 0.0
        %6972 = vmatpush2.msra.mxu0 0.0
        %6973 = vmatprep.subr.mxu0 0.0
        %6974 = vmatpush2.msra.mxu0 0.0
        %6975 = vmatprep.subr.mxu0 0.0
        %6976 = vmatpush2.msra.mxu0 0.0
        %6977 = vmatprep.subr.mxu0 0.0
        %6978 = vmatpush2.msra.mxu0 0.0
        %6979 = vmatprep.subr.mxu0 0.0
        %6980 = vmatpush2.msra.mxu0 0.0
        %6981 = vmatprep.subr.mxu0 0.0
        %6982 = vmatpush2.msra.mxu0 0.0
        %6983 = vmatprep.subr.mxu0 0.0
        %6984 = vmatpush2.msra.mxu0 0.0
        %6985 = vmatprep.subr.mxu0 0.0
        %6986 = vmatpush2.msra.mxu0 0.0
        %6987 = vmatprep.subr.mxu0 0.0
        %6988 = vmatpush2.msra.mxu0 0.0
        %6989 = vmatprep.subr.mxu0 0.0
        %6990 = vmatpush2.msra.mxu0 0.0
        %6991 = vmatprep.subr.mxu0 0.0
        %6992 = vmatpush2.msra.mxu0 0.0
        %6993 = vmatprep.subr.mxu0 0.0
        %6994 = vmatpush2.msra.mxu0 0.0
        %6995 = vmatprep.mubr.f32.mxu0 0.0
        %6996 = vmatmul.mubr.f32.gmra.mxu0 %v6731
        %v6997 = vpop.f32.mrf.mxu0
        %v6998 = vadd.f32 %v6397, %v6997
        %v6999 = vpop.f32.mrf.mxu0
        %7000 = vmatprep.mubr.f32.mxu0 0.0
        %7001 = vmatmul.mubr.f32.gmra.mxu0 %v6734
        %v7002 = vpop.f32.mrf.mxu0
        %v7003 = vadd.f32 %v6402, %v7002
        %v7004 = vpop.f32.mrf.mxu0
        %7005 = vmatprep.mubr.f32.mxu0 0.0
        %7006 = vmatmul.mubr.f32.gmra.mxu0 %v6737
        %v7007 = vpop.f32.mrf.mxu0
        %v7008 = vadd.f32 %v6407, %v7007
        %v7009 = vpop.f32.mrf.mxu0
        %7010 = vmatprep.mubr.f32.mxu0 0.0
        %7011 = vmatmul.mubr.f32.gmra.mxu0 %v6740
        %v7012 = vpop.f32.mrf.mxu0
        %v7013 = vadd.f32 %v6412, %v7012
        %v7014 = vpop.f32.mrf.mxu0
        %7015 = vmatprep.mubr.f32.mxu0 0.0
        %7016 = vmatmul.mubr.f32.gmra.mxu0 %v6743
        %v7017 = vpop.f32.mrf.mxu0
        %v7018 = vadd.f32 %v6417, %v7017
        %v7019 = vpop.f32.mrf.mxu0
        %7020 = vmatprep.mubr.f32.mxu0 0.0
        %7021 = vmatmul.mubr.f32.gmra.mxu0 %v6746
        %v7022 = vpop.f32.mrf.mxu0
        %v7023 = vadd.f32 %v6422, %v7022
        %v7024 = vpop.f32.mrf.mxu0
        %7025 = vmatprep.mubr.f32.mxu0 0.0
        %7026 = vmatmul.mubr.f32.gmra.mxu0 %v6749
        %v7027 = vpop.f32.mrf.mxu0
        %v7028 = vadd.f32 %v6427, %v7027
        %v7029 = vpop.f32.mrf.mxu0
        %7030 = vmatprep.mubr.f32.mxu0 0.0
        %7031 = vmatmul.mubr.f32.gmra.mxu0 %v6752
        %v7032 = vpop.f32.mrf.mxu0
        %v7033 = vadd.f32 %v6432, %v7032
        %v7034 = vpop.f32.mrf.mxu0
        %7035 = vmatprep.mubr.f32.mxu0 0.0
        %7036 = vmatmul.mubr.f32.gmra.mxu0 %v6755
        %v7037 = vpop.f32.mrf.mxu0
        %v7038 = vadd.f32 %v6437, %v7037
        %v7039 = vpop.f32.mrf.mxu0
        %7040 = vmatprep.mubr.f32.mxu0 0.0
        %7041 = vmatmul.mubr.f32.gmra.mxu0 %v6758
        %v7042 = vpop.f32.mrf.mxu0
        %v7043 = vadd.f32 %v6442, %v7042
        %v7044 = vpop.f32.mrf.mxu0
        %7045 = vmatprep.mubr.f32.mxu0 0.0
        %7046 = vmatmul.mubr.f32.gmra.mxu0 %v6761
        %v7047 = vpop.f32.mrf.mxu0
        %v7048 = vadd.f32 %v6447, %v7047
        %v7049 = vpop.f32.mrf.mxu0
        %7050 = vmatprep.mubr.f32.mxu0 0.0
        %7051 = vmatmul.mubr.f32.gmra.mxu0 %v6764
        %v7052 = vpop.f32.mrf.mxu0
        %v7053 = vadd.f32 %v6452, %v7052
        %v7054 = vpop.f32.mrf.mxu0
        %7055 = vmatprep.mubr.f32.mxu0 0.0
        %7056 = vmatmul.mubr.f32.gmra.mxu0 %v6767
        %v7057 = vpop.f32.mrf.mxu0
        %v7058 = vadd.f32 %v6457, %v7057
        %v7059 = vpop.f32.mrf.mxu0
        %7060 = vmatprep.mubr.f32.mxu0 0.0
        %7061 = vmatmul.mubr.f32.gmra.mxu0 %v6770
        %v7062 = vpop.f32.mrf.mxu0
        %v7063 = vadd.f32 %v6462, %v7062
        %v7064 = vpop.f32.mrf.mxu0
        %7065 = vmatprep.mubr.f32.mxu0 0.0
        %7066 = vmatmul.mubr.f32.gmra.mxu0 %v6773
        %v7067 = vpop.f32.mrf.mxu0
        %v7068 = vadd.f32 %v6467, %v7067
        %v7069 = vpop.f32.mrf.mxu0
        %7070 = vmatprep.mubr.f32.mxu0 0.0
        %7071 = vmatmul.mubr.f32.gmra.mxu0 %v6776
        %v7072 = vpop.f32.mrf.mxu0
        %v7073 = vadd.f32 %v6472, %v7072
        %v7074 = vpop.f32.mrf.mxu0
        %7075 = vmatprep.mubr.f32.mxu0 0.0
        %7076 = vmatmul.mubr.f32.gmra.mxu0 %v6779
        %v7077 = vpop.f32.mrf.mxu0
        %v7078 = vadd.f32 %v6477, %v7077
        %v7079 = vpop.f32.mrf.mxu0
        %7080 = vmatprep.mubr.f32.mxu0 0.0
        %7081 = vmatmul.mubr.f32.gmra.mxu0 %v6782
        %v7082 = vpop.f32.mrf.mxu0
        %v7083 = vadd.f32 %v6482, %v7082
        %v7084 = vpop.f32.mrf.mxu0
        %7085 = vmatprep.mubr.f32.mxu0 0.0
        %7086 = vmatmul.mubr.f32.gmra.mxu0 %v6785
        %v7087 = vpop.f32.mrf.mxu0
        %v7088 = vadd.f32 %v6487, %v7087
        %v7089 = vpop.f32.mrf.mxu0
        %7090 = vmatprep.mubr.f32.mxu0 0.0
        %7091 = vmatmul.mubr.f32.gmra.mxu0 %v6788
        %v7092 = vpop.f32.mrf.mxu0
        %v7093 = vadd.f32 %v6492, %v7092
        %v7094 = vpop.f32.mrf.mxu0
        %7095 = vmatprep.mubr.f32.mxu0 0.0
        %7096 = vmatmul.mubr.f32.gmra.mxu0 %v6791
        %v7097 = vpop.f32.mrf.mxu0
        %v7098 = vadd.f32 %v6497, %v7097
        %v7099 = vpop.f32.mrf.mxu0
        %7100 = vmatprep.mubr.f32.mxu0 0.0
        %7101 = vmatmul.mubr.f32.gmra.mxu0 %v6794
        %v7102 = vpop.f32.mrf.mxu0
        %v7103 = vadd.f32 %v6502, %v7102
        %v7104 = vpop.f32.mrf.mxu0
        %7105 = vmatprep.mubr.f32.mxu0 0.0
        %7106 = vmatmul.mubr.f32.gmra.mxu0 %v6797
        %v7107 = vpop.f32.mrf.mxu0
        %v7108 = vadd.f32 %v6507, %v7107
        %v7109 = vpop.f32.mrf.mxu0
        %7110 = vmatprep.mubr.f32.mxu0 0.0
        %7111 = vmatmul.mubr.f32.gmra.mxu0 %v6800
        %v7112 = vpop.f32.mrf.mxu0
        %v7113 = vadd.f32 %v6512, %v7112
        %v7114 = vpop.f32.mrf.mxu0
        %7115 = vmatprep.mubr.f32.mxu0 0.0
        %7116 = vmatmul.mubr.f32.gmra.mxu0 %v6803
        %v7117 = vpop.f32.mrf.mxu0
        %v7118 = vadd.f32 %v6517, %v7117
        %v7119 = vpop.f32.mrf.mxu0
        %7120 = vmatprep.mubr.f32.mxu0 0.0
        %7121 = vmatmul.mubr.f32.gmra.mxu0 %v6806
        %v7122 = vpop.f32.mrf.mxu0
        %v7123 = vadd.f32 %v6522, %v7122
        %v7124 = vpop.f32.mrf.mxu0
        %7125 = vmatprep.mubr.f32.mxu0 0.0
        %7126 = vmatmul.mubr.f32.gmra.mxu0 %v6809
        %v7127 = vpop.f32.mrf.mxu0
        %v7128 = vadd.f32 %v6527, %v7127
        %v7129 = vpop.f32.mrf.mxu0
        %7130 = vmatprep.mubr.f32.mxu0 0.0
        %7131 = vmatmul.mubr.f32.gmra.mxu0 %v6812
        %v7132 = vpop.f32.mrf.mxu0
        %v7133 = vadd.f32 %v6532, %v7132
        %v7134 = vpop.f32.mrf.mxu0
        %7135 = vmatprep.mubr.f32.mxu0 0.0
        %7136 = vmatmul.mubr.f32.gmra.mxu0 %v6815
        %v7137 = vpop.f32.mrf.mxu0
        %v7138 = vadd.f32 %v6537, %v7137
        %v7139 = vpop.f32.mrf.mxu0
        %7140 = vmatprep.mubr.f32.mxu0 0.0
        %7141 = vmatmul.mubr.f32.gmra.mxu0 %v6818
        %v7142 = vpop.f32.mrf.mxu0
        %v7143 = vadd.f32 %v6542, %v7142
        %v7144 = vpop.f32.mrf.mxu0
        %7145 = vmatprep.mubr.f32.mxu0 0.0
        %7146 = vmatmul.mubr.f32.gmra.mxu0 %v6821
        %v7147 = vpop.f32.mrf.mxu0
        %v7148 = vadd.f32 %v6547, %v7147
        %v7149 = vpop.f32.mrf.mxu0
        %7150 = vmatprep.mubr.f32.mxu0 0.0
        %7151 = vmatmul.mubr.f32.gmra.mxu0 %v6824
        %v7152 = vpop.f32.mrf.mxu0
        %v7153 = vadd.f32 %v6552, %v7152
        %v7154 = vpop.f32.mrf.mxu0
        %7155 = vmatprep.mubr.f32.mxu0 0.0
        %7156 = vmatmul.mubr.f32.gmra.mxu0 %v6827
        %v7157 = vpop.f32.mrf.mxu0
        %v7158 = vadd.f32 %v6557, %v7157
        %v7159 = vpop.f32.mrf.mxu0
        %7160 = vmatprep.mubr.f32.mxu0 0.0
        %7161 = vmatmul.mubr.f32.gmra.mxu0 %v6830
        %v7162 = vpop.f32.mrf.mxu0
        %v7163 = vadd.f32 %v6562, %v7162
        %v7164 = vpop.f32.mrf.mxu0
        %7165 = vmatprep.mubr.f32.mxu0 0.0
        %7166 = vmatmul.mubr.f32.gmra.mxu0 %v6833
        %v7167 = vpop.f32.mrf.mxu0
        %v7168 = vadd.f32 %v6567, %v7167
        %v7169 = vpop.f32.mrf.mxu0
        %7170 = vmatprep.mubr.f32.mxu0 0.0
        %7171 = vmatmul.mubr.f32.gmra.mxu0 %v6836
        %v7172 = vpop.f32.mrf.mxu0
        %v7173 = vadd.f32 %v6572, %v7172
        %v7174 = vpop.f32.mrf.mxu0
        %7175 = vmatprep.mubr.f32.mxu0 0.0
        %7176 = vmatmul.mubr.f32.gmra.mxu0 %v6839
        %v7177 = vpop.f32.mrf.mxu0
        %v7178 = vadd.f32 %v6577, %v7177
        %v7179 = vpop.f32.mrf.mxu0
        %7180 = vmatprep.mubr.f32.mxu0 0.0
        %7181 = vmatmul.mubr.f32.gmra.mxu0 %v6842
        %v7182 = vpop.f32.mrf.mxu0
        %v7183 = vadd.f32 %v6582, %v7182
        %v7184 = vpop.f32.mrf.mxu0
        %7185 = vmatprep.mubr.f32.mxu0 0.0
        %7186 = vmatmul.mubr.f32.gmra.mxu0 %v6845
        %v7187 = vpop.f32.mrf.mxu0
        %v7188 = vadd.f32 %v6587, %v7187
        %v7189 = vpop.f32.mrf.mxu0
        %7190 = vmatprep.mubr.f32.mxu0 0.0
        %7191 = vmatmul.mubr.f32.gmra.mxu0 %v6848
        %v7192 = vpop.f32.mrf.mxu0
        %v7193 = vadd.f32 %v6592, %v7192
        %v7194 = vpop.f32.mrf.mxu0
        %7195 = vmatprep.mubr.f32.mxu0 0.0
        %7196 = vmatmul.mubr.f32.gmra.mxu0 %v6851
        %v7197 = vpop.f32.mrf.mxu0
        %v7198 = vadd.f32 %v6597, %v7197
        %v7199 = vpop.f32.mrf.mxu0
        %7200 = vmatprep.mubr.f32.mxu0 0.0
        %7201 = vmatmul.mubr.f32.gmra.mxu0 %v6854
        %v7202 = vpop.f32.mrf.mxu0
        %v7203 = vadd.f32 %v6602, %v7202
        %v7204 = vpop.f32.mrf.mxu0
        %7205 = vmatprep.mubr.f32.mxu0 0.0
        %7206 = vmatmul.mubr.f32.gmra.mxu0 %v6857
        %v7207 = vpop.f32.mrf.mxu0
        %v7208 = vadd.f32 %v6607, %v7207
        %v7209 = vpop.f32.mrf.mxu0
        %7210 = vmatprep.mubr.f32.mxu0 0.0
        %7211 = vmatmul.mubr.f32.gmra.mxu0 %v6860
        %v7212 = vpop.f32.mrf.mxu0
        %v7213 = vadd.f32 %v6612, %v7212
        %v7214 = vpop.f32.mrf.mxu0
        %7215 = vmatprep.mubr.f32.mxu0 0.0
        %7216 = vmatmul.mubr.f32.gmra.mxu0 %v6863
        %v7217 = vpop.f32.mrf.mxu0
        %v7218 = vadd.f32 %v6617, %v7217
        %v7219 = vpop.f32.mrf.mxu0
        %7220 = vmatprep.mubr.f32.mxu0 0.0
        %7221 = vmatmul.mubr.f32.gmra.mxu0 %v6866
        %v7222 = vpop.f32.mrf.mxu0
        %v7223 = vadd.f32 %v6622, %v7222
        %v7224 = vpop.f32.mrf.mxu0
        %7225 = vmatprep.mubr.f32.mxu0 0.0
        %7226 = vmatmul.mubr.f32.gmra.mxu0 %v6869
        %v7227 = vpop.f32.mrf.mxu0
        %v7228 = vadd.f32 %v6627, %v7227
        %v7229 = vpop.f32.mrf.mxu0
        %7230 = vmatprep.mubr.f32.mxu0 0.0
        %7231 = vmatmul.mubr.f32.gmra.mxu0 %v6872
        %v7232 = vpop.f32.mrf.mxu0
        %v7233 = vadd.f32 %v6632, %v7232
        %v7234 = vpop.f32.mrf.mxu0
        %7235 = vmatprep.mubr.f32.mxu0 0.0
        %7236 = vmatmul.mubr.f32.gmra.mxu0 %v6875
        %v7237 = vpop.f32.mrf.mxu0
        %v7238 = vadd.f32 %v6637, %v7237
        %v7239 = vpop.f32.mrf.mxu0
        %7240 = vmatprep.mubr.f32.mxu0 0.0
        %7241 = vmatmul.mubr.f32.gmra.mxu0 %v6878
        %v7242 = vpop.f32.mrf.mxu0
        %v7243 = vadd.f32 %v6642, %v7242
        %v7244 = vpop.f32.mrf.mxu0
        %7245 = vmatprep.mubr.f32.mxu0 0.0
        %7246 = vmatmul.mubr.f32.gmra.mxu0 %v6881
        %v7247 = vpop.f32.mrf.mxu0
        %v7248 = vadd.f32 %v6647, %v7247
        %v7249 = vpop.f32.mrf.mxu0
        %7250 = vmatprep.mubr.f32.mxu0 0.0
        %7251 = vmatmul.mubr.f32.gmra.mxu0 %v6884
        %v7252 = vpop.f32.mrf.mxu0
        %v7253 = vadd.f32 %v6652, %v7252
        %v7254 = vpop.f32.mrf.mxu0
        %7255 = vmatprep.mubr.f32.mxu0 0.0
        %7256 = vmatmul.mubr.f32.gmra.mxu0 %v6887
        %v7257 = vpop.f32.mrf.mxu0
        %v7258 = vadd.f32 %v6657, %v7257
        %v7259 = vpop.f32.mrf.mxu0
        %7260 = vmatprep.mubr.f32.mxu0 0.0
        %7261 = vmatmul.mubr.f32.gmra.mxu0 %v6890
        %v7262 = vpop.f32.mrf.mxu0
        %v7263 = vadd.f32 %v6662, %v7262
        %v7264 = vpop.f32.mrf.mxu0
        %7265 = vmatprep.mubr.f32.mxu0 0.0
        %7266 = vmatmul.mubr.f32.gmra.mxu0 %v6893
        %v7267 = vpop.f32.mrf.mxu0
        %v7268 = vadd.f32 %v6667, %v7267
        %v7269 = vpop.f32.mrf.mxu0
        %7270 = vmatprep.mubr.f32.mxu0 0.0
        %7271 = vmatmul.mubr.f32.gmra.mxu0 %v6896
        %v7272 = vpop.f32.mrf.mxu0
        %v7273 = vadd.f32 %v6672, %v7272
        %v7274 = vpop.f32.mrf.mxu0
        %7275 = vmatprep.mubr.f32.mxu0 0.0
        %7276 = vmatmul.mubr.f32.gmra.mxu0 %v6899
        %v7277 = vpop.f32.mrf.mxu0
        %v7278 = vadd.f32 %v6677, %v7277
        %v7279 = vpop.f32.mrf.mxu0
        %7280 = vmatprep.mubr.f32.mxu0 0.0
        %7281 = vmatmul.mubr.f32.gmra.mxu0 %v6902
        %v7282 = vpop.f32.mrf.mxu0
        %v7283 = vadd.f32 %v6682, %v7282
        %v7284 = vpop.f32.mrf.mxu0
        %7285 = vmatprep.mubr.f32.mxu0 0.0
        %7286 = vmatmul.mubr.f32.gmra.mxu0 %v6905
        %v7287 = vpop.f32.mrf.mxu0
        %v7288 = vadd.f32 %v6687, %v7287
        %v7289 = vpop.f32.mrf.mxu0
        %7290 = vmatprep.mubr.f32.mxu0 0.0
        %7291 = vmatmul.mubr.f32.gmra.mxu0 %v6908
        %v7292 = vpop.f32.mrf.mxu0
        %v7293 = vadd.f32 %v6692, %v7292
        %v7294 = vpop.f32.mrf.mxu0
        %7295 = vmatprep.mubr.f32.mxu0 0.0
        %7296 = vmatmul.mubr.f32.gmra.mxu0 %v6911
        %v7297 = vpop.f32.mrf.mxu0
        %v7298 = vadd.f32 %v6697, %v7297
        %v7299 = vpop.f32.mrf.mxu0
        %7300 = vmatprep.mubr.f32.mxu0 0.0
        %7301 = vmatmul.mubr.f32.gmra.mxu0 %v6914
        %v7302 = vpop.f32.mrf.mxu0
        %v7303 = vadd.f32 %v6702, %v7302
        %v7304 = vpop.f32.mrf.mxu0
        %7305 = vmatprep.mubr.f32.mxu0 0.0
        %7306 = vmatmul.mubr.f32.gmra.mxu0 %v6917
        %v7307 = vpop.f32.mrf.mxu0
        %v7308 = vadd.f32 %v6707, %v7307
        %v7309 = vpop.f32.mrf.mxu0
        %7310 = vmatprep.mubr.f32.mxu0 0.0
        %7311 = vmatmul.mubr.f32.gmra.mxu0 %v6920
        %v7312 = vpop.f32.mrf.mxu0
        %v7313 = vadd.f32 %v6712, %v7312
        %v7314 = vpop.f32.mrf.mxu0
        %7315 = vmatprep.mubr.f32.mxu0 0.0
        %7316 = vmatmul.mubr.f32.gmra.mxu0 %v6923
        %v7317 = vpop.f32.mrf.mxu0
        %v7318 = vadd.f32 %v6717, %v7317
        %v7319 = vpop.f32.mrf.mxu0
        %7320 = vmatprep.mubr.f32.mxu0 0.0
        %7321 = vmatmul.mubr.f32.gmra.mxu0 %v6926
        %v7322 = vpop.f32.mrf.mxu0
        %v7323 = vadd.f32 %v6722, %v7322
        %v7324 = vpop.f32.mrf.mxu0
        %7325 = vmatprep.mubr.f32.mxu0 0.0
        %7326 = vmatmul.mubr.f32.gmra.mxu0 %v6929
        %v7327 = vpop.f32.mrf.mxu0
        %v7328 = vadd.f32 %v6727, %v7327
        %v7329 = vpop.f32.mrf.mxu0
        %7330 = vdwg.mxu0
        %v7331 = vld [vmem:[#allocation3 + $0x2] sm:$0xff]
        %v7332 = vld [vmem:[#allocation3 + $0xa] sm:$0xff]
        %v7333 = vld [vmem:[#allocation3 + $0x12] sm:$0xff]
        %v7334 = vld [vmem:[#allocation3 + $0x1a] sm:$0xff]
        %v7335 = vld [vmem:[#allocation3 + $0x22] sm:$0xff]
        %v7336 = vld [vmem:[#allocation3 + $0x2a] sm:$0xff]
        %v7337 = vld [vmem:[#allocation3 + $0x32] sm:$0xff]
        %v7338 = vld [vmem:[#allocation3 + $0x3a] sm:$0xff]
        %v7339 = vld [vmem:[#allocation3 + $0x42] sm:$0xff]
        %v7340 = vld [vmem:[#allocation3 + $0x4a] sm:$0xff]
        %v7341 = vld [vmem:[#allocation3 + $0x52] sm:$0xff]
        %v7342 = vld [vmem:[#allocation3 + $0x5a] sm:$0xff]
        %v7343 = vld [vmem:[#allocation3 + $0x62] sm:$0xff]
        %v7344 = vld [vmem:[#allocation3 + $0x6a] sm:$0xff]
        %v7345 = vld [vmem:[#allocation3 + $0x72] sm:$0xff]
        %v7346 = vld [vmem:[#allocation3 + $0x7a] sm:$0xff]
        %v7347 = vld [vmem:[#allocation3 + $0x82] sm:$0xff]
        %v7348 = vld [vmem:[#allocation3 + $0x8a] sm:$0xff]
        %v7349 = vld [vmem:[#allocation3 + $0x92] sm:$0xff]
        %v7350 = vld [vmem:[#allocation3 + $0x9a] sm:$0xff]
        %v7351 = vld [vmem:[#allocation3 + $0xa2] sm:$0xff]
        %v7352 = vld [vmem:[#allocation3 + $0xaa] sm:$0xff]
        %v7353 = vld [vmem:[#allocation3 + $0xb2] sm:$0xff]
        %v7354 = vld [vmem:[#allocation3 + $0xba] sm:$0xff]
        %v7355 = vld [vmem:[#allocation3 + $0xc2] sm:$0xff]
        %v7356 = vld [vmem:[#allocation3 + $0xca] sm:$0xff]
        %v7357 = vld [vmem:[#allocation3 + $0xd2] sm:$0xff]
        %v7358 = vld [vmem:[#allocation3 + $0xda] sm:$0xff]
        %v7359 = vld [vmem:[#allocation3 + $0xe2] sm:$0xff]
        %v7360 = vld [vmem:[#allocation3 + $0xea] sm:$0xff]
        %v7361 = vld [vmem:[#allocation3 + $0xf2] sm:$0xff]
        %v7362 = vld [vmem:[#allocation3 + $0xfa] sm:$0xff]
        %v7363 = vld [vmem:[#allocation3 + $0x102] sm:$0xff]
        %v7364 = vld [vmem:[#allocation3 + $0x10a] sm:$0xff]
        %v7365 = vld [vmem:[#allocation3 + $0x112] sm:$0xff]
        %v7366 = vld [vmem:[#allocation3 + $0x11a] sm:$0xff]
        %v7367 = vld [vmem:[#allocation3 + $0x122] sm:$0xff]
        %v7368 = vld [vmem:[#allocation3 + $0x12a] sm:$0xff]
        %v7369 = vld [vmem:[#allocation3 + $0x132] sm:$0xff]
        %v7370 = vld [vmem:[#allocation3 + $0x13a] sm:$0xff]
        %v7371 = vld [vmem:[#allocation3 + $0x142] sm:$0xff]
        %v7372 = vld [vmem:[#allocation3 + $0x14a] sm:$0xff]
        %v7373 = vld [vmem:[#allocation3 + $0x152] sm:$0xff]
        %v7374 = vld [vmem:[#allocation3 + $0x15a] sm:$0xff]
        %v7375 = vld [vmem:[#allocation3 + $0x162] sm:$0xff]
        %v7376 = vld [vmem:[#allocation3 + $0x16a] sm:$0xff]
        %v7377 = vld [vmem:[#allocation3 + $0x172] sm:$0xff]
        %v7378 = vld [vmem:[#allocation3 + $0x17a] sm:$0xff]
        %v7379 = vld [vmem:[#allocation3 + $0x182] sm:$0xff]
        %v7380 = vld [vmem:[#allocation3 + $0x18a] sm:$0xff]
        %v7381 = vld [vmem:[#allocation3 + $0x192] sm:$0xff]
        %v7382 = vld [vmem:[#allocation3 + $0x19a] sm:$0xff]
        %v7383 = vld [vmem:[#allocation3 + $0x1a2] sm:$0xff]
        %v7384 = vld [vmem:[#allocation3 + $0x1aa] sm:$0xff]
        %v7385 = vld [vmem:[#allocation3 + $0x1b2] sm:$0xff]
        %v7386 = vld [vmem:[#allocation3 + $0x1ba] sm:$0xff]
        %v7387 = vld [vmem:[#allocation3 + $0x1c2] sm:$0xff]
        %v7388 = vld [vmem:[#allocation3 + $0x1ca] sm:$0xff]
        %v7389 = vld [vmem:[#allocation3 + $0x1d2] sm:$0xff]
        %v7390 = vld [vmem:[#allocation3 + $0x1da] sm:$0xff]
        %v7391 = vld [vmem:[#allocation3 + $0x1e2] sm:$0xff]
        %v7392 = vld [vmem:[#allocation3 + $0x1ea] sm:$0xff]
        %v7393 = vld [vmem:[#allocation3 + $0x1f2] sm:$0xff]
        %v7394 = vld [vmem:[#allocation3 + $0x1fa] sm:$0xff]
        %v7395 = vld [vmem:[#allocation3 + $0x202] sm:$0xff]
        %v7396 = vld [vmem:[#allocation3 + $0x20a] sm:$0xff]
        %v7397 = vld [vmem:[#allocation3 + $0x212] sm:$0x3]
        %s7398 = scalar_lea.vmem [#allocation11], 64
        %v7399 = vld [vmem:[%s7398] sm:$0xff]
        %v7400 = vld [vmem:[%s7398 + $0x8] sm:$0xff]
        %v7401 = vld [vmem:[%s7398 + $0x10] sm:$0xff]
        %v7402 = vld [vmem:[%s7398 + $0x18] sm:$0xff]
        %v7404 = vsel %vm5181, %v7331, 0
        %v7407 = vsel %vm5181, %v7332, 0
        %v7410 = vsel %vm5181, %v7333, 0
        %v7413 = vsel %vm5181, %v7334, 0
        %v7416 = vsel %vm5181, %v7335, 0
        %v7419 = vsel %vm5181, %v7336, 0
        %v7422 = vsel %vm5181, %v7337, 0
        %v7425 = vsel %vm5181, %v7338, 0
        %v7428 = vsel %vm5181, %v7339, 0
        %v7431 = vsel %vm5181, %v7340, 0
        %v7434 = vsel %vm5181, %v7341, 0
        %v7437 = vsel %vm5181, %v7342, 0
        %v7440 = vsel %vm5181, %v7343, 0
        %v7443 = vsel %vm5181, %v7344, 0
        %v7446 = vsel %vm5181, %v7345, 0
        %v7449 = vsel %vm5181, %v7346, 0
        %v7452 = vsel %vm5181, %v7347, 0
        %v7455 = vsel %vm5181, %v7348, 0
        %v7458 = vsel %vm5181, %v7349, 0
        %v7461 = vsel %vm5181, %v7350, 0
        %v7464 = vsel %vm5181, %v7351, 0
        %v7467 = vsel %vm5181, %v7352, 0
        %v7470 = vsel %vm5181, %v7353, 0
        %v7473 = vsel %vm5181, %v7354, 0
        %v7476 = vsel %vm5181, %v7355, 0
        %v7479 = vsel %vm5181, %v7356, 0
        %v7482 = vsel %vm5181, %v7357, 0
        %v7485 = vsel %vm5181, %v7358, 0
        %v7488 = vsel %vm5181, %v7359, 0
        %v7491 = vsel %vm5181, %v7360, 0
        %v7494 = vsel %vm5181, %v7361, 0
        %v7497 = vsel %vm5181, %v7362, 0
        %v7500 = vsel %vm5181, %v7363, 0
        %v7503 = vsel %vm5181, %v7364, 0
        %v7506 = vsel %vm5181, %v7365, 0
        %v7509 = vsel %vm5181, %v7366, 0
        %v7512 = vsel %vm5181, %v7367, 0
        %v7515 = vsel %vm5181, %v7368, 0
        %v7518 = vsel %vm5181, %v7369, 0
        %v7521 = vsel %vm5181, %v7370, 0
        %v7524 = vsel %vm5181, %v7371, 0
        %v7527 = vsel %vm5181, %v7372, 0
        %v7530 = vsel %vm5181, %v7373, 0
        %v7533 = vsel %vm5181, %v7374, 0
        %v7536 = vsel %vm5181, %v7375, 0
        %v7539 = vsel %vm5181, %v7376, 0
        %v7542 = vsel %vm5181, %v7377, 0
        %v7545 = vsel %vm5181, %v7378, 0
        %v7548 = vsel %vm5181, %v7379, 0
        %v7551 = vsel %vm5181, %v7380, 0
        %v7554 = vsel %vm5181, %v7381, 0
        %v7557 = vsel %vm5181, %v7382, 0
        %v7560 = vsel %vm5181, %v7383, 0
        %v7563 = vsel %vm5181, %v7384, 0
        %v7566 = vsel %vm5181, %v7385, 0
        %v7569 = vsel %vm5181, %v7386, 0
        %v7572 = vsel %vm5181, %v7387, 0
        %v7575 = vsel %vm5181, %v7388, 0
        %v7578 = vsel %vm5181, %v7389, 0
        %v7581 = vsel %vm5181, %v7390, 0
        %v7584 = vsel %vm5181, %v7391, 0
        %v7587 = vsel %vm5181, %v7392, 0
        %v7590 = vsel %vm5181, %v7393, 0
        %v7593 = vsel %vm5181, %v7394, 0
        %v7596 = vsel %vm5181, %v7395, 0
        %v7599 = vsel %vm5181, %v7396, 0
        %v7602 = vsel %vm5181, %v7397, 0
        %7604 = vmatprep.subr.mxu0 0.0
        %7605 = vmatpush1.msra.mxu0 0.0
        %7606 = vmatprep.subr.mxu0 0.0
        %7607 = vmatpush1.msra.mxu0 0.0
        %7608 = vmatprep.subr.mxu0 0.0
        %7609 = vmatpush1.msra.mxu0 0.0
        %7610 = vmatprep.subr.mxu0 0.0
        %7611 = vmatpush1.msra.mxu0 0.0
        %7612 = vmatprep.subr.mxu0 0.0
        %7613 = vmatpush1.msra.mxu0 0.0
        %7614 = vmatprep.subr.mxu0 0.0
        %7615 = vmatpush1.msra.mxu0 0.0
        %7616 = vmatprep.subr.mxu0 0.0
        %7617 = vmatpush1.msra.mxu0 0.0
        %7618 = vmatprep.subr.mxu0 0.0
        %7619 = vmatpush1.msra.mxu0 0.0
        %7620 = vmatprep.subr.mxu0 0.0
        %7621 = vmatpush1.msra.mxu0 0.0
        %7622 = vmatprep.subr.mxu0 0.0
        %7623 = vmatpush1.msra.mxu0 0.0
        %7624 = vmatprep.subr.mxu0 0.0
        %7625 = vmatpush1.msra.mxu0 0.0
        %7626 = vmatprep.subr.mxu0 0.0
        %7627 = vmatpush1.msra.mxu0 0.0
        %7628 = vmatprep.subr.mxu0 0.0
        %7629 = vmatpush1.msra.mxu0 %v7402
        %7630 = vmatprep.subr.mxu0 0.0
        %7631 = vmatpush1.msra.mxu0 %v7401
        %7632 = vmatprep.subr.mxu0 0.0
        %7633 = vmatpush1.msra.mxu0 %v7400
        %7634 = vmatprep.subr.mxu0 0.0
        %7635 = vmatpush1.msra.mxu0 %v7399
        %7636 = vmatprep.subr.mxu0 0.0
        %7637 = vmatpush2.msra.mxu0 0.0
        %7638 = vmatprep.subr.mxu0 0.0
        %7639 = vmatpush2.msra.mxu0 0.0
        %7640 = vmatprep.subr.mxu0 0.0
        %7641 = vmatpush2.msra.mxu0 0.0
        %7642 = vmatprep.subr.mxu0 0.0
        %7643 = vmatpush2.msra.mxu0 0.0
        %7644 = vmatprep.subr.mxu0 0.0
        %7645 = vmatpush2.msra.mxu0 0.0
        %7646 = vmatprep.subr.mxu0 0.0
        %7647 = vmatpush2.msra.mxu0 0.0
        %7648 = vmatprep.subr.mxu0 0.0
        %7649 = vmatpush2.msra.mxu0 0.0
        %7650 = vmatprep.subr.mxu0 0.0
        %7651 = vmatpush2.msra.mxu0 0.0
        %7652 = vmatprep.subr.mxu0 0.0
        %7653 = vmatpush2.msra.mxu0 0.0
        %7654 = vmatprep.subr.mxu0 0.0
        %7655 = vmatpush2.msra.mxu0 0.0
        %7656 = vmatprep.subr.mxu0 0.0
        %7657 = vmatpush2.msra.mxu0 0.0
        %7658 = vmatprep.subr.mxu0 0.0
        %7659 = vmatpush2.msra.mxu0 0.0
        %7660 = vmatprep.subr.mxu0 0.0
        %7661 = vmatpush2.msra.mxu0 0.0
        %7662 = vmatprep.subr.mxu0 0.0
        %7663 = vmatpush2.msra.mxu0 0.0
        %7664 = vmatprep.subr.mxu0 0.0
        %7665 = vmatpush2.msra.mxu0 0.0
        %7666 = vmatprep.subr.mxu0 0.0
        %7667 = vmatpush2.msra.mxu0 0.0
        %7668 = vmatprep.mubr.f32.mxu0 0.0
        %7669 = vmatmul.mubr.f32.gmra.mxu0 %v7404
        %v7670 = vpop.f32.mrf.mxu0
        %v7671 = vadd.f32 0.0, %v7670
        %v7672 = vpop.f32.mrf.mxu0
        %7673 = vmatprep.mubr.f32.mxu0 0.0
        %7674 = vmatmul.mubr.f32.gmra.mxu0 %v7407
        %v7675 = vpop.f32.mrf.mxu0
        %v7676 = vadd.f32 0.0, %v7675
        %v7677 = vpop.f32.mrf.mxu0
        %7678 = vmatprep.mubr.f32.mxu0 0.0
        %7679 = vmatmul.mubr.f32.gmra.mxu0 %v7410
        %v7680 = vpop.f32.mrf.mxu0
        %v7681 = vadd.f32 0.0, %v7680
        %v7682 = vpop.f32.mrf.mxu0
        %7683 = vmatprep.mubr.f32.mxu0 0.0
        %7684 = vmatmul.mubr.f32.gmra.mxu0 %v7413
        %v7685 = vpop.f32.mrf.mxu0
        %v7686 = vadd.f32 0.0, %v7685
        %v7687 = vpop.f32.mrf.mxu0
        %7688 = vmatprep.mubr.f32.mxu0 0.0
        %7689 = vmatmul.mubr.f32.gmra.mxu0 %v7416
        %v7690 = vpop.f32.mrf.mxu0
        %v7691 = vadd.f32 0.0, %v7690
        %v7692 = vpop.f32.mrf.mxu0
        %7693 = vmatprep.mubr.f32.mxu0 0.0
        %7694 = vmatmul.mubr.f32.gmra.mxu0 %v7419
        %v7695 = vpop.f32.mrf.mxu0
        %v7696 = vadd.f32 0.0, %v7695
        %v7697 = vpop.f32.mrf.mxu0
        %7698 = vmatprep.mubr.f32.mxu0 0.0
        %7699 = vmatmul.mubr.f32.gmra.mxu0 %v7422
        %v7700 = vpop.f32.mrf.mxu0
        %v7701 = vadd.f32 0.0, %v7700
        %v7702 = vpop.f32.mrf.mxu0
        %7703 = vmatprep.mubr.f32.mxu0 0.0
        %7704 = vmatmul.mubr.f32.gmra.mxu0 %v7425
        %v7705 = vpop.f32.mrf.mxu0
        %v7706 = vadd.f32 0.0, %v7705
        %v7707 = vpop.f32.mrf.mxu0
        %7708 = vmatprep.mubr.f32.mxu0 0.0
        %7709 = vmatmul.mubr.f32.gmra.mxu0 %v7428
        %v7710 = vpop.f32.mrf.mxu0
        %v7711 = vadd.f32 0.0, %v7710
        %v7712 = vpop.f32.mrf.mxu0
        %7713 = vmatprep.mubr.f32.mxu0 0.0
        %7714 = vmatmul.mubr.f32.gmra.mxu0 %v7431
        %v7715 = vpop.f32.mrf.mxu0
        %v7716 = vadd.f32 0.0, %v7715
        %v7717 = vpop.f32.mrf.mxu0
        %7718 = vmatprep.mubr.f32.mxu0 0.0
        %7719 = vmatmul.mubr.f32.gmra.mxu0 %v7434
        %v7720 = vpop.f32.mrf.mxu0
        %v7721 = vadd.f32 0.0, %v7720
        %v7722 = vpop.f32.mrf.mxu0
        %7723 = vmatprep.mubr.f32.mxu0 0.0
        %7724 = vmatmul.mubr.f32.gmra.mxu0 %v7437
        %v7725 = vpop.f32.mrf.mxu0
        %v7726 = vadd.f32 0.0, %v7725
        %v7727 = vpop.f32.mrf.mxu0
        %7728 = vmatprep.mubr.f32.mxu0 0.0
        %7729 = vmatmul.mubr.f32.gmra.mxu0 %v7440
        %v7730 = vpop.f32.mrf.mxu0
        %v7731 = vadd.f32 0.0, %v7730
        %v7732 = vpop.f32.mrf.mxu0
        %7733 = vmatprep.mubr.f32.mxu0 0.0
        %7734 = vmatmul.mubr.f32.gmra.mxu0 %v7443
        %v7735 = vpop.f32.mrf.mxu0
        %v7736 = vadd.f32 0.0, %v7735
        %v7737 = vpop.f32.mrf.mxu0
        %7738 = vmatprep.mubr.f32.mxu0 0.0
        %7739 = vmatmul.mubr.f32.gmra.mxu0 %v7446
        %v7740 = vpop.f32.mrf.mxu0
        %v7741 = vadd.f32 0.0, %v7740
        %v7742 = vpop.f32.mrf.mxu0
        %7743 = vmatprep.mubr.f32.mxu0 0.0
        %7744 = vmatmul.mubr.f32.gmra.mxu0 %v7449
        %v7745 = vpop.f32.mrf.mxu0
        %v7746 = vadd.f32 0.0, %v7745
        %v7747 = vpop.f32.mrf.mxu0
        %7748 = vmatprep.mubr.f32.mxu0 0.0
        %7749 = vmatmul.mubr.f32.gmra.mxu0 %v7452
        %v7750 = vpop.f32.mrf.mxu0
        %v7751 = vadd.f32 0.0, %v7750
        %v7752 = vpop.f32.mrf.mxu0
        %7753 = vmatprep.mubr.f32.mxu0 0.0
        %7754 = vmatmul.mubr.f32.gmra.mxu0 %v7455
        %v7755 = vpop.f32.mrf.mxu0
        %v7756 = vadd.f32 0.0, %v7755
        %v7757 = vpop.f32.mrf.mxu0
        %7758 = vmatprep.mubr.f32.mxu0 0.0
        %7759 = vmatmul.mubr.f32.gmra.mxu0 %v7458
        %v7760 = vpop.f32.mrf.mxu0
        %v7761 = vadd.f32 0.0, %v7760
        %v7762 = vpop.f32.mrf.mxu0
        %7763 = vmatprep.mubr.f32.mxu0 0.0
        %7764 = vmatmul.mubr.f32.gmra.mxu0 %v7461
        %v7765 = vpop.f32.mrf.mxu0
        %v7766 = vadd.f32 0.0, %v7765
        %v7767 = vpop.f32.mrf.mxu0
        %7768 = vmatprep.mubr.f32.mxu0 0.0
        %7769 = vmatmul.mubr.f32.gmra.mxu0 %v7464
        %v7770 = vpop.f32.mrf.mxu0
        %v7771 = vadd.f32 0.0, %v7770
        %v7772 = vpop.f32.mrf.mxu0
        %7773 = vmatprep.mubr.f32.mxu0 0.0
        %7774 = vmatmul.mubr.f32.gmra.mxu0 %v7467
        %v7775 = vpop.f32.mrf.mxu0
        %v7776 = vadd.f32 0.0, %v7775
        %v7777 = vpop.f32.mrf.mxu0
        %7778 = vmatprep.mubr.f32.mxu0 0.0
        %7779 = vmatmul.mubr.f32.gmra.mxu0 %v7470
        %v7780 = vpop.f32.mrf.mxu0
        %v7781 = vadd.f32 0.0, %v7780
        %v7782 = vpop.f32.mrf.mxu0
        %7783 = vmatprep.mubr.f32.mxu0 0.0
        %7784 = vmatmul.mubr.f32.gmra.mxu0 %v7473
        %v7785 = vpop.f32.mrf.mxu0
        %v7786 = vadd.f32 0.0, %v7785
        %v7787 = vpop.f32.mrf.mxu0
        %7788 = vmatprep.mubr.f32.mxu0 0.0
        %7789 = vmatmul.mubr.f32.gmra.mxu0 %v7476
        %v7790 = vpop.f32.mrf.mxu0
        %v7791 = vadd.f32 0.0, %v7790
        %v7792 = vpop.f32.mrf.mxu0
        %7793 = vmatprep.mubr.f32.mxu0 0.0
        %7794 = vmatmul.mubr.f32.gmra.mxu0 %v7479
        %v7795 = vpop.f32.mrf.mxu0
        %v7796 = vadd.f32 0.0, %v7795
        %v7797 = vpop.f32.mrf.mxu0
        %7798 = vmatprep.mubr.f32.mxu0 0.0
        %7799 = vmatmul.mubr.f32.gmra.mxu0 %v7482
        %v7800 = vpop.f32.mrf.mxu0
        %v7801 = vadd.f32 0.0, %v7800
        %v7802 = vpop.f32.mrf.mxu0
        %7803 = vmatprep.mubr.f32.mxu0 0.0
        %7804 = vmatmul.mubr.f32.gmra.mxu0 %v7485
        %v7805 = vpop.f32.mrf.mxu0
        %v7806 = vadd.f32 0.0, %v7805
        %v7807 = vpop.f32.mrf.mxu0
        %7808 = vmatprep.mubr.f32.mxu0 0.0
        %7809 = vmatmul.mubr.f32.gmra.mxu0 %v7488
        %v7810 = vpop.f32.mrf.mxu0
        %v7811 = vadd.f32 0.0, %v7810
        %v7812 = vpop.f32.mrf.mxu0
        %7813 = vmatprep.mubr.f32.mxu0 0.0
        %7814 = vmatmul.mubr.f32.gmra.mxu0 %v7491
        %v7815 = vpop.f32.mrf.mxu0
        %v7816 = vadd.f32 0.0, %v7815
        %v7817 = vpop.f32.mrf.mxu0
        %7818 = vmatprep.mubr.f32.mxu0 0.0
        %7819 = vmatmul.mubr.f32.gmra.mxu0 %v7494
        %v7820 = vpop.f32.mrf.mxu0
        %v7821 = vadd.f32 0.0, %v7820
        %v7822 = vpop.f32.mrf.mxu0
        %7823 = vmatprep.mubr.f32.mxu0 0.0
        %7824 = vmatmul.mubr.f32.gmra.mxu0 %v7497
        %v7825 = vpop.f32.mrf.mxu0
        %v7826 = vadd.f32 0.0, %v7825
        %v7827 = vpop.f32.mrf.mxu0
        %7828 = vmatprep.mubr.f32.mxu0 0.0
        %7829 = vmatmul.mubr.f32.gmra.mxu0 %v7500
        %v7830 = vpop.f32.mrf.mxu0
        %v7831 = vadd.f32 0.0, %v7830
        %v7832 = vpop.f32.mrf.mxu0
        %7833 = vmatprep.mubr.f32.mxu0 0.0
        %7834 = vmatmul.mubr.f32.gmra.mxu0 %v7503
        %v7835 = vpop.f32.mrf.mxu0
        %v7836 = vadd.f32 0.0, %v7835
        %v7837 = vpop.f32.mrf.mxu0
        %7838 = vmatprep.mubr.f32.mxu0 0.0
        %7839 = vmatmul.mubr.f32.gmra.mxu0 %v7506
        %v7840 = vpop.f32.mrf.mxu0
        %v7841 = vadd.f32 0.0, %v7840
        %v7842 = vpop.f32.mrf.mxu0
        %7843 = vmatprep.mubr.f32.mxu0 0.0
        %7844 = vmatmul.mubr.f32.gmra.mxu0 %v7509
        %v7845 = vpop.f32.mrf.mxu0
        %v7846 = vadd.f32 0.0, %v7845
        %v7847 = vpop.f32.mrf.mxu0
        %7848 = vmatprep.mubr.f32.mxu0 0.0
        %7849 = vmatmul.mubr.f32.gmra.mxu0 %v7512
        %v7850 = vpop.f32.mrf.mxu0
        %v7851 = vadd.f32 0.0, %v7850
        %v7852 = vpop.f32.mrf.mxu0
        %7853 = vmatprep.mubr.f32.mxu0 0.0
        %7854 = vmatmul.mubr.f32.gmra.mxu0 %v7515
        %v7855 = vpop.f32.mrf.mxu0
        %v7856 = vadd.f32 0.0, %v7855
        %v7857 = vpop.f32.mrf.mxu0
        %7858 = vmatprep.mubr.f32.mxu0 0.0
        %7859 = vmatmul.mubr.f32.gmra.mxu0 %v7518
        %v7860 = vpop.f32.mrf.mxu0
        %v7861 = vadd.f32 0.0, %v7860
        %v7862 = vpop.f32.mrf.mxu0
        %7863 = vmatprep.mubr.f32.mxu0 0.0
        %7864 = vmatmul.mubr.f32.gmra.mxu0 %v7521
        %v7865 = vpop.f32.mrf.mxu0
        %v7866 = vadd.f32 0.0, %v7865
        %v7867 = vpop.f32.mrf.mxu0
        %7868 = vmatprep.mubr.f32.mxu0 0.0
        %7869 = vmatmul.mubr.f32.gmra.mxu0 %v7524
        %v7870 = vpop.f32.mrf.mxu0
        %v7871 = vadd.f32 0.0, %v7870
        %v7872 = vpop.f32.mrf.mxu0
        %7873 = vmatprep.mubr.f32.mxu0 0.0
        %7874 = vmatmul.mubr.f32.gmra.mxu0 %v7527
        %v7875 = vpop.f32.mrf.mxu0
        %v7876 = vadd.f32 0.0, %v7875
        %v7877 = vpop.f32.mrf.mxu0
        %7878 = vmatprep.mubr.f32.mxu0 0.0
        %7879 = vmatmul.mubr.f32.gmra.mxu0 %v7530
        %v7880 = vpop.f32.mrf.mxu0
        %v7881 = vadd.f32 0.0, %v7880
        %v7882 = vpop.f32.mrf.mxu0
        %7883 = vmatprep.mubr.f32.mxu0 0.0
        %7884 = vmatmul.mubr.f32.gmra.mxu0 %v7533
        %v7885 = vpop.f32.mrf.mxu0
        %v7886 = vadd.f32 0.0, %v7885
        %v7887 = vpop.f32.mrf.mxu0
        %7888 = vmatprep.mubr.f32.mxu0 0.0
        %7889 = vmatmul.mubr.f32.gmra.mxu0 %v7536
        %v7890 = vpop.f32.mrf.mxu0
        %v7891 = vadd.f32 0.0, %v7890
        %v7892 = vpop.f32.mrf.mxu0
        %7893 = vmatprep.mubr.f32.mxu0 0.0
        %7894 = vmatmul.mubr.f32.gmra.mxu0 %v7539
        %v7895 = vpop.f32.mrf.mxu0
        %v7896 = vadd.f32 0.0, %v7895
        %v7897 = vpop.f32.mrf.mxu0
        %7898 = vmatprep.mubr.f32.mxu0 0.0
        %7899 = vmatmul.mubr.f32.gmra.mxu0 %v7542
        %v7900 = vpop.f32.mrf.mxu0
        %v7901 = vadd.f32 0.0, %v7900
        %v7902 = vpop.f32.mrf.mxu0
        %7903 = vmatprep.mubr.f32.mxu0 0.0
        %7904 = vmatmul.mubr.f32.gmra.mxu0 %v7545
        %v7905 = vpop.f32.mrf.mxu0
        %v7906 = vadd.f32 0.0, %v7905
        %v7907 = vpop.f32.mrf.mxu0
        %7908 = vmatprep.mubr.f32.mxu0 0.0
        %7909 = vmatmul.mubr.f32.gmra.mxu0 %v7548
        %v7910 = vpop.f32.mrf.mxu0
        %v7911 = vadd.f32 0.0, %v7910
        %v7912 = vpop.f32.mrf.mxu0
        %7913 = vmatprep.mubr.f32.mxu0 0.0
        %7914 = vmatmul.mubr.f32.gmra.mxu0 %v7551
        %v7915 = vpop.f32.mrf.mxu0
        %v7916 = vadd.f32 0.0, %v7915
        %v7917 = vpop.f32.mrf.mxu0
        %7918 = vmatprep.mubr.f32.mxu0 0.0
        %7919 = vmatmul.mubr.f32.gmra.mxu0 %v7554
        %v7920 = vpop.f32.mrf.mxu0
        %v7921 = vadd.f32 0.0, %v7920
        %v7922 = vpop.f32.mrf.mxu0
        %7923 = vmatprep.mubr.f32.mxu0 0.0
        %7924 = vmatmul.mubr.f32.gmra.mxu0 %v7557
        %v7925 = vpop.f32.mrf.mxu0
        %v7926 = vadd.f32 0.0, %v7925
        %v7927 = vpop.f32.mrf.mxu0
        %7928 = vmatprep.mubr.f32.mxu0 0.0
        %7929 = vmatmul.mubr.f32.gmra.mxu0 %v7560
        %v7930 = vpop.f32.mrf.mxu0
        %v7931 = vadd.f32 0.0, %v7930
        %v7932 = vpop.f32.mrf.mxu0
        %7933 = vmatprep.mubr.f32.mxu0 0.0
        %7934 = vmatmul.mubr.f32.gmra.mxu0 %v7563
        %v7935 = vpop.f32.mrf.mxu0
        %v7936 = vadd.f32 0.0, %v7935
        %v7937 = vpop.f32.mrf.mxu0
        %7938 = vmatprep.mubr.f32.mxu0 0.0
        %7939 = vmatmul.mubr.f32.gmra.mxu0 %v7566
        %v7940 = vpop.f32.mrf.mxu0
        %v7941 = vadd.f32 0.0, %v7940
        %v7942 = vpop.f32.mrf.mxu0
        %7943 = vmatprep.mubr.f32.mxu0 0.0
        %7944 = vmatmul.mubr.f32.gmra.mxu0 %v7569
        %v7945 = vpop.f32.mrf.mxu0
        %v7946 = vadd.f32 0.0, %v7945
        %v7947 = vpop.f32.mrf.mxu0
        %7948 = vmatprep.mubr.f32.mxu0 0.0
        %7949 = vmatmul.mubr.f32.gmra.mxu0 %v7572
        %v7950 = vpop.f32.mrf.mxu0
        %v7951 = vadd.f32 0.0, %v7950
        %v7952 = vpop.f32.mrf.mxu0
        %7953 = vmatprep.mubr.f32.mxu0 0.0
        %7954 = vmatmul.mubr.f32.gmra.mxu0 %v7575
        %v7955 = vpop.f32.mrf.mxu0
        %v7956 = vadd.f32 0.0, %v7955
        %v7957 = vpop.f32.mrf.mxu0
        %7958 = vmatprep.mubr.f32.mxu0 0.0
        %7959 = vmatmul.mubr.f32.gmra.mxu0 %v7578
        %v7960 = vpop.f32.mrf.mxu0
        %v7961 = vadd.f32 0.0, %v7960
        %v7962 = vpop.f32.mrf.mxu0
        %7963 = vmatprep.mubr.f32.mxu0 0.0
        %7964 = vmatmul.mubr.f32.gmra.mxu0 %v7581
        %v7965 = vpop.f32.mrf.mxu0
        %v7966 = vadd.f32 0.0, %v7965
        %v7967 = vpop.f32.mrf.mxu0
        %7968 = vmatprep.mubr.f32.mxu0 0.0
        %7969 = vmatmul.mubr.f32.gmra.mxu0 %v7584
        %v7970 = vpop.f32.mrf.mxu0
        %v7971 = vadd.f32 0.0, %v7970
        %v7972 = vpop.f32.mrf.mxu0
        %7973 = vmatprep.mubr.f32.mxu0 0.0
        %7974 = vmatmul.mubr.f32.gmra.mxu0 %v7587
        %v7975 = vpop.f32.mrf.mxu0
        %v7976 = vadd.f32 0.0, %v7975
        %v7977 = vpop.f32.mrf.mxu0
        %7978 = vmatprep.mubr.f32.mxu0 0.0
        %7979 = vmatmul.mubr.f32.gmra.mxu0 %v7590
        %v7980 = vpop.f32.mrf.mxu0
        %v7981 = vadd.f32 0.0, %v7980
        %v7982 = vpop.f32.mrf.mxu0
        %7983 = vmatprep.mubr.f32.mxu0 0.0
        %7984 = vmatmul.mubr.f32.gmra.mxu0 %v7593
        %v7985 = vpop.f32.mrf.mxu0
        %v7986 = vadd.f32 0.0, %v7985
        %v7987 = vpop.f32.mrf.mxu0
        %7988 = vmatprep.mubr.f32.mxu0 0.0
        %7989 = vmatmul.mubr.f32.gmra.mxu0 %v7596
        %v7990 = vpop.f32.mrf.mxu0
        %v7991 = vadd.f32 0.0, %v7990
        %v7992 = vpop.f32.mrf.mxu0
        %7993 = vmatprep.mubr.f32.mxu0 0.0
        %7994 = vmatmul.mubr.f32.gmra.mxu0 %v7599
        %v7995 = vpop.f32.mrf.mxu0
        %v7996 = vadd.f32 0.0, %v7995
        %v7997 = vpop.f32.mrf.mxu0
        %7998 = vmatprep.mubr.f32.mxu0 0.0
        %7999 = vmatmul.mubr.f32.gmra.mxu0 %v7602
        %v8000 = vpop.f32.mrf.mxu0
        %v8001 = vadd.f32 0.0, %v8000
        %v8002 = vpop.f32.mrf.mxu0
        %8003 = vdwg.mxu0
        %v8004 = vadd.f32 %v6998, %v7671
        %v8005 = vadd.f32 %v7003, %v7676
        %v8006 = vadd.f32 %v7008, %v7681
        %v8007 = vadd.f32 %v7013, %v7686
        %v8008 = vadd.f32 %v7018, %v7691
        %v8009 = vadd.f32 %v7023, %v7696
        %v8010 = vadd.f32 %v7028, %v7701
        %v8011 = vadd.f32 %v7033, %v7706
        %v8012 = vadd.f32 %v7038, %v7711
        %v8013 = vadd.f32 %v7043, %v7716
        %v8014 = vadd.f32 %v7048, %v7721
        %v8015 = vadd.f32 %v7053, %v7726
        %v8016 = vadd.f32 %v7058, %v7731
        %v8017 = vadd.f32 %v7063, %v7736
        %v8018 = vadd.f32 %v7068, %v7741
        %v8019 = vadd.f32 %v7073, %v7746
        %v8020 = vadd.f32 %v7078, %v7751
        %v8021 = vadd.f32 %v7083, %v7756
        %v8022 = vadd.f32 %v7088, %v7761
        %v8023 = vadd.f32 %v7093, %v7766
        %v8024 = vadd.f32 %v7098, %v7771
        %v8025 = vadd.f32 %v7103, %v7776
        %v8026 = vadd.f32 %v7108, %v7781
        %v8027 = vadd.f32 %v7113, %v7786
        %v8028 = vadd.f32 %v7118, %v7791
        %v8029 = vadd.f32 %v7123, %v7796
        %v8030 = vadd.f32 %v7128, %v7801
        %v8031 = vadd.f32 %v7133, %v7806
        %v8032 = vadd.f32 %v7138, %v7811
        %v8033 = vadd.f32 %v7143, %v7816
        %v8034 = vadd.f32 %v7148, %v7821
        %v8035 = vadd.f32 %v7153, %v7826
        %v8036 = vadd.f32 %v7158, %v7831
        %v8037 = vadd.f32 %v7163, %v7836
        %v8038 = vadd.f32 %v7168, %v7841
        %v8039 = vadd.f32 %v7173, %v7846
        %v8040 = vadd.f32 %v7178, %v7851
        %v8041 = vadd.f32 %v7183, %v7856
        %v8042 = vadd.f32 %v7188, %v7861
        %v8043 = vadd.f32 %v7193, %v7866
        %v8044 = vadd.f32 %v7198, %v7871
        %v8045 = vadd.f32 %v7203, %v7876
        %v8046 = vadd.f32 %v7208, %v7881
        %v8047 = vadd.f32 %v7213, %v7886
        %v8048 = vadd.f32 %v7218, %v7891
        %v8049 = vadd.f32 %v7223, %v7896
        %v8050 = vadd.f32 %v7228, %v7901
        %v8051 = vadd.f32 %v7233, %v7906
        %v8052 = vadd.f32 %v7238, %v7911
        %v8053 = vadd.f32 %v7243, %v7916
        %v8054 = vadd.f32 %v7248, %v7921
        %v8055 = vadd.f32 %v7253, %v7926
        %v8056 = vadd.f32 %v7258, %v7931
        %v8057 = vadd.f32 %v7263, %v7936
        %v8058 = vadd.f32 %v7268, %v7941
        %v8059 = vadd.f32 %v7273, %v7946
        %v8060 = vadd.f32 %v7278, %v7951
        %v8061 = vadd.f32 %v7283, %v7956
        %v8062 = vadd.f32 %v7288, %v7961
        %v8063 = vadd.f32 %v7293, %v7966
        %v8064 = vadd.f32 %v7298, %v7971
        %v8065 = vadd.f32 %v7303, %v7976
        %v8066 = vadd.f32 %v7308, %v7981
        %v8067 = vadd.f32 %v7313, %v7986
        %v8068 = vadd.f32 %v7318, %v7991
        %v8069 = vadd.f32 %v7323, %v7996
        %v8070 = vadd.f32 %v7328, %v8001
        %v8071 = vld [vmem:[#allocation12] sm:$0x1]
        %v8073 = vlaneseq
        %v8074 = vshrl.u32 %v8073, 7
        %v8075 = vsub.s32 0, %v8074
        %v8076 = vrot.slane %v8071, %v8075
        %v8078 = vadd.f32 %v8004, %v8076
        %v8079 = vadd.f32 %v8005, %v8076
        %v8080 = vadd.f32 %v8006, %v8076
        %v8081 = vadd.f32 %v8007, %v8076
        %v8082 = vadd.f32 %v8008, %v8076
        %v8083 = vadd.f32 %v8009, %v8076
        %v8084 = vadd.f32 %v8010, %v8076
        %v8085 = vadd.f32 %v8011, %v8076
        %v8086 = vadd.f32 %v8012, %v8076
        %v8087 = vadd.f32 %v8013, %v8076
        %v8088 = vadd.f32 %v8014, %v8076
        %v8089 = vadd.f32 %v8015, %v8076
        %v8090 = vadd.f32 %v8016, %v8076
        %v8091 = vadd.f32 %v8017, %v8076
        %v8092 = vadd.f32 %v8018, %v8076
        %v8093 = vadd.f32 %v8019, %v8076
        %v8094 = vadd.f32 %v8020, %v8076
        %v8095 = vadd.f32 %v8021, %v8076
        %v8096 = vadd.f32 %v8022, %v8076
        %v8097 = vadd.f32 %v8023, %v8076
        %v8098 = vadd.f32 %v8024, %v8076
        %v8099 = vadd.f32 %v8025, %v8076
        %v8100 = vadd.f32 %v8026, %v8076
        %v8101 = vadd.f32 %v8027, %v8076
        %v8102 = vadd.f32 %v8028, %v8076
        %v8103 = vadd.f32 %v8029, %v8076
        %v8104 = vadd.f32 %v8030, %v8076
        %v8105 = vadd.f32 %v8031, %v8076
        %v8106 = vadd.f32 %v8032, %v8076
        %v8107 = vadd.f32 %v8033, %v8076
        %v8108 = vadd.f32 %v8034, %v8076
        %v8109 = vadd.f32 %v8035, %v8076
        %v8110 = vadd.f32 %v8036, %v8076
        %v8111 = vadd.f32 %v8037, %v8076
        %v8112 = vadd.f32 %v8038, %v8076
        %v8113 = vadd.f32 %v8039, %v8076
        %v8114 = vadd.f32 %v8040, %v8076
        %v8115 = vadd.f32 %v8041, %v8076
        %v8116 = vadd.f32 %v8042, %v8076
        %v8117 = vadd.f32 %v8043, %v8076
        %v8118 = vadd.f32 %v8044, %v8076
        %v8119 = vadd.f32 %v8045, %v8076
        %v8120 = vadd.f32 %v8046, %v8076
        %v8121 = vadd.f32 %v8047, %v8076
        %v8122 = vadd.f32 %v8048, %v8076
        %v8123 = vadd.f32 %v8049, %v8076
        %v8124 = vadd.f32 %v8050, %v8076
        %v8125 = vadd.f32 %v8051, %v8076
        %v8126 = vadd.f32 %v8052, %v8076
        %v8127 = vadd.f32 %v8053, %v8076
        %v8128 = vadd.f32 %v8054, %v8076
        %v8129 = vadd.f32 %v8055, %v8076
        %v8130 = vadd.f32 %v8056, %v8076
        %v8131 = vadd.f32 %v8057, %v8076
        %v8132 = vadd.f32 %v8058, %v8076
        %v8133 = vadd.f32 %v8059, %v8076
        %v8134 = vadd.f32 %v8060, %v8076
        %v8135 = vadd.f32 %v8061, %v8076
        %v8136 = vadd.f32 %v8062, %v8076
        %v8137 = vadd.f32 %v8063, %v8076
        %v8138 = vadd.f32 %v8064, %v8076
        %v8139 = vadd.f32 %v8065, %v8076
        %v8140 = vadd.f32 %v8066, %v8076
        %v8141 = vadd.f32 %v8067, %v8076
        %v8142 = vadd.f32 %v8068, %v8076
        %v8143 = vadd.f32 %v8069, %v8076
        %v8144 = vadd.f32 %v8070, %v8076
        %vm8145 = vcmask 523264
        %8146 = vst.msk [vmem:[#allocation4] sm:$0xff] %vm8145, %v8078
        %8147 = vst.msk [vmem:[#allocation4 + $0x8] sm:$0xff] %vm8145, %v8079
        %8148 = vst.msk [vmem:[#allocation4 + $0x10] sm:$0xff] %vm8145, %v8080
        %8149 = vst.msk [vmem:[#allocation4 + $0x18] sm:$0xff] %vm8145, %v8081
        %8150 = vst.msk [vmem:[#allocation4 + $0x20] sm:$0xff] %vm8145, %v8082
        %8151 = vst.msk [vmem:[#allocation4 + $0x28] sm:$0xff] %vm8145, %v8083
        %8152 = vst.msk [vmem:[#allocation4 + $0x30] sm:$0xff] %vm8145, %v8084
        %8153 = vst.msk [vmem:[#allocation4 + $0x38] sm:$0xff] %vm8145, %v8085
        %8154 = vst.msk [vmem:[#allocation4 + $0x40] sm:$0xff] %vm8145, %v8086
        %8155 = vst.msk [vmem:[#allocation4 + $0x48] sm:$0xff] %vm8145, %v8087
        %8156 = vst.msk [vmem:[#allocation4 + $0x50] sm:$0xff] %vm8145, %v8088
        %8157 = vst.msk [vmem:[#allocation4 + $0x58] sm:$0xff] %vm8145, %v8089
        %8158 = vst.msk [vmem:[#allocation4 + $0x60] sm:$0xff] %vm8145, %v8090
        %8159 = vst.msk [vmem:[#allocation4 + $0x68] sm:$0xff] %vm8145, %v8091
        %8160 = vst.msk [vmem:[#allocation4 + $0x70] sm:$0xff] %vm8145, %v8092
        %8161 = vst.msk [vmem:[#allocation4 + $0x78] sm:$0xff] %vm8145, %v8093
        %8162 = vst.msk [vmem:[#allocation4 + $0x80] sm:$0xff] %vm8145, %v8094
        %8163 = vst.msk [vmem:[#allocation4 + $0x88] sm:$0xff] %vm8145, %v8095
        %8164 = vst.msk [vmem:[#allocation4 + $0x90] sm:$0xff] %vm8145, %v8096
        %8165 = vst.msk [vmem:[#allocation4 + $0x98] sm:$0xff] %vm8145, %v8097
        %8166 = vst.msk [vmem:[#allocation4 + $0xa0] sm:$0xff] %vm8145, %v8098
        %8167 = vst.msk [vmem:[#allocation4 + $0xa8] sm:$0xff] %vm8145, %v8099
        %8168 = vst.msk [vmem:[#allocation4 + $0xb0] sm:$0xff] %vm8145, %v8100
        %8169 = vst.msk [vmem:[#allocation4 + $0xb8] sm:$0xff] %vm8145, %v8101
        %8170 = vst.msk [vmem:[#allocation4 + $0xc0] sm:$0xff] %vm8145, %v8102
        %8171 = vst.msk [vmem:[#allocation4 + $0xc8] sm:$0xff] %vm8145, %v8103
        %8172 = vst.msk [vmem:[#allocation4 + $0xd0] sm:$0xff] %vm8145, %v8104
        %8173 = vst.msk [vmem:[#allocation4 + $0xd8] sm:$0xff] %vm8145, %v8105
        %8174 = vst.msk [vmem:[#allocation4 + $0xe0] sm:$0xff] %vm8145, %v8106
        %8175 = vst.msk [vmem:[#allocation4 + $0xe8] sm:$0xff] %vm8145, %v8107
        %8176 = vst.msk [vmem:[#allocation4 + $0xf0] sm:$0xff] %vm8145, %v8108
        %8177 = vst.msk [vmem:[#allocation4 + $0xf8] sm:$0xff] %vm8145, %v8109
        %8178 = vst.msk [vmem:[#allocation4 + $0x100] sm:$0xff] %vm8145, %v8110
        %8179 = vst.msk [vmem:[#allocation4 + $0x108] sm:$0xff] %vm8145, %v8111
        %8180 = vst.msk [vmem:[#allocation4 + $0x110] sm:$0xff] %vm8145, %v8112
        %8181 = vst.msk [vmem:[#allocation4 + $0x118] sm:$0xff] %vm8145, %v8113
        %8182 = vst.msk [vmem:[#allocation4 + $0x120] sm:$0xff] %vm8145, %v8114
        %8183 = vst.msk [vmem:[#allocation4 + $0x128] sm:$0xff] %vm8145, %v8115
        %8184 = vst.msk [vmem:[#allocation4 + $0x130] sm:$0xff] %vm8145, %v8116
        %8185 = vst.msk [vmem:[#allocation4 + $0x138] sm:$0xff] %vm8145, %v8117
        %8186 = vst.msk [vmem:[#allocation4 + $0x140] sm:$0xff] %vm8145, %v8118
        %8187 = vst.msk [vmem:[#allocation4 + $0x148] sm:$0xff] %vm8145, %v8119
        %8188 = vst.msk [vmem:[#allocation4 + $0x150] sm:$0xff] %vm8145, %v8120
        %8189 = vst.msk [vmem:[#allocation4 + $0x158] sm:$0xff] %vm8145, %v8121
        %8190 = vst.msk [vmem:[#allocation4 + $0x160] sm:$0xff] %vm8145, %v8122
        %8191 = vst.msk [vmem:[#allocation4 + $0x168] sm:$0xff] %vm8145, %v8123
        %8192 = vst.msk [vmem:[#allocation4 + $0x170] sm:$0xff] %vm8145, %v8124
        %8193 = vst.msk [vmem:[#allocation4 + $0x178] sm:$0xff] %vm8145, %v8125
        %8194 = vst.msk [vmem:[#allocation4 + $0x180] sm:$0xff] %vm8145, %v8126
        %8195 = vst.msk [vmem:[#allocation4 + $0x188] sm:$0xff] %vm8145, %v8127
        %8196 = vst.msk [vmem:[#allocation4 + $0x190] sm:$0xff] %vm8145, %v8128
        %8197 = vst.msk [vmem:[#allocation4 + $0x198] sm:$0xff] %vm8145, %v8129
        %8198 = vst.msk [vmem:[#allocation4 + $0x1a0] sm:$0xff] %vm8145, %v8130
        %8199 = vst.msk [vmem:[#allocation4 + $0x1a8] sm:$0xff] %vm8145, %v8131
        %8200 = vst.msk [vmem:[#allocation4 + $0x1b0] sm:$0xff] %vm8145, %v8132
        %8201 = vst.msk [vmem:[#allocation4 + $0x1b8] sm:$0xff] %vm8145, %v8133
        %8202 = vst.msk [vmem:[#allocation4 + $0x1c0] sm:$0xff] %vm8145, %v8134
        %8203 = vst.msk [vmem:[#allocation4 + $0x1c8] sm:$0xff] %vm8145, %v8135
        %8204 = vst.msk [vmem:[#allocation4 + $0x1d0] sm:$0xff] %vm8145, %v8136
        %8205 = vst.msk [vmem:[#allocation4 + $0x1d8] sm:$0xff] %vm8145, %v8137
        %8206 = vst.msk [vmem:[#allocation4 + $0x1e0] sm:$0xff] %vm8145, %v8138
        %8207 = vst.msk [vmem:[#allocation4 + $0x1e8] sm:$0xff] %vm8145, %v8139
        %8208 = vst.msk [vmem:[#allocation4 + $0x1f0] sm:$0xff] %vm8145, %v8140
        %8209 = vst.msk [vmem:[#allocation4 + $0x1f8] sm:$0xff] %vm8145, %v8141
        %8210 = vst.msk [vmem:[#allocation4 + $0x200] sm:$0xff] %vm8145, %v8142
        %8211 = vst.msk [vmem:[#allocation4 + $0x208] sm:$0xff] %vm8145, %v8143
        %vm8212 = vcmask 517120
        %8213 = vst.msk [vmem:[#allocation4 + $0x210] sm:$0x3] %vm8212, %v8144
        %vm8214 = vcmask 516096
        %8215 = vst.msk [vmem:[#allocation5] sm:$0x1] %vm8214, 0.0
        %8216 = vst.msk [vmem:[#allocation5 + $0xb1] sm:$0x1] %vm8214, 0.0
        %v8217 = vld [vmem:[#allocation4] ss:$3 sm:$0xff]
        %s8218 = scalar_lea.vmem [#allocation4], 24
        %v8219 = vld [vmem:[%s8218] ss:$3 sm:$0xff]
        %s8220 = scalar_lea.vmem [#allocation4], 48
        %v8221 = vld [vmem:[%s8220] ss:$3 sm:$0xff]
        %s8222 = scalar_lea.vmem [#allocation4], 72
        %v8223 = vld [vmem:[%s8222] ss:$3 sm:$0xff]
        %s8224 = scalar_lea.vmem [#allocation4], 96
        %v8225 = vld [vmem:[%s8224] ss:$3 sm:$0xff]
        %s8226 = scalar_lea.vmem [#allocation4], 120
        %v8227 = vld [vmem:[%s8226] ss:$3 sm:$0xff]
        %s8228 = scalar_lea.vmem [#allocation4], 144
        %v8229 = vld [vmem:[%s8228] ss:$3 sm:$0xff]
        %s8230 = scalar_lea.vmem [#allocation4], 168
        %v8231 = vld [vmem:[%s8230] ss:$3 sm:$0xff]
        %s8232 = scalar_lea.vmem [#allocation4], 192
        %v8233 = vld [vmem:[%s8232] ss:$3 sm:$0xff]
        %s8234 = scalar_lea.vmem [#allocation4], 216
        %v8235 = vld [vmem:[%s8234] ss:$3 sm:$0xff]
        %s8236 = scalar_lea.vmem [#allocation4], 240
        %v8237 = vld [vmem:[%s8236] ss:$3 sm:$0xff]
        %s8238 = scalar_lea.vmem [#allocation4], 264
        %v8239 = vld [vmem:[%s8238] ss:$3 sm:$0xff]
        %s8240 = scalar_lea.vmem [#allocation4], 288
        %v8241 = vld [vmem:[%s8240] ss:$3 sm:$0xff]
        %s8242 = scalar_lea.vmem [#allocation4], 312
        %v8243 = vld [vmem:[%s8242] ss:$3 sm:$0xff]
        %s8244 = scalar_lea.vmem [#allocation4], 336
        %v8245 = vld [vmem:[%s8244] ss:$3 sm:$0xff]
        %s8246 = scalar_lea.vmem [#allocation4], 360
        %v8247 = vld [vmem:[%s8246] ss:$3 sm:$0xff]
        %s8248 = scalar_lea.vmem [#allocation4], 384
        %v8249 = vld [vmem:[%s8248] ss:$3 sm:$0xff]
        %s8250 = scalar_lea.vmem [#allocation4], 408
        %v8251 = vld [vmem:[%s8250] ss:$3 sm:$0xff]
        %s8252 = scalar_lea.vmem [#allocation4], 432
        %v8253 = vld [vmem:[%s8252] ss:$3 sm:$0xff]
        %s8254 = scalar_lea.vmem [#allocation4], 456
        %v8255 = vld [vmem:[%s8254] ss:$3 sm:$0xff]
        %s8256 = scalar_lea.vmem [#allocation4], 480
        %v8257 = vld [vmem:[%s8256] ss:$3 sm:$0xff]
        %s8258 = scalar_lea.vmem [#allocation4], 504
        %v8259 = vld [vmem:[%s8258] ss:$3 sm:$0xff]
        %s8260 = scalar_lea.vmem [#allocation4], 1
        %v8261 = vld [vmem:[%s8260] ss:$3 sm:$0xff]
        %s8262 = scalar_lea.vmem [#allocation4], 25
        %v8263 = vld [vmem:[%s8262] ss:$3 sm:$0xff]
        %s8264 = scalar_lea.vmem [#allocation4], 49
        %v8265 = vld [vmem:[%s8264] ss:$3 sm:$0xff]
        %s8266 = scalar_lea.vmem [#allocation4], 73
        %v8267 = vld [vmem:[%s8266] ss:$3 sm:$0xff]
        %s8268 = scalar_lea.vmem [#allocation4], 97
        %v8269 = vld [vmem:[%s8268] ss:$3 sm:$0xff]
        %s8270 = scalar_lea.vmem [#allocation4], 121
        %v8271 = vld [vmem:[%s8270] ss:$3 sm:$0xff]
        %s8272 = scalar_lea.vmem [#allocation4], 145
        %v8273 = vld [vmem:[%s8272] ss:$3 sm:$0xff]
        %s8274 = scalar_lea.vmem [#allocation4], 169
        %v8275 = vld [vmem:[%s8274] ss:$3 sm:$0xff]
        %s8276 = scalar_lea.vmem [#allocation4], 193
        %v8277 = vld [vmem:[%s8276] ss:$3 sm:$0xff]
        %s8278 = scalar_lea.vmem [#allocation4], 217
        %v8279 = vld [vmem:[%s8278] ss:$3 sm:$0xff]
        %s8280 = scalar_lea.vmem [#allocation4], 241
        %v8281 = vld [vmem:[%s8280] ss:$3 sm:$0xff]
        %s8282 = scalar_lea.vmem [#allocation4], 265
        %v8283 = vld [vmem:[%s8282] ss:$3 sm:$0xff]
        %s8284 = scalar_lea.vmem [#allocation4], 289
        %v8285 = vld [vmem:[%s8284] ss:$3 sm:$0xff]
        %s8286 = scalar_lea.vmem [#allocation4], 313
        %v8287 = vld [vmem:[%s8286] ss:$3 sm:$0xff]
        %s8288 = scalar_lea.vmem [#allocation4], 337
        %v8289 = vld [vmem:[%s8288] ss:$3 sm:$0xff]
        %s8290 = scalar_lea.vmem [#allocation4], 361
        %v8291 = vld [vmem:[%s8290] ss:$3 sm:$0xff]
        %s8292 = scalar_lea.vmem [#allocation4], 385
        %v8293 = vld [vmem:[%s8292] ss:$3 sm:$0xff]
        %s8294 = scalar_lea.vmem [#allocation4], 409
        %v8295 = vld [vmem:[%s8294] ss:$3 sm:$0xff]
        %s8296 = scalar_lea.vmem [#allocation4], 433
        %v8297 = vld [vmem:[%s8296] ss:$3 sm:$0xff]
        %s8298 = scalar_lea.vmem [#allocation4], 457
        %v8299 = vld [vmem:[%s8298] ss:$3 sm:$0xff]
        %s8300 = scalar_lea.vmem [#allocation4], 481
        %v8301 = vld [vmem:[%s8300] ss:$3 sm:$0xff]
        %s8302 = scalar_lea.vmem [#allocation4], 505
        %v8303 = vld [vmem:[%s8302] ss:$3 sm:$0xff]
        %v8304 = vmax.f32 %v8217, %v8261
        %v8305 = vmax.f32 %v8219, %v8263
        %v8306 = vmax.f32 %v8221, %v8265
        %v8307 = vmax.f32 %v8223, %v8267
        %v8308 = vmax.f32 %v8225, %v8269
        %v8309 = vmax.f32 %v8227, %v8271
        %v8310 = vmax.f32 %v8229, %v8273
        %v8311 = vmax.f32 %v8231, %v8275
        %v8312 = vmax.f32 %v8233, %v8277
        %v8313 = vmax.f32 %v8235, %v8279
        %v8314 = vmax.f32 %v8237, %v8281
        %v8315 = vmax.f32 %v8239, %v8283
        %v8316 = vmax.f32 %v8241, %v8285
        %v8317 = vmax.f32 %v8243, %v8287
        %v8318 = vmax.f32 %v8245, %v8289
        %v8319 = vmax.f32 %v8247, %v8291
        %v8320 = vmax.f32 %v8249, %v8293
        %v8321 = vmax.f32 %v8251, %v8295
        %v8322 = vmax.f32 %v8253, %v8297
        %v8323 = vmax.f32 %v8255, %v8299
        %v8324 = vmax.f32 %v8257, %v8301
        %v8325 = vmax.f32 %v8259, %v8303
        %s8326 = scalar_lea.vmem [#allocation4], 2
        %v8327 = vld [vmem:[%s8326] ss:$3 sm:$0xff]
        %s8328 = scalar_lea.vmem [#allocation4], 26
        %v8329 = vld [vmem:[%s8328] ss:$3 sm:$0xff]
        %s8330 = scalar_lea.vmem [#allocation4], 50
        %v8331 = vld [vmem:[%s8330] ss:$3 sm:$0xff]
        %s8332 = scalar_lea.vmem [#allocation4], 74
        %v8333 = vld [vmem:[%s8332] ss:$3 sm:$0xff]
        %s8334 = scalar_lea.vmem [#allocation4], 98
        %v8335 = vld [vmem:[%s8334] ss:$3 sm:$0xff]
        %s8336 = scalar_lea.vmem [#allocation4], 122
        %v8337 = vld [vmem:[%s8336] ss:$3 sm:$0xff]
        %s8338 = scalar_lea.vmem [#allocation4], 146
        %v8339 = vld [vmem:[%s8338] ss:$3 sm:$0xff]
        %s8340 = scalar_lea.vmem [#allocation4], 170
        %v8341 = vld [vmem:[%s8340] ss:$3 sm:$0xff]
        %s8342 = scalar_lea.vmem [#allocation4], 194
        %v8343 = vld [vmem:[%s8342] ss:$3 sm:$0xff]
        %s8344 = scalar_lea.vmem [#allocation4], 218
        %v8345 = vld [vmem:[%s8344] ss:$3 sm:$0xff]
        %s8346 = scalar_lea.vmem [#allocation4], 242
        %v8347 = vld [vmem:[%s8346] ss:$3 sm:$0xff]
        %s8348 = scalar_lea.vmem [#allocation4], 266
        %v8349 = vld [vmem:[%s8348] ss:$3 sm:$0xff]
        %s8350 = scalar_lea.vmem [#allocation4], 290
        %v8351 = vld [vmem:[%s8350] ss:$3 sm:$0xff]
        %s8352 = scalar_lea.vmem [#allocation4], 314
        %v8353 = vld [vmem:[%s8352] ss:$3 sm:$0xff]
        %s8354 = scalar_lea.vmem [#allocation4], 338
        %v8355 = vld [vmem:[%s8354] ss:$3 sm:$0xff]
        %s8356 = scalar_lea.vmem [#allocation4], 362
        %v8357 = vld [vmem:[%s8356] ss:$3 sm:$0xff]
        %s8358 = scalar_lea.vmem [#allocation4], 386
        %v8359 = vld [vmem:[%s8358] ss:$3 sm:$0xff]
        %s8360 = scalar_lea.vmem [#allocation4], 410
        %v8361 = vld [vmem:[%s8360] ss:$3 sm:$0xff]
        %s8362 = scalar_lea.vmem [#allocation4], 434
        %v8363 = vld [vmem:[%s8362] ss:$3 sm:$0xff]
        %s8364 = scalar_lea.vmem [#allocation4], 458
        %v8365 = vld [vmem:[%s8364] ss:$3 sm:$0xff]
        %s8366 = scalar_lea.vmem [#allocation4], 482
        %v8367 = vld [vmem:[%s8366] ss:$3 sm:$0xff]
        %s8368 = scalar_lea.vmem [#allocation4], 506
        %v8369 = vld [vmem:[%s8368] ss:$3 sm:$0xff]
        %v8370 = vmax.f32 %v8304, %v8327
        %v8371 = vmax.f32 %v8305, %v8329
        %v8372 = vmax.f32 %v8306, %v8331
        %v8373 = vmax.f32 %v8307, %v8333
        %v8374 = vmax.f32 %v8308, %v8335
        %v8375 = vmax.f32 %v8309, %v8337
        %v8376 = vmax.f32 %v8310, %v8339
        %v8377 = vmax.f32 %v8311, %v8341
        %v8378 = vmax.f32 %v8312, %v8343
        %v8379 = vmax.f32 %v8313, %v8345
        %v8380 = vmax.f32 %v8314, %v8347
        %v8381 = vmax.f32 %v8315, %v8349
        %v8382 = vmax.f32 %v8316, %v8351
        %v8383 = vmax.f32 %v8317, %v8353
        %v8384 = vmax.f32 %v8318, %v8355
        %v8385 = vmax.f32 %v8319, %v8357
        %v8386 = vmax.f32 %v8320, %v8359
        %v8387 = vmax.f32 %v8321, %v8361
        %v8388 = vmax.f32 %v8322, %v8363
        %v8389 = vmax.f32 %v8323, %v8365
        %v8390 = vmax.f32 %v8324, %v8367
        %v8391 = vmax.f32 %v8325, %v8369
        %8392 = vst.msk [vmem:[#allocation5 + $0x1] sm:$0xff] %vm8145, %v8370
        %8393 = vst.msk [vmem:[#allocation5 + $0x9] sm:$0xff] %vm8145, %v8371
        %8394 = vst.msk [vmem:[#allocation5 + $0x11] sm:$0xff] %vm8145, %v8372
        %8395 = vst.msk [vmem:[#allocation5 + $0x19] sm:$0xff] %vm8145, %v8373
        %8396 = vst.msk [vmem:[#allocation5 + $0x21] sm:$0xff] %vm8145, %v8374
        %8397 = vst.msk [vmem:[#allocation5 + $0x29] sm:$0xff] %vm8145, %v8375
        %8398 = vst.msk [vmem:[#allocation5 + $0x31] sm:$0xff] %vm8145, %v8376
        %8399 = vst.msk [vmem:[#allocation5 + $0x39] sm:$0xff] %vm8145, %v8377
        %8400 = vst.msk [vmem:[#allocation5 + $0x41] sm:$0xff] %vm8145, %v8378
        %8401 = vst.msk [vmem:[#allocation5 + $0x49] sm:$0xff] %vm8145, %v8379
        %8402 = vst.msk [vmem:[#allocation5 + $0x51] sm:$0xff] %vm8145, %v8380
        %8403 = vst.msk [vmem:[#allocation5 + $0x59] sm:$0xff] %vm8145, %v8381
        %8404 = vst.msk [vmem:[#allocation5 + $0x61] sm:$0xff] %vm8145, %v8382
        %8405 = vst.msk [vmem:[#allocation5 + $0x69] sm:$0xff] %vm8145, %v8383
        %8406 = vst.msk [vmem:[#allocation5 + $0x71] sm:$0xff] %vm8145, %v8384
        %8407 = vst.msk [vmem:[#allocation5 + $0x79] sm:$0xff] %vm8145, %v8385
        %8408 = vst.msk [vmem:[#allocation5 + $0x81] sm:$0xff] %vm8145, %v8386
        %8409 = vst.msk [vmem:[#allocation5 + $0x89] sm:$0xff] %vm8145, %v8387
        %8410 = vst.msk [vmem:[#allocation5 + $0x91] sm:$0xff] %vm8145, %v8388
        %8411 = vst.msk [vmem:[#allocation5 + $0x99] sm:$0xff] %vm8145, %v8389
        %8412 = vst.msk [vmem:[#allocation5 + $0xa1] sm:$0xff] %vm8145, %v8390
        %8413 = vst.msk [vmem:[#allocation5 + $0xa9] sm:$0xff] %vm8145, %v8391
        %v8414 = vld [vmem:[#allocation5] sm:$0xff]
        %v8415 = vld [vmem:[#allocation5 + $0x8] sm:$0xff]
        %v8416 = vld [vmem:[#allocation5 + $0x10] sm:$0xff]
        %v8417 = vld [vmem:[#allocation5 + $0x18] sm:$0xff]
        %v8418 = vld [vmem:[#allocation5 + $0x20] sm:$0xff]
        %v8419 = vld [vmem:[#allocation5 + $0x28] sm:$0xff]
        %v8420 = vld [vmem:[#allocation5 + $0x30] sm:$0xff]
        %v8421 = vld [vmem:[#allocation5 + $0x38] sm:$0xff]
        %v8422 = vld [vmem:[#allocation5 + $0x40] sm:$0xff]
        %v8423 = vld [vmem:[#allocation5 + $0x48] sm:$0xff]
        %v8424 = vld [vmem:[#allocation5 + $0x50] sm:$0xff]
        %v8425 = vld [vmem:[#allocation5 + $0x58] sm:$0xff]
        %v8426 = vld [vmem:[#allocation5 + $0x60] sm:$0xff]
        %v8427 = vld [vmem:[#allocation5 + $0x68] sm:$0xff]
        %v8428 = vld [vmem:[#allocation5 + $0x70] sm:$0xff]
        %v8429 = vld [vmem:[#allocation5 + $0x78] sm:$0xff]
        %v8430 = vld [vmem:[#allocation5 + $0x80] sm:$0xff]
        %v8431 = vld [vmem:[#allocation5 + $0x88] sm:$0xff]
        %v8432 = vld [vmem:[#allocation5 + $0x90] sm:$0xff]
        %v8433 = vld [vmem:[#allocation5 + $0x98] sm:$0xff]
        %v8434 = vld [vmem:[#allocation5 + $0xa0] sm:$0xff]
        %v8435 = vld [vmem:[#allocation5 + $0xa8] sm:$0xff]
        %v8436 = vld [vmem:[#allocation14] sm:$0xff]
        %v8437 = vld [vmem:[#allocation14 + $0x8] sm:$0xff]
        %v8438 = vld [vmem:[#allocation14 + $0x10] sm:$0xff]
        %v8439 = vld [vmem:[#allocation14 + $0x18] sm:$0xff]
        %v8440 = vld [vmem:[#allocation14 + $0x20] sm:$0xff]
        %v8441 = vld [vmem:[#allocation14 + $0x28] sm:$0xff]
        %v8442 = vld [vmem:[#allocation14 + $0x30] sm:$0xff]
        %v8443 = vld [vmem:[#allocation14 + $0x38] sm:$0xff]
        %v8444 = vld [vmem:[#allocation5 + $0x1] sm:$0xff]
        %v8445 = vld [vmem:[#allocation5 + $0x9] sm:$0xff]
        %v8446 = vld [vmem:[#allocation5 + $0x11] sm:$0xff]
        %v8447 = vld [vmem:[#allocation5 + $0x19] sm:$0xff]
        %v8448 = vld [vmem:[#allocation5 + $0x21] sm:$0xff]
        %v8449 = vld [vmem:[#allocation5 + $0x29] sm:$0xff]
        %v8450 = vld [vmem:[#allocation5 + $0x31] sm:$0xff]
        %v8451 = vld [vmem:[#allocation5 + $0x39] sm:$0xff]
        %v8452 = vld [vmem:[#allocation5 + $0x41] sm:$0xff]
        %v8453 = vld [vmem:[#allocation5 + $0x49] sm:$0xff]
        %v8454 = vld [vmem:[#allocation5 + $0x51] sm:$0xff]
        %v8455 = vld [vmem:[#allocation5 + $0x59] sm:$0xff]
        %v8456 = vld [vmem:[#allocation5 + $0x61] sm:$0xff]
        %v8457 = vld [vmem:[#allocation5 + $0x69] sm:$0xff]
        %v8458 = vld [vmem:[#allocation5 + $0x71] sm:$0xff]
        %v8459 = vld [vmem:[#allocation5 + $0x79] sm:$0xff]
        %v8460 = vld [vmem:[#allocation5 + $0x81] sm:$0xff]
        %v8461 = vld [vmem:[#allocation5 + $0x89] sm:$0xff]
        %v8462 = vld [vmem:[#allocation5 + $0x91] sm:$0xff]
        %v8463 = vld [vmem:[#allocation5 + $0x99] sm:$0xff]
        %v8464 = vld [vmem:[#allocation5 + $0xa1] sm:$0xff]
        %v8465 = vld [vmem:[#allocation5 + $0xa9] sm:$0xff]
        %s8466 = scalar_lea.vmem [#allocation14], 64
        %v8467 = vld [vmem:[%s8466] sm:$0xff]
        %v8468 = vld [vmem:[%s8466 + $0x8] sm:$0xff]
        %v8469 = vld [vmem:[%s8466 + $0x10] sm:$0xff]
        %v8470 = vld [vmem:[%s8466 + $0x18] sm:$0xff]
        %v8471 = vld [vmem:[%s8466 + $0x20] sm:$0xff]
        %v8472 = vld [vmem:[%s8466 + $0x28] sm:$0xff]
        %v8473 = vld [vmem:[%s8466 + $0x30] sm:$0xff]
        %v8474 = vld [vmem:[%s8466 + $0x38] sm:$0xff]
        %v8476 = vsel %vm8145, %v8444, 0
        %v8479 = vsel %vm8145, %v8445, 0
        %v8482 = vsel %vm8145, %v8446, 0
        %v8485 = vsel %vm8145, %v8447, 0
        %v8488 = vsel %vm8145, %v8448, 0
        %v8491 = vsel %vm8145, %v8449, 0
        %v8494 = vsel %vm8145, %v8450, 0
        %v8497 = vsel %vm8145, %v8451, 0
        %v8500 = vsel %vm8145, %v8452, 0
        %v8503 = vsel %vm8145, %v8453, 0
        %v8506 = vsel %vm8145, %v8454, 0
        %v8509 = vsel %vm8145, %v8455, 0
        %v8512 = vsel %vm8145, %v8456, 0
        %v8515 = vsel %vm8145, %v8457, 0
        %v8518 = vsel %vm8145, %v8458, 0
        %v8521 = vsel %vm8145, %v8459, 0
        %v8524 = vsel %vm8145, %v8460, 0
        %v8527 = vsel %vm8145, %v8461, 0
        %v8530 = vsel %vm8145, %v8462, 0
        %v8533 = vsel %vm8145, %v8463, 0
        %v8536 = vsel %vm8145, %v8464, 0
        %v8539 = vsel %vm8145, %v8465, 0
        %8541 = vmatprep.subr.mxu0 0.0
        %8542 = vmatpush1.msra.mxu0 0.0
        %8543 = vmatprep.subr.mxu0 0.0
        %8544 = vmatpush1.msra.mxu0 0.0
        %8545 = vmatprep.subr.mxu0 0.0
        %8546 = vmatpush1.msra.mxu0 0.0
        %8547 = vmatprep.subr.mxu0 0.0
        %8548 = vmatpush1.msra.mxu0 0.0
        %8549 = vmatprep.subr.mxu0 0.0
        %8550 = vmatpush1.msra.mxu0 0.0
        %8551 = vmatprep.subr.mxu0 0.0
        %8552 = vmatpush1.msra.mxu0 0.0
        %8553 = vmatprep.subr.mxu0 0.0
        %8554 = vmatpush1.msra.mxu0 0.0
        %8555 = vmatprep.subr.mxu0 0.0
        %8556 = vmatpush1.msra.mxu0 0.0
        %8557 = vmatprep.subr.mxu0 0.0
        %8558 = vmatpush1.msra.mxu0 %v8474
        %8559 = vmatprep.subr.mxu0 0.0
        %8560 = vmatpush1.msra.mxu0 %v8473
        %8561 = vmatprep.subr.mxu0 0.0
        %8562 = vmatpush1.msra.mxu0 %v8472
        %8563 = vmatprep.subr.mxu0 0.0
        %8564 = vmatpush1.msra.mxu0 %v8471
        %8565 = vmatprep.subr.mxu0 0.0
        %8566 = vmatpush1.msra.mxu0 %v8470
        %8567 = vmatprep.subr.mxu0 0.0
        %8568 = vmatpush1.msra.mxu0 %v8469
        %8569 = vmatprep.subr.mxu0 0.0
        %8570 = vmatpush1.msra.mxu0 %v8468
        %8571 = vmatprep.subr.mxu0 0.0
        %8572 = vmatpush1.msra.mxu0 %v8467
        %8573 = vmatprep.subr.mxu0 0.0
        %8574 = vmatpush2.msra.mxu0 0.0
        %8575 = vmatprep.subr.mxu0 0.0
        %8576 = vmatpush2.msra.mxu0 0.0
        %8577 = vmatprep.subr.mxu0 0.0
        %8578 = vmatpush2.msra.mxu0 0.0
        %8579 = vmatprep.subr.mxu0 0.0
        %8580 = vmatpush2.msra.mxu0 0.0
        %8581 = vmatprep.subr.mxu0 0.0
        %8582 = vmatpush2.msra.mxu0 0.0
        %8583 = vmatprep.subr.mxu0 0.0
        %8584 = vmatpush2.msra.mxu0 0.0
        %8585 = vmatprep.subr.mxu0 0.0
        %8586 = vmatpush2.msra.mxu0 0.0
        %8587 = vmatprep.subr.mxu0 0.0
        %8588 = vmatpush2.msra.mxu0 0.0
        %8589 = vmatprep.subr.mxu0 0.0
        %8590 = vmatpush2.msra.mxu0 0.0
        %8591 = vmatprep.subr.mxu0 0.0
        %8592 = vmatpush2.msra.mxu0 0.0
        %8593 = vmatprep.subr.mxu0 0.0
        %8594 = vmatpush2.msra.mxu0 0.0
        %8595 = vmatprep.subr.mxu0 0.0
        %8596 = vmatpush2.msra.mxu0 0.0
        %8597 = vmatprep.subr.mxu0 0.0
        %8598 = vmatpush2.msra.mxu0 0.0
        %8599 = vmatprep.subr.mxu0 0.0
        %8600 = vmatpush2.msra.mxu0 0.0
        %8601 = vmatprep.subr.mxu0 0.0
        %8602 = vmatpush2.msra.mxu0 0.0
        %8603 = vmatprep.subr.mxu0 0.0
        %8604 = vmatpush2.msra.mxu0 0.0
        %8605 = vmatprep.mubr.f32.mxu0 0.0
        %8606 = vmatmul.mubr.f32.gmra.mxu0 %v8476
        %v8607 = vpop.f32.mrf.mxu0
        %v8608 = vadd.f32 0.0, %v8607
        %v8609 = vpop.f32.mrf.mxu0
        %8610 = vmatprep.mubr.f32.mxu0 0.0
        %8611 = vmatmul.mubr.f32.gmra.mxu0 %v8479
        %v8612 = vpop.f32.mrf.mxu0
        %v8613 = vadd.f32 0.0, %v8612
        %v8614 = vpop.f32.mrf.mxu0
        %8615 = vmatprep.mubr.f32.mxu0 0.0
        %8616 = vmatmul.mubr.f32.gmra.mxu0 %v8482
        %v8617 = vpop.f32.mrf.mxu0
        %v8618 = vadd.f32 0.0, %v8617
        %v8619 = vpop.f32.mrf.mxu0
        %8620 = vmatprep.mubr.f32.mxu0 0.0
        %8621 = vmatmul.mubr.f32.gmra.mxu0 %v8485
        %v8622 = vpop.f32.mrf.mxu0
        %v8623 = vadd.f32 0.0, %v8622
        %v8624 = vpop.f32.mrf.mxu0
        %8625 = vmatprep.mubr.f32.mxu0 0.0
        %8626 = vmatmul.mubr.f32.gmra.mxu0 %v8488
        %v8627 = vpop.f32.mrf.mxu0
        %v8628 = vadd.f32 0.0, %v8627
        %v8629 = vpop.f32.mrf.mxu0
        %8630 = vmatprep.mubr.f32.mxu0 0.0
        %8631 = vmatmul.mubr.f32.gmra.mxu0 %v8491
        %v8632 = vpop.f32.mrf.mxu0
        %v8633 = vadd.f32 0.0, %v8632
        %v8634 = vpop.f32.mrf.mxu0
        %8635 = vmatprep.mubr.f32.mxu0 0.0
        %8636 = vmatmul.mubr.f32.gmra.mxu0 %v8494
        %v8637 = vpop.f32.mrf.mxu0
        %v8638 = vadd.f32 0.0, %v8637
        %v8639 = vpop.f32.mrf.mxu0
        %8640 = vmatprep.mubr.f32.mxu0 0.0
        %8641 = vmatmul.mubr.f32.gmra.mxu0 %v8497
        %v8642 = vpop.f32.mrf.mxu0
        %v8643 = vadd.f32 0.0, %v8642
        %v8644 = vpop.f32.mrf.mxu0
        %8645 = vmatprep.mubr.f32.mxu0 0.0
        %8646 = vmatmul.mubr.f32.gmra.mxu0 %v8500
        %v8647 = vpop.f32.mrf.mxu0
        %v8648 = vadd.f32 0.0, %v8647
        %v8649 = vpop.f32.mrf.mxu0
        %8650 = vmatprep.mubr.f32.mxu0 0.0
        %8651 = vmatmul.mubr.f32.gmra.mxu0 %v8503
        %v8652 = vpop.f32.mrf.mxu0
        %v8653 = vadd.f32 0.0, %v8652
        %v8654 = vpop.f32.mrf.mxu0
        %8655 = vmatprep.mubr.f32.mxu0 0.0
        %8656 = vmatmul.mubr.f32.gmra.mxu0 %v8506
        %v8657 = vpop.f32.mrf.mxu0
        %v8658 = vadd.f32 0.0, %v8657
        %v8659 = vpop.f32.mrf.mxu0
        %8660 = vmatprep.mubr.f32.mxu0 0.0
        %8661 = vmatmul.mubr.f32.gmra.mxu0 %v8509
        %v8662 = vpop.f32.mrf.mxu0
        %v8663 = vadd.f32 0.0, %v8662
        %v8664 = vpop.f32.mrf.mxu0
        %8665 = vmatprep.mubr.f32.mxu0 0.0
        %8666 = vmatmul.mubr.f32.gmra.mxu0 %v8512
        %v8667 = vpop.f32.mrf.mxu0
        %v8668 = vadd.f32 0.0, %v8667
        %v8669 = vpop.f32.mrf.mxu0
        %8670 = vmatprep.mubr.f32.mxu0 0.0
        %8671 = vmatmul.mubr.f32.gmra.mxu0 %v8515
        %v8672 = vpop.f32.mrf.mxu0
        %v8673 = vadd.f32 0.0, %v8672
        %v8674 = vpop.f32.mrf.mxu0
        %8675 = vmatprep.mubr.f32.mxu0 0.0
        %8676 = vmatmul.mubr.f32.gmra.mxu0 %v8518
        %v8677 = vpop.f32.mrf.mxu0
        %v8678 = vadd.f32 0.0, %v8677
        %v8679 = vpop.f32.mrf.mxu0
        %8680 = vmatprep.mubr.f32.mxu0 0.0
        %8681 = vmatmul.mubr.f32.gmra.mxu0 %v8521
        %v8682 = vpop.f32.mrf.mxu0
        %v8683 = vadd.f32 0.0, %v8682
        %v8684 = vpop.f32.mrf.mxu0
        %8685 = vmatprep.mubr.f32.mxu0 0.0
        %8686 = vmatmul.mubr.f32.gmra.mxu0 %v8524
        %v8687 = vpop.f32.mrf.mxu0
        %v8688 = vadd.f32 0.0, %v8687
        %v8689 = vpop.f32.mrf.mxu0
        %8690 = vmatprep.mubr.f32.mxu0 0.0
        %8691 = vmatmul.mubr.f32.gmra.mxu0 %v8527
        %v8692 = vpop.f32.mrf.mxu0
        %v8693 = vadd.f32 0.0, %v8692
        %v8694 = vpop.f32.mrf.mxu0
        %8695 = vmatprep.mubr.f32.mxu0 0.0
        %8696 = vmatmul.mubr.f32.gmra.mxu0 %v8530
        %v8697 = vpop.f32.mrf.mxu0
        %v8698 = vadd.f32 0.0, %v8697
        %v8699 = vpop.f32.mrf.mxu0
        %8700 = vmatprep.mubr.f32.mxu0 0.0
        %8701 = vmatmul.mubr.f32.gmra.mxu0 %v8533
        %v8702 = vpop.f32.mrf.mxu0
        %v8703 = vadd.f32 0.0, %v8702
        %v8704 = vpop.f32.mrf.mxu0
        %8705 = vmatprep.mubr.f32.mxu0 0.0
        %8706 = vmatmul.mubr.f32.gmra.mxu0 %v8536
        %v8707 = vpop.f32.mrf.mxu0
        %v8708 = vadd.f32 0.0, %v8707
        %v8709 = vpop.f32.mrf.mxu0
        %8710 = vmatprep.mubr.f32.mxu0 0.0
        %8711 = vmatmul.mubr.f32.gmra.mxu0 %v8539
        %v8712 = vpop.f32.mrf.mxu0
        %v8713 = vadd.f32 0.0, %v8712
        %v8714 = vpop.f32.mrf.mxu0
        %8715 = vdwg.mxu0
        %v8717 = vsel %vm8145, %v8414, 0
        %v8720 = vsel %vm8145, %v8415, 0
        %v8723 = vsel %vm8145, %v8416, 0
        %v8726 = vsel %vm8145, %v8417, 0
        %v8729 = vsel %vm8145, %v8418, 0
        %v8732 = vsel %vm8145, %v8419, 0
        %v8735 = vsel %vm8145, %v8420, 0
        %v8738 = vsel %vm8145, %v8421, 0
        %v8741 = vsel %vm8145, %v8422, 0
        %v8744 = vsel %vm8145, %v8423, 0
        %v8747 = vsel %vm8145, %v8424, 0
        %v8750 = vsel %vm8145, %v8425, 0
        %v8753 = vsel %vm8145, %v8426, 0
        %v8756 = vsel %vm8145, %v8427, 0
        %v8759 = vsel %vm8145, %v8428, 0
        %v8762 = vsel %vm8145, %v8429, 0
        %v8765 = vsel %vm8145, %v8430, 0
        %v8768 = vsel %vm8145, %v8431, 0
        %v8771 = vsel %vm8145, %v8432, 0
        %v8774 = vsel %vm8145, %v8433, 0
        %v8777 = vsel %vm8145, %v8434, 0
        %v8780 = vsel %vm8145, %v8435, 0
        %8782 = vmatprep.subr.mxu0 0.0
        %8783 = vmatpush1.msra.mxu0 0.0
        %8784 = vmatprep.subr.mxu0 0.0
        %8785 = vmatpush1.msra.mxu0 0.0
        %8786 = vmatprep.subr.mxu0 0.0
        %8787 = vmatpush1.msra.mxu0 0.0
        %8788 = vmatprep.subr.mxu0 0.0
        %8789 = vmatpush1.msra.mxu0 0.0
        %8790 = vmatprep.subr.mxu0 0.0
        %8791 = vmatpush1.msra.mxu0 0.0
        %8792 = vmatprep.subr.mxu0 0.0
        %8793 = vmatpush1.msra.mxu0 0.0
        %8794 = vmatprep.subr.mxu0 0.0
        %8795 = vmatpush1.msra.mxu0 0.0
        %8796 = vmatprep.subr.mxu0 0.0
        %8797 = vmatpush1.msra.mxu0 0.0
        %8798 = vmatprep.subr.mxu0 0.0
        %8799 = vmatpush1.msra.mxu0 %v8443
        %8800 = vmatprep.subr.mxu0 0.0
        %8801 = vmatpush1.msra.mxu0 %v8442
        %8802 = vmatprep.subr.mxu0 0.0
        %8803 = vmatpush1.msra.mxu0 %v8441
        %8804 = vmatprep.subr.mxu0 0.0
        %8805 = vmatpush1.msra.mxu0 %v8440
        %8806 = vmatprep.subr.mxu0 0.0
        %8807 = vmatpush1.msra.mxu0 %v8439
        %8808 = vmatprep.subr.mxu0 0.0
        %8809 = vmatpush1.msra.mxu0 %v8438
        %8810 = vmatprep.subr.mxu0 0.0
        %8811 = vmatpush1.msra.mxu0 %v8437
        %8812 = vmatprep.subr.mxu0 0.0
        %8813 = vmatpush1.msra.mxu0 %v8436
        %8814 = vmatprep.subr.mxu0 0.0
        %8815 = vmatpush2.msra.mxu0 0.0
        %8816 = vmatprep.subr.mxu0 0.0
        %8817 = vmatpush2.msra.mxu0 0.0
        %8818 = vmatprep.subr.mxu0 0.0
        %8819 = vmatpush2.msra.mxu0 0.0
        %8820 = vmatprep.subr.mxu0 0.0
        %8821 = vmatpush2.msra.mxu0 0.0
        %8822 = vmatprep.subr.mxu0 0.0
        %8823 = vmatpush2.msra.mxu0 0.0
        %8824 = vmatprep.subr.mxu0 0.0
        %8825 = vmatpush2.msra.mxu0 0.0
        %8826 = vmatprep.subr.mxu0 0.0
        %8827 = vmatpush2.msra.mxu0 0.0
        %8828 = vmatprep.subr.mxu0 0.0
        %8829 = vmatpush2.msra.mxu0 0.0
        %8830 = vmatprep.subr.mxu0 0.0
        %8831 = vmatpush2.msra.mxu0 0.0
        %8832 = vmatprep.subr.mxu0 0.0
        %8833 = vmatpush2.msra.mxu0 0.0
        %8834 = vmatprep.subr.mxu0 0.0
        %8835 = vmatpush2.msra.mxu0 0.0
        %8836 = vmatprep.subr.mxu0 0.0
        %8837 = vmatpush2.msra.mxu0 0.0
        %8838 = vmatprep.subr.mxu0 0.0
        %8839 = vmatpush2.msra.mxu0 0.0
        %8840 = vmatprep.subr.mxu0 0.0
        %8841 = vmatpush2.msra.mxu0 0.0
        %8842 = vmatprep.subr.mxu0 0.0
        %8843 = vmatpush2.msra.mxu0 0.0
        %8844 = vmatprep.subr.mxu0 0.0
        %8845 = vmatpush2.msra.mxu0 0.0
        %8846 = vmatprep.mubr.f32.mxu0 0.0
        %8847 = vmatmul.mubr.f32.gmra.mxu0 %v8717
        %v8848 = vpop.f32.mrf.mxu0
        %v8849 = vadd.f32 %v8608, %v8848
        %v8850 = vpop.f32.mrf.mxu0
        %8851 = vmatprep.mubr.f32.mxu0 0.0
        %8852 = vmatmul.mubr.f32.gmra.mxu0 %v8720
        %v8853 = vpop.f32.mrf.mxu0
        %v8854 = vadd.f32 %v8613, %v8853
        %v8855 = vpop.f32.mrf.mxu0
        %8856 = vmatprep.mubr.f32.mxu0 0.0
        %8857 = vmatmul.mubr.f32.gmra.mxu0 %v8723
        %v8858 = vpop.f32.mrf.mxu0
        %v8859 = vadd.f32 %v8618, %v8858
        %v8860 = vpop.f32.mrf.mxu0
        %8861 = vmatprep.mubr.f32.mxu0 0.0
        %8862 = vmatmul.mubr.f32.gmra.mxu0 %v8726
        %v8863 = vpop.f32.mrf.mxu0
        %v8864 = vadd.f32 %v8623, %v8863
        %v8865 = vpop.f32.mrf.mxu0
        %8866 = vmatprep.mubr.f32.mxu0 0.0
        %8867 = vmatmul.mubr.f32.gmra.mxu0 %v8729
        %v8868 = vpop.f32.mrf.mxu0
        %v8869 = vadd.f32 %v8628, %v8868
        %v8870 = vpop.f32.mrf.mxu0
        %8871 = vmatprep.mubr.f32.mxu0 0.0
        %8872 = vmatmul.mubr.f32.gmra.mxu0 %v8732
        %v8873 = vpop.f32.mrf.mxu0
        %v8874 = vadd.f32 %v8633, %v8873
        %v8875 = vpop.f32.mrf.mxu0
        %8876 = vmatprep.mubr.f32.mxu0 0.0
        %8877 = vmatmul.mubr.f32.gmra.mxu0 %v8735
        %v8878 = vpop.f32.mrf.mxu0
        %v8879 = vadd.f32 %v8638, %v8878
        %v8880 = vpop.f32.mrf.mxu0
        %8881 = vmatprep.mubr.f32.mxu0 0.0
        %8882 = vmatmul.mubr.f32.gmra.mxu0 %v8738
        %v8883 = vpop.f32.mrf.mxu0
        %v8884 = vadd.f32 %v8643, %v8883
        %v8885 = vpop.f32.mrf.mxu0
        %8886 = vmatprep.mubr.f32.mxu0 0.0
        %8887 = vmatmul.mubr.f32.gmra.mxu0 %v8741
        %v8888 = vpop.f32.mrf.mxu0
        %v8889 = vadd.f32 %v8648, %v8888
        %v8890 = vpop.f32.mrf.mxu0
        %8891 = vmatprep.mubr.f32.mxu0 0.0
        %8892 = vmatmul.mubr.f32.gmra.mxu0 %v8744
        %v8893 = vpop.f32.mrf.mxu0
        %v8894 = vadd.f32 %v8653, %v8893
        %v8895 = vpop.f32.mrf.mxu0
        %8896 = vmatprep.mubr.f32.mxu0 0.0
        %8897 = vmatmul.mubr.f32.gmra.mxu0 %v8747
        %v8898 = vpop.f32.mrf.mxu0
        %v8899 = vadd.f32 %v8658, %v8898
        %v8900 = vpop.f32.mrf.mxu0
        %8901 = vmatprep.mubr.f32.mxu0 0.0
        %8902 = vmatmul.mubr.f32.gmra.mxu0 %v8750
        %v8903 = vpop.f32.mrf.mxu0
        %v8904 = vadd.f32 %v8663, %v8903
        %v8905 = vpop.f32.mrf.mxu0
        %8906 = vmatprep.mubr.f32.mxu0 0.0
        %8907 = vmatmul.mubr.f32.gmra.mxu0 %v8753
        %v8908 = vpop.f32.mrf.mxu0
        %v8909 = vadd.f32 %v8668, %v8908
        %v8910 = vpop.f32.mrf.mxu0
        %8911 = vmatprep.mubr.f32.mxu0 0.0
        %8912 = vmatmul.mubr.f32.gmra.mxu0 %v8756
        %v8913 = vpop.f32.mrf.mxu0
        %v8914 = vadd.f32 %v8673, %v8913
        %v8915 = vpop.f32.mrf.mxu0
        %8916 = vmatprep.mubr.f32.mxu0 0.0
        %8917 = vmatmul.mubr.f32.gmra.mxu0 %v8759
        %v8918 = vpop.f32.mrf.mxu0
        %v8919 = vadd.f32 %v8678, %v8918
        %v8920 = vpop.f32.mrf.mxu0
        %8921 = vmatprep.mubr.f32.mxu0 0.0
        %8922 = vmatmul.mubr.f32.gmra.mxu0 %v8762
        %v8923 = vpop.f32.mrf.mxu0
        %v8924 = vadd.f32 %v8683, %v8923
        %v8925 = vpop.f32.mrf.mxu0
        %8926 = vmatprep.mubr.f32.mxu0 0.0
        %8927 = vmatmul.mubr.f32.gmra.mxu0 %v8765
        %v8928 = vpop.f32.mrf.mxu0
        %v8929 = vadd.f32 %v8688, %v8928
        %v8930 = vpop.f32.mrf.mxu0
        %8931 = vmatprep.mubr.f32.mxu0 0.0
        %8932 = vmatmul.mubr.f32.gmra.mxu0 %v8768
        %v8933 = vpop.f32.mrf.mxu0
        %v8934 = vadd.f32 %v8693, %v8933
        %v8935 = vpop.f32.mrf.mxu0
        %8936 = vmatprep.mubr.f32.mxu0 0.0
        %8937 = vmatmul.mubr.f32.gmra.mxu0 %v8771
        %v8938 = vpop.f32.mrf.mxu0
        %v8939 = vadd.f32 %v8698, %v8938
        %v8940 = vpop.f32.mrf.mxu0
        %8941 = vmatprep.mubr.f32.mxu0 0.0
        %8942 = vmatmul.mubr.f32.gmra.mxu0 %v8774
        %v8943 = vpop.f32.mrf.mxu0
        %v8944 = vadd.f32 %v8703, %v8943
        %v8945 = vpop.f32.mrf.mxu0
        %8946 = vmatprep.mubr.f32.mxu0 0.0
        %8947 = vmatmul.mubr.f32.gmra.mxu0 %v8777
        %v8948 = vpop.f32.mrf.mxu0
        %v8949 = vadd.f32 %v8708, %v8948
        %v8950 = vpop.f32.mrf.mxu0
        %8951 = vmatprep.mubr.f32.mxu0 0.0
        %8952 = vmatmul.mubr.f32.gmra.mxu0 %v8780
        %v8953 = vpop.f32.mrf.mxu0
        %v8954 = vadd.f32 %v8713, %v8953
        %v8955 = vpop.f32.mrf.mxu0
        %8956 = vdwg.mxu0
        %v8957 = vld [vmem:[#allocation5 + $0x2] sm:$0xff]
        %v8958 = vld [vmem:[#allocation5 + $0xa] sm:$0xff]
        %v8959 = vld [vmem:[#allocation5 + $0x12] sm:$0xff]
        %v8960 = vld [vmem:[#allocation5 + $0x1a] sm:$0xff]
        %v8961 = vld [vmem:[#allocation5 + $0x22] sm:$0xff]
        %v8962 = vld [vmem:[#allocation5 + $0x2a] sm:$0xff]
        %v8963 = vld [vmem:[#allocation5 + $0x32] sm:$0xff]
        %v8964 = vld [vmem:[#allocation5 + $0x3a] sm:$0xff]
        %v8965 = vld [vmem:[#allocation5 + $0x42] sm:$0xff]
        %v8966 = vld [vmem:[#allocation5 + $0x4a] sm:$0xff]
        %v8967 = vld [vmem:[#allocation5 + $0x52] sm:$0xff]
        %v8968 = vld [vmem:[#allocation5 + $0x5a] sm:$0xff]
        %v8969 = vld [vmem:[#allocation5 + $0x62] sm:$0xff]
        %v8970 = vld [vmem:[#allocation5 + $0x6a] sm:$0xff]
        %v8971 = vld [vmem:[#allocation5 + $0x72] sm:$0xff]
        %v8972 = vld [vmem:[#allocation5 + $0x7a] sm:$0xff]
        %v8973 = vld [vmem:[#allocation5 + $0x82] sm:$0xff]
        %v8974 = vld [vmem:[#allocation5 + $0x8a] sm:$0xff]
        %v8975 = vld [vmem:[#allocation5 + $0x92] sm:$0xff]
        %v8976 = vld [vmem:[#allocation5 + $0x9a] sm:$0xff]
        %v8977 = vld [vmem:[#allocation5 + $0xa2] sm:$0xff]
        %v8978 = vld [vmem:[#allocation5 + $0xaa] sm:$0xff]
        %s8979 = scalar_lea.vmem [#allocation14], 128
        %v8980 = vld [vmem:[%s8979] sm:$0xff]
        %v8981 = vld [vmem:[%s8979 + $0x8] sm:$0xff]
        %v8982 = vld [vmem:[%s8979 + $0x10] sm:$0xff]
        %v8983 = vld [vmem:[%s8979 + $0x18] sm:$0xff]
        %v8984 = vld [vmem:[%s8979 + $0x20] sm:$0xff]
        %v8985 = vld [vmem:[%s8979 + $0x28] sm:$0xff]
        %v8986 = vld [vmem:[%s8979 + $0x30] sm:$0xff]
        %v8987 = vld [vmem:[%s8979 + $0x38] sm:$0xff]
        %v8989 = vsel %vm8145, %v8957, 0
        %v8992 = vsel %vm8145, %v8958, 0
        %v8995 = vsel %vm8145, %v8959, 0
        %v8998 = vsel %vm8145, %v8960, 0
        %v9001 = vsel %vm8145, %v8961, 0
        %v9004 = vsel %vm8145, %v8962, 0
        %v9007 = vsel %vm8145, %v8963, 0
        %v9010 = vsel %vm8145, %v8964, 0
        %v9013 = vsel %vm8145, %v8965, 0
        %v9016 = vsel %vm8145, %v8966, 0
        %v9019 = vsel %vm8145, %v8967, 0
        %v9022 = vsel %vm8145, %v8968, 0
        %v9025 = vsel %vm8145, %v8969, 0
        %v9028 = vsel %vm8145, %v8970, 0
        %v9031 = vsel %vm8145, %v8971, 0
        %v9034 = vsel %vm8145, %v8972, 0
        %v9037 = vsel %vm8145, %v8973, 0
        %v9040 = vsel %vm8145, %v8974, 0
        %v9043 = vsel %vm8145, %v8975, 0
        %v9046 = vsel %vm8145, %v8976, 0
        %v9049 = vsel %vm8145, %v8977, 0
        %v9052 = vsel %vm8145, %v8978, 0
        %9054 = vmatprep.subr.mxu0 0.0
        %9055 = vmatpush1.msra.mxu0 0.0
        %9056 = vmatprep.subr.mxu0 0.0
        %9057 = vmatpush1.msra.mxu0 0.0
        %9058 = vmatprep.subr.mxu0 0.0
        %9059 = vmatpush1.msra.mxu0 0.0
        %9060 = vmatprep.subr.mxu0 0.0
        %9061 = vmatpush1.msra.mxu0 0.0
        %9062 = vmatprep.subr.mxu0 0.0
        %9063 = vmatpush1.msra.mxu0 0.0
        %9064 = vmatprep.subr.mxu0 0.0
        %9065 = vmatpush1.msra.mxu0 0.0
        %9066 = vmatprep.subr.mxu0 0.0
        %9067 = vmatpush1.msra.mxu0 0.0
        %9068 = vmatprep.subr.mxu0 0.0
        %9069 = vmatpush1.msra.mxu0 0.0
        %9070 = vmatprep.subr.mxu0 0.0
        %9071 = vmatpush1.msra.mxu0 %v8987
        %9072 = vmatprep.subr.mxu0 0.0
        %9073 = vmatpush1.msra.mxu0 %v8986
        %9074 = vmatprep.subr.mxu0 0.0
        %9075 = vmatpush1.msra.mxu0 %v8985
        %9076 = vmatprep.subr.mxu0 0.0
        %9077 = vmatpush1.msra.mxu0 %v8984
        %9078 = vmatprep.subr.mxu0 0.0
        %9079 = vmatpush1.msra.mxu0 %v8983
        %9080 = vmatprep.subr.mxu0 0.0
        %9081 = vmatpush1.msra.mxu0 %v8982
        %9082 = vmatprep.subr.mxu0 0.0
        %9083 = vmatpush1.msra.mxu0 %v8981
        %9084 = vmatprep.subr.mxu0 0.0
        %9085 = vmatpush1.msra.mxu0 %v8980
        %9086 = vmatprep.subr.mxu0 0.0
        %9087 = vmatpush2.msra.mxu0 0.0
        %9088 = vmatprep.subr.mxu0 0.0
        %9089 = vmatpush2.msra.mxu0 0.0
        %9090 = vmatprep.subr.mxu0 0.0
        %9091 = vmatpush2.msra.mxu0 0.0
        %9092 = vmatprep.subr.mxu0 0.0
        %9093 = vmatpush2.msra.mxu0 0.0
        %9094 = vmatprep.subr.mxu0 0.0
        %9095 = vmatpush2.msra.mxu0 0.0
        %9096 = vmatprep.subr.mxu0 0.0
        %9097 = vmatpush2.msra.mxu0 0.0
        %9098 = vmatprep.subr.mxu0 0.0
        %9099 = vmatpush2.msra.mxu0 0.0
        %9100 = vmatprep.subr.mxu0 0.0
        %9101 = vmatpush2.msra.mxu0 0.0
        %9102 = vmatprep.subr.mxu0 0.0
        %9103 = vmatpush2.msra.mxu0 0.0
        %9104 = vmatprep.subr.mxu0 0.0
        %9105 = vmatpush2.msra.mxu0 0.0
        %9106 = vmatprep.subr.mxu0 0.0
        %9107 = vmatpush2.msra.mxu0 0.0
        %9108 = vmatprep.subr.mxu0 0.0
        %9109 = vmatpush2.msra.mxu0 0.0
        %9110 = vmatprep.subr.mxu0 0.0
        %9111 = vmatpush2.msra.mxu0 0.0
        %9112 = vmatprep.subr.mxu0 0.0
        %9113 = vmatpush2.msra.mxu0 0.0
        %9114 = vmatprep.subr.mxu0 0.0
        %9115 = vmatpush2.msra.mxu0 0.0
        %9116 = vmatprep.subr.mxu0 0.0
        %9117 = vmatpush2.msra.mxu0 0.0
        %9118 = vmatprep.mubr.f32.mxu0 0.0
        %9119 = vmatmul.mubr.f32.gmra.mxu0 %v8989
        %v9120 = vpop.f32.mrf.mxu0
        %v9121 = vadd.f32 0.0, %v9120
        %v9122 = vpop.f32.mrf.mxu0
        %9123 = vmatprep.mubr.f32.mxu0 0.0
        %9124 = vmatmul.mubr.f32.gmra.mxu0 %v8992
        %v9125 = vpop.f32.mrf.mxu0
        %v9126 = vadd.f32 0.0, %v9125
        %v9127 = vpop.f32.mrf.mxu0
        %9128 = vmatprep.mubr.f32.mxu0 0.0
        %9129 = vmatmul.mubr.f32.gmra.mxu0 %v8995
        %v9130 = vpop.f32.mrf.mxu0
        %v9131 = vadd.f32 0.0, %v9130
        %v9132 = vpop.f32.mrf.mxu0
        %9133 = vmatprep.mubr.f32.mxu0 0.0
        %9134 = vmatmul.mubr.f32.gmra.mxu0 %v8998
        %v9135 = vpop.f32.mrf.mxu0
        %v9136 = vadd.f32 0.0, %v9135
        %v9137 = vpop.f32.mrf.mxu0
        %9138 = vmatprep.mubr.f32.mxu0 0.0
        %9139 = vmatmul.mubr.f32.gmra.mxu0 %v9001
        %v9140 = vpop.f32.mrf.mxu0
        %v9141 = vadd.f32 0.0, %v9140
        %v9142 = vpop.f32.mrf.mxu0
        %9143 = vmatprep.mubr.f32.mxu0 0.0
        %9144 = vmatmul.mubr.f32.gmra.mxu0 %v9004
        %v9145 = vpop.f32.mrf.mxu0
        %v9146 = vadd.f32 0.0, %v9145
        %v9147 = vpop.f32.mrf.mxu0
        %9148 = vmatprep.mubr.f32.mxu0 0.0
        %9149 = vmatmul.mubr.f32.gmra.mxu0 %v9007
        %v9150 = vpop.f32.mrf.mxu0
        %v9151 = vadd.f32 0.0, %v9150
        %v9152 = vpop.f32.mrf.mxu0
        %9153 = vmatprep.mubr.f32.mxu0 0.0
        %9154 = vmatmul.mubr.f32.gmra.mxu0 %v9010
        %v9155 = vpop.f32.mrf.mxu0
        %v9156 = vadd.f32 0.0, %v9155
        %v9157 = vpop.f32.mrf.mxu0
        %9158 = vmatprep.mubr.f32.mxu0 0.0
        %9159 = vmatmul.mubr.f32.gmra.mxu0 %v9013
        %v9160 = vpop.f32.mrf.mxu0
        %v9161 = vadd.f32 0.0, %v9160
        %v9162 = vpop.f32.mrf.mxu0
        %9163 = vmatprep.mubr.f32.mxu0 0.0
        %9164 = vmatmul.mubr.f32.gmra.mxu0 %v9016
        %v9165 = vpop.f32.mrf.mxu0
        %v9166 = vadd.f32 0.0, %v9165
        %v9167 = vpop.f32.mrf.mxu0
        %9168 = vmatprep.mubr.f32.mxu0 0.0
        %9169 = vmatmul.mubr.f32.gmra.mxu0 %v9019
        %v9170 = vpop.f32.mrf.mxu0
        %v9171 = vadd.f32 0.0, %v9170
        %v9172 = vpop.f32.mrf.mxu0
        %9173 = vmatprep.mubr.f32.mxu0 0.0
        %9174 = vmatmul.mubr.f32.gmra.mxu0 %v9022
        %v9175 = vpop.f32.mrf.mxu0
        %v9176 = vadd.f32 0.0, %v9175
        %v9177 = vpop.f32.mrf.mxu0
        %9178 = vmatprep.mubr.f32.mxu0 0.0
        %9179 = vmatmul.mubr.f32.gmra.mxu0 %v9025
        %v9180 = vpop.f32.mrf.mxu0
        %v9181 = vadd.f32 0.0, %v9180
        %v9182 = vpop.f32.mrf.mxu0
        %9183 = vmatprep.mubr.f32.mxu0 0.0
        %9184 = vmatmul.mubr.f32.gmra.mxu0 %v9028
        %v9185 = vpop.f32.mrf.mxu0
        %v9186 = vadd.f32 0.0, %v9185
        %v9187 = vpop.f32.mrf.mxu0
        %9188 = vmatprep.mubr.f32.mxu0 0.0
        %9189 = vmatmul.mubr.f32.gmra.mxu0 %v9031
        %v9190 = vpop.f32.mrf.mxu0
        %v9191 = vadd.f32 0.0, %v9190
        %v9192 = vpop.f32.mrf.mxu0
        %9193 = vmatprep.mubr.f32.mxu0 0.0
        %9194 = vmatmul.mubr.f32.gmra.mxu0 %v9034
        %v9195 = vpop.f32.mrf.mxu0
        %v9196 = vadd.f32 0.0, %v9195
        %v9197 = vpop.f32.mrf.mxu0
        %9198 = vmatprep.mubr.f32.mxu0 0.0
        %9199 = vmatmul.mubr.f32.gmra.mxu0 %v9037
        %v9200 = vpop.f32.mrf.mxu0
        %v9201 = vadd.f32 0.0, %v9200
        %v9202 = vpop.f32.mrf.mxu0
        %9203 = vmatprep.mubr.f32.mxu0 0.0
        %9204 = vmatmul.mubr.f32.gmra.mxu0 %v9040
        %v9205 = vpop.f32.mrf.mxu0
        %v9206 = vadd.f32 0.0, %v9205
        %v9207 = vpop.f32.mrf.mxu0
        %9208 = vmatprep.mubr.f32.mxu0 0.0
        %9209 = vmatmul.mubr.f32.gmra.mxu0 %v9043
        %v9210 = vpop.f32.mrf.mxu0
        %v9211 = vadd.f32 0.0, %v9210
        %v9212 = vpop.f32.mrf.mxu0
        %9213 = vmatprep.mubr.f32.mxu0 0.0
        %9214 = vmatmul.mubr.f32.gmra.mxu0 %v9046
        %v9215 = vpop.f32.mrf.mxu0
        %v9216 = vadd.f32 0.0, %v9215
        %v9217 = vpop.f32.mrf.mxu0
        %9218 = vmatprep.mubr.f32.mxu0 0.0
        %9219 = vmatmul.mubr.f32.gmra.mxu0 %v9049
        %v9220 = vpop.f32.mrf.mxu0
        %v9221 = vadd.f32 0.0, %v9220
        %v9222 = vpop.f32.mrf.mxu0
        %9223 = vmatprep.mubr.f32.mxu0 0.0
        %9224 = vmatmul.mubr.f32.gmra.mxu0 %v9052
        %v9225 = vpop.f32.mrf.mxu0
        %v9226 = vadd.f32 0.0, %v9225
        %v9227 = vpop.f32.mrf.mxu0
        %9228 = vdwg.mxu0
        %v9229 = vadd.f32 %v8849, %v9121
        %v9230 = vadd.f32 %v8854, %v9126
        %v9231 = vadd.f32 %v8859, %v9131
        %v9232 = vadd.f32 %v8864, %v9136
        %v9233 = vadd.f32 %v8869, %v9141
        %v9234 = vadd.f32 %v8874, %v9146
        %v9235 = vadd.f32 %v8879, %v9151
        %v9236 = vadd.f32 %v8884, %v9156
        %v9237 = vadd.f32 %v8889, %v9161
        %v9238 = vadd.f32 %v8894, %v9166
        %v9239 = vadd.f32 %v8899, %v9171
        %v9240 = vadd.f32 %v8904, %v9176
        %v9241 = vadd.f32 %v8909, %v9181
        %v9242 = vadd.f32 %v8914, %v9186
        %v9243 = vadd.f32 %v8919, %v9191
        %v9244 = vadd.f32 %v8924, %v9196
        %v9245 = vadd.f32 %v8929, %v9201
        %v9246 = vadd.f32 %v8934, %v9206
        %v9247 = vadd.f32 %v8939, %v9211
        %v9248 = vadd.f32 %v8944, %v9216
        %v9249 = vadd.f32 %v8949, %v9221
        %v9250 = vadd.f32 %v8954, %v9226
        %v9251 = vld [vmem:[#allocation15] sm:$0x1]
        %v9253 = vlaneseq
        %v9254 = vshrl.u32 %v9253, 7
        %v9255 = vsub.s32 0, %v9254
        %v9256 = vrot.slane %v9251, %v9255
        %v9258 = vadd.f32 %v9229, %v9256
        %v9259 = vadd.f32 %v9230, %v9256
        %v9260 = vadd.f32 %v9231, %v9256
        %v9261 = vadd.f32 %v9232, %v9256
        %v9262 = vadd.f32 %v9233, %v9256
        %v9263 = vadd.f32 %v9234, %v9256
        %v9264 = vadd.f32 %v9235, %v9256
        %v9265 = vadd.f32 %v9236, %v9256
        %v9266 = vadd.f32 %v9237, %v9256
        %v9267 = vadd.f32 %v9238, %v9256
        %v9268 = vadd.f32 %v9239, %v9256
        %v9269 = vadd.f32 %v9240, %v9256
        %v9270 = vadd.f32 %v9241, %v9256
        %v9271 = vadd.f32 %v9242, %v9256
        %v9272 = vadd.f32 %v9243, %v9256
        %v9273 = vadd.f32 %v9244, %v9256
        %v9274 = vadd.f32 %v9245, %v9256
        %v9275 = vadd.f32 %v9246, %v9256
        %v9276 = vadd.f32 %v9247, %v9256
        %v9277 = vadd.f32 %v9248, %v9256
        %v9278 = vadd.f32 %v9249, %v9256
        %v9279 = vadd.f32 %v9250, %v9256
        %9280 = vst.msk [vmem:[#allocation6] sm:$0xff] %vm8145, %v9258
        %9281 = vst.msk [vmem:[#allocation6 + $0x8] sm:$0xff] %vm8145, %v9259
        %9282 = vst.msk [vmem:[#allocation6 + $0x10] sm:$0xff] %vm8145, %v9260
        %9283 = vst.msk [vmem:[#allocation6 + $0x18] sm:$0xff] %vm8145, %v9261
        %9284 = vst.msk [vmem:[#allocation6 + $0x20] sm:$0xff] %vm8145, %v9262
        %9285 = vst.msk [vmem:[#allocation6 + $0x28] sm:$0xff] %vm8145, %v9263
        %9286 = vst.msk [vmem:[#allocation6 + $0x30] sm:$0xff] %vm8145, %v9264
        %9287 = vst.msk [vmem:[#allocation6 + $0x38] sm:$0xff] %vm8145, %v9265
        %9288 = vst.msk [vmem:[#allocation6 + $0x40] sm:$0xff] %vm8145, %v9266
        %9289 = vst.msk [vmem:[#allocation6 + $0x48] sm:$0xff] %vm8145, %v9267
        %9290 = vst.msk [vmem:[#allocation6 + $0x50] sm:$0xff] %vm8145, %v9268
        %9291 = vst.msk [vmem:[#allocation6 + $0x58] sm:$0xff] %vm8145, %v9269
        %9292 = vst.msk [vmem:[#allocation6 + $0x60] sm:$0xff] %vm8145, %v9270
        %9293 = vst.msk [vmem:[#allocation6 + $0x68] sm:$0xff] %vm8145, %v9271
        %9294 = vst.msk [vmem:[#allocation6 + $0x70] sm:$0xff] %vm8145, %v9272
        %9295 = vst.msk [vmem:[#allocation6 + $0x78] sm:$0xff] %vm8145, %v9273
        %9296 = vst.msk [vmem:[#allocation6 + $0x80] sm:$0xff] %vm8145, %v9274
        %9297 = vst.msk [vmem:[#allocation6 + $0x88] sm:$0xff] %vm8145, %v9275
        %9298 = vst.msk [vmem:[#allocation6 + $0x90] sm:$0xff] %vm8145, %v9276
        %9299 = vst.msk [vmem:[#allocation6 + $0x98] sm:$0xff] %vm8145, %v9277
        %9300 = vst.msk [vmem:[#allocation6 + $0xa0] sm:$0xff] %vm8145, %v9278
        %9301 = vst.msk [vmem:[#allocation6 + $0xa8] sm:$0xff] %vm8145, %v9279
        %v9302 = vld [vmem:[#allocation6] ss:$3 sm:$0xff]
        %s9303 = scalar_lea.vmem [#allocation6], 24
        %v9304 = vld [vmem:[%s9303] ss:$3 sm:$0xff]
        %s9305 = scalar_lea.vmem [#allocation6], 48
        %v9306 = vld [vmem:[%s9305] ss:$3 sm:$0xff]
        %s9307 = scalar_lea.vmem [#allocation6], 72
        %v9308 = vld [vmem:[%s9307] ss:$3 sm:$0xff]
        %s9309 = scalar_lea.vmem [#allocation6], 96
        %v9310 = vld [vmem:[%s9309] ss:$3 sm:$0xff]
        %s9311 = scalar_lea.vmem [#allocation6], 120
        %v9312 = vld [vmem:[%s9311] ss:$3 sm:$0xff]
        %s9313 = scalar_lea.vmem [#allocation6], 144
        %v9314 = vld [vmem:[%s9313] ss:$3 sm:$0xff]
        %s9315 = scalar_lea.vmem [#allocation6], 168
        %v9316 = vld [vmem:[%s9315] ss:$3 sm:$0x3]
        %s9317 = scalar_lea.vmem [#allocation6], 1
        %v9318 = vld [vmem:[%s9317] ss:$3 sm:$0xff]
        %s9319 = scalar_lea.vmem [#allocation6], 25
        %v9320 = vld [vmem:[%s9319] ss:$3 sm:$0xff]
        %s9321 = scalar_lea.vmem [#allocation6], 49
        %v9322 = vld [vmem:[%s9321] ss:$3 sm:$0xff]
        %s9323 = scalar_lea.vmem [#allocation6], 73
        %v9324 = vld [vmem:[%s9323] ss:$3 sm:$0xff]
        %s9325 = scalar_lea.vmem [#allocation6], 97
        %v9326 = vld [vmem:[%s9325] ss:$3 sm:$0xff]
        %s9327 = scalar_lea.vmem [#allocation6], 121
        %v9328 = vld [vmem:[%s9327] ss:$3 sm:$0xff]
        %s9329 = scalar_lea.vmem [#allocation6], 145
        %v9330 = vld [vmem:[%s9329] ss:$3 sm:$0xff]
        %s9331 = scalar_lea.vmem [#allocation6], 169
        %v9332 = vld [vmem:[%s9331] ss:$3 sm:$0x3]
        %v9333 = vmax.f32 %v9302, %v9318
        %v9334 = vmax.f32 %v9304, %v9320
        %v9335 = vmax.f32 %v9306, %v9322
        %v9336 = vmax.f32 %v9308, %v9324
        %v9337 = vmax.f32 %v9310, %v9326
        %v9338 = vmax.f32 %v9312, %v9328
        %v9339 = vmax.f32 %v9314, %v9330
        %v9340 = vmax.f32 %v9316, %v9332
        %s9341 = scalar_lea.vmem [#allocation6], 2
        %v9342 = vld [vmem:[%s9341] ss:$3 sm:$0xff]
        %s9343 = scalar_lea.vmem [#allocation6], 26
        %v9344 = vld [vmem:[%s9343] ss:$3 sm:$0xff]
        %s9345 = scalar_lea.vmem [#allocation6], 50
        %v9346 = vld [vmem:[%s9345] ss:$3 sm:$0xff]
        %s9347 = scalar_lea.vmem [#allocation6], 74
        %v9348 = vld [vmem:[%s9347] ss:$3 sm:$0xff]
        %s9349 = scalar_lea.vmem [#allocation6], 98
        %v9350 = vld [vmem:[%s9349] ss:$3 sm:$0xff]
        %s9351 = scalar_lea.vmem [#allocation6], 122
        %v9352 = vld [vmem:[%s9351] ss:$3 sm:$0xff]
        %s9353 = scalar_lea.vmem [#allocation6], 146
        %v9354 = vld [vmem:[%s9353] ss:$3 sm:$0xff]
        %s9355 = scalar_lea.vmem [#allocation6], 170
        %v9356 = vld [vmem:[%s9355] ss:$3 sm:$0x3]
        %v9357 = vmax.f32 %v9333, %v9342
        %v9358 = vmax.f32 %v9334, %v9344
        %v9359 = vmax.f32 %v9335, %v9346
        %v9360 = vmax.f32 %v9336, %v9348
        %v9361 = vmax.f32 %v9337, %v9350
        %v9362 = vmax.f32 %v9338, %v9352
        %v9363 = vmax.f32 %v9339, %v9354
        %v9364 = vmax.f32 %v9340, %v9356
        %9365 = vst.msk [vmem:[%s358] sm:$0xff] %vm8145, %v9357
        %9366 = vst.msk [vmem:[%s358 + $0x8] sm:$0xff] %vm8145, %v9358
        %9367 = vst.msk [vmem:[%s358 + $0x10] sm:$0xff] %vm8145, %v9359
        %9368 = vst.msk [vmem:[%s358 + $0x18] sm:$0xff] %vm8145, %v9360
        %9369 = vst.msk [vmem:[%s358 + $0x20] sm:$0xff] %vm8145, %v9361
        %9370 = vst.msk [vmem:[%s358 + $0x28] sm:$0xff] %vm8145, %v9362
        %9371 = vst.msk [vmem:[%s358 + $0x30] sm:$0xff] %vm8145, %v9363
        %9372 = vst.msk [vmem:[%s358 + $0x38] sm:$0x3] %vm8212, %v9364
        %p9373 = scmp.lt.s32.totalorder %s22, 1
        %s9374 = scalar_select %p9373, %s22, 1
        %s9375 = smul.addr %s9374, 8
        %s9376 = smul.addr %s9375, 8
        %s9377 = scalar_lea.vmem %s7, %s9376
        // Predicated region
        $region73: #{cnn_forward.2} parent=47 // pred_check
          %p9378 = pneg %p192
        $region74: #{cnn_forward.2} parent=47 // pred_check_branch
          %9380 = sbr.rel (%p9378) target = $region76
        $region75: #{cnn_forward.2} parent=47 // pred_region
          _
        $region76: #{cnn_forward.2} parent=47 // pred_fallthru
          _
      $region48: #{cnn_forward.2} parent=5 // pred_fallthru
        _
      %p9381 = scmp.le.s32.totalorder 2, %s17
      // Predicated region
      $region77: #{cnn_forward.2} parent=5 // pred_check
        %p9382 = pneg %p9381
      $region78: #{cnn_forward.2} parent=5 // pred_check_branch
        %9384 = sbr.rel (%p9382) target = $region80
      $region79: #{cnn_forward.2} parent=5 // pred_region
        %s9385 = ssub.s32 %s17, 2
        // Predicated region
        $region81: #{cnn_forward.2} parent=79 // pred_check
          %p9386 = pneg %p198
        $region82: #{cnn_forward.2} parent=79 // pred_check_branch
          %9388 = sbr.rel (%p9386) target = $region84
        $region83: #{cnn_forward.2} parent=79 // pred_region
          %p9389 = scmp.lt.s32.totalorder %s23, 1
          %s9390 = scalar_select %p9389, %s23, 1
          %s9391 = smul.addr %s9390, 8
          %s9392 = smul.addr %s9391, 8
          %s9393 = scalar_lea.vmem %s7, %s9392
        $region84: #{cnn_forward.2} parent=79 // pred_fallthru
          _
      $region80: #{cnn_forward.2} parent=5 // pred_fallthru
        _
    $region6: #{cnn_forward.2} parent=1 // loop_footer
      %s21 = sadd.s32 1, %s17
    $region7: #{cnn_forward.2} parent=1 // loop_footer_branch
      %16 = sbr.rel target = $region3
    $region8: #{cnn_forward.2} parent=1 // loop_exit
      _
    %9394 = vsyncpa [#allocation8], 1
    %s9395 = scalar_lea.sflag [#allocation8], 1
    %9396 = vsyncpa %s9395, 1
    %9397 = vsyncpa [#allocation10], 1
    %9398 = vsyncpa [#allocation13], 1
    %9399 = vsyncpa [#allocation16], 1

</llo_original>
